<compile_context>
chip_gen: v5e
topology: v5e:2x2
jax: 0.10.0
libtpu: 0.0.40
codegen_flags: <defaults>
</compile_context>

<pallas_src>
import jax
import jax.numpy as jnp
from jax.experimental import pallas as pl
from jax.experimental.pallas import tpu as pltpu

NUM_BLOCKS = 3
HIDDEN = 256
THETA = 128


def _round_up(n, m):
    return ((n + m - 1) // m) * m


def _round_down(n, m):
    return (n // m) * m


# ---------------------------------------------------------------------------
# Kernel
# ---------------------------------------------------------------------------
def generic_stack_kernel(x_ref,
                         w1_ref, b1_ref, w2_ref, b2_ref, w3_ref, b3_ref,
                         wt_ref, bt_ref,
                         out_ref):
    tb, I = x_ref.shape
    residual = x_ref[...]                                  # (tb, I) f32
    tail_sum = jnp.zeros((tb, 3 * I), dtype=jnp.float32)   # [fore|back|adpt] sums

    def mm(a_bf16, w_bf16):
        # bf16 MXU matmul with f32 accumulation; LHS is already bf16.
        return jnp.dot(a_bf16, w_bf16, preferred_element_type=jnp.float32)

    def relu_bf16(acc_f32, b_f32):
        # fused bias-add + ReLU + bf16 cast for the next layer's MXU LHS.
        return jnp.maximum(acc_f32 + b_f32, 0.0).astype(jnp.bfloat16)

    # Static unroll over the 3 identical N-BEATS blocks.
    for k in range(NUM_BLOCKS):
        r = residual.astype(jnp.bfloat16)
        # theta_layer hidden stages: Linear->ReLU (->Dropout==id) x3.
        h = relu_bf16(mm(r, w1_ref[k]), b1_ref[k])
        h = relu_bf16(mm(h, w2_ref[k]), b2_ref[k])
        h = relu_bf16(mm(h, w3_ref[k]), b3_ref[k])
        # Folded tail: theta layer 4 + basis_expansion + adaptive basis, all in
        # one (256, 3*I) matmul producing [forecast | backcast | adaptive].
        tail = mm(h, wt_ref[k]) + bt_ref[k]                # (tb, 3I) f32
        tail_sum = tail_sum + tail
        residual = residual - tail[:, I:2 * I]

    # Single packed (tb, 4*I) output slab: [fore_sum | back_sum | adpt_sum | residual].
    out_ref[:, :3 * I] = tail_sum
    out_ref[:, 3 * I:] = residual


# ---------------------------------------------------------------------------
# Wrapper
# ---------------------------------------------------------------------------
def prepare_params(params):
    """One-time weight prep: fold w4 + adaptive_basis into the basis tail,
    concatenate the tail into one (256, 3*I) matrix per block, cast MXU weights
    to bf16. All folds are computed in f32 and cast once."""
    A = params["adaptive_basis"]                     # (I, I) f32
    I = A.shape[0]
    wb, bb = params["wb"], params["bb"]              # (NB, THETA, 2I), (NB, 1, 2I)
    wf, wk = wb[..., :I], wb[..., I:]                # forecast / backcast halves
    bf, bk = bb[..., :I], bb[..., I:]
    w4, b4 = params["w4"], params["b4"]              # (NB, HIDDEN, THETA), (NB, 1, THETA)

    wfore = jnp.einsum("kht,kti->khi", w4, wf)       # (NB, HIDDEN, I)
    wback = jnp.einsum("kht,kti->khi", w4, wk)
    wadpt = jnp.einsum("khi,ij->khj", wfore, A)
    bfore = jnp.einsum("kot,kti->koi", b4, wf) + bf  # (NB, 1, I)
    bback = jnp.einsum("kot,kti->koi", b4, wk) + bk
    badpt = jnp.einsum("koi,ij->koj", bfore, A)

    wt = jnp.concatenate([wfore, wback, wadpt], axis=-1)   # (NB, HIDDEN, 3I)
    bt = jnp.concatenate([bfore, bback, badpt], axis=-1)   # (NB, 1, 3I)

    cast = lambda w: w.astype(jnp.bfloat16)
    return {
        "w1": cast(params["w1"]), "b1": params["b1"],
        "w2": cast(params["w2"]), "b2": params["b2"],
        "w3": cast(params["w3"]), "b3": params["b3"],
        "wt": cast(wt), "bt": bt,
    }


def _const_spec(a):
    nd = a.ndim
    return pl.BlockSpec(a.shape, lambda *_: (0,) * nd)


def generic_stack_forward(x, prep, tile_b=512):
    B, I = x.shape

    # Pick the batch tile: multiple of 8, as large as tile_b allows, but capped
    # so the grid has >=2 steps whenever possible (v7x megacore sharding).
    tb = max(8, _round_down(min(tile_b, _round_up(B, 8)), 8))
    bp_min = _round_up(B, 8)
    if pl.cdiv(bp_min, tb) < 2 and bp_min >= 16:
        tb = max(8, _round_down(bp_min // 2, 8))
    Bp = _round_up(B, tb)
    x_p = jnp.pad(x, ((0, Bp - B), (0, 0))) if Bp != B else x

    weights = (prep["w1"], prep["b1"], prep["w2"], prep["b2"],
               prep["w3"], prep["b3"], prep["wt"], prep["bt"])

    in_specs = [pl.BlockSpec((tb, I), lambda i: (i, 0))]
    in_specs += [_const_spec(w) for w in weights]
    out_spec = pl.BlockSpec((tb, 4 * I), lambda i: (i, 0))

    flops = 2 * Bp * NUM_BLOCKS * (I * HIDDEN + 2 * HIDDEN * HIDDEN
                                   + HIDDEN * 3 * I)
    bytes_accessed = int(x_p.size * x_p.dtype.itemsize
                         + Bp * 4 * I * 4
                         + sum(int(w.size) * w.dtype.itemsize for w in weights))

    out = pl.pallas_call(
        generic_stack_kernel,
        out_shape=jax.ShapeDtypeStruct((Bp, 4 * I), jnp.float32),
        grid=(pl.cdiv(Bp, tb),),
        in_specs=in_specs,
        out_specs=out_spec,
        compiler_params=pltpu.CompilerParams(
            dimension_semantics=("parallel",),
            vmem_limit_bytes=32 * 1024 * 1024),
        cost_estimate=pl.CostEstimate(flops=flops,
                                      bytes_accessed=bytes_accessed,
                                      transcendentals=0),
    )(x_p, *weights)

    return {"forecast": out[:B, :I],
            "backcast": out[:B, I:2 * I],
            "adaptive_components": out[:B, 2 * I:3 * I],
            "residual": out[:B, 3 * I:]}


# ---------------------------------------------------------------------------
# Synthetic parameters + references
# ---------------------------------------------------------------------------
def init_params(key, input_size):
    """Deterministic synthetic params (PyTorch-Linear-style uniform fan-in init).
    Linear weights are stored transposed (in_features, out_features) so y = x@W+b."""
    basis_size = 2 * input_size

    def lin(k, fan_in, fan_out):
        bound = 1.0 / (fan_in ** 0.5)
        kw, kb = jax.random.split(k)
        w = jax.random.uniform(kw, (NUM_BLOCKS, fan_in, fan_out),
                               jnp.float32, -bound, bound)
        b = jax.random.uniform(kb, (NUM_BLOCKS, 1, fan_out),
                               jnp.float32, -bound, bound)
        return w, b

    keys = jax.random.split(key, 6)
    w1, b1 = lin(keys[0], input_size, HIDDEN)
    w2, b2 = lin(keys[1], HIDDEN, HIDDEN)
    w3, b3 = lin(keys[2], HIDDEN, HIDDEN)
    w4, b4 = lin(keys[3], HIDDEN, THETA)
    wb, bb = lin(keys[4], THETA, basis_size)
    adaptive_basis = jax.random.normal(keys[5], (input_size, input_size), jnp.float32)
    return {"w1": w1, "b1": b1, "w2": w2, "b2": b2, "w3": w3, "b3": b3,
            "w4": w4, "b4": b4, "wb": wb, "bb": bb,
            "adaptive_basis": adaptive_basis}


def reference_forward_f32(x, p):
    """Pure-f32 JAX reference mirroring the PyTorch forward exactly (eval mode)."""
    I = x.shape[1]
    residual = x
    fsum = jnp.zeros_like(x)
    bsum = jnp.zeros_like(x)
    for k in range(NUM_BLOCKS):
        h = jax.nn.relu(residual @ p["w1"][k] + p["b1"][k])
        h = jax.nn.relu(h @ p["w2"][k] + p["b2"][k])
        h = jax.nn.relu(h @ p["w3"][k] + p["b3"][k])
        theta = h @ p["w4"][k] + p["b4"][k]
        basis = theta @ p["wb"][k] + p["bb"][k]
        forecast, backcast = basis[:, :I], basis[:, I:]
        fsum = fsum + forecast
        bsum = bsum + backcast
        residual = residual - backcast
    adaptive = fsum @ p["adaptive_basis"]
    return {"forecast": fsum, "backcast": bsum,
            "adaptive_components": adaptive, "residual": residual}


def reference_forward_bf16(x, prep):
    """Mirrors the kernel's exact math (bf16 activations / weights on the MXU,
    f32 accumulation, folded w4 + adaptive basis, packed tail)."""
    I = x.shape[1]

    def mm(a, w):
        return jnp.dot(a, w, preferred_element_type=jnp.float32)

    def act(acc, b):
        return jnp.maximum(acc + b, 0.0).astype(jnp.bfloat16)

    residual = x
    tail_sum = jnp.zeros((x.shape[0], 3 * I), jnp.float32)
    for k in range(NUM_BLOCKS):
        r = residual.astype(jnp.bfloat16)
        h = act(mm(r, prep["w1"][k]), prep["b1"][k])
        h = act(mm(h, prep["w2"][k]), prep["b2"][k])
        h = act(mm(h, prep["w3"][k]), prep["b3"][k])
        tail = mm(h, prep["wt"][k]) + prep["bt"][k]
        tail_sum = tail_sum + tail
        residual = residual - tail[:, I:2 * I]
    return {"forecast": tail_sum[:, :I],
            "backcast": tail_sum[:, I:2 * I],
            "adaptive_components": tail_sum[:, 2 * I:],
            "residual": residual}


# ---------------------------------------------------------------------------
if __name__ == "__main__":
    batch = 512          # >=2 grid steps at tb=256 -> exercises the batch pipeline
    input_size = 16

    key = jax.random.PRNGKey(0)
    kx, kp = jax.random.split(key)
    x = jax.random.normal(kx, (batch, input_size), jnp.float32)
    params = init_params(kp, input_size)
    prep = prepare_params(params)

    fwd = jax.jit(generic_stack_forward, static_argnames=("tile_b",))
    out = fwd(x, prep, tile_b=512)
    jax.block_until_ready(out)

    ref_k = reference_forward_bf16(x, prep)      # same dtype policy / factorization as kernel
    ref_f = reference_forward_f32(x, params)     # exact module (eval) semantics
    for name in ("forecast", "backcast", "adaptive_components", "residual"):
        assert jnp.allclose(out[name], ref_k[name], atol=1e-3, rtol=1e-3), name
        assert jnp.allclose(out[name], ref_f[name], atol=5e-2, rtol=5e-2), name + "_vs_f32"

    print("KERNEL_OK")
</pallas_src>

<mosaic_0001>
module attributes {stable_mosaic.version = 11 : i64} {
  func.func @generic_stack_kernel(%arg0: i32, %arg1: memref<256x16xf32, #tpu.memory_space<vmem>>, %arg2: memref<3x16x256xbf16, #tpu.memory_space<vmem>>, %arg3: memref<3x1x256xf32, #tpu.memory_space<vmem>>, %arg4: memref<3x256x256xbf16, #tpu.memory_space<vmem>>, %arg5: memref<3x1x256xf32, #tpu.memory_space<vmem>>, %arg6: memref<3x256x256xbf16, #tpu.memory_space<vmem>>, %arg7: memref<3x1x256xf32, #tpu.memory_space<vmem>>, %arg8: memref<3x256x48xbf16, #tpu.memory_space<vmem>>, %arg9: memref<3x1x48xf32, #tpu.memory_space<vmem>>, %arg10: memref<256x64xf32, #tpu.memory_space<vmem>>) attributes {dimension_semantics = [#tpu.dimension_semantics<parallel>], iteration_bounds = array<i64: 2>, scalar_prefetch = 0 : i64, scratch_operands = 0 : i64, tpu.core_type = #tpu.core_type<tc>, window_params = [{transform_indices = @transform_0, window_bounds = array<i64: 256, 16>}, {pipeline_mode = #tpu.pipeline_mode<synchronous>, transform_indices = @transform_1, window_bounds = array<i64: 3, 16, 256>}, {pipeline_mode = #tpu.pipeline_mode<synchronous>, transform_indices = @transform_2, window_bounds = array<i64: 3, 1, 256>}, {pipeline_mode = #tpu.pipeline_mode<synchronous>, transform_indices = @transform_3, window_bounds = array<i64: 3, 256, 256>}, {pipeline_mode = #tpu.pipeline_mode<synchronous>, transform_indices = @transform_4, window_bounds = array<i64: 3, 1, 256>}, {pipeline_mode = #tpu.pipeline_mode<synchronous>, transform_indices = @transform_5, window_bounds = array<i64: 3, 256, 256>}, {pipeline_mode = #tpu.pipeline_mode<synchronous>, transform_indices = @transform_6, window_bounds = array<i64: 3, 1, 256>}, {pipeline_mode = #tpu.pipeline_mode<synchronous>, transform_indices = @transform_7, window_bounds = array<i64: 3, 256, 48>}, {pipeline_mode = #tpu.pipeline_mode<synchronous>, transform_indices = @transform_8, window_bounds = array<i64: 3, 1, 48>}, {transform_indices = @transform_9, window_bounds = array<i64: 256, 64>}]} {
    %c0 = arith.constant 0 : index
    %c0_0 = arith.constant 0 : index
    %0 = vector.load %arg1[%c0, %c0_0] : memref<256x16xf32, #tpu.memory_space<vmem>>, vector<256x16xf32>
    %cst = arith.constant 0.000000e+00 : f32
    %1 = vector.broadcast %cst : f32 to vector<256x48xf32>
    %2 = arith.truncf %0 : vector<256x16xf32> to vector<256x16xbf16>
    %c0_1 = arith.constant 0 : index
    %c0_2 = arith.constant 0 : index
    %c0_3 = arith.constant 0 : index
    %3 = vector.load %arg2[%c0_1, %c0_2, %c0_3] : memref<3x16x256xbf16, #tpu.memory_space<vmem>>, vector<1x16x256xbf16>
    %4 = vector.shape_cast %3 : vector<1x16x256xbf16> to vector<16x256xbf16>
    %cst_4 = arith.constant dense<0.000000e+00> : vector<256x256xf32>
    %5 = tpu.matmul %2, %4, %cst_4 {dimension_numbers = #tpu.dot_dimension_numbers<[1], [0], [0], [1], [0, 0, 1, 1], [], []>} : vector<256x16xbf16>, vector<16x256xbf16>, vector<256x256xf32> -> vector<256x256xf32>
    %c0_5 = arith.constant 0 : index
    %c0_6 = arith.constant 0 : index
    %c0_7 = arith.constant 0 : index
    %6 = vector.load %arg3[%c0_5, %c0_6, %c0_7] : memref<3x1x256xf32, #tpu.memory_space<vmem>>, vector<1x1x256xf32>
    %7 = vector.shape_cast %6 : vector<1x1x256xf32> to vector<1x256xf32>
    %8 = vector.broadcast %7 : vector<1x256xf32> to vector<256x256xf32>
    %9 = arith.addf %5, %8 : vector<256x256xf32>
    %cst_8 = arith.constant 0.000000e+00 : f32
    %10 = vector.broadcast %cst_8 : f32 to vector<256x256xf32>
    %11 = arith.maximumf %9, %10 : vector<256x256xf32>
    %12 = arith.truncf %11 : vector<256x256xf32> to vector<256x256xbf16>
    %c0_9 = arith.constant 0 : index
    %c0_10 = arith.constant 0 : index
    %c0_11 = arith.constant 0 : index
    %13 = vector.load %arg4[%c0_9, %c0_10, %c0_11] : memref<3x256x256xbf16, #tpu.memory_space<vmem>>, vector<1x256x256xbf16>
    %14 = vector.shape_cast %13 : vector<1x256x256xbf16> to vector<256x256xbf16>
    %cst_12 = arith.constant dense<0.000000e+00> : vector<256x256xf32>
    %15 = tpu.matmul %12, %14, %cst_12 {dimension_numbers = #tpu.dot_dimension_numbers<[1], [0], [0], [1], [0, 0, 1, 1], [], []>} : vector<256x256xbf16>, vector<256x256xbf16>, vector<256x256xf32> -> vector<256x256xf32>
    %c0_13 = arith.constant 0 : index
    %c0_14 = arith.constant 0 : index
    %c0_15 = arith.constant 0 : index
    %16 = vector.load %arg5[%c0_13, %c0_14, %c0_15] : memref<3x1x256xf32, #tpu.memory_space<vmem>>, vector<1x1x256xf32>
    %17 = vector.shape_cast %16 : vector<1x1x256xf32> to vector<1x256xf32>
    %18 = vector.broadcast %17 : vector<1x256xf32> to vector<256x256xf32>
    %19 = arith.addf %15, %18 : vector<256x256xf32>
    %cst_16 = arith.constant 0.000000e+00 : f32
    %20 = vector.broadcast %cst_16 : f32 to vector<256x256xf32>
    %21 = arith.maximumf %19, %20 : vector<256x256xf32>
    %22 = arith.truncf %21 : vector<256x256xf32> to vector<256x256xbf16>
    %c0_17 = arith.constant 0 : index
    %c0_18 = arith.constant 0 : index
    %c0_19 = arith.constant 0 : index
    %23 = vector.load %arg6[%c0_17, %c0_18, %c0_19] : memref<3x256x256xbf16, #tpu.memory_space<vmem>>, vector<1x256x256xbf16>
    %24 = vector.shape_cast %23 : vector<1x256x256xbf16> to vector<256x256xbf16>
    %cst_20 = arith.constant dense<0.000000e+00> : vector<256x256xf32>
    %25 = tpu.matmul %22, %24, %cst_20 {dimension_numbers = #tpu.dot_dimension_numbers<[1], [0], [0], [1], [0, 0, 1, 1], [], []>} : vector<256x256xbf16>, vector<256x256xbf16>, vector<256x256xf32> -> vector<256x256xf32>
    %c0_21 = arith.constant 0 : index
    %c0_22 = arith.constant 0 : index
    %c0_23 = arith.constant 0 : index
    %26 = vector.load %arg7[%c0_21, %c0_22, %c0_23] : memref<3x1x256xf32, #tpu.memory_space<vmem>>, vector<1x1x256xf32>
    %27 = vector.shape_cast %26 : vector<1x1x256xf32> to vector<1x256xf32>
    %28 = vector.broadcast %27 : vector<1x256xf32> to vector<256x256xf32>
    %29 = arith.addf %25, %28 : vector<256x256xf32>
    %cst_24 = arith.constant 0.000000e+00 : f32
    %30 = vector.broadcast %cst_24 : f32 to vector<256x256xf32>
    %31 = arith.maximumf %29, %30 : vector<256x256xf32>
    %32 = arith.truncf %31 : vector<256x256xf32> to vector<256x256xbf16>
    %c0_25 = arith.constant 0 : index
    %c0_26 = arith.constant 0 : index
    %c0_27 = arith.constant 0 : index
    %33 = vector.load %arg8[%c0_25, %c0_26, %c0_27] : memref<3x256x48xbf16, #tpu.memory_space<vmem>>, vector<1x256x48xbf16>
    %34 = vector.shape_cast %33 : vector<1x256x48xbf16> to vector<256x48xbf16>
    %cst_28 = arith.constant dense<0.000000e+00> : vector<256x48xf32>
    %35 = tpu.matmul %32, %34, %cst_28 {dimension_numbers = #tpu.dot_dimension_numbers<[1], [0], [0], [1], [0, 0, 1, 1], [], []>} : vector<256x256xbf16>, vector<256x48xbf16>, vector<256x48xf32> -> vector<256x48xf32>
    %c0_29 = arith.constant 0 : index
    %c0_30 = arith.constant 0 : index
    %c0_31 = arith.constant 0 : index
    %36 = vector.load %arg9[%c0_29, %c0_30, %c0_31] : memref<3x1x48xf32, #tpu.memory_space<vmem>>, vector<1x1x48xf32>
    %37 = vector.shape_cast %36 : vector<1x1x48xf32> to vector<1x48xf32>
    %38 = vector.broadcast %37 : vector<1x48xf32> to vector<256x48xf32>
    %39 = arith.addf %35, %38 : vector<256x48xf32>
    %40 = arith.addf %1, %39 : vector<256x48xf32>
    %41 = vector.extract_strided_slice %39 {offsets = [0, 16], sizes = [256, 16], strides = [1, 1]} : vector<256x48xf32> to vector<256x16xf32>
    %42 = arith.subf %0, %41 : vector<256x16xf32>
    %43 = arith.truncf %42 : vector<256x16xf32> to vector<256x16xbf16>
    %c1 = arith.constant 1 : index
    %c0_32 = arith.constant 0 : index
    %c0_33 = arith.constant 0 : index
    %44 = vector.load %arg2[%c1, %c0_32, %c0_33] : memref<3x16x256xbf16, #tpu.memory_space<vmem>>, vector<1x16x256xbf16>
    %45 = vector.shape_cast %44 : vector<1x16x256xbf16> to vector<16x256xbf16>
    %cst_34 = arith.constant dense<0.000000e+00> : vector<256x256xf32>
    %46 = tpu.matmul %43, %45, %cst_34 {dimension_numbers = #tpu.dot_dimension_numbers<[1], [0], [0], [1], [0, 0, 1, 1], [], []>} : vector<256x16xbf16>, vector<16x256xbf16>, vector<256x256xf32> -> vector<256x256xf32>
    %c1_35 = arith.constant 1 : index
    %c0_36 = arith.constant 0 : index
    %c0_37 = arith.constant 0 : index
    %47 = vector.load %arg3[%c1_35, %c0_36, %c0_37] : memref<3x1x256xf32, #tpu.memory_space<vmem>>, vector<1x1x256xf32>
    %48 = vector.shape_cast %47 : vector<1x1x256xf32> to vector<1x256xf32>
    %49 = vector.broadcast %48 : vector<1x256xf32> to vector<256x256xf32>
    %50 = arith.addf %46, %49 : vector<256x256xf32>
    %cst_38 = arith.constant 0.000000e+00 : f32
    %51 = vector.broadcast %cst_38 : f32 to vector<256x256xf32>
    %52 = arith.maximumf %50, %51 : vector<256x256xf32>
    %53 = arith.truncf %52 : vector<256x256xf32> to vector<256x256xbf16>
    %c1_39 = arith.constant 1 : index
    %c0_40 = arith.constant 0 : index
    %c0_41 = arith.constant 0 : index
    %54 = vector.load %arg4[%c1_39, %c0_40, %c0_41] : memref<3x256x256xbf16, #tpu.memory_space<vmem>>, vector<1x256x256xbf16>
    %55 = vector.shape_cast %54 : vector<1x256x256xbf16> to vector<256x256xbf16>
    %cst_42 = arith.constant dense<0.000000e+00> : vector<256x256xf32>
    %56 = tpu.matmul %53, %55, %cst_42 {dimension_numbers = #tpu.dot_dimension_numbers<[1], [0], [0], [1], [0, 0, 1, 1], [], []>} : vector<256x256xbf16>, vector<256x256xbf16>, vector<256x256xf32> -> vector<256x256xf32>
    %c1_43 = arith.constant 1 : index
    %c0_44 = arith.constant 0 : index
    %c0_45 = arith.constant 0 : index
    %57 = vector.load %arg5[%c1_43, %c0_44, %c0_45] : memref<3x1x256xf32, #tpu.memory_space<vmem>>, vector<1x1x256xf32>
    %58 = vector.shape_cast %57 : vector<1x1x256xf32> to vector<1x256xf32>
    %59 = vector.broadcast %58 : vector<1x256xf32> to vector<256x256xf32>
    %60 = arith.addf %56, %59 : vector<256x256xf32>
    %cst_46 = arith.constant 0.000000e+00 : f32
    %61 = vector.broadcast %cst_46 : f32 to vector<256x256xf32>
    %62 = arith.maximumf %60, %61 : vector<256x256xf32>
    %63 = arith.truncf %62 : vector<256x256xf32> to vector<256x256xbf16>
    %c1_47 = arith.constant 1 : index
    %c0_48 = arith.constant 0 : index
    %c0_49 = arith.constant 0 : index
    %64 = vector.load %arg6[%c1_47, %c0_48, %c0_49] : memref<3x256x256xbf16, #tpu.memory_space<vmem>>, vector<1x256x256xbf16>
    %65 = vector.shape_cast %64 : vector<1x256x256xbf16> to vector<256x256xbf16>
    %cst_50 = arith.constant dense<0.000000e+00> : vector<256x256xf32>
    %66 = tpu.matmul %63, %65, %cst_50 {dimension_numbers = #tpu.dot_dimension_numbers<[1], [0], [0], [1], [0, 0, 1, 1], [], []>} : vector<256x256xbf16>, vector<256x256xbf16>, vector<256x256xf32> -> vector<256x256xf32>
    %c1_51 = arith.constant 1 : index
    %c0_52 = arith.constant 0 : index
    %c0_53 = arith.constant 0 : index
    %67 = vector.load %arg7[%c1_51, %c0_52, %c0_53] : memref<3x1x256xf32, #tpu.memory_space<vmem>>, vector<1x1x256xf32>
    %68 = vector.shape_cast %67 : vector<1x1x256xf32> to vector<1x256xf32>
    %69 = vector.broadcast %68 : vector<1x256xf32> to vector<256x256xf32>
    %70 = arith.addf %66, %69 : vector<256x256xf32>
    %cst_54 = arith.constant 0.000000e+00 : f32
    %71 = vector.broadcast %cst_54 : f32 to vector<256x256xf32>
    %72 = arith.maximumf %70, %71 : vector<256x256xf32>
    %73 = arith.truncf %72 : vector<256x256xf32> to vector<256x256xbf16>
    %c1_55 = arith.constant 1 : index
    %c0_56 = arith.constant 0 : index
    %c0_57 = arith.constant 0 : index
    %74 = vector.load %arg8[%c1_55, %c0_56, %c0_57] : memref<3x256x48xbf16, #tpu.memory_space<vmem>>, vector<1x256x48xbf16>
    %75 = vector.shape_cast %74 : vector<1x256x48xbf16> to vector<256x48xbf16>
    %cst_58 = arith.constant dense<0.000000e+00> : vector<256x48xf32>
    %76 = tpu.matmul %73, %75, %cst_58 {dimension_numbers = #tpu.dot_dimension_numbers<[1], [0], [0], [1], [0, 0, 1, 1], [], []>} : vector<256x256xbf16>, vector<256x48xbf16>, vector<256x48xf32> -> vector<256x48xf32>
    %c1_59 = arith.constant 1 : index
    %c0_60 = arith.constant 0 : index
    %c0_61 = arith.constant 0 : index
    %77 = vector.load %arg9[%c1_59, %c0_60, %c0_61] : memref<3x1x48xf32, #tpu.memory_space<vmem>>, vector<1x1x48xf32>
    %78 = vector.shape_cast %77 : vector<1x1x48xf32> to vector<1x48xf32>
    %79 = vector.broadcast %78 : vector<1x48xf32> to vector<256x48xf32>
    %80 = arith.addf %76, %79 : vector<256x48xf32>
    %81 = arith.addf %40, %80 : vector<256x48xf32>
    %82 = vector.extract_strided_slice %80 {offsets = [0, 16], sizes = [256, 16], strides = [1, 1]} : vector<256x48xf32> to vector<256x16xf32>
    %83 = arith.subf %42, %82 : vector<256x16xf32>
    %84 = arith.truncf %83 : vector<256x16xf32> to vector<256x16xbf16>
    %c2 = arith.constant 2 : index
    %c0_62 = arith.constant 0 : index
    %c0_63 = arith.constant 0 : index
    %85 = vector.load %arg2[%c2, %c0_62, %c0_63] : memref<3x16x256xbf16, #tpu.memory_space<vmem>>, vector<1x16x256xbf16>
    %86 = vector.shape_cast %85 : vector<1x16x256xbf16> to vector<16x256xbf16>
    %cst_64 = arith.constant dense<0.000000e+00> : vector<256x256xf32>
    %87 = tpu.matmul %84, %86, %cst_64 {dimension_numbers = #tpu.dot_dimension_numbers<[1], [0], [0], [1], [0, 0, 1, 1], [], []>} : vector<256x16xbf16>, vector<16x256xbf16>, vector<256x256xf32> -> vector<256x256xf32>
    %c2_65 = arith.constant 2 : index
    %c0_66 = arith.constant 0 : index
    %c0_67 = arith.constant 0 : index
    %88 = vector.load %arg3[%c2_65, %c0_66, %c0_67] : memref<3x1x256xf32, #tpu.memory_space<vmem>>, vector<1x1x256xf32>
    %89 = vector.shape_cast %88 : vector<1x1x256xf32> to vector<1x256xf32>
    %90 = vector.broadcast %89 : vector<1x256xf32> to vector<256x256xf32>
    %91 = arith.addf %87, %90 : vector<256x256xf32>
    %cst_68 = arith.constant 0.000000e+00 : f32
    %92 = vector.broadcast %cst_68 : f32 to vector<256x256xf32>
    %93 = arith.maximumf %91, %92 : vector<256x256xf32>
    %94 = arith.truncf %93 : vector<256x256xf32> to vector<256x256xbf16>
    %c2_69 = arith.constant 2 : index
    %c0_70 = arith.constant 0 : index
    %c0_71 = arith.constant 0 : index
    %95 = vector.load %arg4[%c2_69, %c0_70, %c0_71] : memref<3x256x256xbf16, #tpu.memory_space<vmem>>, vector<1x256x256xbf16>
    %96 = vector.shape_cast %95 : vector<1x256x256xbf16> to vector<256x256xbf16>
    %cst_72 = arith.constant dense<0.000000e+00> : vector<256x256xf32>
    %97 = tpu.matmul %94, %96, %cst_72 {dimension_numbers = #tpu.dot_dimension_numbers<[1], [0], [0], [1], [0, 0, 1, 1], [], []>} : vector<256x256xbf16>, vector<256x256xbf16>, vector<256x256xf32> -> vector<256x256xf32>
    %c2_73 = arith.constant 2 : index
    %c0_74 = arith.constant 0 : index
    %c0_75 = arith.constant 0 : index
    %98 = vector.load %arg5[%c2_73, %c0_74, %c0_75] : memref<3x1x256xf32, #tpu.memory_space<vmem>>, vector<1x1x256xf32>
    %99 = vector.shape_cast %98 : vector<1x1x256xf32> to vector<1x256xf32>
    %100 = vector.broadcast %99 : vector<1x256xf32> to vector<256x256xf32>
    %101 = arith.addf %97, %100 : vector<256x256xf32>
    %cst_76 = arith.constant 0.000000e+00 : f32
    %102 = vector.broadcast %cst_76 : f32 to vector<256x256xf32>
    %103 = arith.maximumf %101, %102 : vector<256x256xf32>
    %104 = arith.truncf %103 : vector<256x256xf32> to vector<256x256xbf16>
    %c2_77 = arith.constant 2 : index
    %c0_78 = arith.constant 0 : index
    %c0_79 = arith.constant 0 : index
    %105 = vector.load %arg6[%c2_77, %c0_78, %c0_79] : memref<3x256x256xbf16, #tpu.memory_space<vmem>>, vector<1x256x256xbf16>
    %106 = vector.shape_cast %105 : vector<1x256x256xbf16> to vector<256x256xbf16>
    %cst_80 = arith.constant dense<0.000000e+00> : vector<256x256xf32>
    %107 = tpu.matmul %104, %106, %cst_80 {dimension_numbers = #tpu.dot_dimension_numbers<[1], [0], [0], [1], [0, 0, 1, 1], [], []>} : vector<256x256xbf16>, vector<256x256xbf16>, vector<256x256xf32> -> vector<256x256xf32>
    %c2_81 = arith.constant 2 : index
    %c0_82 = arith.constant 0 : index
    %c0_83 = arith.constant 0 : index
    %108 = vector.load %arg7[%c2_81, %c0_82, %c0_83] : memref<3x1x256xf32, #tpu.memory_space<vmem>>, vector<1x1x256xf32>
    %109 = vector.shape_cast %108 : vector<1x1x256xf32> to vector<1x256xf32>
    %110 = vector.broadcast %109 : vector<1x256xf32> to vector<256x256xf32>
    %111 = arith.addf %107, %110 : vector<256x256xf32>
    %cst_84 = arith.constant 0.000000e+00 : f32
    %112 = vector.broadcast %cst_84 : f32 to vector<256x256xf32>
    %113 = arith.maximumf %111, %112 : vector<256x256xf32>
    %114 = arith.truncf %113 : vector<256x256xf32> to vector<256x256xbf16>
    %c2_85 = arith.constant 2 : index
    %c0_86 = arith.constant 0 : index
    %c0_87 = arith.constant 0 : index
    %115 = vector.load %arg8[%c2_85, %c0_86, %c0_87] : memref<3x256x48xbf16, #tpu.memory_space<vmem>>, vector<1x256x48xbf16>
    %116 = vector.shape_cast %115 : vector<1x256x48xbf16> to vector<256x48xbf16>
    %cst_88 = arith.constant dense<0.000000e+00> : vector<256x48xf32>
    %117 = tpu.matmul %114, %116, %cst_88 {dimension_numbers = #tpu.dot_dimension_numbers<[1], [0], [0], [1], [0, 0, 1, 1], [], []>} : vector<256x256xbf16>, vector<256x48xbf16>, vector<256x48xf32> -> vector<256x48xf32>
    %c2_89 = arith.constant 2 : index
    %c0_90 = arith.constant 0 : index
    %c0_91 = arith.constant 0 : index
    %118 = vector.load %arg9[%c2_89, %c0_90, %c0_91] : memref<3x1x48xf32, #tpu.memory_space<vmem>>, vector<1x1x48xf32>
    %119 = vector.shape_cast %118 : vector<1x1x48xf32> to vector<1x48xf32>
    %120 = vector.broadcast %119 : vector<1x48xf32> to vector<256x48xf32>
    %121 = arith.addf %117, %120 : vector<256x48xf32>
    %122 = arith.addf %81, %121 : vector<256x48xf32>
    %123 = vector.extract_strided_slice %121 {offsets = [0, 16], sizes = [256, 16], strides = [1, 1]} : vector<256x48xf32> to vector<256x16xf32>
    %124 = arith.subf %83, %123 : vector<256x16xf32>
    %c0_92 = arith.constant 0 : index
    %c0_93 = arith.constant 0 : index
    %125 = vector.load %arg10[%c0_92, %c0_93] : memref<256x64xf32, #tpu.memory_space<vmem>>, vector<256x48xf32>
    tpu.vector_store %arg10[%c0_92, %c0_93], %122 {strides = array<i32>} : memref<256x64xf32, #tpu.memory_space<vmem>>, vector<256x48xf32>,
    %c0_94 = arith.constant 0 : index
    %c48 = arith.constant 48 : index
    %126 = vector.load %arg10[%c0_94, %c48] : memref<256x64xf32, #tpu.memory_space<vmem>>, vector<256x16xf32>
    tpu.vector_store %arg10[%c0_94, %c48], %124 {strides = array<i32>} : memref<256x64xf32, #tpu.memory_space<vmem>>, vector<256x16xf32>,
    return
  }
  func.func @transform_0(%arg0: i32) -> (i32, i32) {
    %c0_i32 = arith.constant 0 : i32
    %c0_i32_0 = arith.constant 0 : i32
    return %arg0, %c0_i32 : i32, i32
  }
  func.func @transform_1(%arg0: i32) -> (i32, i32, i32) {
    %c0_i32 = arith.constant 0 : i32
    %c0_i32_0 = arith.constant 0 : i32
    %c0_i32_1 = arith.constant 0 : i32
    %c0_i32_2 = arith.constant 0 : i32
    return %c0_i32, %c0_i32_0, %c0_i32_1 : i32, i32, i32
  }
  func.func @transform_2(%arg0: i32) -> (i32, i32, i32) {
    %c0_i32 = arith.constant 0 : i32
    %c0_i32_0 = arith.constant 0 : i32
    %c0_i32_1 = arith.constant 0 : i32
    %c0_i32_2 = arith.constant 0 : i32
    return %c0_i32, %c0_i32_0, %c0_i32_1 : i32, i32, i32
  }
  func.func @transform_3(%arg0: i32) -> (i32, i32, i32) {
    %c0_i32 = arith.constant 0 : i32
    %c0_i32_0 = arith.constant 0 : i32
    %c0_i32_1 = arith.constant 0 : i32
    %c0_i32_2 = arith.constant 0 : i32
    return %c0_i32, %c0_i32_0, %c0_i32_1 : i32, i32, i32
  }
  func.func @transform_4(%arg0: i32) -> (i32, i32, i32) {
    %c0_i32 = arith.constant 0 : i32
    %c0_i32_0 = arith.constant 0 : i32
    %c0_i32_1 = arith.constant 0 : i32
    %c0_i32_2 = arith.constant 0 : i32
    return %c0_i32, %c0_i32_0, %c0_i32_1 : i32, i32, i32
  }
  func.func @transform_5(%arg0: i32) -> (i32, i32, i32) {
    %c0_i32 = arith.constant 0 : i32
    %c0_i32_0 = arith.constant 0 : i32
    %c0_i32_1 = arith.constant 0 : i32
    %c0_i32_2 = arith.constant 0 : i32
    return %c0_i32, %c0_i32_0, %c0_i32_1 : i32, i32, i32
  }
  func.func @transform_6(%arg0: i32) -> (i32, i32, i32) {
    %c0_i32 = arith.constant 0 : i32
    %c0_i32_0 = arith.constant 0 : i32
    %c0_i32_1 = arith.constant 0 : i32
    %c0_i32_2 = arith.constant 0 : i32
    return %c0_i32, %c0_i32_0, %c0_i32_1 : i32, i32, i32
  }
  func.func @transform_7(%arg0: i32) -> (i32, i32, i32) {
    %c0_i32 = arith.constant 0 : i32
    %c0_i32_0 = arith.constant 0 : i32
    %c0_i32_1 = arith.constant 0 : i32
    %c0_i32_2 = arith.constant 0 : i32
    return %c0_i32, %c0_i32_0, %c0_i32_1 : i32, i32, i32
  }
  func.func @transform_8(%arg0: i32) -> (i32, i32, i32) {
    %c0_i32 = arith.constant 0 : i32
    %c0_i32_0 = arith.constant 0 : i32
    %c0_i32_1 = arith.constant 0 : i32
    %c0_i32_2 = arith.constant 0 : i32
    return %c0_i32, %c0_i32_0, %c0_i32_1 : i32, i32, i32
  }
  func.func @transform_9(%arg0: i32) -> (i32, i32) {
    %c0_i32 = arith.constant 0 : i32
    %c0_i32_0 = arith.constant 0 : i32
    return %arg0, %c0_i32 : i32, i32
  }
}

</mosaic_0001>

<llo_original>
// kernel: generic_stack_forward.1
$region0: #{generic_stack_forward.1}
  #allocation0 [shape = 'u32[]', space=smem, size = 0x4, offset = 0x4, fixed_abs, tag = 'smem constant byte address 0x4 - core index']
  #allocation1 [shape = 'u32[72,128]{1,0:T(1,128)}', space=vmem, size = 0x9000, scoped, tag = 'internal scratch']
  %s0 = inlined_call_operand.vmem [shape: f32[512,16], index: 0, kind: input, shape index: {}]
  %s1 = inlined_call_operand.vmem [shape: bf16[3,16,256], index: 1, kind: input, shape index: {}]
  %s2 = inlined_call_operand.vmem [shape: f32[3,1,256], index: 2, kind: input, shape index: {}]
  %s3 = inlined_call_operand.vmem [shape: bf16[3,256,256], index: 3, kind: input, shape index: {}]
  %s4 = inlined_call_operand.vmem [shape: f32[3,1,256], index: 4, kind: input, shape index: {}]
  %s5 = inlined_call_operand.hbm [shape: bf16[3,256,256], index: 5, kind: input, shape index: {}]
  %s6 = inlined_call_operand.vmem [shape: f32[3,1,256], index: 6, kind: input, shape index: {}]
  %s7 = inlined_call_operand.vmem [shape: bf16[3,256,48], index: 7, kind: input, shape index: {}]
  %s8 = inlined_call_operand.vmem [shape: f32[3,1,48], index: 8, kind: input, shape index: {}]
  %s9 = inlined_call_operand.vmem [shape: f32[512,64], index: 9, kind: output, shape index: {}]
  %s10 = sld [smem:[#allocation0]]
  $region73: #{generic_stack_forward.1} parent=0
    _
  %s12 = ssub.s32 1, %s10
  %s13 = scalar_select 0, %s12, %s10
  $region1: #{generic_stack_forward.1} parent=0
    #allocation2 [shape = 'u8[393216]{0}', space=vmem, size = 0x60000, scoped, tag = 'input window, operand 5, single buffered']
    #allocation3 [shape = 's32[2]{0}', space=sflag, size = 0x8, scoped, tag = 'scoped memory for generic_stack_forward.1']
    %14 = vsyncpa [#allocation3], 0
    loop: start=0, step=1, limit=4
    $region2: #{generic_stack_forward.1} parent=1 // loop_pre_header
      _
    $region3: #{generic_stack_forward.1} parent=1 // loop_header
      %s16 = sphi 0, %s20
      %p17 = scmp.ge.s32.totalorder %s16, 4
      %s26 = sphi 0, %s28
      %s29 = sphi 0, %s26
      %s30 = sphi 0, %s29
      %s46 = sphi 0, %s30
      %s50 = sphi 0, %s50
      %s52 = sphi 0, %s50
      %s53 = sphi 0, %s52
      %s67 = sphi 0, %s53
      %s71 = sphi 0, %s71
      %s73 = sphi 0, %s71
      %s74 = sphi 0, %s73
      %s88 = sphi 0, %s74
      %s92 = sphi 0, %s92
      %s94 = sphi 0, %s92
      %s95 = sphi 0, %s94
      %s109 = sphi 0, %s95
      %s113 = sphi 0, %s113
      %s115 = sphi 0, %s113
      %s116 = sphi 0, %s115
      %s130 = sphi 0, %s116
      %s134 = sphi 0, %s134
      %s136 = sphi 0, %s134
      %s137 = sphi 0, %s136
      %s151 = sphi 0, %s137
      %s155 = sphi 0, %s155
      %s157 = sphi 0, %s155
      %s158 = sphi 0, %s157
      %s172 = sphi 0, %s158
      %s176 = sphi 0, %s176
      %s178 = sphi 0, %s176
      %s179 = sphi 0, %s178
      %s193 = sphi 0, %s179
      %s197 = sphi 0, %s197
      %s199 = sphi 0, %s197
      %s200 = sphi 0, %s199
      %s214 = sphi 0, %s200
      %s220 = sphi 0, %s222
      %s223 = sphi 0, %s220
      %s224 = sphi 0, %s223
      %s240 = sphi 0, %s224
    $region4: #{generic_stack_forward.1} parent=1 // loop_header_branch
      %19 = sbr.rel (%p17) target = $region8
    $region5: #{generic_stack_forward.1} parent=1 // loop_body
      %s21 = ssub.s32 %s16, 1
      %s22 = ssub.s32 %s16, 2
      %s23 = sadd.s32 %s16, 1
      %s24 = ssub.s32 %s16, %s23
      %p25 = scmp.eq.s32.totalorder %s24, 0
      %s27 = sadd.s32 %s26, 1
      %s28 = scalar_select %p25, %s26, %s27
      %p31 = pneg %p25
      %p32 = scmp.eq.s32.totalorder %s16, 1
      %p33 = por %p31, %p32
      %p34 = scmp.ne.s32.totalorder %s26, %s29
      %p35 = scmp.eq.s32.totalorder %s16, 0
      %p36 = por %p34, %p35
      %p37 = scmp.ne.s32.totalorder %s26, %s29
      %p38 = scmp.eq.s32.totalorder %s21, 1
      %p39 = por %p37, %p38
      %p40 = scmp.ne.s32.totalorder %s29, %s30
      %p41 = scmp.eq.s32.totalorder %s21, 0
      %p42 = por %p40, %p41
      %p43 = scmp.ne.s32.totalorder %s29, %s30
      %p44 = scmp.eq.s32.totalorder %s22, 1
      %p45 = por %p43, %p44
      %p47 = scmp.ne.s32.totalorder %s30, %s46
      %p48 = scmp.eq.s32.totalorder %s22, 0
      %p49 = por %p47, %p48
      %s51 = sadd.s32 %s50, 1
      %p54 = scmp.eq.s32.totalorder %s16, 1
      %p55 = scmp.ne.s32.totalorder %s50, %s52
      %p56 = scmp.eq.s32.totalorder %s16, 0
      %p57 = por %p55, %p56
      %p58 = scmp.ne.s32.totalorder %s50, %s52
      %p59 = scmp.eq.s32.totalorder %s21, 1
      %p60 = por %p58, %p59
      %p61 = scmp.ne.s32.totalorder %s52, %s53
      %p62 = scmp.eq.s32.totalorder %s21, 0
      %p63 = por %p61, %p62
      %p64 = scmp.ne.s32.totalorder %s52, %s53
      %p65 = scmp.eq.s32.totalorder %s22, 1
      %p66 = por %p64, %p65
      %p68 = scmp.ne.s32.totalorder %s53, %s67
      %p69 = scmp.eq.s32.totalorder %s22, 0
      %p70 = por %p68, %p69
      %s72 = sadd.s32 %s71, 1
      %p75 = scmp.eq.s32.totalorder %s16, 1
      %p76 = scmp.ne.s32.totalorder %s71, %s73
      %p77 = scmp.eq.s32.totalorder %s16, 0
      %p78 = por %p76, %p77
      %p79 = scmp.ne.s32.totalorder %s71, %s73
      %p80 = scmp.eq.s32.totalorder %s21, 1
      %p81 = por %p79, %p80
      %p82 = scmp.ne.s32.totalorder %s73, %s74
      %p83 = scmp.eq.s32.totalorder %s21, 0
      %p84 = por %p82, %p83
      %p85 = scmp.ne.s32.totalorder %s73, %s74
      %p86 = scmp.eq.s32.totalorder %s22, 1
      %p87 = por %p85, %p86
      %p89 = scmp.ne.s32.totalorder %s74, %s88
      %p90 = scmp.eq.s32.totalorder %s22, 0
      %p91 = por %p89, %p90
      %s93 = sadd.s32 %s92, 1
      %p96 = scmp.eq.s32.totalorder %s16, 1
      %p97 = scmp.ne.s32.totalorder %s92, %s94
      %p98 = scmp.eq.s32.totalorder %s16, 0
      %p99 = por %p97, %p98
      %p100 = scmp.ne.s32.totalorder %s92, %s94
      %p101 = scmp.eq.s32.totalorder %s21, 1
      %p102 = por %p100, %p101
      %p103 = scmp.ne.s32.totalorder %s94, %s95
      %p104 = scmp.eq.s32.totalorder %s21, 0
      %p105 = por %p103, %p104
      %p106 = scmp.ne.s32.totalorder %s94, %s95
      %p107 = scmp.eq.s32.totalorder %s22, 1
      %p108 = por %p106, %p107
      %p110 = scmp.ne.s32.totalorder %s95, %s109
      %p111 = scmp.eq.s32.totalorder %s22, 0
      %p112 = por %p110, %p111
      %s114 = sadd.s32 %s113, 1
      %p117 = scmp.eq.s32.totalorder %s16, 1
      %p118 = scmp.ne.s32.totalorder %s113, %s115
      %p119 = scmp.eq.s32.totalorder %s16, 0
      %p120 = por %p118, %p119
      %p121 = scmp.ne.s32.totalorder %s113, %s115
      %p122 = scmp.eq.s32.totalorder %s21, 1
      %p123 = por %p121, %p122
      %p124 = scmp.ne.s32.totalorder %s115, %s116
      %p125 = scmp.eq.s32.totalorder %s21, 0
      %p126 = por %p124, %p125
      %p127 = scmp.ne.s32.totalorder %s115, %s116
      %p128 = scmp.eq.s32.totalorder %s22, 1
      %p129 = por %p127, %p128
      %p131 = scmp.ne.s32.totalorder %s116, %s130
      %p132 = scmp.eq.s32.totalorder %s22, 0
      %p133 = por %p131, %p132
      %s135 = sadd.s32 %s134, 1
      %p138 = scmp.eq.s32.totalorder %s16, 1
      %p139 = scmp.ne.s32.totalorder %s134, %s136
      %p140 = scmp.eq.s32.totalorder %s16, 0
      %p141 = por %p139, %p140
      %p142 = scmp.ne.s32.totalorder %s134, %s136
      %p143 = scmp.eq.s32.totalorder %s21, 1
      %p144 = por %p142, %p143
      %p145 = scmp.ne.s32.totalorder %s136, %s137
      %p146 = scmp.eq.s32.totalorder %s21, 0
      %p147 = por %p145, %p146
      %p148 = scmp.ne.s32.totalorder %s136, %s137
      %p149 = scmp.eq.s32.totalorder %s22, 1
      %p150 = por %p148, %p149
      %p152 = scmp.ne.s32.totalorder %s137, %s151
      %p153 = scmp.eq.s32.totalorder %s22, 0
      %p154 = por %p152, %p153
      %s156 = sadd.s32 %s155, 1
      %p159 = scmp.eq.s32.totalorder %s16, 1
      %p160 = scmp.ne.s32.totalorder %s155, %s157
      %p161 = scmp.eq.s32.totalorder %s16, 0
      %p162 = por %p160, %p161
      %p163 = scmp.ne.s32.totalorder %s155, %s157
      %p164 = scmp.eq.s32.totalorder %s21, 1
      %p165 = por %p163, %p164
      %p166 = scmp.ne.s32.totalorder %s157, %s158
      %p167 = scmp.eq.s32.totalorder %s21, 0
      %p168 = por %p166, %p167
      %p169 = scmp.ne.s32.totalorder %s157, %s158
      %p170 = scmp.eq.s32.totalorder %s22, 1
      %p171 = por %p169, %p170
      %p173 = scmp.ne.s32.totalorder %s158, %s172
      %p174 = scmp.eq.s32.totalorder %s22, 0
      %p175 = por %p173, %p174
      %s177 = sadd.s32 %s176, 1
      %p180 = scmp.eq.s32.totalorder %s16, 1
      %p181 = scmp.ne.s32.totalorder %s176, %s178
      %p182 = scmp.eq.s32.totalorder %s16, 0
      %p183 = por %p181, %p182
      %p184 = scmp.ne.s32.totalorder %s176, %s178
      %p185 = scmp.eq.s32.totalorder %s21, 1
      %p186 = por %p184, %p185
      %p187 = scmp.ne.s32.totalorder %s178, %s179
      %p188 = scmp.eq.s32.totalorder %s21, 0
      %p189 = por %p187, %p188
      %p190 = scmp.ne.s32.totalorder %s178, %s179
      %p191 = scmp.eq.s32.totalorder %s22, 1
      %p192 = por %p190, %p191
      %p194 = scmp.ne.s32.totalorder %s179, %s193
      %p195 = scmp.eq.s32.totalorder %s22, 0
      %p196 = por %p194, %p195
      %s198 = sadd.s32 %s197, 1
      %p201 = scmp.eq.s32.totalorder %s16, 1
      %p202 = scmp.ne.s32.totalorder %s197, %s199
      %p203 = scmp.eq.s32.totalorder %s16, 0
      %p204 = por %p202, %p203
      %p205 = scmp.ne.s32.totalorder %s197, %s199
      %p206 = scmp.eq.s32.totalorder %s21, 1
      %p207 = por %p205, %p206
      %p208 = scmp.ne.s32.totalorder %s199, %s200
      %p209 = scmp.eq.s32.totalorder %s21, 0
      %p210 = por %p208, %p209
      %p211 = scmp.ne.s32.totalorder %s199, %s200
      %p212 = scmp.eq.s32.totalorder %s22, 1
      %p213 = por %p211, %p212
      %p215 = scmp.ne.s32.totalorder %s200, %s214
      %p216 = scmp.eq.s32.totalorder %s22, 0
      %p217 = por %p215, %p216
      %s218 = ssub.s32 %s16, %s23
      %p219 = scmp.eq.s32.totalorder %s218, 0
      %s221 = sadd.s32 %s220, 1
      %s222 = scalar_select %p219, %s220, %s221
      %p225 = pneg %p219
      %p226 = scmp.eq.s32.totalorder %s16, 1
      %p227 = por %p225, %p226
      %p228 = scmp.ne.s32.totalorder %s220, %s223
      %p229 = scmp.eq.s32.totalorder %s16, 0
      %p230 = por %p228, %p229
      %p231 = scmp.ne.s32.totalorder %s220, %s223
      %p232 = scmp.eq.s32.totalorder %s21, 1
      %p233 = por %p231, %p232
      %p234 = scmp.ne.s32.totalorder %s223, %s224
      %p235 = scmp.eq.s32.totalorder %s21, 0
      %p236 = por %p234, %p235
      %p237 = scmp.ne.s32.totalorder %s223, %s224
      %p238 = scmp.eq.s32.totalorder %s22, 1
      %p239 = por %p237, %p238
      %p241 = scmp.ne.s32.totalorder %s224, %s240
      %p242 = scmp.eq.s32.totalorder %s22, 0
      %p243 = por %p241, %p242
      %p244 = scmp.le.s32.totalorder 1, %s16
      %p245 = scmp.lt.s32.totalorder %s16, 3
      %p246 = pnand %p244, %p245
      %p247 = pneg %p246
      // Predicated region
      $region9: #{generic_stack_forward.1} parent=5 // pred_check
        _
      $region10: #{generic_stack_forward.1} parent=5 // pred_check_branch
        %249 = sbr.rel (%p246) target = $region12
      $region11: #{generic_stack_forward.1} parent=5 // pred_region
        %s250 = ssub.s32 %s16, 1
        // Predicated region
        $region13: #{generic_stack_forward.1} parent=11 // pred_check
          %p251 = pneg %p63
        $region14: #{generic_stack_forward.1} parent=11 // pred_check_branch
          %253 = sbr.rel (%p251) target = $region16
        $region15: #{generic_stack_forward.1} parent=11 // pred_region
          _
        $region16: #{generic_stack_forward.1} parent=11 // pred_fallthru
          _
        // Predicated region
        $region17: #{generic_stack_forward.1} parent=11 // pred_check
          %p254 = pneg %p84
        $region18: #{generic_stack_forward.1} parent=11 // pred_check_branch
          %256 = sbr.rel (%p254) target = $region20
        $region19: #{generic_stack_forward.1} parent=11 // pred_region
          _
        $region20: #{generic_stack_forward.1} parent=11 // pred_fallthru
          _
        // Predicated region
        $region21: #{generic_stack_forward.1} parent=11 // pred_check
          %p257 = pneg %p105
        $region22: #{generic_stack_forward.1} parent=11 // pred_check_branch
          %259 = sbr.rel (%p257) target = $region24
        $region23: #{generic_stack_forward.1} parent=11 // pred_region
          _
        $region24: #{generic_stack_forward.1} parent=11 // pred_fallthru
          _
        // Predicated region
        $region25: #{generic_stack_forward.1} parent=11 // pred_check
          %p260 = pneg %p126
        $region26: #{generic_stack_forward.1} parent=11 // pred_check_branch
          %262 = sbr.rel (%p260) target = $region28
        $region27: #{generic_stack_forward.1} parent=11 // pred_region
          _
        $region28: #{generic_stack_forward.1} parent=11 // pred_fallthru
          _
        // Predicated region
        $region29: #{generic_stack_forward.1} parent=11 // pred_check
          %p263 = pneg %p147
        $region30: #{generic_stack_forward.1} parent=11 // pred_check_branch
          %265 = sbr.rel (%p263) target = $region32
        $region31: #{generic_stack_forward.1} parent=11 // pred_region
          %267 = vsyncadd [#allocation3], 0
          %s268 = sshll.u32 %s5, 4
          %s269 = int_to_ptr.hbm [resolvable:$true] %s268
          %s270 = sshll.u32 [#allocation2], 4
          %s271 = int_to_ptr.vmem [resolvable:$true] %s270
          %276 = dma.hbm_to_vmem [thread:$0]  %s269, 12288, %s271, [#allocation3], 128, 128, 8
        $region32: #{generic_stack_forward.1} parent=11 // pred_fallthru
          _
        // Predicated region
        $region33: #{generic_stack_forward.1} parent=11 // pred_check
          %p277 = pneg %p168
        $region34: #{generic_stack_forward.1} parent=11 // pred_check_branch
          %279 = sbr.rel (%p277) target = $region36
        $region35: #{generic_stack_forward.1} parent=11 // pred_region
          _
        $region36: #{generic_stack_forward.1} parent=11 // pred_fallthru
          _
        // Predicated region
        $region37: #{generic_stack_forward.1} parent=11 // pred_check
          %p280 = pneg %p189
        $region38: #{generic_stack_forward.1} parent=11 // pred_check_branch
          %282 = sbr.rel (%p280) target = $region40
        $region39: #{generic_stack_forward.1} parent=11 // pred_region
          _
        $region40: #{generic_stack_forward.1} parent=11 // pred_fallthru
          _
        // Predicated region
        $region41: #{generic_stack_forward.1} parent=11 // pred_check
          %p283 = pneg %p210
        $region42: #{generic_stack_forward.1} parent=11 // pred_check_branch
          %285 = sbr.rel (%p283) target = $region44
        $region43: #{generic_stack_forward.1} parent=11 // pred_region
          _
        $region44: #{generic_stack_forward.1} parent=11 // pred_fallthru
          _
      $region12: #{generic_stack_forward.1} parent=5 // pred_fallthru
        _
      %p286 = scmp.lt.s32.totalorder %s16, 2
      // Predicated region
      $region45: #{generic_stack_forward.1} parent=5 // pred_check
        %p287 = pneg %p286
      $region46: #{generic_stack_forward.1} parent=5 // pred_check_branch
        %289 = sbr.rel (%p287) target = $region48
      $region47: #{generic_stack_forward.1} parent=5 // pred_region
        // Predicated region
        $region49: #{generic_stack_forward.1} parent=47 // pred_check
          %p290 = pneg %p36
        $region50: #{generic_stack_forward.1} parent=47 // pred_check_branch
          %292 = sbr.rel (%p290) target = $region52
        $region51: #{generic_stack_forward.1} parent=47 // pred_region
          %s293 = smul.u32 32, %s16
          %p294 = scmp.lt.s32.totalorder %s293, 63
          %s295 = scalar_select %p294, %s293, 63
          %s296 = smul.addr %s295, 8
          %s297 = scalar_lea.vmem %s0, %s296
          %s298 = smul.u32 32, %s16
        $region52: #{generic_stack_forward.1} parent=47 // pred_fallthru
          _
      $region48: #{generic_stack_forward.1} parent=5 // pred_fallthru
        _
      %p299 = scmp.le.s32.totalorder 1, %s16
      %p300 = scmp.lt.s32.totalorder %s16, 3
      %p301 = pnand %p299, %p300
      %p302 = pneg %p301
      // Predicated region
      $region53: #{generic_stack_forward.1} parent=5 // pred_check
        _
      $region54: #{generic_stack_forward.1} parent=5 // pred_check_branch
        %304 = sbr.rel (%p301) target = $region56
      $region55: #{generic_stack_forward.1} parent=5 // pred_region
        %s305 = ssub.s32 %s16, 1
        // Predicated region
        $region57: #{generic_stack_forward.1} parent=55 // pred_check
          %p306 = pneg %p147
        $region58: #{generic_stack_forward.1} parent=55 // pred_check_branch
          %308 = sbr.rel (%p306) target = $region60
        $region59: #{generic_stack_forward.1} parent=55 // pred_region
          %310 = dma.done [#allocation3], 12288
        $region60: #{generic_stack_forward.1} parent=55 // pred_fallthru
          _
        %s311 = smul.u32 32, %s21
        %p312 = scmp.lt.s32.totalorder %s311, 63
        %s313 = scalar_select %p312, %s311, 63
        %s314 = smul.addr %s313, 8
        %s315 = scalar_lea.vmem %s0, %s314
        %p316 = pneg %p42
        %p317 = pneg %p39
        %p318 = pneg %p63
        %p319 = pneg %p60
        %p320 = pneg %p84
        %p321 = pneg %p81
        %p322 = pneg %p105
        %p323 = pneg %p102
        %p324 = pneg %p126
        %p325 = pneg %p123
        %p326 = pneg %p147
        %p327 = pneg %p144
        %p328 = pneg %p168
        %p329 = pneg %p165
        %p330 = pneg %p189
        %p331 = pneg %p186
        %p332 = pneg %p210
        %p333 = pneg %p207
        %p334 = pneg %p236
        %p335 = pneg %p233
        %s336 = smul.u32 32, %s21
        %p337 = scmp.lt.s32.totalorder %s336, 63
        %s338 = scalar_select %p337, %s336, 63
        %s339 = smul.addr %s338, 8
        %s340 = scalar_lea.vmem %s9, %s339
        %s341 = smul.u32 32, %s21
        %p342 = scmp.lt.s32.totalorder %s341, 63
        %s343 = scalar_select %p342, %s341, 63
        %s344 = smul.addr %s343, 8
        %s345 = scalar_lea.vmem %s0, %s344
        %s346 = smul.u32 32, %s21
        %s347 = smul.u32 32, %s21
        %p348 = scmp.lt.s32.totalorder %s347, 63
        %s349 = scalar_select %p348, %s347, 63
        %s350 = smul.addr %s349, 8
        %s351 = scalar_lea.vmem %s9, %s350
        %s352 = smul.u32 32, %s21
        %v354 = vld [vmem:[%s345] sm:$0xff]
        %v355 = vld [vmem:[%s345 + $0x8] sm:$0xff]
        %v356 = vld [vmem:[%s345 + $0x10] sm:$0xff]
        %v357 = vld [vmem:[%s345 + $0x18] sm:$0xff]
        %v358 = vld [vmem:[%s345 + $0x20] sm:$0xff]
        %v359 = vld [vmem:[%s345 + $0x28] sm:$0xff]
        %v360 = vld [vmem:[%s345 + $0x30] sm:$0xff]
        %v361 = vld [vmem:[%s345 + $0x38] sm:$0xff]
        %v362 = vld [vmem:[%s345 + $0x40] sm:$0xff]
        %v363 = vld [vmem:[%s345 + $0x48] sm:$0xff]
        %v364 = vld [vmem:[%s345 + $0x50] sm:$0xff]
        %v365 = vld [vmem:[%s345 + $0x58] sm:$0xff]
        %v366 = vld [vmem:[%s345 + $0x60] sm:$0xff]
        %v367 = vld [vmem:[%s345 + $0x68] sm:$0xff]
        %v368 = vld [vmem:[%s345 + $0x70] sm:$0xff]
        %v369 = vld [vmem:[%s345 + $0x78] sm:$0xff]
        %v370 = vld [vmem:[%s345 + $0x80] sm:$0xff]
        %v371 = vld [vmem:[%s345 + $0x88] sm:$0xff]
        %v372 = vld [vmem:[%s345 + $0x90] sm:$0xff]
        %v373 = vld [vmem:[%s345 + $0x98] sm:$0xff]
        %v374 = vld [vmem:[%s345 + $0xa0] sm:$0xff]
        %v375 = vld [vmem:[%s345 + $0xa8] sm:$0xff]
        %v376 = vld [vmem:[%s345 + $0xb0] sm:$0xff]
        %v377 = vld [vmem:[%s345 + $0xb8] sm:$0xff]
        %v378 = vld [vmem:[%s345 + $0xc0] sm:$0xff]
        %v379 = vld [vmem:[%s345 + $0xc8] sm:$0xff]
        %v380 = vld [vmem:[%s345 + $0xd0] sm:$0xff]
        %v381 = vld [vmem:[%s345 + $0xd8] sm:$0xff]
        %v382 = vld [vmem:[%s345 + $0xe0] sm:$0xff]
        %v383 = vld [vmem:[%s345 + $0xe8] sm:$0xff]
        %v384 = vld [vmem:[%s345 + $0xf0] sm:$0xff]
        %v385 = vld [vmem:[%s345 + $0xf8] sm:$0xff]
        %v386 = vpack.c.bf16 %v355, %v354
        %v387 = vpack.c.bf16 %v357, %v356
        %v388 = vpack.c.bf16 %v359, %v358
        %v389 = vpack.c.bf16 %v361, %v360
        %v390 = vpack.c.bf16 %v363, %v362
        %v391 = vpack.c.bf16 %v365, %v364
        %v392 = vpack.c.bf16 %v367, %v366
        %v393 = vpack.c.bf16 %v369, %v368
        %v394 = vpack.c.bf16 %v371, %v370
        %v395 = vpack.c.bf16 %v373, %v372
        %v396 = vpack.c.bf16 %v375, %v374
        %v397 = vpack.c.bf16 %v377, %v376
        %v398 = vpack.c.bf16 %v379, %v378
        %v399 = vpack.c.bf16 %v381, %v380
        %v400 = vpack.c.bf16 %v383, %v382
        %v401 = vpack.c.bf16 %v385, %v384
        %v402 = vld [vmem:[%s1] sm:$0xff]
        %v403 = vld [vmem:[%s1 + $0x8] sm:$0xff]
        %v404 = vld [vmem:[%s2] sm:$0x3]
        %v406 = vperm.slane %v404, 0
        %v407 = vperm.slane %v404, 1
        %v412 = vunpack.c.l.b16 %v402
        %v413 = vunpack.c.h.b16 %v402
        %v414 = vunpack.c.l.b16 %v403
        %v415 = vunpack.c.h.b16 %v403
        %v416 = vpack.c.b16 %v414, %v412
        %v417 = vpack.c.b16 %v415, %v413
        %vm420 = vcmask 130048
        %v422 = vsel %vm420, %v386, 0
        %v425 = vsel %vm420, %v387, 0
        %v428 = vsel %vm420, %v388, 0
        %v431 = vsel %vm420, %v389, 0
        %v434 = vsel %vm420, %v390, 0
        %v437 = vsel %vm420, %v391, 0
        %v440 = vsel %vm420, %v392, 0
        %v443 = vsel %vm420, %v393, 0
        %v446 = vsel %vm420, %v394, 0
        %v449 = vsel %vm420, %v395, 0
        %v452 = vsel %vm420, %v396, 0
        %v455 = vsel %vm420, %v397, 0
        %v458 = vsel %vm420, %v398, 0
        %v461 = vsel %vm420, %v399, 0
        %v464 = vsel %vm420, %v400, 0
        %v467 = vsel %vm420, %v401, 0
        %469 = vmatpush.bf16.msra.mxu0 0
        %470 = vmatpush.bf16.msra.mxu0 0
        %471 = vmatpush.bf16.msra.mxu0 0
        %472 = vmatpush.bf16.msra.mxu0 0
        %473 = vmatpush.bf16.msra.mxu0 0
        %474 = vmatpush.bf16.msra.mxu0 0
        %475 = vmatpush.bf16.msra.mxu0 0
        %476 = vmatpush.bf16.msra.mxu0 %v416
        %477 = vmatmul.bf16.gmra.mxu0 %v422
        %v478 = vpop.f32.mrf.mxu0
        %v479 = vadd.f32 %v406, %v478
        %v480 = vpop.f32.mrf.mxu0
        %v481 = vadd.f32 %v406, %v480
        %482 = vmatmul.bf16.gmra.mxu0 %v425
        %v483 = vpop.f32.mrf.mxu0
        %v484 = vadd.f32 %v406, %v483
        %v485 = vpop.f32.mrf.mxu0
        %v486 = vadd.f32 %v406, %v485
        %487 = vmatmul.bf16.gmra.mxu0 %v428
        %v488 = vpop.f32.mrf.mxu0
        %v489 = vadd.f32 %v406, %v488
        %v490 = vpop.f32.mrf.mxu0
        %v491 = vadd.f32 %v406, %v490
        %492 = vmatmul.bf16.gmra.mxu0 %v431
        %v493 = vpop.f32.mrf.mxu0
        %v494 = vadd.f32 %v406, %v493
        %v495 = vpop.f32.mrf.mxu0
        %v496 = vadd.f32 %v406, %v495
        %497 = vmatmul.bf16.gmra.mxu0 %v434
        %v498 = vpop.f32.mrf.mxu0
        %v499 = vadd.f32 %v406, %v498
        %v500 = vpop.f32.mrf.mxu0
        %v501 = vadd.f32 %v406, %v500
        %502 = vmatmul.bf16.gmra.mxu0 %v437
        %v503 = vpop.f32.mrf.mxu0
        %v504 = vadd.f32 %v406, %v503
        %v505 = vpop.f32.mrf.mxu0
        %v506 = vadd.f32 %v406, %v505
        %507 = vmatmul.bf16.gmra.mxu0 %v440
        %v508 = vpop.f32.mrf.mxu0
        %v509 = vadd.f32 %v406, %v508
        %v510 = vpop.f32.mrf.mxu0
        %v511 = vadd.f32 %v406, %v510
        %512 = vmatmul.bf16.gmra.mxu0 %v443
        %v513 = vpop.f32.mrf.mxu0
        %v514 = vadd.f32 %v406, %v513
        %v515 = vpop.f32.mrf.mxu0
        %v516 = vadd.f32 %v406, %v515
        %517 = vmatmul.bf16.gmra.mxu0 %v446
        %v518 = vpop.f32.mrf.mxu0
        %v519 = vadd.f32 %v406, %v518
        %v520 = vpop.f32.mrf.mxu0
        %v521 = vadd.f32 %v406, %v520
        %522 = vmatmul.bf16.gmra.mxu0 %v449
        %v523 = vpop.f32.mrf.mxu0
        %v524 = vadd.f32 %v406, %v523
        %v525 = vpop.f32.mrf.mxu0
        %v526 = vadd.f32 %v406, %v525
        %527 = vmatmul.bf16.gmra.mxu0 %v452
        %v528 = vpop.f32.mrf.mxu0
        %v529 = vadd.f32 %v406, %v528
        %v530 = vpop.f32.mrf.mxu0
        %v531 = vadd.f32 %v406, %v530
        %532 = vmatmul.bf16.gmra.mxu0 %v455
        %v533 = vpop.f32.mrf.mxu0
        %v534 = vadd.f32 %v406, %v533
        %v535 = vpop.f32.mrf.mxu0
        %v536 = vadd.f32 %v406, %v535
        %537 = vmatmul.bf16.gmra.mxu0 %v458
        %v538 = vpop.f32.mrf.mxu0
        %v539 = vadd.f32 %v406, %v538
        %v540 = vpop.f32.mrf.mxu0
        %v541 = vadd.f32 %v406, %v540
        %542 = vmatmul.bf16.gmra.mxu0 %v461
        %v543 = vpop.f32.mrf.mxu0
        %v544 = vadd.f32 %v406, %v543
        %v545 = vpop.f32.mrf.mxu0
        %v546 = vadd.f32 %v406, %v545
        %547 = vmatmul.bf16.gmra.mxu0 %v464
        %v548 = vpop.f32.mrf.mxu0
        %v549 = vadd.f32 %v406, %v548
        %v550 = vpop.f32.mrf.mxu0
        %v551 = vadd.f32 %v406, %v550
        %552 = vmatmul.bf16.gmra.mxu0 %v467
        %v553 = vpop.f32.mrf.mxu0
        %v554 = vadd.f32 %v406, %v553
        %v555 = vpop.f32.mrf.mxu0
        %v556 = vadd.f32 %v406, %v555
        %557 = vdwg.mxu0
        %558 = vmatpush.bf16.msra.mxu0 0
        %559 = vmatpush.bf16.msra.mxu0 0
        %560 = vmatpush.bf16.msra.mxu0 0
        %561 = vmatpush.bf16.msra.mxu0 0
        %562 = vmatpush.bf16.msra.mxu0 0
        %563 = vmatpush.bf16.msra.mxu0 0
        %564 = vmatpush.bf16.msra.mxu0 0
        %565 = vmatpush.bf16.msra.mxu0 %v417
        %566 = vmatmul.bf16.gmra.mxu0 %v422
        %v567 = vpop.f32.mrf.mxu0
        %v568 = vadd.f32 %v407, %v567
        %v569 = vpop.f32.mrf.mxu0
        %v570 = vadd.f32 %v407, %v569
        %571 = vmatmul.bf16.gmra.mxu0 %v425
        %v572 = vpop.f32.mrf.mxu0
        %v573 = vadd.f32 %v407, %v572
        %v574 = vpop.f32.mrf.mxu0
        %v575 = vadd.f32 %v407, %v574
        %576 = vmatmul.bf16.gmra.mxu0 %v428
        %v577 = vpop.f32.mrf.mxu0
        %v578 = vadd.f32 %v407, %v577
        %v579 = vpop.f32.mrf.mxu0
        %v580 = vadd.f32 %v407, %v579
        %581 = vmatmul.bf16.gmra.mxu0 %v431
        %v582 = vpop.f32.mrf.mxu0
        %v583 = vadd.f32 %v407, %v582
        %v584 = vpop.f32.mrf.mxu0
        %v585 = vadd.f32 %v407, %v584
        %586 = vmatmul.bf16.gmra.mxu0 %v434
        %v587 = vpop.f32.mrf.mxu0
        %v588 = vadd.f32 %v407, %v587
        %v589 = vpop.f32.mrf.mxu0
        %v590 = vadd.f32 %v407, %v589
        %591 = vmatmul.bf16.gmra.mxu0 %v437
        %v592 = vpop.f32.mrf.mxu0
        %v593 = vadd.f32 %v407, %v592
        %v594 = vpop.f32.mrf.mxu0
        %v595 = vadd.f32 %v407, %v594
        %596 = vmatmul.bf16.gmra.mxu0 %v440
        %v597 = vpop.f32.mrf.mxu0
        %v598 = vadd.f32 %v407, %v597
        %v599 = vpop.f32.mrf.mxu0
        %v600 = vadd.f32 %v407, %v599
        %601 = vmatmul.bf16.gmra.mxu0 %v443
        %v602 = vpop.f32.mrf.mxu0
        %v603 = vadd.f32 %v407, %v602
        %v604 = vpop.f32.mrf.mxu0
        %v605 = vadd.f32 %v407, %v604
        %606 = vmatmul.bf16.gmra.mxu0 %v446
        %v607 = vpop.f32.mrf.mxu0
        %v608 = vadd.f32 %v407, %v607
        %v609 = vpop.f32.mrf.mxu0
        %v610 = vadd.f32 %v407, %v609
        %611 = vmatmul.bf16.gmra.mxu0 %v449
        %v612 = vpop.f32.mrf.mxu0
        %v613 = vadd.f32 %v407, %v612
        %v614 = vpop.f32.mrf.mxu0
        %v615 = vadd.f32 %v407, %v614
        %616 = vmatmul.bf16.gmra.mxu0 %v452
        %v617 = vpop.f32.mrf.mxu0
        %v618 = vadd.f32 %v407, %v617
        %v619 = vpop.f32.mrf.mxu0
        %v620 = vadd.f32 %v407, %v619
        %621 = vmatmul.bf16.gmra.mxu0 %v455
        %v622 = vpop.f32.mrf.mxu0
        %v623 = vadd.f32 %v407, %v622
        %v624 = vpop.f32.mrf.mxu0
        %v625 = vadd.f32 %v407, %v624
        %626 = vmatmul.bf16.gmra.mxu0 %v458
        %v627 = vpop.f32.mrf.mxu0
        %v628 = vadd.f32 %v407, %v627
        %v629 = vpop.f32.mrf.mxu0
        %v630 = vadd.f32 %v407, %v629
        %631 = vmatmul.bf16.gmra.mxu0 %v461
        %v632 = vpop.f32.mrf.mxu0
        %v633 = vadd.f32 %v407, %v632
        %v634 = vpop.f32.mrf.mxu0
        %v635 = vadd.f32 %v407, %v634
        %636 = vmatmul.bf16.gmra.mxu0 %v464
        %v637 = vpop.f32.mrf.mxu0
        %v638 = vadd.f32 %v407, %v637
        %v639 = vpop.f32.mrf.mxu0
        %v640 = vadd.f32 %v407, %v639
        %641 = vmatmul.bf16.gmra.mxu0 %v467
        %v642 = vpop.f32.mrf.mxu0
        %v643 = vadd.f32 %v407, %v642
        %v644 = vpop.f32.mrf.mxu0
        %v645 = vadd.f32 %v407, %v644
        %646 = vdwg.mxu0
        %v647 = vmax.f32 %v479, 0.0
        %v648 = vmax.f32 %v568, 0.0
        %v649 = vmax.f32 %v481, 0.0
        %v650 = vmax.f32 %v570, 0.0
        %v651 = vmax.f32 %v484, 0.0
        %v652 = vmax.f32 %v573, 0.0
        %v653 = vmax.f32 %v486, 0.0
        %v654 = vmax.f32 %v575, 0.0
        %v655 = vmax.f32 %v489, 0.0
        %v656 = vmax.f32 %v578, 0.0
        %v657 = vmax.f32 %v491, 0.0
        %v658 = vmax.f32 %v580, 0.0
        %v659 = vmax.f32 %v494, 0.0
        %v660 = vmax.f32 %v583, 0.0
        %v661 = vmax.f32 %v496, 0.0
        %v662 = vmax.f32 %v585, 0.0
        %v663 = vmax.f32 %v499, 0.0
        %v664 = vmax.f32 %v588, 0.0
        %v665 = vmax.f32 %v501, 0.0
        %v666 = vmax.f32 %v590, 0.0
        %v667 = vmax.f32 %v504, 0.0
        %v668 = vmax.f32 %v593, 0.0
        %v669 = vmax.f32 %v506, 0.0
        %v670 = vmax.f32 %v595, 0.0
        %v671 = vmax.f32 %v509, 0.0
        %v672 = vmax.f32 %v598, 0.0
        %v673 = vmax.f32 %v511, 0.0
        %v674 = vmax.f32 %v600, 0.0
        %v675 = vmax.f32 %v514, 0.0
        %v676 = vmax.f32 %v603, 0.0
        %v677 = vmax.f32 %v516, 0.0
        %v678 = vmax.f32 %v605, 0.0
        %v679 = vmax.f32 %v519, 0.0
        %v680 = vmax.f32 %v608, 0.0
        %v681 = vmax.f32 %v521, 0.0
        %v682 = vmax.f32 %v610, 0.0
        %v683 = vmax.f32 %v524, 0.0
        %v684 = vmax.f32 %v613, 0.0
        %v685 = vmax.f32 %v526, 0.0
        %v686 = vmax.f32 %v615, 0.0
        %v687 = vmax.f32 %v529, 0.0
        %v688 = vmax.f32 %v618, 0.0
        %v689 = vmax.f32 %v531, 0.0
        %v690 = vmax.f32 %v620, 0.0
        %v691 = vmax.f32 %v534, 0.0
        %v692 = vmax.f32 %v623, 0.0
        %v693 = vmax.f32 %v536, 0.0
        %v694 = vmax.f32 %v625, 0.0
        %v695 = vmax.f32 %v539, 0.0
        %v696 = vmax.f32 %v628, 0.0
        %v697 = vmax.f32 %v541, 0.0
        %v698 = vmax.f32 %v630, 0.0
        %v699 = vmax.f32 %v544, 0.0
        %v700 = vmax.f32 %v633, 0.0
        %v701 = vmax.f32 %v546, 0.0
        %v702 = vmax.f32 %v635, 0.0
        %v703 = vmax.f32 %v549, 0.0
        %v704 = vmax.f32 %v638, 0.0
        %v705 = vmax.f32 %v551, 0.0
        %v706 = vmax.f32 %v640, 0.0
        %v707 = vmax.f32 %v554, 0.0
        %v708 = vmax.f32 %v643, 0.0
        %v709 = vmax.f32 %v556, 0.0
        %v710 = vmax.f32 %v645, 0.0
        %v711 = vpack.c.bf16 %v649, %v647
        %v712 = vpack.c.bf16 %v650, %v648
        %v713 = vpack.c.bf16 %v653, %v651
        %v714 = vpack.c.bf16 %v654, %v652
        %v715 = vpack.c.bf16 %v657, %v655
        %v716 = vpack.c.bf16 %v658, %v656
        %v717 = vpack.c.bf16 %v661, %v659
        %v718 = vpack.c.bf16 %v662, %v660
        %v719 = vpack.c.bf16 %v665, %v663
        %v720 = vpack.c.bf16 %v666, %v664
        %v721 = vpack.c.bf16 %v669, %v667
        %v722 = vpack.c.bf16 %v670, %v668
        %v723 = vpack.c.bf16 %v673, %v671
        %v724 = vpack.c.bf16 %v674, %v672
        %v725 = vpack.c.bf16 %v677, %v675
        %v726 = vpack.c.bf16 %v678, %v676
        %v727 = vpack.c.bf16 %v681, %v679
        %v728 = vpack.c.bf16 %v682, %v680
        %v729 = vpack.c.bf16 %v685, %v683
        %v730 = vpack.c.bf16 %v686, %v684
        %v731 = vpack.c.bf16 %v689, %v687
        %v732 = vpack.c.bf16 %v690, %v688
        %v733 = vpack.c.bf16 %v693, %v691
        %v734 = vpack.c.bf16 %v694, %v692
        %v735 = vpack.c.bf16 %v697, %v695
        %v736 = vpack.c.bf16 %v698, %v696
        %v737 = vpack.c.bf16 %v701, %v699
        %v738 = vpack.c.bf16 %v702, %v700
        %v739 = vpack.c.bf16 %v705, %v703
        %v740 = vpack.c.bf16 %v706, %v704
        %v741 = vpack.c.bf16 %v709, %v707
        %v742 = vpack.c.bf16 %v710, %v708
        %v743 = vld [vmem:[%s3] sm:$0xff]
        %v744 = vld [vmem:[%s3 + $0x8] sm:$0xff]
        %v745 = vld [vmem:[%s3 + $0x10] sm:$0xff]
        %v746 = vld [vmem:[%s3 + $0x18] sm:$0xff]
        %v747 = vld [vmem:[%s3 + $0x20] sm:$0xff]
        %v748 = vld [vmem:[%s3 + $0x28] sm:$0xff]
        %v749 = vld [vmem:[%s3 + $0x30] sm:$0xff]
        %v750 = vld [vmem:[%s3 + $0x38] sm:$0xff]
        %v751 = vld [vmem:[%s3 + $0x40] sm:$0xff]
        %v752 = vld [vmem:[%s3 + $0x48] sm:$0xff]
        %v753 = vld [vmem:[%s3 + $0x50] sm:$0xff]
        %v754 = vld [vmem:[%s3 + $0x58] sm:$0xff]
        %v755 = vld [vmem:[%s3 + $0x60] sm:$0xff]
        %v756 = vld [vmem:[%s3 + $0x68] sm:$0xff]
        %v757 = vld [vmem:[%s3 + $0x70] sm:$0xff]
        %v758 = vld [vmem:[%s3 + $0x78] sm:$0xff]
        %v759 = vld [vmem:[%s3 + $0x80] sm:$0xff]
        %v760 = vld [vmem:[%s3 + $0x88] sm:$0xff]
        %v761 = vld [vmem:[%s3 + $0x90] sm:$0xff]
        %v762 = vld [vmem:[%s3 + $0x98] sm:$0xff]
        %v763 = vld [vmem:[%s3 + $0xa0] sm:$0xff]
        %v764 = vld [vmem:[%s3 + $0xa8] sm:$0xff]
        %v765 = vld [vmem:[%s3 + $0xb0] sm:$0xff]
        %v766 = vld [vmem:[%s3 + $0xb8] sm:$0xff]
        %v767 = vld [vmem:[%s3 + $0xc0] sm:$0xff]
        %v768 = vld [vmem:[%s3 + $0xc8] sm:$0xff]
        %v769 = vld [vmem:[%s3 + $0xd0] sm:$0xff]
        %v770 = vld [vmem:[%s3 + $0xd8] sm:$0xff]
        %v771 = vld [vmem:[%s3 + $0xe0] sm:$0xff]
        %v772 = vld [vmem:[%s3 + $0xe8] sm:$0xff]
        %v773 = vld [vmem:[%s3 + $0xf0] sm:$0xff]
        %v774 = vld [vmem:[%s3 + $0xf8] sm:$0xff]
        %v775 = vld [vmem:[%s4] sm:$0x3]
        %v777 = vperm.slane %v775, 0
        %v778 = vperm.slane %v775, 1
        %v813 = vunpack.c.l.b16 %v743
        %v814 = vunpack.c.h.b16 %v743
        %v815 = vunpack.c.l.b16 %v744
        %v816 = vunpack.c.h.b16 %v744
        %v817 = vunpack.c.l.b16 %v745
        %v818 = vunpack.c.h.b16 %v745
        %v819 = vunpack.c.l.b16 %v746
        %v820 = vunpack.c.h.b16 %v746
        %v821 = vunpack.c.l.b16 %v747
        %v822 = vunpack.c.h.b16 %v747
        %v823 = vunpack.c.l.b16 %v748
        %v824 = vunpack.c.h.b16 %v748
        %v825 = vunpack.c.l.b16 %v749
        %v826 = vunpack.c.h.b16 %v749
        %v827 = vunpack.c.l.b16 %v750
        %v828 = vunpack.c.h.b16 %v750
        %v829 = vunpack.c.l.b16 %v751
        %v830 = vunpack.c.h.b16 %v751
        %v831 = vunpack.c.l.b16 %v752
        %v832 = vunpack.c.h.b16 %v752
        %v833 = vunpack.c.l.b16 %v753
        %v834 = vunpack.c.h.b16 %v753
        %v835 = vunpack.c.l.b16 %v754
        %v836 = vunpack.c.h.b16 %v754
        %v837 = vunpack.c.l.b16 %v755
        %v838 = vunpack.c.h.b16 %v755
        %v839 = vunpack.c.l.b16 %v756
        %v840 = vunpack.c.h.b16 %v756
        %v841 = vunpack.c.l.b16 %v757
        %v842 = vunpack.c.h.b16 %v757
        %v843 = vunpack.c.l.b16 %v758
        %v844 = vunpack.c.h.b16 %v758
        %v845 = vunpack.c.l.b16 %v759
        %v846 = vunpack.c.h.b16 %v759
        %v847 = vunpack.c.l.b16 %v760
        %v848 = vunpack.c.h.b16 %v760
        %v849 = vunpack.c.l.b16 %v761
        %v850 = vunpack.c.h.b16 %v761
        %v851 = vunpack.c.l.b16 %v762
        %v852 = vunpack.c.h.b16 %v762
        %v853 = vunpack.c.l.b16 %v763
        %v854 = vunpack.c.h.b16 %v763
        %v855 = vunpack.c.l.b16 %v764
        %v856 = vunpack.c.h.b16 %v764
        %v857 = vunpack.c.l.b16 %v765
        %v858 = vunpack.c.h.b16 %v765
        %v859 = vunpack.c.l.b16 %v766
        %v860 = vunpack.c.h.b16 %v766
        %v861 = vunpack.c.l.b16 %v767
        %v862 = vunpack.c.h.b16 %v767
        %v863 = vunpack.c.l.b16 %v768
        %v864 = vunpack.c.h.b16 %v768
        %v865 = vunpack.c.l.b16 %v769
        %v866 = vunpack.c.h.b16 %v769
        %v867 = vunpack.c.l.b16 %v770
        %v868 = vunpack.c.h.b16 %v770
        %v869 = vunpack.c.l.b16 %v771
        %v870 = vunpack.c.h.b16 %v771
        %v871 = vunpack.c.l.b16 %v772
        %v872 = vunpack.c.h.b16 %v772
        %v873 = vunpack.c.l.b16 %v773
        %v874 = vunpack.c.h.b16 %v773
        %v875 = vunpack.c.l.b16 %v774
        %v876 = vunpack.c.h.b16 %v774
        %v877 = vpack.c.b16 %v815, %v813
        %v878 = vpack.c.b16 %v816, %v814
        %v879 = vpack.c.b16 %v819, %v817
        %v880 = vpack.c.b16 %v820, %v818
        %v881 = vpack.c.b16 %v823, %v821
        %v882 = vpack.c.b16 %v824, %v822
        %v883 = vpack.c.b16 %v827, %v825
        %v884 = vpack.c.b16 %v828, %v826
        %v885 = vpack.c.b16 %v831, %v829
        %v886 = vpack.c.b16 %v832, %v830
        %v887 = vpack.c.b16 %v835, %v833
        %v888 = vpack.c.b16 %v836, %v834
        %v889 = vpack.c.b16 %v839, %v837
        %v890 = vpack.c.b16 %v840, %v838
        %v891 = vpack.c.b16 %v843, %v841
        %v892 = vpack.c.b16 %v844, %v842
        %v893 = vpack.c.b16 %v847, %v845
        %v894 = vpack.c.b16 %v848, %v846
        %v895 = vpack.c.b16 %v851, %v849
        %v896 = vpack.c.b16 %v852, %v850
        %v897 = vpack.c.b16 %v855, %v853
        %v898 = vpack.c.b16 %v856, %v854
        %v899 = vpack.c.b16 %v859, %v857
        %v900 = vpack.c.b16 %v860, %v858
        %v901 = vpack.c.b16 %v863, %v861
        %v902 = vpack.c.b16 %v864, %v862
        %v903 = vpack.c.b16 %v867, %v865
        %v904 = vpack.c.b16 %v868, %v866
        %v905 = vpack.c.b16 %v871, %v869
        %v906 = vpack.c.b16 %v872, %v870
        %v907 = vpack.c.b16 %v875, %v873
        %v908 = vpack.c.b16 %v876, %v874
        %941 = vmatpush.bf16.msra.mxu0 %v891
        %942 = vmatpush.bf16.msra.mxu0 %v889
        %943 = vmatpush.bf16.msra.mxu0 %v887
        %944 = vmatpush.bf16.msra.mxu0 %v885
        %945 = vmatpush.bf16.msra.mxu0 %v883
        %946 = vmatpush.bf16.msra.mxu0 %v881
        %947 = vmatpush.bf16.msra.mxu0 %v879
        %948 = vmatpush.bf16.msra.mxu0 %v877
        %949 = vmatmul.bf16.gmra.mxu0 %v711
        %v950 = vpop.f32.mrf.mxu0
        %v951 = vadd.f32 %v777, %v950
        %v952 = vpop.f32.mrf.mxu0
        %v953 = vadd.f32 %v777, %v952
        %954 = vmatmul.bf16.gmra.mxu0 %v713
        %v955 = vpop.f32.mrf.mxu0
        %v956 = vadd.f32 %v777, %v955
        %v957 = vpop.f32.mrf.mxu0
        %v958 = vadd.f32 %v777, %v957
        %959 = vmatmul.bf16.gmra.mxu0 %v715
        %v960 = vpop.f32.mrf.mxu0
        %v961 = vadd.f32 %v777, %v960
        %v962 = vpop.f32.mrf.mxu0
        %v963 = vadd.f32 %v777, %v962
        %964 = vmatmul.bf16.gmra.mxu0 %v717
        %v965 = vpop.f32.mrf.mxu0
        %v966 = vadd.f32 %v777, %v965
        %v967 = vpop.f32.mrf.mxu0
        %v968 = vadd.f32 %v777, %v967
        %969 = vmatmul.bf16.gmra.mxu0 %v719
        %v970 = vpop.f32.mrf.mxu0
        %v971 = vadd.f32 %v777, %v970
        %v972 = vpop.f32.mrf.mxu0
        %v973 = vadd.f32 %v777, %v972
        %974 = vmatmul.bf16.gmra.mxu0 %v721
        %v975 = vpop.f32.mrf.mxu0
        %v976 = vadd.f32 %v777, %v975
        %v977 = vpop.f32.mrf.mxu0
        %v978 = vadd.f32 %v777, %v977
        %979 = vmatmul.bf16.gmra.mxu0 %v723
        %v980 = vpop.f32.mrf.mxu0
        %v981 = vadd.f32 %v777, %v980
        %v982 = vpop.f32.mrf.mxu0
        %v983 = vadd.f32 %v777, %v982
        %984 = vmatmul.bf16.gmra.mxu0 %v725
        %v985 = vpop.f32.mrf.mxu0
        %v986 = vadd.f32 %v777, %v985
        %v987 = vpop.f32.mrf.mxu0
        %v988 = vadd.f32 %v777, %v987
        %989 = vmatmul.bf16.gmra.mxu0 %v727
        %v990 = vpop.f32.mrf.mxu0
        %v991 = vadd.f32 %v777, %v990
        %v992 = vpop.f32.mrf.mxu0
        %v993 = vadd.f32 %v777, %v992
        %994 = vmatmul.bf16.gmra.mxu0 %v729
        %v995 = vpop.f32.mrf.mxu0
        %v996 = vadd.f32 %v777, %v995
        %v997 = vpop.f32.mrf.mxu0
        %v998 = vadd.f32 %v777, %v997
        %999 = vmatmul.bf16.gmra.mxu0 %v731
        %v1000 = vpop.f32.mrf.mxu0
        %v1001 = vadd.f32 %v777, %v1000
        %v1002 = vpop.f32.mrf.mxu0
        %v1003 = vadd.f32 %v777, %v1002
        %1004 = vmatmul.bf16.gmra.mxu0 %v733
        %v1005 = vpop.f32.mrf.mxu0
        %v1006 = vadd.f32 %v777, %v1005
        %v1007 = vpop.f32.mrf.mxu0
        %v1008 = vadd.f32 %v777, %v1007
        %1009 = vmatmul.bf16.gmra.mxu0 %v735
        %v1010 = vpop.f32.mrf.mxu0
        %v1011 = vadd.f32 %v777, %v1010
        %v1012 = vpop.f32.mrf.mxu0
        %v1013 = vadd.f32 %v777, %v1012
        %1014 = vmatmul.bf16.gmra.mxu0 %v737
        %v1015 = vpop.f32.mrf.mxu0
        %v1016 = vadd.f32 %v777, %v1015
        %v1017 = vpop.f32.mrf.mxu0
        %v1018 = vadd.f32 %v777, %v1017
        %1019 = vmatmul.bf16.gmra.mxu0 %v739
        %v1020 = vpop.f32.mrf.mxu0
        %v1021 = vadd.f32 %v777, %v1020
        %v1022 = vpop.f32.mrf.mxu0
        %v1023 = vadd.f32 %v777, %v1022
        %1024 = vmatmul.bf16.gmra.mxu0 %v741
        %v1025 = vpop.f32.mrf.mxu0
        %v1026 = vadd.f32 %v777, %v1025
        %v1027 = vpop.f32.mrf.mxu0
        %v1028 = vadd.f32 %v777, %v1027
        %1029 = vdwg.mxu0
        %1030 = vmatpush.bf16.msra.mxu0 %v907
        %1031 = vmatpush.bf16.msra.mxu0 %v905
        %1032 = vmatpush.bf16.msra.mxu0 %v903
        %1033 = vmatpush.bf16.msra.mxu0 %v901
        %1034 = vmatpush.bf16.msra.mxu0 %v899
        %1035 = vmatpush.bf16.msra.mxu0 %v897
        %1036 = vmatpush.bf16.msra.mxu0 %v895
        %1037 = vmatpush.bf16.msra.mxu0 %v893
        %1038 = vmatmul.bf16.gmra.mxu0 %v712
        %v1039 = vpop.f32.mrf.mxu0
        %v1040 = vadd.f32 %v951, %v1039
        %v1041 = vpop.f32.mrf.mxu0
        %v1042 = vadd.f32 %v953, %v1041
        %1043 = vmatmul.bf16.gmra.mxu0 %v714
        %v1044 = vpop.f32.mrf.mxu0
        %v1045 = vadd.f32 %v956, %v1044
        %v1046 = vpop.f32.mrf.mxu0
        %v1047 = vadd.f32 %v958, %v1046
        %1048 = vmatmul.bf16.gmra.mxu0 %v716
        %v1049 = vpop.f32.mrf.mxu0
        %v1050 = vadd.f32 %v961, %v1049
        %v1051 = vpop.f32.mrf.mxu0
        %v1052 = vadd.f32 %v963, %v1051
        %1053 = vmatmul.bf16.gmra.mxu0 %v718
        %v1054 = vpop.f32.mrf.mxu0
        %v1055 = vadd.f32 %v966, %v1054
        %v1056 = vpop.f32.mrf.mxu0
        %v1057 = vadd.f32 %v968, %v1056
        %1058 = vmatmul.bf16.gmra.mxu0 %v720
        %v1059 = vpop.f32.mrf.mxu0
        %v1060 = vadd.f32 %v971, %v1059
        %v1061 = vpop.f32.mrf.mxu0
        %v1062 = vadd.f32 %v973, %v1061
        %1063 = vmatmul.bf16.gmra.mxu0 %v722
        %v1064 = vpop.f32.mrf.mxu0
        %v1065 = vadd.f32 %v976, %v1064
        %v1066 = vpop.f32.mrf.mxu0
        %v1067 = vadd.f32 %v978, %v1066
        %1068 = vmatmul.bf16.gmra.mxu0 %v724
        %v1069 = vpop.f32.mrf.mxu0
        %v1070 = vadd.f32 %v981, %v1069
        %v1071 = vpop.f32.mrf.mxu0
        %v1072 = vadd.f32 %v983, %v1071
        %1073 = vmatmul.bf16.gmra.mxu0 %v726
        %v1074 = vpop.f32.mrf.mxu0
        %v1075 = vadd.f32 %v986, %v1074
        %v1076 = vpop.f32.mrf.mxu0
        %v1077 = vadd.f32 %v988, %v1076
        %1078 = vmatmul.bf16.gmra.mxu0 %v728
        %v1079 = vpop.f32.mrf.mxu0
        %v1080 = vadd.f32 %v991, %v1079
        %v1081 = vpop.f32.mrf.mxu0
        %v1082 = vadd.f32 %v993, %v1081
        %1083 = vmatmul.bf16.gmra.mxu0 %v730
        %v1084 = vpop.f32.mrf.mxu0
        %v1085 = vadd.f32 %v996, %v1084
        %v1086 = vpop.f32.mrf.mxu0
        %v1087 = vadd.f32 %v998, %v1086
        %1088 = vmatmul.bf16.gmra.mxu0 %v732
        %v1089 = vpop.f32.mrf.mxu0
        %v1090 = vadd.f32 %v1001, %v1089
        %v1091 = vpop.f32.mrf.mxu0
        %v1092 = vadd.f32 %v1003, %v1091
        %1093 = vmatmul.bf16.gmra.mxu0 %v734
        %v1094 = vpop.f32.mrf.mxu0
        %v1095 = vadd.f32 %v1006, %v1094
        %v1096 = vpop.f32.mrf.mxu0
        %v1097 = vadd.f32 %v1008, %v1096
        %1098 = vmatmul.bf16.gmra.mxu0 %v736
        %v1099 = vpop.f32.mrf.mxu0
        %v1100 = vadd.f32 %v1011, %v1099
        %v1101 = vpop.f32.mrf.mxu0
        %v1102 = vadd.f32 %v1013, %v1101
        %1103 = vmatmul.bf16.gmra.mxu0 %v738
        %v1104 = vpop.f32.mrf.mxu0
        %v1105 = vadd.f32 %v1016, %v1104
        %v1106 = vpop.f32.mrf.mxu0
        %v1107 = vadd.f32 %v1018, %v1106
        %1108 = vmatmul.bf16.gmra.mxu0 %v740
        %v1109 = vpop.f32.mrf.mxu0
        %v1110 = vadd.f32 %v1021, %v1109
        %v1111 = vpop.f32.mrf.mxu0
        %v1112 = vadd.f32 %v1023, %v1111
        %1113 = vmatmul.bf16.gmra.mxu0 %v742
        %v1114 = vpop.f32.mrf.mxu0
        %v1115 = vadd.f32 %v1026, %v1114
        %v1116 = vpop.f32.mrf.mxu0
        %v1117 = vadd.f32 %v1028, %v1116
        %1118 = vdwg.mxu0
        %1119 = vmatpush.bf16.msra.mxu0 %v892
        %1120 = vmatpush.bf16.msra.mxu0 %v890
        %1121 = vmatpush.bf16.msra.mxu0 %v888
        %1122 = vmatpush.bf16.msra.mxu0 %v886
        %1123 = vmatpush.bf16.msra.mxu0 %v884
        %1124 = vmatpush.bf16.msra.mxu0 %v882
        %1125 = vmatpush.bf16.msra.mxu0 %v880
        %1126 = vmatpush.bf16.msra.mxu0 %v878
        %1127 = vmatmul.bf16.gmra.mxu0 %v711
        %v1128 = vpop.f32.mrf.mxu0
        %v1129 = vadd.f32 %v778, %v1128
        %v1130 = vpop.f32.mrf.mxu0
        %v1131 = vadd.f32 %v778, %v1130
        %1132 = vmatmul.bf16.gmra.mxu0 %v713
        %v1133 = vpop.f32.mrf.mxu0
        %v1134 = vadd.f32 %v778, %v1133
        %v1135 = vpop.f32.mrf.mxu0
        %v1136 = vadd.f32 %v778, %v1135
        %1137 = vmatmul.bf16.gmra.mxu0 %v715
        %v1138 = vpop.f32.mrf.mxu0
        %v1139 = vadd.f32 %v778, %v1138
        %v1140 = vpop.f32.mrf.mxu0
        %v1141 = vadd.f32 %v778, %v1140
        %1142 = vmatmul.bf16.gmra.mxu0 %v717
        %v1143 = vpop.f32.mrf.mxu0
        %v1144 = vadd.f32 %v778, %v1143
        %v1145 = vpop.f32.mrf.mxu0
        %v1146 = vadd.f32 %v778, %v1145
        %1147 = vmatmul.bf16.gmra.mxu0 %v719
        %v1148 = vpop.f32.mrf.mxu0
        %v1149 = vadd.f32 %v778, %v1148
        %v1150 = vpop.f32.mrf.mxu0
        %v1151 = vadd.f32 %v778, %v1150
        %1152 = vmatmul.bf16.gmra.mxu0 %v721
        %v1153 = vpop.f32.mrf.mxu0
        %v1154 = vadd.f32 %v778, %v1153
        %v1155 = vpop.f32.mrf.mxu0
        %v1156 = vadd.f32 %v778, %v1155
        %1157 = vmatmul.bf16.gmra.mxu0 %v723
        %v1158 = vpop.f32.mrf.mxu0
        %v1159 = vadd.f32 %v778, %v1158
        %v1160 = vpop.f32.mrf.mxu0
        %v1161 = vadd.f32 %v778, %v1160
        %1162 = vmatmul.bf16.gmra.mxu0 %v725
        %v1163 = vpop.f32.mrf.mxu0
        %v1164 = vadd.f32 %v778, %v1163
        %v1165 = vpop.f32.mrf.mxu0
        %v1166 = vadd.f32 %v778, %v1165
        %1167 = vmatmul.bf16.gmra.mxu0 %v727
        %v1168 = vpop.f32.mrf.mxu0
        %v1169 = vadd.f32 %v778, %v1168
        %v1170 = vpop.f32.mrf.mxu0
        %v1171 = vadd.f32 %v778, %v1170
        %1172 = vmatmul.bf16.gmra.mxu0 %v729
        %v1173 = vpop.f32.mrf.mxu0
        %v1174 = vadd.f32 %v778, %v1173
        %v1175 = vpop.f32.mrf.mxu0
        %v1176 = vadd.f32 %v778, %v1175
        %1177 = vmatmul.bf16.gmra.mxu0 %v731
        %v1178 = vpop.f32.mrf.mxu0
        %v1179 = vadd.f32 %v778, %v1178
        %v1180 = vpop.f32.mrf.mxu0
        %v1181 = vadd.f32 %v778, %v1180
        %1182 = vmatmul.bf16.gmra.mxu0 %v733
        %v1183 = vpop.f32.mrf.mxu0
        %v1184 = vadd.f32 %v778, %v1183
        %v1185 = vpop.f32.mrf.mxu0
        %v1186 = vadd.f32 %v778, %v1185
        %1187 = vmatmul.bf16.gmra.mxu0 %v735
        %v1188 = vpop.f32.mrf.mxu0
        %v1189 = vadd.f32 %v778, %v1188
        %v1190 = vpop.f32.mrf.mxu0
        %v1191 = vadd.f32 %v778, %v1190
        %1192 = vmatmul.bf16.gmra.mxu0 %v737
        %v1193 = vpop.f32.mrf.mxu0
        %v1194 = vadd.f32 %v778, %v1193
        %v1195 = vpop.f32.mrf.mxu0
        %v1196 = vadd.f32 %v778, %v1195
        %1197 = vmatmul.bf16.gmra.mxu0 %v739
        %v1198 = vpop.f32.mrf.mxu0
        %v1199 = vadd.f32 %v778, %v1198
        %v1200 = vpop.f32.mrf.mxu0
        %v1201 = vadd.f32 %v778, %v1200
        %1202 = vmatmul.bf16.gmra.mxu0 %v741
        %v1203 = vpop.f32.mrf.mxu0
        %v1204 = vadd.f32 %v778, %v1203
        %v1205 = vpop.f32.mrf.mxu0
        %v1206 = vadd.f32 %v778, %v1205
        %1207 = vdwg.mxu0
        %1208 = vmatpush.bf16.msra.mxu0 %v908
        %1209 = vmatpush.bf16.msra.mxu0 %v906
        %1210 = vmatpush.bf16.msra.mxu0 %v904
        %1211 = vmatpush.bf16.msra.mxu0 %v902
        %1212 = vmatpush.bf16.msra.mxu0 %v900
        %1213 = vmatpush.bf16.msra.mxu0 %v898
        %1214 = vmatpush.bf16.msra.mxu0 %v896
        %1215 = vmatpush.bf16.msra.mxu0 %v894
        %1216 = vmatmul.bf16.gmra.mxu0 %v712
        %v1217 = vpop.f32.mrf.mxu0
        %v1218 = vadd.f32 %v1129, %v1217
        %v1219 = vpop.f32.mrf.mxu0
        %v1220 = vadd.f32 %v1131, %v1219
        %1221 = vmatmul.bf16.gmra.mxu0 %v714
        %v1222 = vpop.f32.mrf.mxu0
        %v1223 = vadd.f32 %v1134, %v1222
        %v1224 = vpop.f32.mrf.mxu0
        %v1225 = vadd.f32 %v1136, %v1224
        %1226 = vmatmul.bf16.gmra.mxu0 %v716
        %v1227 = vpop.f32.mrf.mxu0
        %v1228 = vadd.f32 %v1139, %v1227
        %v1229 = vpop.f32.mrf.mxu0
        %v1230 = vadd.f32 %v1141, %v1229
        %1231 = vmatmul.bf16.gmra.mxu0 %v718
        %v1232 = vpop.f32.mrf.mxu0
        %v1233 = vadd.f32 %v1144, %v1232
        %v1234 = vpop.f32.mrf.mxu0
        %v1235 = vadd.f32 %v1146, %v1234
        %1236 = vmatmul.bf16.gmra.mxu0 %v720
        %v1237 = vpop.f32.mrf.mxu0
        %v1238 = vadd.f32 %v1149, %v1237
        %v1239 = vpop.f32.mrf.mxu0
        %v1240 = vadd.f32 %v1151, %v1239
        %1241 = vmatmul.bf16.gmra.mxu0 %v722
        %v1242 = vpop.f32.mrf.mxu0
        %v1243 = vadd.f32 %v1154, %v1242
        %v1244 = vpop.f32.mrf.mxu0
        %v1245 = vadd.f32 %v1156, %v1244
        %1246 = vmatmul.bf16.gmra.mxu0 %v724
        %v1247 = vpop.f32.mrf.mxu0
        %v1248 = vadd.f32 %v1159, %v1247
        %v1249 = vpop.f32.mrf.mxu0
        %v1250 = vadd.f32 %v1161, %v1249
        %1251 = vmatmul.bf16.gmra.mxu0 %v726
        %v1252 = vpop.f32.mrf.mxu0
        %v1253 = vadd.f32 %v1164, %v1252
        %v1254 = vpop.f32.mrf.mxu0
        %v1255 = vadd.f32 %v1166, %v1254
        %1256 = vmatmul.bf16.gmra.mxu0 %v728
        %v1257 = vpop.f32.mrf.mxu0
        %v1258 = vadd.f32 %v1169, %v1257
        %v1259 = vpop.f32.mrf.mxu0
        %v1260 = vadd.f32 %v1171, %v1259
        %1261 = vmatmul.bf16.gmra.mxu0 %v730
        %v1262 = vpop.f32.mrf.mxu0
        %v1263 = vadd.f32 %v1174, %v1262
        %v1264 = vpop.f32.mrf.mxu0
        %v1265 = vadd.f32 %v1176, %v1264
        %1266 = vmatmul.bf16.gmra.mxu0 %v732
        %v1267 = vpop.f32.mrf.mxu0
        %v1268 = vadd.f32 %v1179, %v1267
        %v1269 = vpop.f32.mrf.mxu0
        %v1270 = vadd.f32 %v1181, %v1269
        %1271 = vmatmul.bf16.gmra.mxu0 %v734
        %v1272 = vpop.f32.mrf.mxu0
        %v1273 = vadd.f32 %v1184, %v1272
        %v1274 = vpop.f32.mrf.mxu0
        %v1275 = vadd.f32 %v1186, %v1274
        %1276 = vmatmul.bf16.gmra.mxu0 %v736
        %v1277 = vpop.f32.mrf.mxu0
        %v1278 = vadd.f32 %v1189, %v1277
        %v1279 = vpop.f32.mrf.mxu0
        %v1280 = vadd.f32 %v1191, %v1279
        %1281 = vmatmul.bf16.gmra.mxu0 %v738
        %v1282 = vpop.f32.mrf.mxu0
        %v1283 = vadd.f32 %v1194, %v1282
        %v1284 = vpop.f32.mrf.mxu0
        %v1285 = vadd.f32 %v1196, %v1284
        %1286 = vmatmul.bf16.gmra.mxu0 %v740
        %v1287 = vpop.f32.mrf.mxu0
        %v1288 = vadd.f32 %v1199, %v1287
        %v1289 = vpop.f32.mrf.mxu0
        %v1290 = vadd.f32 %v1201, %v1289
        %1291 = vmatmul.bf16.gmra.mxu0 %v742
        %v1292 = vpop.f32.mrf.mxu0
        %v1293 = vadd.f32 %v1204, %v1292
        %v1294 = vpop.f32.mrf.mxu0
        %v1295 = vadd.f32 %v1206, %v1294
        %1296 = vdwg.mxu0
        %v1297 = vmax.f32 %v1040, 0.0
        %v1298 = vmax.f32 %v1218, 0.0
        %v1299 = vmax.f32 %v1042, 0.0
        %v1300 = vmax.f32 %v1220, 0.0
        %v1301 = vmax.f32 %v1045, 0.0
        %v1302 = vmax.f32 %v1223, 0.0
        %v1303 = vmax.f32 %v1047, 0.0
        %v1304 = vmax.f32 %v1225, 0.0
        %v1305 = vmax.f32 %v1050, 0.0
        %v1306 = vmax.f32 %v1228, 0.0
        %v1307 = vmax.f32 %v1052, 0.0
        %v1308 = vmax.f32 %v1230, 0.0
        %v1309 = vmax.f32 %v1055, 0.0
        %v1310 = vmax.f32 %v1233, 0.0
        %v1311 = vmax.f32 %v1057, 0.0
        %v1312 = vmax.f32 %v1235, 0.0
        %v1313 = vmax.f32 %v1060, 0.0
        %v1314 = vmax.f32 %v1238, 0.0
        %v1315 = vmax.f32 %v1062, 0.0
        %v1316 = vmax.f32 %v1240, 0.0
        %v1317 = vmax.f32 %v1065, 0.0
        %v1318 = vmax.f32 %v1243, 0.0
        %v1319 = vmax.f32 %v1067, 0.0
        %v1320 = vmax.f32 %v1245, 0.0
        %v1321 = vmax.f32 %v1070, 0.0
        %v1322 = vmax.f32 %v1248, 0.0
        %v1323 = vmax.f32 %v1072, 0.0
        %v1324 = vmax.f32 %v1250, 0.0
        %v1325 = vmax.f32 %v1075, 0.0
        %v1326 = vmax.f32 %v1253, 0.0
        %v1327 = vmax.f32 %v1077, 0.0
        %v1328 = vmax.f32 %v1255, 0.0
        %v1329 = vmax.f32 %v1080, 0.0
        %v1330 = vmax.f32 %v1258, 0.0
        %v1331 = vmax.f32 %v1082, 0.0
        %v1332 = vmax.f32 %v1260, 0.0
        %v1333 = vmax.f32 %v1085, 0.0
        %v1334 = vmax.f32 %v1263, 0.0
        %v1335 = vmax.f32 %v1087, 0.0
        %v1336 = vmax.f32 %v1265, 0.0
        %v1337 = vmax.f32 %v1090, 0.0
        %v1338 = vmax.f32 %v1268, 0.0
        %v1339 = vmax.f32 %v1092, 0.0
        %v1340 = vmax.f32 %v1270, 0.0
        %v1341 = vmax.f32 %v1095, 0.0
        %v1342 = vmax.f32 %v1273, 0.0
        %v1343 = vmax.f32 %v1097, 0.0
        %v1344 = vmax.f32 %v1275, 0.0
        %v1345 = vmax.f32 %v1100, 0.0
        %v1346 = vmax.f32 %v1278, 0.0
        %v1347 = vmax.f32 %v1102, 0.0
        %v1348 = vmax.f32 %v1280, 0.0
        %v1349 = vmax.f32 %v1105, 0.0
        %v1350 = vmax.f32 %v1283, 0.0
        %v1351 = vmax.f32 %v1107, 0.0
        %v1352 = vmax.f32 %v1285, 0.0
        %v1353 = vmax.f32 %v1110, 0.0
        %v1354 = vmax.f32 %v1288, 0.0
        %v1355 = vmax.f32 %v1112, 0.0
        %v1356 = vmax.f32 %v1290, 0.0
        %v1357 = vmax.f32 %v1115, 0.0
        %v1358 = vmax.f32 %v1293, 0.0
        %v1359 = vmax.f32 %v1117, 0.0
        %v1360 = vmax.f32 %v1295, 0.0
        %v1361 = vpack.c.bf16 %v1299, %v1297
        %v1362 = vpack.c.bf16 %v1300, %v1298
        %v1363 = vpack.c.bf16 %v1303, %v1301
        %v1364 = vpack.c.bf16 %v1304, %v1302
        %v1365 = vpack.c.bf16 %v1307, %v1305
        %v1366 = vpack.c.bf16 %v1308, %v1306
        %v1367 = vpack.c.bf16 %v1311, %v1309
        %v1368 = vpack.c.bf16 %v1312, %v1310
        %v1369 = vpack.c.bf16 %v1315, %v1313
        %v1370 = vpack.c.bf16 %v1316, %v1314
        %v1371 = vpack.c.bf16 %v1319, %v1317
        %v1372 = vpack.c.bf16 %v1320, %v1318
        %v1373 = vpack.c.bf16 %v1323, %v1321
        %v1374 = vpack.c.bf16 %v1324, %v1322
        %v1375 = vpack.c.bf16 %v1327, %v1325
        %v1376 = vpack.c.bf16 %v1328, %v1326
        %v1377 = vpack.c.bf16 %v1331, %v1329
        %v1378 = vpack.c.bf16 %v1332, %v1330
        %v1379 = vpack.c.bf16 %v1335, %v1333
        %v1380 = vpack.c.bf16 %v1336, %v1334
        %v1381 = vpack.c.bf16 %v1339, %v1337
        %v1382 = vpack.c.bf16 %v1340, %v1338
        %v1383 = vpack.c.bf16 %v1343, %v1341
        %v1384 = vpack.c.bf16 %v1344, %v1342
        %v1385 = vpack.c.bf16 %v1347, %v1345
        %v1386 = vpack.c.bf16 %v1348, %v1346
        %v1387 = vpack.c.bf16 %v1351, %v1349
        %v1388 = vpack.c.bf16 %v1352, %v1350
        %v1389 = vpack.c.bf16 %v1355, %v1353
        %v1390 = vpack.c.bf16 %v1356, %v1354
        %v1391 = vpack.c.bf16 %v1359, %v1357
        %v1392 = vpack.c.bf16 %v1360, %v1358
        %v1393 = vld [vmem:[#allocation2] sm:$0xff]
        %v1394 = vld [vmem:[#allocation2 + $0x8] sm:$0xff]
        %v1395 = vld [vmem:[#allocation2 + $0x10] sm:$0xff]
        %v1396 = vld [vmem:[#allocation2 + $0x18] sm:$0xff]
        %v1397 = vld [vmem:[#allocation2 + $0x20] sm:$0xff]
        %v1398 = vld [vmem:[#allocation2 + $0x28] sm:$0xff]
        %v1399 = vld [vmem:[#allocation2 + $0x30] sm:$0xff]
        %v1400 = vld [vmem:[#allocation2 + $0x38] sm:$0xff]
        %v1401 = vld [vmem:[#allocation2 + $0x40] sm:$0xff]
        %v1402 = vld [vmem:[#allocation2 + $0x48] sm:$0xff]
        %v1403 = vld [vmem:[#allocation2 + $0x50] sm:$0xff]
        %v1404 = vld [vmem:[#allocation2 + $0x58] sm:$0xff]
        %v1405 = vld [vmem:[#allocation2 + $0x60] sm:$0xff]
        %v1406 = vld [vmem:[#allocation2 + $0x68] sm:$0xff]
        %v1407 = vld [vmem:[#allocation2 + $0x70] sm:$0xff]
        %v1408 = vld [vmem:[#allocation2 + $0x78] sm:$0xff]
        %v1409 = vld [vmem:[#allocation2 + $0x80] sm:$0xff]
        %v1410 = vld [vmem:[#allocation2 + $0x88] sm:$0xff]
        %v1411 = vld [vmem:[#allocation2 + $0x90] sm:$0xff]
        %v1412 = vld [vmem:[#allocation2 + $0x98] sm:$0xff]
        %v1413 = vld [vmem:[#allocation2 + $0xa0] sm:$0xff]
        %v1414 = vld [vmem:[#allocation2 + $0xa8] sm:$0xff]
        %v1415 = vld [vmem:[#allocation2 + $0xb0] sm:$0xff]
        %v1416 = vld [vmem:[#allocation2 + $0xb8] sm:$0xff]
        %v1417 = vld [vmem:[#allocation2 + $0xc0] sm:$0xff]
        %v1418 = vld [vmem:[#allocation2 + $0xc8] sm:$0xff]
        %v1419 = vld [vmem:[#allocation2 + $0xd0] sm:$0xff]
        %v1420 = vld [vmem:[#allocation2 + $0xd8] sm:$0xff]
        %v1421 = vld [vmem:[#allocation2 + $0xe0] sm:$0xff]
        %v1422 = vld [vmem:[#allocation2 + $0xe8] sm:$0xff]
        %v1423 = vld [vmem:[#allocation2 + $0xf0] sm:$0xff]
        %v1424 = vld [vmem:[#allocation2 + $0xf8] sm:$0xff]
        %v1425 = vld [vmem:[%s6] sm:$0x3]
        %v1427 = vperm.slane %v1425, 0
        %v1428 = vperm.slane %v1425, 1
        %v1463 = vunpack.c.l.b16 %v1393
        %v1464 = vunpack.c.h.b16 %v1393
        %v1465 = vunpack.c.l.b16 %v1394
        %v1466 = vunpack.c.h.b16 %v1394
        %v1467 = vunpack.c.l.b16 %v1395
        %v1468 = vunpack.c.h.b16 %v1395
        %v1469 = vunpack.c.l.b16 %v1396
        %v1470 = vunpack.c.h.b16 %v1396
        %v1471 = vunpack.c.l.b16 %v1397
        %v1472 = vunpack.c.h.b16 %v1397
        %v1473 = vunpack.c.l.b16 %v1398
        %v1474 = vunpack.c.h.b16 %v1398
        %v1475 = vunpack.c.l.b16 %v1399
        %v1476 = vunpack.c.h.b16 %v1399
        %v1477 = vunpack.c.l.b16 %v1400
        %v1478 = vunpack.c.h.b16 %v1400
        %v1479 = vunpack.c.l.b16 %v1401
        %v1480 = vunpack.c.h.b16 %v1401
        %v1481 = vunpack.c.l.b16 %v1402
        %v1482 = vunpack.c.h.b16 %v1402
        %v1483 = vunpack.c.l.b16 %v1403
        %v1484 = vunpack.c.h.b16 %v1403
        %v1485 = vunpack.c.l.b16 %v1404
        %v1486 = vunpack.c.h.b16 %v1404
        %v1487 = vunpack.c.l.b16 %v1405
        %v1488 = vunpack.c.h.b16 %v1405
        %v1489 = vunpack.c.l.b16 %v1406
        %v1490 = vunpack.c.h.b16 %v1406
        %v1491 = vunpack.c.l.b16 %v1407
        %v1492 = vunpack.c.h.b16 %v1407
        %v1493 = vunpack.c.l.b16 %v1408
        %v1494 = vunpack.c.h.b16 %v1408
        %v1495 = vunpack.c.l.b16 %v1409
        %v1496 = vunpack.c.h.b16 %v1409
        %v1497 = vunpack.c.l.b16 %v1410
        %v1498 = vunpack.c.h.b16 %v1410
        %v1499 = vunpack.c.l.b16 %v1411
        %v1500 = vunpack.c.h.b16 %v1411
        %v1501 = vunpack.c.l.b16 %v1412
        %v1502 = vunpack.c.h.b16 %v1412
        %v1503 = vunpack.c.l.b16 %v1413
        %v1504 = vunpack.c.h.b16 %v1413
        %v1505 = vunpack.c.l.b16 %v1414
        %v1506 = vunpack.c.h.b16 %v1414
        %v1507 = vunpack.c.l.b16 %v1415
        %v1508 = vunpack.c.h.b16 %v1415
        %v1509 = vunpack.c.l.b16 %v1416
        %v1510 = vunpack.c.h.b16 %v1416
        %v1511 = vunpack.c.l.b16 %v1417
        %v1512 = vunpack.c.h.b16 %v1417
        %v1513 = vunpack.c.l.b16 %v1418
        %v1514 = vunpack.c.h.b16 %v1418
        %v1515 = vunpack.c.l.b16 %v1419
        %v1516 = vunpack.c.h.b16 %v1419
        %v1517 = vunpack.c.l.b16 %v1420
        %v1518 = vunpack.c.h.b16 %v1420
        %v1519 = vunpack.c.l.b16 %v1421
        %v1520 = vunpack.c.h.b16 %v1421
        %v1521 = vunpack.c.l.b16 %v1422
        %v1522 = vunpack.c.h.b16 %v1422
        %v1523 = vunpack.c.l.b16 %v1423
        %v1524 = vunpack.c.h.b16 %v1423
        %v1525 = vunpack.c.l.b16 %v1424
        %v1526 = vunpack.c.h.b16 %v1424
        %v1527 = vpack.c.b16 %v1465, %v1463
        %v1528 = vpack.c.b16 %v1466, %v1464
        %v1529 = vpack.c.b16 %v1469, %v1467
        %v1530 = vpack.c.b16 %v1470, %v1468
        %v1531 = vpack.c.b16 %v1473, %v1471
        %v1532 = vpack.c.b16 %v1474, %v1472
        %v1533 = vpack.c.b16 %v1477, %v1475
        %v1534 = vpack.c.b16 %v1478, %v1476
        %v1535 = vpack.c.b16 %v1481, %v1479
        %v1536 = vpack.c.b16 %v1482, %v1480
        %v1537 = vpack.c.b16 %v1485, %v1483
        %v1538 = vpack.c.b16 %v1486, %v1484
        %v1539 = vpack.c.b16 %v1489, %v1487
        %v1540 = vpack.c.b16 %v1490, %v1488
        %v1541 = vpack.c.b16 %v1493, %v1491
        %v1542 = vpack.c.b16 %v1494, %v1492
        %v1543 = vpack.c.b16 %v1497, %v1495
        %v1544 = vpack.c.b16 %v1498, %v1496
        %v1545 = vpack.c.b16 %v1501, %v1499
        %v1546 = vpack.c.b16 %v1502, %v1500
        %v1547 = vpack.c.b16 %v1505, %v1503
        %v1548 = vpack.c.b16 %v1506, %v1504
        %v1549 = vpack.c.b16 %v1509, %v1507
        %v1550 = vpack.c.b16 %v1510, %v1508
        %v1551 = vpack.c.b16 %v1513, %v1511
        %v1552 = vpack.c.b16 %v1514, %v1512
        %v1553 = vpack.c.b16 %v1517, %v1515
        %v1554 = vpack.c.b16 %v1518, %v1516
        %v1555 = vpack.c.b16 %v1521, %v1519
        %v1556 = vpack.c.b16 %v1522, %v1520
        %v1557 = vpack.c.b16 %v1525, %v1523
        %v1558 = vpack.c.b16 %v1526, %v1524
        %1591 = vmatpush.bf16.msra.mxu0 %v1541
        %1592 = vmatpush.bf16.msra.mxu0 %v1539
        %1593 = vmatpush.bf16.msra.mxu0 %v1537
        %1594 = vmatpush.bf16.msra.mxu0 %v1535
        %1595 = vmatpush.bf16.msra.mxu0 %v1533
        %1596 = vmatpush.bf16.msra.mxu0 %v1531
        %1597 = vmatpush.bf16.msra.mxu0 %v1529
        %1598 = vmatpush.bf16.msra.mxu0 %v1527
        %1599 = vmatmul.bf16.gmra.mxu0 %v1361
        %v1600 = vpop.f32.mrf.mxu0
        %v1601 = vadd.f32 %v1427, %v1600
        %v1602 = vpop.f32.mrf.mxu0
        %v1603 = vadd.f32 %v1427, %v1602
        %1604 = vmatmul.bf16.gmra.mxu0 %v1363
        %v1605 = vpop.f32.mrf.mxu0
        %v1606 = vadd.f32 %v1427, %v1605
        %v1607 = vpop.f32.mrf.mxu0
        %v1608 = vadd.f32 %v1427, %v1607
        %1609 = vmatmul.bf16.gmra.mxu0 %v1365
        %v1610 = vpop.f32.mrf.mxu0
        %v1611 = vadd.f32 %v1427, %v1610
        %v1612 = vpop.f32.mrf.mxu0
        %v1613 = vadd.f32 %v1427, %v1612
        %1614 = vmatmul.bf16.gmra.mxu0 %v1367
        %v1615 = vpop.f32.mrf.mxu0
        %v1616 = vadd.f32 %v1427, %v1615
        %v1617 = vpop.f32.mrf.mxu0
        %v1618 = vadd.f32 %v1427, %v1617
        %1619 = vmatmul.bf16.gmra.mxu0 %v1369
        %v1620 = vpop.f32.mrf.mxu0
        %v1621 = vadd.f32 %v1427, %v1620
        %v1622 = vpop.f32.mrf.mxu0
        %v1623 = vadd.f32 %v1427, %v1622
        %1624 = vmatmul.bf16.gmra.mxu0 %v1371
        %v1625 = vpop.f32.mrf.mxu0
        %v1626 = vadd.f32 %v1427, %v1625
        %v1627 = vpop.f32.mrf.mxu0
        %v1628 = vadd.f32 %v1427, %v1627
        %1629 = vmatmul.bf16.gmra.mxu0 %v1373
        %v1630 = vpop.f32.mrf.mxu0
        %v1631 = vadd.f32 %v1427, %v1630
        %v1632 = vpop.f32.mrf.mxu0
        %v1633 = vadd.f32 %v1427, %v1632
        %1634 = vmatmul.bf16.gmra.mxu0 %v1375
        %v1635 = vpop.f32.mrf.mxu0
        %v1636 = vadd.f32 %v1427, %v1635
        %v1637 = vpop.f32.mrf.mxu0
        %v1638 = vadd.f32 %v1427, %v1637
        %1639 = vmatmul.bf16.gmra.mxu0 %v1377
        %v1640 = vpop.f32.mrf.mxu0
        %v1641 = vadd.f32 %v1427, %v1640
        %v1642 = vpop.f32.mrf.mxu0
        %v1643 = vadd.f32 %v1427, %v1642
        %1644 = vmatmul.bf16.gmra.mxu0 %v1379
        %v1645 = vpop.f32.mrf.mxu0
        %v1646 = vadd.f32 %v1427, %v1645
        %v1647 = vpop.f32.mrf.mxu0
        %v1648 = vadd.f32 %v1427, %v1647
        %1649 = vmatmul.bf16.gmra.mxu0 %v1381
        %v1650 = vpop.f32.mrf.mxu0
        %v1651 = vadd.f32 %v1427, %v1650
        %v1652 = vpop.f32.mrf.mxu0
        %v1653 = vadd.f32 %v1427, %v1652
        %1654 = vmatmul.bf16.gmra.mxu0 %v1383
        %v1655 = vpop.f32.mrf.mxu0
        %v1656 = vadd.f32 %v1427, %v1655
        %v1657 = vpop.f32.mrf.mxu0
        %v1658 = vadd.f32 %v1427, %v1657
        %1659 = vmatmul.bf16.gmra.mxu0 %v1385
        %v1660 = vpop.f32.mrf.mxu0
        %v1661 = vadd.f32 %v1427, %v1660
        %v1662 = vpop.f32.mrf.mxu0
        %v1663 = vadd.f32 %v1427, %v1662
        %1664 = vmatmul.bf16.gmra.mxu0 %v1387
        %v1665 = vpop.f32.mrf.mxu0
        %v1666 = vadd.f32 %v1427, %v1665
        %v1667 = vpop.f32.mrf.mxu0
        %v1668 = vadd.f32 %v1427, %v1667
        %1669 = vmatmul.bf16.gmra.mxu0 %v1389
        %v1670 = vpop.f32.mrf.mxu0
        %v1671 = vadd.f32 %v1427, %v1670
        %v1672 = vpop.f32.mrf.mxu0
        %v1673 = vadd.f32 %v1427, %v1672
        %1674 = vmatmul.bf16.gmra.mxu0 %v1391
        %v1675 = vpop.f32.mrf.mxu0
        %v1676 = vadd.f32 %v1427, %v1675
        %v1677 = vpop.f32.mrf.mxu0
        %v1678 = vadd.f32 %v1427, %v1677
        %1679 = vdwg.mxu0
        %1680 = vmatpush.bf16.msra.mxu0 %v1557
        %1681 = vmatpush.bf16.msra.mxu0 %v1555
        %1682 = vmatpush.bf16.msra.mxu0 %v1553
        %1683 = vmatpush.bf16.msra.mxu0 %v1551
        %1684 = vmatpush.bf16.msra.mxu0 %v1549
        %1685 = vmatpush.bf16.msra.mxu0 %v1547
        %1686 = vmatpush.bf16.msra.mxu0 %v1545
        %1687 = vmatpush.bf16.msra.mxu0 %v1543
        %1688 = vmatmul.bf16.gmra.mxu0 %v1362
        %v1689 = vpop.f32.mrf.mxu0
        %v1690 = vadd.f32 %v1601, %v1689
        %v1691 = vpop.f32.mrf.mxu0
        %v1692 = vadd.f32 %v1603, %v1691
        %1693 = vmatmul.bf16.gmra.mxu0 %v1364
        %v1694 = vpop.f32.mrf.mxu0
        %v1695 = vadd.f32 %v1606, %v1694
        %v1696 = vpop.f32.mrf.mxu0
        %v1697 = vadd.f32 %v1608, %v1696
        %1698 = vmatmul.bf16.gmra.mxu0 %v1366
        %v1699 = vpop.f32.mrf.mxu0
        %v1700 = vadd.f32 %v1611, %v1699
        %v1701 = vpop.f32.mrf.mxu0
        %v1702 = vadd.f32 %v1613, %v1701
        %1703 = vmatmul.bf16.gmra.mxu0 %v1368
        %v1704 = vpop.f32.mrf.mxu0
        %v1705 = vadd.f32 %v1616, %v1704
        %v1706 = vpop.f32.mrf.mxu0
        %v1707 = vadd.f32 %v1618, %v1706
        %1708 = vmatmul.bf16.gmra.mxu0 %v1370
        %v1709 = vpop.f32.mrf.mxu0
        %v1710 = vadd.f32 %v1621, %v1709
        %v1711 = vpop.f32.mrf.mxu0
        %v1712 = vadd.f32 %v1623, %v1711
        %1713 = vmatmul.bf16.gmra.mxu0 %v1372
        %v1714 = vpop.f32.mrf.mxu0
        %v1715 = vadd.f32 %v1626, %v1714
        %v1716 = vpop.f32.mrf.mxu0
        %v1717 = vadd.f32 %v1628, %v1716
        %1718 = vmatmul.bf16.gmra.mxu0 %v1374
        %v1719 = vpop.f32.mrf.mxu0
        %v1720 = vadd.f32 %v1631, %v1719
        %v1721 = vpop.f32.mrf.mxu0
        %v1722 = vadd.f32 %v1633, %v1721
        %1723 = vmatmul.bf16.gmra.mxu0 %v1376
        %v1724 = vpop.f32.mrf.mxu0
        %v1725 = vadd.f32 %v1636, %v1724
        %v1726 = vpop.f32.mrf.mxu0
        %v1727 = vadd.f32 %v1638, %v1726
        %1728 = vmatmul.bf16.gmra.mxu0 %v1378
        %v1729 = vpop.f32.mrf.mxu0
        %v1730 = vadd.f32 %v1641, %v1729
        %v1731 = vpop.f32.mrf.mxu0
        %v1732 = vadd.f32 %v1643, %v1731
        %1733 = vmatmul.bf16.gmra.mxu0 %v1380
        %v1734 = vpop.f32.mrf.mxu0
        %v1735 = vadd.f32 %v1646, %v1734
        %v1736 = vpop.f32.mrf.mxu0
        %v1737 = vadd.f32 %v1648, %v1736
        %1738 = vmatmul.bf16.gmra.mxu0 %v1382
        %v1739 = vpop.f32.mrf.mxu0
        %v1740 = vadd.f32 %v1651, %v1739
        %v1741 = vpop.f32.mrf.mxu0
        %v1742 = vadd.f32 %v1653, %v1741
        %1743 = vmatmul.bf16.gmra.mxu0 %v1384
        %v1744 = vpop.f32.mrf.mxu0
        %v1745 = vadd.f32 %v1656, %v1744
        %v1746 = vpop.f32.mrf.mxu0
        %v1747 = vadd.f32 %v1658, %v1746
        %1748 = vmatmul.bf16.gmra.mxu0 %v1386
        %v1749 = vpop.f32.mrf.mxu0
        %v1750 = vadd.f32 %v1661, %v1749
        %v1751 = vpop.f32.mrf.mxu0
        %v1752 = vadd.f32 %v1663, %v1751
        %1753 = vmatmul.bf16.gmra.mxu0 %v1388
        %v1754 = vpop.f32.mrf.mxu0
        %v1755 = vadd.f32 %v1666, %v1754
        %v1756 = vpop.f32.mrf.mxu0
        %v1757 = vadd.f32 %v1668, %v1756
        %1758 = vmatmul.bf16.gmra.mxu0 %v1390
        %v1759 = vpop.f32.mrf.mxu0
        %v1760 = vadd.f32 %v1671, %v1759
        %v1761 = vpop.f32.mrf.mxu0
        %v1762 = vadd.f32 %v1673, %v1761
        %1763 = vmatmul.bf16.gmra.mxu0 %v1392
        %v1764 = vpop.f32.mrf.mxu0
        %v1765 = vadd.f32 %v1676, %v1764
        %v1766 = vpop.f32.mrf.mxu0
        %v1767 = vadd.f32 %v1678, %v1766
        %1768 = vdwg.mxu0
        %1769 = vmatpush.bf16.msra.mxu0 %v1542
        %1770 = vmatpush.bf16.msra.mxu0 %v1540
        %1771 = vmatpush.bf16.msra.mxu0 %v1538
        %1772 = vmatpush.bf16.msra.mxu0 %v1536
        %1773 = vmatpush.bf16.msra.mxu0 %v1534
        %1774 = vmatpush.bf16.msra.mxu0 %v1532
        %1775 = vmatpush.bf16.msra.mxu0 %v1530
        %1776 = vmatpush.bf16.msra.mxu0 %v1528
        %1777 = vmatmul.bf16.gmra.mxu0 %v1361
        %v1778 = vpop.f32.mrf.mxu0
        %v1779 = vadd.f32 %v1428, %v1778
        %v1780 = vpop.f32.mrf.mxu0
        %v1781 = vadd.f32 %v1428, %v1780
        %1782 = vmatmul.bf16.gmra.mxu0 %v1363
        %v1783 = vpop.f32.mrf.mxu0
        %v1784 = vadd.f32 %v1428, %v1783
        %v1785 = vpop.f32.mrf.mxu0
        %v1786 = vadd.f32 %v1428, %v1785
        %1787 = vmatmul.bf16.gmra.mxu0 %v1365
        %v1788 = vpop.f32.mrf.mxu0
        %v1789 = vadd.f32 %v1428, %v1788
        %v1790 = vpop.f32.mrf.mxu0
        %v1791 = vadd.f32 %v1428, %v1790
        %1792 = vmatmul.bf16.gmra.mxu0 %v1367
        %v1793 = vpop.f32.mrf.mxu0
        %v1794 = vadd.f32 %v1428, %v1793
        %v1795 = vpop.f32.mrf.mxu0
        %v1796 = vadd.f32 %v1428, %v1795
        %1797 = vmatmul.bf16.gmra.mxu0 %v1369
        %v1798 = vpop.f32.mrf.mxu0
        %v1799 = vadd.f32 %v1428, %v1798
        %v1800 = vpop.f32.mrf.mxu0
        %v1801 = vadd.f32 %v1428, %v1800
        %1802 = vmatmul.bf16.gmra.mxu0 %v1371
        %v1803 = vpop.f32.mrf.mxu0
        %v1804 = vadd.f32 %v1428, %v1803
        %v1805 = vpop.f32.mrf.mxu0
        %v1806 = vadd.f32 %v1428, %v1805
        %1807 = vmatmul.bf16.gmra.mxu0 %v1373
        %v1808 = vpop.f32.mrf.mxu0
        %v1809 = vadd.f32 %v1428, %v1808
        %v1810 = vpop.f32.mrf.mxu0
        %v1811 = vadd.f32 %v1428, %v1810
        %1812 = vmatmul.bf16.gmra.mxu0 %v1375
        %v1813 = vpop.f32.mrf.mxu0
        %v1814 = vadd.f32 %v1428, %v1813
        %v1815 = vpop.f32.mrf.mxu0
        %v1816 = vadd.f32 %v1428, %v1815
        %1817 = vmatmul.bf16.gmra.mxu0 %v1377
        %v1818 = vpop.f32.mrf.mxu0
        %v1819 = vadd.f32 %v1428, %v1818
        %v1820 = vpop.f32.mrf.mxu0
        %v1821 = vadd.f32 %v1428, %v1820
        %1822 = vmatmul.bf16.gmra.mxu0 %v1379
        %v1823 = vpop.f32.mrf.mxu0
        %v1824 = vadd.f32 %v1428, %v1823
        %v1825 = vpop.f32.mrf.mxu0
        %v1826 = vadd.f32 %v1428, %v1825
        %1827 = vmatmul.bf16.gmra.mxu0 %v1381
        %v1828 = vpop.f32.mrf.mxu0
        %v1829 = vadd.f32 %v1428, %v1828
        %v1830 = vpop.f32.mrf.mxu0
        %v1831 = vadd.f32 %v1428, %v1830
        %1832 = vmatmul.bf16.gmra.mxu0 %v1383
        %v1833 = vpop.f32.mrf.mxu0
        %v1834 = vadd.f32 %v1428, %v1833
        %v1835 = vpop.f32.mrf.mxu0
        %v1836 = vadd.f32 %v1428, %v1835
        %1837 = vmatmul.bf16.gmra.mxu0 %v1385
        %v1838 = vpop.f32.mrf.mxu0
        %v1839 = vadd.f32 %v1428, %v1838
        %v1840 = vpop.f32.mrf.mxu0
        %v1841 = vadd.f32 %v1428, %v1840
        %1842 = vmatmul.bf16.gmra.mxu0 %v1387
        %v1843 = vpop.f32.mrf.mxu0
        %v1844 = vadd.f32 %v1428, %v1843
        %v1845 = vpop.f32.mrf.mxu0
        %v1846 = vadd.f32 %v1428, %v1845
        %1847 = vmatmul.bf16.gmra.mxu0 %v1389
        %v1848 = vpop.f32.mrf.mxu0
        %v1849 = vadd.f32 %v1428, %v1848
        %v1850 = vpop.f32.mrf.mxu0
        %v1851 = vadd.f32 %v1428, %v1850
        %1852 = vmatmul.bf16.gmra.mxu0 %v1391
        %v1853 = vpop.f32.mrf.mxu0
        %v1854 = vadd.f32 %v1428, %v1853
        %v1855 = vpop.f32.mrf.mxu0
        %v1856 = vadd.f32 %v1428, %v1855
        %1857 = vdwg.mxu0
        %1858 = vmatpush.bf16.msra.mxu0 %v1558
        %1859 = vmatpush.bf16.msra.mxu0 %v1556
        %1860 = vmatpush.bf16.msra.mxu0 %v1554
        %1861 = vmatpush.bf16.msra.mxu0 %v1552
        %1862 = vmatpush.bf16.msra.mxu0 %v1550
        %1863 = vmatpush.bf16.msra.mxu0 %v1548
        %1864 = vmatpush.bf16.msra.mxu0 %v1546
        %1865 = vmatpush.bf16.msra.mxu0 %v1544
        %1866 = vmatmul.bf16.gmra.mxu0 %v1362
        %v1867 = vpop.f32.mrf.mxu0
        %v1868 = vadd.f32 %v1779, %v1867
        %v1869 = vpop.f32.mrf.mxu0
        %v1870 = vadd.f32 %v1781, %v1869
        %1871 = vmatmul.bf16.gmra.mxu0 %v1364
        %v1872 = vpop.f32.mrf.mxu0
        %v1873 = vadd.f32 %v1784, %v1872
        %v1874 = vpop.f32.mrf.mxu0
        %v1875 = vadd.f32 %v1786, %v1874
        %1876 = vmatmul.bf16.gmra.mxu0 %v1366
        %v1877 = vpop.f32.mrf.mxu0
        %v1878 = vadd.f32 %v1789, %v1877
        %v1879 = vpop.f32.mrf.mxu0
        %v1880 = vadd.f32 %v1791, %v1879
        %1881 = vmatmul.bf16.gmra.mxu0 %v1368
        %v1882 = vpop.f32.mrf.mxu0
        %v1883 = vadd.f32 %v1794, %v1882
        %v1884 = vpop.f32.mrf.mxu0
        %v1885 = vadd.f32 %v1796, %v1884
        %1886 = vmatmul.bf16.gmra.mxu0 %v1370
        %v1887 = vpop.f32.mrf.mxu0
        %v1888 = vadd.f32 %v1799, %v1887
        %v1889 = vpop.f32.mrf.mxu0
        %v1890 = vadd.f32 %v1801, %v1889
        %1891 = vmatmul.bf16.gmra.mxu0 %v1372
        %v1892 = vpop.f32.mrf.mxu0
        %v1893 = vadd.f32 %v1804, %v1892
        %v1894 = vpop.f32.mrf.mxu0
        %v1895 = vadd.f32 %v1806, %v1894
        %1896 = vmatmul.bf16.gmra.mxu0 %v1374
        %v1897 = vpop.f32.mrf.mxu0
        %v1898 = vadd.f32 %v1809, %v1897
        %v1899 = vpop.f32.mrf.mxu0
        %v1900 = vadd.f32 %v1811, %v1899
        %1901 = vmatmul.bf16.gmra.mxu0 %v1376
        %v1902 = vpop.f32.mrf.mxu0
        %v1903 = vadd.f32 %v1814, %v1902
        %v1904 = vpop.f32.mrf.mxu0
        %v1905 = vadd.f32 %v1816, %v1904
        %1906 = vmatmul.bf16.gmra.mxu0 %v1378
        %v1907 = vpop.f32.mrf.mxu0
        %v1908 = vadd.f32 %v1819, %v1907
        %v1909 = vpop.f32.mrf.mxu0
        %v1910 = vadd.f32 %v1821, %v1909
        %1911 = vmatmul.bf16.gmra.mxu0 %v1380
        %v1912 = vpop.f32.mrf.mxu0
        %v1913 = vadd.f32 %v1824, %v1912
        %v1914 = vpop.f32.mrf.mxu0
        %v1915 = vadd.f32 %v1826, %v1914
        %1916 = vmatmul.bf16.gmra.mxu0 %v1382
        %v1917 = vpop.f32.mrf.mxu0
        %v1918 = vadd.f32 %v1829, %v1917
        %v1919 = vpop.f32.mrf.mxu0
        %v1920 = vadd.f32 %v1831, %v1919
        %1921 = vmatmul.bf16.gmra.mxu0 %v1384
        %v1922 = vpop.f32.mrf.mxu0
        %v1923 = vadd.f32 %v1834, %v1922
        %v1924 = vpop.f32.mrf.mxu0
        %v1925 = vadd.f32 %v1836, %v1924
        %1926 = vmatmul.bf16.gmra.mxu0 %v1386
        %v1927 = vpop.f32.mrf.mxu0
        %v1928 = vadd.f32 %v1839, %v1927
        %v1929 = vpop.f32.mrf.mxu0
        %v1930 = vadd.f32 %v1841, %v1929
        %1931 = vmatmul.bf16.gmra.mxu0 %v1388
        %v1932 = vpop.f32.mrf.mxu0
        %v1933 = vadd.f32 %v1844, %v1932
        %v1934 = vpop.f32.mrf.mxu0
        %v1935 = vadd.f32 %v1846, %v1934
        %1936 = vmatmul.bf16.gmra.mxu0 %v1390
        %v1937 = vpop.f32.mrf.mxu0
        %v1938 = vadd.f32 %v1849, %v1937
        %v1939 = vpop.f32.mrf.mxu0
        %v1940 = vadd.f32 %v1851, %v1939
        %1941 = vmatmul.bf16.gmra.mxu0 %v1392
        %v1942 = vpop.f32.mrf.mxu0
        %v1943 = vadd.f32 %v1854, %v1942
        %v1944 = vpop.f32.mrf.mxu0
        %v1945 = vadd.f32 %v1856, %v1944
        %1946 = vdwg.mxu0
        %v1947 = vmax.f32 %v1690, 0.0
        %v1948 = vmax.f32 %v1868, 0.0
        %v1949 = vmax.f32 %v1692, 0.0
        %v1950 = vmax.f32 %v1870, 0.0
        %v1951 = vmax.f32 %v1695, 0.0
        %v1952 = vmax.f32 %v1873, 0.0
        %v1953 = vmax.f32 %v1697, 0.0
        %v1954 = vmax.f32 %v1875, 0.0
        %v1955 = vmax.f32 %v1700, 0.0
        %v1956 = vmax.f32 %v1878, 0.0
        %v1957 = vmax.f32 %v1702, 0.0
        %v1958 = vmax.f32 %v1880, 0.0
        %v1959 = vmax.f32 %v1705, 0.0
        %v1960 = vmax.f32 %v1883, 0.0
        %v1961 = vmax.f32 %v1707, 0.0
        %v1962 = vmax.f32 %v1885, 0.0
        %v1963 = vmax.f32 %v1710, 0.0
        %v1964 = vmax.f32 %v1888, 0.0
        %v1965 = vmax.f32 %v1712, 0.0
        %v1966 = vmax.f32 %v1890, 0.0
        %v1967 = vmax.f32 %v1715, 0.0
        %v1968 = vmax.f32 %v1893, 0.0
        %v1969 = vmax.f32 %v1717, 0.0
        %v1970 = vmax.f32 %v1895, 0.0
        %v1971 = vmax.f32 %v1720, 0.0
        %v1972 = vmax.f32 %v1898, 0.0
        %v1973 = vmax.f32 %v1722, 0.0
        %v1974 = vmax.f32 %v1900, 0.0
        %v1975 = vmax.f32 %v1725, 0.0
        %v1976 = vmax.f32 %v1903, 0.0
        %v1977 = vmax.f32 %v1727, 0.0
        %v1978 = vmax.f32 %v1905, 0.0
        %v1979 = vmax.f32 %v1730, 0.0
        %v1980 = vmax.f32 %v1908, 0.0
        %v1981 = vmax.f32 %v1732, 0.0
        %v1982 = vmax.f32 %v1910, 0.0
        %v1983 = vmax.f32 %v1735, 0.0
        %v1984 = vmax.f32 %v1913, 0.0
        %v1985 = vmax.f32 %v1737, 0.0
        %v1986 = vmax.f32 %v1915, 0.0
        %v1987 = vmax.f32 %v1740, 0.0
        %v1988 = vmax.f32 %v1918, 0.0
        %v1989 = vmax.f32 %v1742, 0.0
        %v1990 = vmax.f32 %v1920, 0.0
        %v1991 = vmax.f32 %v1745, 0.0
        %v1992 = vmax.f32 %v1923, 0.0
        %v1993 = vmax.f32 %v1747, 0.0
        %v1994 = vmax.f32 %v1925, 0.0
        %v1995 = vmax.f32 %v1750, 0.0
        %v1996 = vmax.f32 %v1928, 0.0
        %v1997 = vmax.f32 %v1752, 0.0
        %v1998 = vmax.f32 %v1930, 0.0
        %v1999 = vmax.f32 %v1755, 0.0
        %v2000 = vmax.f32 %v1933, 0.0
        %v2001 = vmax.f32 %v1757, 0.0
        %v2002 = vmax.f32 %v1935, 0.0
        %v2003 = vmax.f32 %v1760, 0.0
        %v2004 = vmax.f32 %v1938, 0.0
        %v2005 = vmax.f32 %v1762, 0.0
        %v2006 = vmax.f32 %v1940, 0.0
        %v2007 = vmax.f32 %v1765, 0.0
        %v2008 = vmax.f32 %v1943, 0.0
        %v2009 = vmax.f32 %v1767, 0.0
        %v2010 = vmax.f32 %v1945, 0.0
        %v2011 = vpack.c.bf16 %v1949, %v1947
        %v2012 = vpack.c.bf16 %v1950, %v1948
        %v2013 = vpack.c.bf16 %v1953, %v1951
        %v2014 = vpack.c.bf16 %v1954, %v1952
        %v2015 = vpack.c.bf16 %v1957, %v1955
        %v2016 = vpack.c.bf16 %v1958, %v1956
        %v2017 = vpack.c.bf16 %v1961, %v1959
        %v2018 = vpack.c.bf16 %v1962, %v1960
        %v2019 = vpack.c.bf16 %v1965, %v1963
        %v2020 = vpack.c.bf16 %v1966, %v1964
        %v2021 = vpack.c.bf16 %v1969, %v1967
        %v2022 = vpack.c.bf16 %v1970, %v1968
        %v2023 = vpack.c.bf16 %v1973, %v1971
        %v2024 = vpack.c.bf16 %v1974, %v1972
        %v2025 = vpack.c.bf16 %v1977, %v1975
        %v2026 = vpack.c.bf16 %v1978, %v1976
        %v2027 = vpack.c.bf16 %v1981, %v1979
        %v2028 = vpack.c.bf16 %v1982, %v1980
        %v2029 = vpack.c.bf16 %v1985, %v1983
        %v2030 = vpack.c.bf16 %v1986, %v1984
        %v2031 = vpack.c.bf16 %v1989, %v1987
        %v2032 = vpack.c.bf16 %v1990, %v1988
        %v2033 = vpack.c.bf16 %v1993, %v1991
        %v2034 = vpack.c.bf16 %v1994, %v1992
        %v2035 = vpack.c.bf16 %v1997, %v1995
        %v2036 = vpack.c.bf16 %v1998, %v1996
        %v2037 = vpack.c.bf16 %v2001, %v1999
        %v2038 = vpack.c.bf16 %v2002, %v2000
        %v2039 = vpack.c.bf16 %v2005, %v2003
        %v2040 = vpack.c.bf16 %v2006, %v2004
        %v2041 = vpack.c.bf16 %v2009, %v2007
        %v2042 = vpack.c.bf16 %v2010, %v2008
        %v2043 = vld [vmem:[%s7] sm:$0xf]
        %v2044 = vld [vmem:[%s7 + $0x4] sm:$0xf]
        %v2045 = vld [vmem:[%s7 + $0x8] sm:$0xf]
        %v2046 = vld [vmem:[%s7 + $0xc] sm:$0xf]
        %v2047 = vld [vmem:[%s7 + $0x10] sm:$0xf]
        %v2048 = vld [vmem:[%s7 + $0x14] sm:$0xf]
        %v2049 = vld [vmem:[%s7 + $0x18] sm:$0xf]
        %v2050 = vld [vmem:[%s7 + $0x1c] sm:$0xf]
        %v2051 = vld [vmem:[%s7 + $0x20] sm:$0xf]
        %v2052 = vld [vmem:[%s7 + $0x24] sm:$0xf]
        %v2053 = vld [vmem:[%s7 + $0x28] sm:$0xf]
        %v2054 = vld [vmem:[%s7 + $0x2c] sm:$0xf]
        %v2055 = vld [vmem:[%s7 + $0x30] sm:$0xf]
        %v2056 = vld [vmem:[%s7 + $0x34] sm:$0xf]
        %v2057 = vld [vmem:[%s7 + $0x38] sm:$0xf]
        %v2058 = vld [vmem:[%s7 + $0x3c] sm:$0xf]
        %v2059 = vld [vmem:[%s7 + $0x40] sm:$0xf]
        %v2060 = vld [vmem:[%s7 + $0x44] sm:$0xf]
        %v2061 = vld [vmem:[%s7 + $0x48] sm:$0xf]
        %v2062 = vld [vmem:[%s7 + $0x4c] sm:$0xf]
        %v2063 = vld [vmem:[%s7 + $0x50] sm:$0xf]
        %v2064 = vld [vmem:[%s7 + $0x54] sm:$0xf]
        %v2065 = vld [vmem:[%s7 + $0x58] sm:$0xf]
        %v2066 = vld [vmem:[%s7 + $0x5c] sm:$0xf]
        %v2067 = vld [vmem:[%s7 + $0x60] sm:$0xf]
        %v2068 = vld [vmem:[%s7 + $0x64] sm:$0xf]
        %v2069 = vld [vmem:[%s7 + $0x68] sm:$0xf]
        %v2070 = vld [vmem:[%s7 + $0x6c] sm:$0xf]
        %v2071 = vld [vmem:[%s7 + $0x70] sm:$0xf]
        %v2072 = vld [vmem:[%s7 + $0x74] sm:$0xf]
        %v2073 = vld [vmem:[%s7 + $0x78] sm:$0xf]
        %v2074 = vld [vmem:[%s7 + $0x7c] sm:$0xf]
        %v2075 = vld [vmem:[%s8] sm:$0x1]
        %v2077 = vperm.slane %v2075, 0
        %v2111 = vunpack.c.l.b16 %v2043
        %v2112 = vunpack.c.l.b16 %v2044
        %v2113 = vunpack.c.l.b16 %v2045
        %v2114 = vunpack.c.l.b16 %v2046
        %v2115 = vunpack.c.l.b16 %v2047
        %v2116 = vunpack.c.l.b16 %v2048
        %v2117 = vunpack.c.l.b16 %v2049
        %v2118 = vunpack.c.l.b16 %v2050
        %v2119 = vunpack.c.l.b16 %v2051
        %v2120 = vunpack.c.l.b16 %v2052
        %v2121 = vunpack.c.l.b16 %v2053
        %v2122 = vunpack.c.l.b16 %v2054
        %v2123 = vunpack.c.l.b16 %v2055
        %v2124 = vunpack.c.l.b16 %v2056
        %v2125 = vunpack.c.l.b16 %v2057
        %v2126 = vunpack.c.l.b16 %v2058
        %v2127 = vunpack.c.l.b16 %v2059
        %v2128 = vunpack.c.l.b16 %v2060
        %v2129 = vunpack.c.l.b16 %v2061
        %v2130 = vunpack.c.l.b16 %v2062
        %v2131 = vunpack.c.l.b16 %v2063
        %v2132 = vunpack.c.l.b16 %v2064
        %v2133 = vunpack.c.l.b16 %v2065
        %v2134 = vunpack.c.l.b16 %v2066
        %v2135 = vunpack.c.l.b16 %v2067
        %v2136 = vunpack.c.l.b16 %v2068
        %v2137 = vunpack.c.l.b16 %v2069
        %v2138 = vunpack.c.l.b16 %v2070
        %v2139 = vunpack.c.l.b16 %v2071
        %v2140 = vunpack.c.l.b16 %v2072
        %v2141 = vunpack.c.l.b16 %v2073
        %v2142 = vunpack.c.l.b16 %v2074
        %v2143 = vpack.c.b16 %v2112, %v2111
        %v2144 = vpack.c.b16 %v2114, %v2113
        %v2145 = vpack.c.b16 %v2116, %v2115
        %v2146 = vpack.c.b16 %v2118, %v2117
        %v2147 = vpack.c.b16 %v2120, %v2119
        %v2148 = vpack.c.b16 %v2122, %v2121
        %v2149 = vpack.c.b16 %v2124, %v2123
        %v2150 = vpack.c.b16 %v2126, %v2125
        %v2151 = vpack.c.b16 %v2128, %v2127
        %v2152 = vpack.c.b16 %v2130, %v2129
        %v2153 = vpack.c.b16 %v2132, %v2131
        %v2154 = vpack.c.b16 %v2134, %v2133
        %v2155 = vpack.c.b16 %v2136, %v2135
        %v2156 = vpack.c.b16 %v2138, %v2137
        %v2157 = vpack.c.b16 %v2140, %v2139
        %v2158 = vpack.c.b16 %v2142, %v2141
        %2175 = vmatpush.bf16.msra.mxu0 %v2150
        %2176 = vmatpush.bf16.msra.mxu0 %v2149
        %2177 = vmatpush.bf16.msra.mxu0 %v2148
        %2178 = vmatpush.bf16.msra.mxu0 %v2147
        %2179 = vmatpush.bf16.msra.mxu0 %v2146
        %2180 = vmatpush.bf16.msra.mxu0 %v2145
        %2181 = vmatpush.bf16.msra.mxu0 %v2144
        %2182 = vmatpush.bf16.msra.mxu0 %v2143
        %2183 = vmatmul.bf16.gmra.mxu0 %v2011
        %v2184 = vpop.f32.mrf.mxu0
        %v2185 = vadd.f32 %v2077, %v2184
        %v2186 = vpop.f32.mrf.mxu0
        %v2187 = vadd.f32 %v2077, %v2186
        %2188 = vmatmul.bf16.gmra.mxu0 %v2013
        %v2189 = vpop.f32.mrf.mxu0
        %v2190 = vadd.f32 %v2077, %v2189
        %v2191 = vpop.f32.mrf.mxu0
        %v2192 = vadd.f32 %v2077, %v2191
        %2193 = vmatmul.bf16.gmra.mxu0 %v2015
        %v2194 = vpop.f32.mrf.mxu0
        %v2195 = vadd.f32 %v2077, %v2194
        %v2196 = vpop.f32.mrf.mxu0
        %v2197 = vadd.f32 %v2077, %v2196
        %2198 = vmatmul.bf16.gmra.mxu0 %v2017
        %v2199 = vpop.f32.mrf.mxu0
        %v2200 = vadd.f32 %v2077, %v2199
        %v2201 = vpop.f32.mrf.mxu0
        %v2202 = vadd.f32 %v2077, %v2201
        %2203 = vmatmul.bf16.gmra.mxu0 %v2019
        %v2204 = vpop.f32.mrf.mxu0
        %v2205 = vadd.f32 %v2077, %v2204
        %v2206 = vpop.f32.mrf.mxu0
        %v2207 = vadd.f32 %v2077, %v2206
        %2208 = vmatmul.bf16.gmra.mxu0 %v2021
        %v2209 = vpop.f32.mrf.mxu0
        %v2210 = vadd.f32 %v2077, %v2209
        %v2211 = vpop.f32.mrf.mxu0
        %v2212 = vadd.f32 %v2077, %v2211
        %2213 = vmatmul.bf16.gmra.mxu0 %v2023
        %v2214 = vpop.f32.mrf.mxu0
        %v2215 = vadd.f32 %v2077, %v2214
        %v2216 = vpop.f32.mrf.mxu0
        %v2217 = vadd.f32 %v2077, %v2216
        %2218 = vmatmul.bf16.gmra.mxu0 %v2025
        %v2219 = vpop.f32.mrf.mxu0
        %v2220 = vadd.f32 %v2077, %v2219
        %v2221 = vpop.f32.mrf.mxu0
        %v2222 = vadd.f32 %v2077, %v2221
        %2223 = vmatmul.bf16.gmra.mxu0 %v2027
        %v2224 = vpop.f32.mrf.mxu0
        %v2225 = vadd.f32 %v2077, %v2224
        %v2226 = vpop.f32.mrf.mxu0
        %v2227 = vadd.f32 %v2077, %v2226
        %2228 = vmatmul.bf16.gmra.mxu0 %v2029
        %v2229 = vpop.f32.mrf.mxu0
        %v2230 = vadd.f32 %v2077, %v2229
        %v2231 = vpop.f32.mrf.mxu0
        %v2232 = vadd.f32 %v2077, %v2231
        %2233 = vmatmul.bf16.gmra.mxu0 %v2031
        %v2234 = vpop.f32.mrf.mxu0
        %v2235 = vadd.f32 %v2077, %v2234
        %v2236 = vpop.f32.mrf.mxu0
        %v2237 = vadd.f32 %v2077, %v2236
        %2238 = vmatmul.bf16.gmra.mxu0 %v2033
        %v2239 = vpop.f32.mrf.mxu0
        %v2240 = vadd.f32 %v2077, %v2239
        %v2241 = vpop.f32.mrf.mxu0
        %v2242 = vadd.f32 %v2077, %v2241
        %2243 = vmatmul.bf16.gmra.mxu0 %v2035
        %v2244 = vpop.f32.mrf.mxu0
        %v2245 = vadd.f32 %v2077, %v2244
        %v2246 = vpop.f32.mrf.mxu0
        %v2247 = vadd.f32 %v2077, %v2246
        %2248 = vmatmul.bf16.gmra.mxu0 %v2037
        %v2249 = vpop.f32.mrf.mxu0
        %v2250 = vadd.f32 %v2077, %v2249
        %v2251 = vpop.f32.mrf.mxu0
        %v2252 = vadd.f32 %v2077, %v2251
        %2253 = vmatmul.bf16.gmra.mxu0 %v2039
        %v2254 = vpop.f32.mrf.mxu0
        %v2255 = vadd.f32 %v2077, %v2254
        %v2256 = vpop.f32.mrf.mxu0
        %v2257 = vadd.f32 %v2077, %v2256
        %2258 = vmatmul.bf16.gmra.mxu0 %v2041
        %v2259 = vpop.f32.mrf.mxu0
        %v2260 = vadd.f32 %v2077, %v2259
        %v2261 = vpop.f32.mrf.mxu0
        %v2262 = vadd.f32 %v2077, %v2261
        %2263 = vdwg.mxu0
        %2264 = vmatpush.bf16.msra.mxu0 %v2158
        %2265 = vmatpush.bf16.msra.mxu0 %v2157
        %2266 = vmatpush.bf16.msra.mxu0 %v2156
        %2267 = vmatpush.bf16.msra.mxu0 %v2155
        %2268 = vmatpush.bf16.msra.mxu0 %v2154
        %2269 = vmatpush.bf16.msra.mxu0 %v2153
        %2270 = vmatpush.bf16.msra.mxu0 %v2152
        %2271 = vmatpush.bf16.msra.mxu0 %v2151
        %2272 = vmatmul.bf16.gmra.mxu0 %v2012
        %v2273 = vpop.f32.mrf.mxu0
        %v2274 = vadd.f32 %v2185, %v2273
        %v2275 = vpop.f32.mrf.mxu0
        %v2276 = vadd.f32 %v2187, %v2275
        %2277 = vmatmul.bf16.gmra.mxu0 %v2014
        %v2278 = vpop.f32.mrf.mxu0
        %v2279 = vadd.f32 %v2190, %v2278
        %v2280 = vpop.f32.mrf.mxu0
        %v2281 = vadd.f32 %v2192, %v2280
        %2282 = vmatmul.bf16.gmra.mxu0 %v2016
        %v2283 = vpop.f32.mrf.mxu0
        %v2284 = vadd.f32 %v2195, %v2283
        %v2285 = vpop.f32.mrf.mxu0
        %v2286 = vadd.f32 %v2197, %v2285
        %2287 = vmatmul.bf16.gmra.mxu0 %v2018
        %v2288 = vpop.f32.mrf.mxu0
        %v2289 = vadd.f32 %v2200, %v2288
        %v2290 = vpop.f32.mrf.mxu0
        %v2291 = vadd.f32 %v2202, %v2290
        %2292 = vmatmul.bf16.gmra.mxu0 %v2020
        %v2293 = vpop.f32.mrf.mxu0
        %v2294 = vadd.f32 %v2205, %v2293
        %v2295 = vpop.f32.mrf.mxu0
        %v2296 = vadd.f32 %v2207, %v2295
        %2297 = vmatmul.bf16.gmra.mxu0 %v2022
        %v2298 = vpop.f32.mrf.mxu0
        %v2299 = vadd.f32 %v2210, %v2298
        %v2300 = vpop.f32.mrf.mxu0
        %v2301 = vadd.f32 %v2212, %v2300
        %2302 = vmatmul.bf16.gmra.mxu0 %v2024
        %v2303 = vpop.f32.mrf.mxu0
        %v2304 = vadd.f32 %v2215, %v2303
        %v2305 = vpop.f32.mrf.mxu0
        %v2306 = vadd.f32 %v2217, %v2305
        %2307 = vmatmul.bf16.gmra.mxu0 %v2026
        %v2308 = vpop.f32.mrf.mxu0
        %v2309 = vadd.f32 %v2220, %v2308
        %v2310 = vpop.f32.mrf.mxu0
        %v2311 = vadd.f32 %v2222, %v2310
        %2312 = vmatmul.bf16.gmra.mxu0 %v2028
        %v2313 = vpop.f32.mrf.mxu0
        %v2314 = vadd.f32 %v2225, %v2313
        %v2315 = vpop.f32.mrf.mxu0
        %v2316 = vadd.f32 %v2227, %v2315
        %2317 = vmatmul.bf16.gmra.mxu0 %v2030
        %v2318 = vpop.f32.mrf.mxu0
        %v2319 = vadd.f32 %v2230, %v2318
        %v2320 = vpop.f32.mrf.mxu0
        %v2321 = vadd.f32 %v2232, %v2320
        %2322 = vmatmul.bf16.gmra.mxu0 %v2032
        %v2323 = vpop.f32.mrf.mxu0
        %v2324 = vadd.f32 %v2235, %v2323
        %v2325 = vpop.f32.mrf.mxu0
        %v2326 = vadd.f32 %v2237, %v2325
        %2327 = vmatmul.bf16.gmra.mxu0 %v2034
        %v2328 = vpop.f32.mrf.mxu0
        %v2329 = vadd.f32 %v2240, %v2328
        %v2330 = vpop.f32.mrf.mxu0
        %v2331 = vadd.f32 %v2242, %v2330
        %2332 = vmatmul.bf16.gmra.mxu0 %v2036
        %v2333 = vpop.f32.mrf.mxu0
        %v2334 = vadd.f32 %v2245, %v2333
        %v2335 = vpop.f32.mrf.mxu0
        %v2336 = vadd.f32 %v2247, %v2335
        %2337 = vmatmul.bf16.gmra.mxu0 %v2038
        %v2338 = vpop.f32.mrf.mxu0
        %v2339 = vadd.f32 %v2250, %v2338
        %v2340 = vpop.f32.mrf.mxu0
        %v2341 = vadd.f32 %v2252, %v2340
        %2342 = vmatmul.bf16.gmra.mxu0 %v2040
        %v2343 = vpop.f32.mrf.mxu0
        %v2344 = vadd.f32 %v2255, %v2343
        %v2345 = vpop.f32.mrf.mxu0
        %v2346 = vadd.f32 %v2257, %v2345
        %2347 = vmatmul.bf16.gmra.mxu0 %v2042
        %v2348 = vpop.f32.mrf.mxu0
        %v2349 = vadd.f32 %v2260, %v2348
        %v2350 = vpop.f32.mrf.mxu0
        %v2351 = vadd.f32 %v2262, %v2350
        %2352 = vdwg.mxu0
        %v2353 = vadd.f32 %v2274, 0.0
        %v2354 = vadd.f32 %v2276, 0.0
        %v2355 = vadd.f32 %v2279, 0.0
        %v2356 = vadd.f32 %v2281, 0.0
        %v2357 = vadd.f32 %v2284, 0.0
        %v2358 = vadd.f32 %v2286, 0.0
        %v2359 = vadd.f32 %v2289, 0.0
        %v2360 = vadd.f32 %v2291, 0.0
        %v2361 = vadd.f32 %v2294, 0.0
        %v2362 = vadd.f32 %v2296, 0.0
        %v2363 = vadd.f32 %v2299, 0.0
        %v2364 = vadd.f32 %v2301, 0.0
        %v2365 = vadd.f32 %v2304, 0.0
        %v2366 = vadd.f32 %v2306, 0.0
        %v2367 = vadd.f32 %v2309, 0.0
        %v2368 = vadd.f32 %v2311, 0.0
        %v2369 = vadd.f32 %v2314, 0.0
        %v2370 = vadd.f32 %v2316, 0.0
        %v2371 = vadd.f32 %v2319, 0.0
        %v2372 = vadd.f32 %v2321, 0.0
        %v2373 = vadd.f32 %v2324, 0.0
        %v2374 = vadd.f32 %v2326, 0.0
        %v2375 = vadd.f32 %v2329, 0.0
        %v2376 = vadd.f32 %v2331, 0.0
        %v2377 = vadd.f32 %v2334, 0.0
        %v2378 = vadd.f32 %v2336, 0.0
        %v2379 = vadd.f32 %v2339, 0.0
        %v2380 = vadd.f32 %v2341, 0.0
        %v2381 = vadd.f32 %v2344, 0.0
        %v2382 = vadd.f32 %v2346, 0.0
        %v2383 = vadd.f32 %v2349, 0.0
        %v2384 = vadd.f32 %v2351, 0.0
        %2417 = vrot.lane.b32.xlu0 %v2274, 112
        %v2418 = vpop.permute.xlu0 %2417
        %2419 = vrot.lane.b32.xlu0 %v2276, 112
        %v2420 = vpop.permute.xlu0 %2419
        %2421 = vrot.lane.b32.xlu0 %v2279, 112
        %v2422 = vpop.permute.xlu0 %2421
        %2423 = vrot.lane.b32.xlu0 %v2281, 112
        %v2424 = vpop.permute.xlu0 %2423
        %2425 = vrot.lane.b32.xlu0 %v2284, 112
        %v2426 = vpop.permute.xlu0 %2425
        %2427 = vrot.lane.b32.xlu0 %v2286, 112
        %v2428 = vpop.permute.xlu0 %2427
        %2429 = vrot.lane.b32.xlu0 %v2289, 112
        %v2430 = vpop.permute.xlu0 %2429
        %2431 = vrot.lane.b32.xlu0 %v2291, 112
        %v2432 = vpop.permute.xlu0 %2431
        %2433 = vrot.lane.b32.xlu0 %v2294, 112
        %v2434 = vpop.permute.xlu0 %2433
        %2435 = vrot.lane.b32.xlu0 %v2296, 112
        %v2436 = vpop.permute.xlu0 %2435
        %2437 = vrot.lane.b32.xlu0 %v2299, 112
        %v2438 = vpop.permute.xlu0 %2437
        %2439 = vrot.lane.b32.xlu0 %v2301, 112
        %v2440 = vpop.permute.xlu0 %2439
        %2441 = vrot.lane.b32.xlu0 %v2304, 112
        %v2442 = vpop.permute.xlu0 %2441
        %2443 = vrot.lane.b32.xlu0 %v2306, 112
        %v2444 = vpop.permute.xlu0 %2443
        %2445 = vrot.lane.b32.xlu0 %v2309, 112
        %v2446 = vpop.permute.xlu0 %2445
        %2447 = vrot.lane.b32.xlu0 %v2311, 112
        %v2448 = vpop.permute.xlu0 %2447
        %2449 = vrot.lane.b32.xlu0 %v2314, 112
        %v2450 = vpop.permute.xlu0 %2449
        %2451 = vrot.lane.b32.xlu0 %v2316, 112
        %v2452 = vpop.permute.xlu0 %2451
        %2453 = vrot.lane.b32.xlu0 %v2319, 112
        %v2454 = vpop.permute.xlu0 %2453
        %2455 = vrot.lane.b32.xlu0 %v2321, 112
        %v2456 = vpop.permute.xlu0 %2455
        %2457 = vrot.lane.b32.xlu0 %v2324, 112
        %v2458 = vpop.permute.xlu0 %2457
        %2459 = vrot.lane.b32.xlu0 %v2326, 112
        %v2460 = vpop.permute.xlu0 %2459
        %2461 = vrot.lane.b32.xlu0 %v2329, 112
        %v2462 = vpop.permute.xlu0 %2461
        %2463 = vrot.lane.b32.xlu0 %v2331, 112
        %v2464 = vpop.permute.xlu0 %2463
        %2465 = vrot.lane.b32.xlu0 %v2334, 112
        %v2466 = vpop.permute.xlu0 %2465
        %2467 = vrot.lane.b32.xlu0 %v2336, 112
        %v2468 = vpop.permute.xlu0 %2467
        %2469 = vrot.lane.b32.xlu0 %v2339, 112
        %v2470 = vpop.permute.xlu0 %2469
        %2471 = vrot.lane.b32.xlu0 %v2341, 112
        %v2472 = vpop.permute.xlu0 %2471
        %2473 = vrot.lane.b32.xlu0 %v2344, 112
        %v2474 = vpop.permute.xlu0 %2473
        %2475 = vrot.lane.b32.xlu0 %v2346, 112
        %v2476 = vpop.permute.xlu0 %2475
        %2477 = vrot.lane.b32.xlu0 %v2349, 112
        %v2478 = vpop.permute.xlu0 %2477
        %2479 = vrot.lane.b32.xlu0 %v2351, 112
        %v2480 = vpop.permute.xlu0 %2479
        %v2513 = vsub.f32 %v354, %v2418
        %v2514 = vsub.f32 %v355, %v2420
        %v2515 = vsub.f32 %v356, %v2422
        %v2516 = vsub.f32 %v357, %v2424
        %v2517 = vsub.f32 %v358, %v2426
        %v2518 = vsub.f32 %v359, %v2428
        %v2519 = vsub.f32 %v360, %v2430
        %v2520 = vsub.f32 %v361, %v2432
        %v2521 = vsub.f32 %v362, %v2434
        %v2522 = vsub.f32 %v363, %v2436
        %v2523 = vsub.f32 %v364, %v2438
        %v2524 = vsub.f32 %v365, %v2440
        %v2525 = vsub.f32 %v366, %v2442
        %v2526 = vsub.f32 %v367, %v2444
        %v2527 = vsub.f32 %v368, %v2446
        %v2528 = vsub.f32 %v369, %v2448
        %v2529 = vsub.f32 %v370, %v2450
        %v2530 = vsub.f32 %v371, %v2452
        %v2531 = vsub.f32 %v372, %v2454
        %v2532 = vsub.f32 %v373, %v2456
        %v2533 = vsub.f32 %v374, %v2458
        %v2534 = vsub.f32 %v375, %v2460
        %v2535 = vsub.f32 %v376, %v2462
        %v2536 = vsub.f32 %v377, %v2464
        %v2537 = vsub.f32 %v378, %v2466
        %v2538 = vsub.f32 %v379, %v2468
        %v2539 = vsub.f32 %v380, %v2470
        %v2540 = vsub.f32 %v381, %v2472
        %v2541 = vsub.f32 %v382, %v2474
        %v2542 = vsub.f32 %v383, %v2476
        %v2543 = vsub.f32 %v384, %v2478
        %v2544 = vsub.f32 %v385, %v2480
        %v2545 = vpack.c.bf16 %v2514, %v2513
        %v2546 = vpack.c.bf16 %v2516, %v2515
        %v2547 = vpack.c.bf16 %v2518, %v2517
        %v2548 = vpack.c.bf16 %v2520, %v2519
        %v2549 = vpack.c.bf16 %v2522, %v2521
        %v2550 = vpack.c.bf16 %v2524, %v2523
        %v2551 = vpack.c.bf16 %v2526, %v2525
        %v2552 = vpack.c.bf16 %v2528, %v2527
        %v2553 = vpack.c.bf16 %v2530, %v2529
        %v2554 = vpack.c.bf16 %v2532, %v2531
        %v2555 = vpack.c.bf16 %v2534, %v2533
        %v2556 = vpack.c.bf16 %v2536, %v2535
        %v2557 = vpack.c.bf16 %v2538, %v2537
        %v2558 = vpack.c.bf16 %v2540, %v2539
        %v2559 = vpack.c.bf16 %v2542, %v2541
        %v2560 = vpack.c.bf16 %v2544, %v2543
        %s2561 = scalar_lea.vmem %s1, 16
        %v2562 = vld [vmem:[%s2561] sm:$0xff]
        %v2563 = vld [vmem:[%s2561 + $0x8] sm:$0xff]
        %s2564 = scalar_lea.vmem %s2, 2
        %v2565 = vld [vmem:[%s2564] sm:$0x3]
        %v2567 = vperm.slane %v2565, 0
        %v2568 = vperm.slane %v2565, 1
        %v2573 = vunpack.c.l.b16 %v2562
        %v2574 = vunpack.c.h.b16 %v2562
        %v2575 = vunpack.c.l.b16 %v2563
        %v2576 = vunpack.c.h.b16 %v2563
        %v2577 = vpack.c.b16 %v2575, %v2573
        %v2578 = vpack.c.b16 %v2576, %v2574
        %v2582 = vsel %vm420, %v2545, 0
        %v2585 = vsel %vm420, %v2546, 0
        %v2588 = vsel %vm420, %v2547, 0
        %v2591 = vsel %vm420, %v2548, 0
        %v2594 = vsel %vm420, %v2549, 0
        %v2597 = vsel %vm420, %v2550, 0
        %v2600 = vsel %vm420, %v2551, 0
        %v2603 = vsel %vm420, %v2552, 0
        %v2606 = vsel %vm420, %v2553, 0
        %v2609 = vsel %vm420, %v2554, 0
        %v2612 = vsel %vm420, %v2555, 0
        %v2615 = vsel %vm420, %v2556, 0
        %v2618 = vsel %vm420, %v2557, 0
        %v2621 = vsel %vm420, %v2558, 0
        %v2624 = vsel %vm420, %v2559, 0
        %v2627 = vsel %vm420, %v2560, 0
        %2629 = vmatpush.bf16.msra.mxu0 0
        %2630 = vmatpush.bf16.msra.mxu0 0
        %2631 = vmatpush.bf16.msra.mxu0 0
        %2632 = vmatpush.bf16.msra.mxu0 0
        %2633 = vmatpush.bf16.msra.mxu0 0
        %2634 = vmatpush.bf16.msra.mxu0 0
        %2635 = vmatpush.bf16.msra.mxu0 0
        %2636 = vmatpush.bf16.msra.mxu0 %v2577
        %2637 = vmatmul.bf16.gmra.mxu0 %v2582
        %v2638 = vpop.f32.mrf.mxu0
        %v2639 = vadd.f32 %v2567, %v2638
        %v2640 = vpop.f32.mrf.mxu0
        %v2641 = vadd.f32 %v2567, %v2640
        %2642 = vmatmul.bf16.gmra.mxu0 %v2585
        %v2643 = vpop.f32.mrf.mxu0
        %v2644 = vadd.f32 %v2567, %v2643
        %v2645 = vpop.f32.mrf.mxu0
        %v2646 = vadd.f32 %v2567, %v2645
        %2647 = vmatmul.bf16.gmra.mxu0 %v2588
        %v2648 = vpop.f32.mrf.mxu0
        %v2649 = vadd.f32 %v2567, %v2648
        %v2650 = vpop.f32.mrf.mxu0
        %v2651 = vadd.f32 %v2567, %v2650
        %2652 = vmatmul.bf16.gmra.mxu0 %v2591
        %v2653 = vpop.f32.mrf.mxu0
        %v2654 = vadd.f32 %v2567, %v2653
        %v2655 = vpop.f32.mrf.mxu0
        %v2656 = vadd.f32 %v2567, %v2655
        %2657 = vmatmul.bf16.gmra.mxu0 %v2594
        %v2658 = vpop.f32.mrf.mxu0
        %v2659 = vadd.f32 %v2567, %v2658
        %v2660 = vpop.f32.mrf.mxu0
        %v2661 = vadd.f32 %v2567, %v2660
        %2662 = vmatmul.bf16.gmra.mxu0 %v2597
        %v2663 = vpop.f32.mrf.mxu0
        %v2664 = vadd.f32 %v2567, %v2663
        %v2665 = vpop.f32.mrf.mxu0
        %v2666 = vadd.f32 %v2567, %v2665
        %2667 = vmatmul.bf16.gmra.mxu0 %v2600
        %v2668 = vpop.f32.mrf.mxu0
        %v2669 = vadd.f32 %v2567, %v2668
        %v2670 = vpop.f32.mrf.mxu0
        %v2671 = vadd.f32 %v2567, %v2670
        %2672 = vmatmul.bf16.gmra.mxu0 %v2603
        %v2673 = vpop.f32.mrf.mxu0
        %v2674 = vadd.f32 %v2567, %v2673
        %v2675 = vpop.f32.mrf.mxu0
        %v2676 = vadd.f32 %v2567, %v2675
        %2677 = vmatmul.bf16.gmra.mxu0 %v2606
        %v2678 = vpop.f32.mrf.mxu0
        %v2679 = vadd.f32 %v2567, %v2678
        %v2680 = vpop.f32.mrf.mxu0
        %v2681 = vadd.f32 %v2567, %v2680
        %2682 = vmatmul.bf16.gmra.mxu0 %v2609
        %v2683 = vpop.f32.mrf.mxu0
        %v2684 = vadd.f32 %v2567, %v2683
        %v2685 = vpop.f32.mrf.mxu0
        %v2686 = vadd.f32 %v2567, %v2685
        %2687 = vmatmul.bf16.gmra.mxu0 %v2612
        %v2688 = vpop.f32.mrf.mxu0
        %v2689 = vadd.f32 %v2567, %v2688
        %v2690 = vpop.f32.mrf.mxu0
        %v2691 = vadd.f32 %v2567, %v2690
        %2692 = vmatmul.bf16.gmra.mxu0 %v2615
        %v2693 = vpop.f32.mrf.mxu0
        %v2694 = vadd.f32 %v2567, %v2693
        %v2695 = vpop.f32.mrf.mxu0
        %v2696 = vadd.f32 %v2567, %v2695
        %2697 = vmatmul.bf16.gmra.mxu0 %v2618
        %v2698 = vpop.f32.mrf.mxu0
        %v2699 = vadd.f32 %v2567, %v2698
        %v2700 = vpop.f32.mrf.mxu0
        %v2701 = vadd.f32 %v2567, %v2700
        %2702 = vmatmul.bf16.gmra.mxu0 %v2621
        %v2703 = vpop.f32.mrf.mxu0
        %v2704 = vadd.f32 %v2567, %v2703
        %v2705 = vpop.f32.mrf.mxu0
        %v2706 = vadd.f32 %v2567, %v2705
        %2707 = vmatmul.bf16.gmra.mxu0 %v2624
        %v2708 = vpop.f32.mrf.mxu0
        %v2709 = vadd.f32 %v2567, %v2708
        %v2710 = vpop.f32.mrf.mxu0
        %v2711 = vadd.f32 %v2567, %v2710
        %2712 = vmatmul.bf16.gmra.mxu0 %v2627
        %v2713 = vpop.f32.mrf.mxu0
        %v2714 = vadd.f32 %v2567, %v2713
        %v2715 = vpop.f32.mrf.mxu0
        %v2716 = vadd.f32 %v2567, %v2715
        %2717 = vdwg.mxu0
        %2718 = vmatpush.bf16.msra.mxu0 0
        %2719 = vmatpush.bf16.msra.mxu0 0
        %2720 = vmatpush.bf16.msra.mxu0 0
        %2721 = vmatpush.bf16.msra.mxu0 0
        %2722 = vmatpush.bf16.msra.mxu0 0
        %2723 = vmatpush.bf16.msra.mxu0 0
        %2724 = vmatpush.bf16.msra.mxu0 0
        %2725 = vmatpush.bf16.msra.mxu0 %v2578
        %2726 = vmatmul.bf16.gmra.mxu0 %v2582
        %v2727 = vpop.f32.mrf.mxu0
        %v2728 = vadd.f32 %v2568, %v2727
        %v2729 = vpop.f32.mrf.mxu0
        %v2730 = vadd.f32 %v2568, %v2729
        %2731 = vmatmul.bf16.gmra.mxu0 %v2585
        %v2732 = vpop.f32.mrf.mxu0
        %v2733 = vadd.f32 %v2568, %v2732
        %v2734 = vpop.f32.mrf.mxu0
        %v2735 = vadd.f32 %v2568, %v2734
        %2736 = vmatmul.bf16.gmra.mxu0 %v2588
        %v2737 = vpop.f32.mrf.mxu0
        %v2738 = vadd.f32 %v2568, %v2737
        %v2739 = vpop.f32.mrf.mxu0
        %v2740 = vadd.f32 %v2568, %v2739
        %2741 = vmatmul.bf16.gmra.mxu0 %v2591
        %v2742 = vpop.f32.mrf.mxu0
        %v2743 = vadd.f32 %v2568, %v2742
        %v2744 = vpop.f32.mrf.mxu0
        %v2745 = vadd.f32 %v2568, %v2744
        %2746 = vmatmul.bf16.gmra.mxu0 %v2594
        %v2747 = vpop.f32.mrf.mxu0
        %v2748 = vadd.f32 %v2568, %v2747
        %v2749 = vpop.f32.mrf.mxu0
        %v2750 = vadd.f32 %v2568, %v2749
        %2751 = vmatmul.bf16.gmra.mxu0 %v2597
        %v2752 = vpop.f32.mrf.mxu0
        %v2753 = vadd.f32 %v2568, %v2752
        %v2754 = vpop.f32.mrf.mxu0
        %v2755 = vadd.f32 %v2568, %v2754
        %2756 = vmatmul.bf16.gmra.mxu0 %v2600
        %v2757 = vpop.f32.mrf.mxu0
        %v2758 = vadd.f32 %v2568, %v2757
        %v2759 = vpop.f32.mrf.mxu0
        %v2760 = vadd.f32 %v2568, %v2759
        %2761 = vmatmul.bf16.gmra.mxu0 %v2603
        %v2762 = vpop.f32.mrf.mxu0
        %v2763 = vadd.f32 %v2568, %v2762
        %v2764 = vpop.f32.mrf.mxu0
        %v2765 = vadd.f32 %v2568, %v2764
        %2766 = vmatmul.bf16.gmra.mxu0 %v2606
        %v2767 = vpop.f32.mrf.mxu0
        %v2768 = vadd.f32 %v2568, %v2767
        %v2769 = vpop.f32.mrf.mxu0
        %v2770 = vadd.f32 %v2568, %v2769
        %2771 = vmatmul.bf16.gmra.mxu0 %v2609
        %v2772 = vpop.f32.mrf.mxu0
        %v2773 = vadd.f32 %v2568, %v2772
        %v2774 = vpop.f32.mrf.mxu0
        %v2775 = vadd.f32 %v2568, %v2774
        %2776 = vmatmul.bf16.gmra.mxu0 %v2612
        %v2777 = vpop.f32.mrf.mxu0
        %v2778 = vadd.f32 %v2568, %v2777
        %v2779 = vpop.f32.mrf.mxu0
        %v2780 = vadd.f32 %v2568, %v2779
        %2781 = vmatmul.bf16.gmra.mxu0 %v2615
        %v2782 = vpop.f32.mrf.mxu0
        %v2783 = vadd.f32 %v2568, %v2782
        %v2784 = vpop.f32.mrf.mxu0
        %v2785 = vadd.f32 %v2568, %v2784
        %2786 = vmatmul.bf16.gmra.mxu0 %v2618
        %v2787 = vpop.f32.mrf.mxu0
        %v2788 = vadd.f32 %v2568, %v2787
        %v2789 = vpop.f32.mrf.mxu0
        %v2790 = vadd.f32 %v2568, %v2789
        %2791 = vmatmul.bf16.gmra.mxu0 %v2621
        %v2792 = vpop.f32.mrf.mxu0
        %v2793 = vadd.f32 %v2568, %v2792
        %v2794 = vpop.f32.mrf.mxu0
        %v2795 = vadd.f32 %v2568, %v2794
        %2796 = vmatmul.bf16.gmra.mxu0 %v2624
        %v2797 = vpop.f32.mrf.mxu0
        %v2798 = vadd.f32 %v2568, %v2797
        %v2799 = vpop.f32.mrf.mxu0
        %v2800 = vadd.f32 %v2568, %v2799
        %2801 = vmatmul.bf16.gmra.mxu0 %v2627
        %v2802 = vpop.f32.mrf.mxu0
        %v2803 = vadd.f32 %v2568, %v2802
        %v2804 = vpop.f32.mrf.mxu0
        %v2805 = vadd.f32 %v2568, %v2804
        %2806 = vdwg.mxu0
        %v2807 = vmax.f32 %v2639, 0.0
        %v2808 = vmax.f32 %v2728, 0.0
        %v2809 = vmax.f32 %v2641, 0.0
        %v2810 = vmax.f32 %v2730, 0.0
        %v2811 = vmax.f32 %v2644, 0.0
        %v2812 = vmax.f32 %v2733, 0.0
        %v2813 = vmax.f32 %v2646, 0.0
        %v2814 = vmax.f32 %v2735, 0.0
        %v2815 = vmax.f32 %v2649, 0.0
        %v2816 = vmax.f32 %v2738, 0.0
        %v2817 = vmax.f32 %v2651, 0.0
        %v2818 = vmax.f32 %v2740, 0.0
        %v2819 = vmax.f32 %v2654, 0.0
        %v2820 = vmax.f32 %v2743, 0.0
        %v2821 = vmax.f32 %v2656, 0.0
        %v2822 = vmax.f32 %v2745, 0.0
        %v2823 = vmax.f32 %v2659, 0.0
        %v2824 = vmax.f32 %v2748, 0.0
        %v2825 = vmax.f32 %v2661, 0.0
        %v2826 = vmax.f32 %v2750, 0.0
        %v2827 = vmax.f32 %v2664, 0.0
        %v2828 = vmax.f32 %v2753, 0.0
        %v2829 = vmax.f32 %v2666, 0.0
        %v2830 = vmax.f32 %v2755, 0.0
        %v2831 = vmax.f32 %v2669, 0.0
        %v2832 = vmax.f32 %v2758, 0.0
        %v2833 = vmax.f32 %v2671, 0.0
        %v2834 = vmax.f32 %v2760, 0.0
        %v2835 = vmax.f32 %v2674, 0.0
        %v2836 = vmax.f32 %v2763, 0.0
        %v2837 = vmax.f32 %v2676, 0.0
        %v2838 = vmax.f32 %v2765, 0.0
        %v2839 = vmax.f32 %v2679, 0.0
        %v2840 = vmax.f32 %v2768, 0.0
        %v2841 = vmax.f32 %v2681, 0.0
        %v2842 = vmax.f32 %v2770, 0.0
        %v2843 = vmax.f32 %v2684, 0.0
        %v2844 = vmax.f32 %v2773, 0.0
        %v2845 = vmax.f32 %v2686, 0.0
        %v2846 = vmax.f32 %v2775, 0.0
        %v2847 = vmax.f32 %v2689, 0.0
        %v2848 = vmax.f32 %v2778, 0.0
        %v2849 = vmax.f32 %v2691, 0.0
        %v2850 = vmax.f32 %v2780, 0.0
        %v2851 = vmax.f32 %v2694, 0.0
        %v2852 = vmax.f32 %v2783, 0.0
        %v2853 = vmax.f32 %v2696, 0.0
        %v2854 = vmax.f32 %v2785, 0.0
        %v2855 = vmax.f32 %v2699, 0.0
        %v2856 = vmax.f32 %v2788, 0.0
        %v2857 = vmax.f32 %v2701, 0.0
        %v2858 = vmax.f32 %v2790, 0.0
        %v2859 = vmax.f32 %v2704, 0.0
        %v2860 = vmax.f32 %v2793, 0.0
        %v2861 = vmax.f32 %v2706, 0.0
        %v2862 = vmax.f32 %v2795, 0.0
        %v2863 = vmax.f32 %v2709, 0.0
        %v2864 = vmax.f32 %v2798, 0.0
        %v2865 = vmax.f32 %v2711, 0.0
        %v2866 = vmax.f32 %v2800, 0.0
        %v2867 = vmax.f32 %v2714, 0.0
        %v2868 = vmax.f32 %v2803, 0.0
        %v2869 = vmax.f32 %v2716, 0.0
        %v2870 = vmax.f32 %v2805, 0.0
        %v2871 = vpack.c.bf16 %v2809, %v2807
        %v2872 = vpack.c.bf16 %v2810, %v2808
        %v2873 = vpack.c.bf16 %v2813, %v2811
        %v2874 = vpack.c.bf16 %v2814, %v2812
        %v2875 = vpack.c.bf16 %v2817, %v2815
        %v2876 = vpack.c.bf16 %v2818, %v2816
        %v2877 = vpack.c.bf16 %v2821, %v2819
        %v2878 = vpack.c.bf16 %v2822, %v2820
        %v2879 = vpack.c.bf16 %v2825, %v2823
        %v2880 = vpack.c.bf16 %v2826, %v2824
        %v2881 = vpack.c.bf16 %v2829, %v2827
        %v2882 = vpack.c.bf16 %v2830, %v2828
        %v2883 = vpack.c.bf16 %v2833, %v2831
        %v2884 = vpack.c.bf16 %v2834, %v2832
        %v2885 = vpack.c.bf16 %v2837, %v2835
        %v2886 = vpack.c.bf16 %v2838, %v2836
        %v2887 = vpack.c.bf16 %v2841, %v2839
        %v2888 = vpack.c.bf16 %v2842, %v2840
        %v2889 = vpack.c.bf16 %v2845, %v2843
        %v2890 = vpack.c.bf16 %v2846, %v2844
        %v2891 = vpack.c.bf16 %v2849, %v2847
        %v2892 = vpack.c.bf16 %v2850, %v2848
        %v2893 = vpack.c.bf16 %v2853, %v2851
        %v2894 = vpack.c.bf16 %v2854, %v2852
        %v2895 = vpack.c.bf16 %v2857, %v2855
        %v2896 = vpack.c.bf16 %v2858, %v2856
        %v2897 = vpack.c.bf16 %v2861, %v2859
        %v2898 = vpack.c.bf16 %v2862, %v2860
        %v2899 = vpack.c.bf16 %v2865, %v2863
        %v2900 = vpack.c.bf16 %v2866, %v2864
        %v2901 = vpack.c.bf16 %v2869, %v2867
        %v2902 = vpack.c.bf16 %v2870, %v2868
        %s2903 = scalar_lea.vmem %s3, 256
        %v2904 = vld [vmem:[%s2903] sm:$0xff]
        %v2905 = vld [vmem:[%s2903 + $0x8] sm:$0xff]
        %v2906 = vld [vmem:[%s2903 + $0x10] sm:$0xff]
        %v2907 = vld [vmem:[%s2903 + $0x18] sm:$0xff]
        %v2908 = vld [vmem:[%s2903 + $0x20] sm:$0xff]
        %v2909 = vld [vmem:[%s2903 + $0x28] sm:$0xff]
        %v2910 = vld [vmem:[%s2903 + $0x30] sm:$0xff]
        %v2911 = vld [vmem:[%s2903 + $0x38] sm:$0xff]
        %v2912 = vld [vmem:[%s2903 + $0x40] sm:$0xff]
        %v2913 = vld [vmem:[%s2903 + $0x48] sm:$0xff]
        %v2914 = vld [vmem:[%s2903 + $0x50] sm:$0xff]
        %v2915 = vld [vmem:[%s2903 + $0x58] sm:$0xff]
        %v2916 = vld [vmem:[%s2903 + $0x60] sm:$0xff]
        %v2917 = vld [vmem:[%s2903 + $0x68] sm:$0xff]
        %v2918 = vld [vmem:[%s2903 + $0x70] sm:$0xff]
        %v2919 = vld [vmem:[%s2903 + $0x78] sm:$0xff]
        %v2920 = vld [vmem:[%s2903 + $0x80] sm:$0xff]
        %v2921 = vld [vmem:[%s2903 + $0x88] sm:$0xff]
        %v2922 = vld [vmem:[%s2903 + $0x90] sm:$0xff]
        %v2923 = vld [vmem:[%s2903 + $0x98] sm:$0xff]
        %v2924 = vld [vmem:[%s2903 + $0xa0] sm:$0xff]
        %v2925 = vld [vmem:[%s2903 + $0xa8] sm:$0xff]
        %v2926 = vld [vmem:[%s2903 + $0xb0] sm:$0xff]
        %v2927 = vld [vmem:[%s2903 + $0xb8] sm:$0xff]
        %v2928 = vld [vmem:[%s2903 + $0xc0] sm:$0xff]
        %v2929 = vld [vmem:[%s2903 + $0xc8] sm:$0xff]
        %v2930 = vld [vmem:[%s2903 + $0xd0] sm:$0xff]
        %v2931 = vld [vmem:[%s2903 + $0xd8] sm:$0xff]
        %v2932 = vld [vmem:[%s2903 + $0xe0] sm:$0xff]
        %v2933 = vld [vmem:[%s2903 + $0xe8] sm:$0xff]
        %v2934 = vld [vmem:[%s2903 + $0xf0] sm:$0xff]
        %v2935 = vld [vmem:[%s2903 + $0xf8] sm:$0xff]
        %s2936 = scalar_lea.vmem %s4, 2
        %v2937 = vld [vmem:[%s2936] sm:$0x3]
        %v2939 = vperm.slane %v2937, 0
        %v2940 = vperm.slane %v2937, 1
        %v2975 = vunpack.c.l.b16 %v2904
        %v2976 = vunpack.c.h.b16 %v2904
        %v2977 = vunpack.c.l.b16 %v2905
        %v2978 = vunpack.c.h.b16 %v2905
        %v2979 = vunpack.c.l.b16 %v2906
        %v2980 = vunpack.c.h.b16 %v2906
        %v2981 = vunpack.c.l.b16 %v2907
        %v2982 = vunpack.c.h.b16 %v2907
        %v2983 = vunpack.c.l.b16 %v2908
        %v2984 = vunpack.c.h.b16 %v2908
        %v2985 = vunpack.c.l.b16 %v2909
        %v2986 = vunpack.c.h.b16 %v2909
        %v2987 = vunpack.c.l.b16 %v2910
        %v2988 = vunpack.c.h.b16 %v2910
        %v2989 = vunpack.c.l.b16 %v2911
        %v2990 = vunpack.c.h.b16 %v2911
        %v2991 = vunpack.c.l.b16 %v2912
        %v2992 = vunpack.c.h.b16 %v2912
        %v2993 = vunpack.c.l.b16 %v2913
        %v2994 = vunpack.c.h.b16 %v2913
        %v2995 = vunpack.c.l.b16 %v2914
        %v2996 = vunpack.c.h.b16 %v2914
        %v2997 = vunpack.c.l.b16 %v2915
        %v2998 = vunpack.c.h.b16 %v2915
        %v2999 = vunpack.c.l.b16 %v2916
        %v3000 = vunpack.c.h.b16 %v2916
        %v3001 = vunpack.c.l.b16 %v2917
        %v3002 = vunpack.c.h.b16 %v2917
        %v3003 = vunpack.c.l.b16 %v2918
        %v3004 = vunpack.c.h.b16 %v2918
        %v3005 = vunpack.c.l.b16 %v2919
        %v3006 = vunpack.c.h.b16 %v2919
        %v3007 = vunpack.c.l.b16 %v2920
        %v3008 = vunpack.c.h.b16 %v2920
        %v3009 = vunpack.c.l.b16 %v2921
        %v3010 = vunpack.c.h.b16 %v2921
        %v3011 = vunpack.c.l.b16 %v2922
        %v3012 = vunpack.c.h.b16 %v2922
        %v3013 = vunpack.c.l.b16 %v2923
        %v3014 = vunpack.c.h.b16 %v2923
        %v3015 = vunpack.c.l.b16 %v2924
        %v3016 = vunpack.c.h.b16 %v2924
        %v3017 = vunpack.c.l.b16 %v2925
        %v3018 = vunpack.c.h.b16 %v2925
        %v3019 = vunpack.c.l.b16 %v2926
        %v3020 = vunpack.c.h.b16 %v2926
        %v3021 = vunpack.c.l.b16 %v2927
        %v3022 = vunpack.c.h.b16 %v2927
        %v3023 = vunpack.c.l.b16 %v2928
        %v3024 = vunpack.c.h.b16 %v2928
        %v3025 = vunpack.c.l.b16 %v2929
        %v3026 = vunpack.c.h.b16 %v2929
        %v3027 = vunpack.c.l.b16 %v2930
        %v3028 = vunpack.c.h.b16 %v2930
        %v3029 = vunpack.c.l.b16 %v2931
        %v3030 = vunpack.c.h.b16 %v2931
        %v3031 = vunpack.c.l.b16 %v2932
        %v3032 = vunpack.c.h.b16 %v2932
        %v3033 = vunpack.c.l.b16 %v2933
        %v3034 = vunpack.c.h.b16 %v2933
        %v3035 = vunpack.c.l.b16 %v2934
        %v3036 = vunpack.c.h.b16 %v2934
        %v3037 = vunpack.c.l.b16 %v2935
        %v3038 = vunpack.c.h.b16 %v2935
        %v3039 = vpack.c.b16 %v2977, %v2975
        %v3040 = vpack.c.b16 %v2978, %v2976
        %v3041 = vpack.c.b16 %v2981, %v2979
        %v3042 = vpack.c.b16 %v2982, %v2980
        %v3043 = vpack.c.b16 %v2985, %v2983
        %v3044 = vpack.c.b16 %v2986, %v2984
        %v3045 = vpack.c.b16 %v2989, %v2987
        %v3046 = vpack.c.b16 %v2990, %v2988
        %v3047 = vpack.c.b16 %v2993, %v2991
        %v3048 = vpack.c.b16 %v2994, %v2992
        %v3049 = vpack.c.b16 %v2997, %v2995
        %v3050 = vpack.c.b16 %v2998, %v2996
        %v3051 = vpack.c.b16 %v3001, %v2999
        %v3052 = vpack.c.b16 %v3002, %v3000
        %v3053 = vpack.c.b16 %v3005, %v3003
        %v3054 = vpack.c.b16 %v3006, %v3004
        %v3055 = vpack.c.b16 %v3009, %v3007
        %v3056 = vpack.c.b16 %v3010, %v3008
        %v3057 = vpack.c.b16 %v3013, %v3011
        %v3058 = vpack.c.b16 %v3014, %v3012
        %v3059 = vpack.c.b16 %v3017, %v3015
        %v3060 = vpack.c.b16 %v3018, %v3016
        %v3061 = vpack.c.b16 %v3021, %v3019
        %v3062 = vpack.c.b16 %v3022, %v3020
        %v3063 = vpack.c.b16 %v3025, %v3023
        %v3064 = vpack.c.b16 %v3026, %v3024
        %v3065 = vpack.c.b16 %v3029, %v3027
        %v3066 = vpack.c.b16 %v3030, %v3028
        %v3067 = vpack.c.b16 %v3033, %v3031
        %v3068 = vpack.c.b16 %v3034, %v3032
        %v3069 = vpack.c.b16 %v3037, %v3035
        %v3070 = vpack.c.b16 %v3038, %v3036
        %3103 = vmatpush.bf16.msra.mxu0 %v3053
        %3104 = vmatpush.bf16.msra.mxu0 %v3051
        %3105 = vmatpush.bf16.msra.mxu0 %v3049
        %3106 = vmatpush.bf16.msra.mxu0 %v3047
        %3107 = vmatpush.bf16.msra.mxu0 %v3045
        %3108 = vmatpush.bf16.msra.mxu0 %v3043
        %3109 = vmatpush.bf16.msra.mxu0 %v3041
        %3110 = vmatpush.bf16.msra.mxu0 %v3039
        %3111 = vmatmul.bf16.gmra.mxu0 %v2871
        %v3112 = vpop.f32.mrf.mxu0
        %v3113 = vadd.f32 %v2939, %v3112
        %v3114 = vpop.f32.mrf.mxu0
        %v3115 = vadd.f32 %v2939, %v3114
        %3116 = vmatmul.bf16.gmra.mxu0 %v2873
        %v3117 = vpop.f32.mrf.mxu0
        %v3118 = vadd.f32 %v2939, %v3117
        %v3119 = vpop.f32.mrf.mxu0
        %v3120 = vadd.f32 %v2939, %v3119
        %3121 = vmatmul.bf16.gmra.mxu0 %v2875
        %v3122 = vpop.f32.mrf.mxu0
        %v3123 = vadd.f32 %v2939, %v3122
        %v3124 = vpop.f32.mrf.mxu0
        %v3125 = vadd.f32 %v2939, %v3124
        %3126 = vmatmul.bf16.gmra.mxu0 %v2877
        %v3127 = vpop.f32.mrf.mxu0
        %v3128 = vadd.f32 %v2939, %v3127
        %v3129 = vpop.f32.mrf.mxu0
        %v3130 = vadd.f32 %v2939, %v3129
        %3131 = vmatmul.bf16.gmra.mxu0 %v2879
        %v3132 = vpop.f32.mrf.mxu0
        %v3133 = vadd.f32 %v2939, %v3132
        %v3134 = vpop.f32.mrf.mxu0
        %v3135 = vadd.f32 %v2939, %v3134
        %3136 = vmatmul.bf16.gmra.mxu0 %v2881
        %v3137 = vpop.f32.mrf.mxu0
        %v3138 = vadd.f32 %v2939, %v3137
        %v3139 = vpop.f32.mrf.mxu0
        %v3140 = vadd.f32 %v2939, %v3139
        %3141 = vmatmul.bf16.gmra.mxu0 %v2883
        %v3142 = vpop.f32.mrf.mxu0
        %v3143 = vadd.f32 %v2939, %v3142
        %v3144 = vpop.f32.mrf.mxu0
        %v3145 = vadd.f32 %v2939, %v3144
        %3146 = vmatmul.bf16.gmra.mxu0 %v2885
        %v3147 = vpop.f32.mrf.mxu0
        %v3148 = vadd.f32 %v2939, %v3147
        %v3149 = vpop.f32.mrf.mxu0
        %v3150 = vadd.f32 %v2939, %v3149
        %3151 = vmatmul.bf16.gmra.mxu0 %v2887
        %v3152 = vpop.f32.mrf.mxu0
        %v3153 = vadd.f32 %v2939, %v3152
        %v3154 = vpop.f32.mrf.mxu0
        %v3155 = vadd.f32 %v2939, %v3154
        %3156 = vmatmul.bf16.gmra.mxu0 %v2889
        %v3157 = vpop.f32.mrf.mxu0
        %v3158 = vadd.f32 %v2939, %v3157
        %v3159 = vpop.f32.mrf.mxu0
        %v3160 = vadd.f32 %v2939, %v3159
        %3161 = vmatmul.bf16.gmra.mxu0 %v2891
        %v3162 = vpop.f32.mrf.mxu0
        %v3163 = vadd.f32 %v2939, %v3162
        %v3164 = vpop.f32.mrf.mxu0
        %v3165 = vadd.f32 %v2939, %v3164
        %3166 = vmatmul.bf16.gmra.mxu0 %v2893
        %v3167 = vpop.f32.mrf.mxu0
        %v3168 = vadd.f32 %v2939, %v3167
        %v3169 = vpop.f32.mrf.mxu0
        %v3170 = vadd.f32 %v2939, %v3169
        %3171 = vmatmul.bf16.gmra.mxu0 %v2895
        %v3172 = vpop.f32.mrf.mxu0
        %v3173 = vadd.f32 %v2939, %v3172
        %v3174 = vpop.f32.mrf.mxu0
        %v3175 = vadd.f32 %v2939, %v3174
        %3176 = vmatmul.bf16.gmra.mxu0 %v2897
        %v3177 = vpop.f32.mrf.mxu0
        %v3178 = vadd.f32 %v2939, %v3177
        %v3179 = vpop.f32.mrf.mxu0
        %v3180 = vadd.f32 %v2939, %v3179
        %3181 = vmatmul.bf16.gmra.mxu0 %v2899
        %v3182 = vpop.f32.mrf.mxu0
        %v3183 = vadd.f32 %v2939, %v3182
        %v3184 = vpop.f32.mrf.mxu0
        %v3185 = vadd.f32 %v2939, %v3184
        %3186 = vmatmul.bf16.gmra.mxu0 %v2901
        %v3187 = vpop.f32.mrf.mxu0
        %v3188 = vadd.f32 %v2939, %v3187
        %v3189 = vpop.f32.mrf.mxu0
        %v3190 = vadd.f32 %v2939, %v3189
        %3191 = vdwg.mxu0
        %3192 = vmatpush.bf16.msra.mxu0 %v3069
        %3193 = vmatpush.bf16.msra.mxu0 %v3067
        %3194 = vmatpush.bf16.msra.mxu0 %v3065
        %3195 = vmatpush.bf16.msra.mxu0 %v3063
        %3196 = vmatpush.bf16.msra.mxu0 %v3061
        %3197 = vmatpush.bf16.msra.mxu0 %v3059
        %3198 = vmatpush.bf16.msra.mxu0 %v3057
        %3199 = vmatpush.bf16.msra.mxu0 %v3055
        %3200 = vmatmul.bf16.gmra.mxu0 %v2872
        %v3201 = vpop.f32.mrf.mxu0
        %v3202 = vadd.f32 %v3113, %v3201
        %v3203 = vpop.f32.mrf.mxu0
        %v3204 = vadd.f32 %v3115, %v3203
        %3205 = vmatmul.bf16.gmra.mxu0 %v2874
        %v3206 = vpop.f32.mrf.mxu0
        %v3207 = vadd.f32 %v3118, %v3206
        %v3208 = vpop.f32.mrf.mxu0
        %v3209 = vadd.f32 %v3120, %v3208
        %3210 = vmatmul.bf16.gmra.mxu0 %v2876
        %v3211 = vpop.f32.mrf.mxu0
        %v3212 = vadd.f32 %v3123, %v3211
        %v3213 = vpop.f32.mrf.mxu0
        %v3214 = vadd.f32 %v3125, %v3213
        %3215 = vmatmul.bf16.gmra.mxu0 %v2878
        %v3216 = vpop.f32.mrf.mxu0
        %v3217 = vadd.f32 %v3128, %v3216
        %v3218 = vpop.f32.mrf.mxu0
        %v3219 = vadd.f32 %v3130, %v3218
        %3220 = vmatmul.bf16.gmra.mxu0 %v2880
        %v3221 = vpop.f32.mrf.mxu0
        %v3222 = vadd.f32 %v3133, %v3221
        %v3223 = vpop.f32.mrf.mxu0
        %v3224 = vadd.f32 %v3135, %v3223
        %3225 = vmatmul.bf16.gmra.mxu0 %v2882
        %v3226 = vpop.f32.mrf.mxu0
        %v3227 = vadd.f32 %v3138, %v3226
        %v3228 = vpop.f32.mrf.mxu0
        %v3229 = vadd.f32 %v3140, %v3228
        %3230 = vmatmul.bf16.gmra.mxu0 %v2884
        %v3231 = vpop.f32.mrf.mxu0
        %v3232 = vadd.f32 %v3143, %v3231
        %v3233 = vpop.f32.mrf.mxu0
        %v3234 = vadd.f32 %v3145, %v3233
        %3235 = vmatmul.bf16.gmra.mxu0 %v2886
        %v3236 = vpop.f32.mrf.mxu0
        %v3237 = vadd.f32 %v3148, %v3236
        %v3238 = vpop.f32.mrf.mxu0
        %v3239 = vadd.f32 %v3150, %v3238
        %3240 = vmatmul.bf16.gmra.mxu0 %v2888
        %v3241 = vpop.f32.mrf.mxu0
        %v3242 = vadd.f32 %v3153, %v3241
        %v3243 = vpop.f32.mrf.mxu0
        %v3244 = vadd.f32 %v3155, %v3243
        %3245 = vmatmul.bf16.gmra.mxu0 %v2890
        %v3246 = vpop.f32.mrf.mxu0
        %v3247 = vadd.f32 %v3158, %v3246
        %v3248 = vpop.f32.mrf.mxu0
        %v3249 = vadd.f32 %v3160, %v3248
        %3250 = vmatmul.bf16.gmra.mxu0 %v2892
        %v3251 = vpop.f32.mrf.mxu0
        %v3252 = vadd.f32 %v3163, %v3251
        %v3253 = vpop.f32.mrf.mxu0
        %v3254 = vadd.f32 %v3165, %v3253
        %3255 = vmatmul.bf16.gmra.mxu0 %v2894
        %v3256 = vpop.f32.mrf.mxu0
        %v3257 = vadd.f32 %v3168, %v3256
        %v3258 = vpop.f32.mrf.mxu0
        %v3259 = vadd.f32 %v3170, %v3258
        %3260 = vmatmul.bf16.gmra.mxu0 %v2896
        %v3261 = vpop.f32.mrf.mxu0
        %v3262 = vadd.f32 %v3173, %v3261
        %v3263 = vpop.f32.mrf.mxu0
        %v3264 = vadd.f32 %v3175, %v3263
        %3265 = vmatmul.bf16.gmra.mxu0 %v2898
        %v3266 = vpop.f32.mrf.mxu0
        %v3267 = vadd.f32 %v3178, %v3266
        %v3268 = vpop.f32.mrf.mxu0
        %v3269 = vadd.f32 %v3180, %v3268
        %3270 = vmatmul.bf16.gmra.mxu0 %v2900
        %v3271 = vpop.f32.mrf.mxu0
        %v3272 = vadd.f32 %v3183, %v3271
        %v3273 = vpop.f32.mrf.mxu0
        %v3274 = vadd.f32 %v3185, %v3273
        %3275 = vmatmul.bf16.gmra.mxu0 %v2902
        %v3276 = vpop.f32.mrf.mxu0
        %v3277 = vadd.f32 %v3188, %v3276
        %v3278 = vpop.f32.mrf.mxu0
        %v3279 = vadd.f32 %v3190, %v3278
        %3280 = vdwg.mxu0
        %3281 = vmatpush.bf16.msra.mxu0 %v3054
        %3282 = vmatpush.bf16.msra.mxu0 %v3052
        %3283 = vmatpush.bf16.msra.mxu0 %v3050
        %3284 = vmatpush.bf16.msra.mxu0 %v3048
        %3285 = vmatpush.bf16.msra.mxu0 %v3046
        %3286 = vmatpush.bf16.msra.mxu0 %v3044
        %3287 = vmatpush.bf16.msra.mxu0 %v3042
        %3288 = vmatpush.bf16.msra.mxu0 %v3040
        %3289 = vmatmul.bf16.gmra.mxu0 %v2871
        %v3290 = vpop.f32.mrf.mxu0
        %v3291 = vadd.f32 %v2940, %v3290
        %v3292 = vpop.f32.mrf.mxu0
        %v3293 = vadd.f32 %v2940, %v3292
        %3294 = vmatmul.bf16.gmra.mxu0 %v2873
        %v3295 = vpop.f32.mrf.mxu0
        %v3296 = vadd.f32 %v2940, %v3295
        %v3297 = vpop.f32.mrf.mxu0
        %v3298 = vadd.f32 %v2940, %v3297
        %3299 = vmatmul.bf16.gmra.mxu0 %v2875
        %v3300 = vpop.f32.mrf.mxu0
        %v3301 = vadd.f32 %v2940, %v3300
        %v3302 = vpop.f32.mrf.mxu0
        %v3303 = vadd.f32 %v2940, %v3302
        %3304 = vmatmul.bf16.gmra.mxu0 %v2877
        %v3305 = vpop.f32.mrf.mxu0
        %v3306 = vadd.f32 %v2940, %v3305
        %v3307 = vpop.f32.mrf.mxu0
        %v3308 = vadd.f32 %v2940, %v3307
        %3309 = vmatmul.bf16.gmra.mxu0 %v2879
        %v3310 = vpop.f32.mrf.mxu0
        %v3311 = vadd.f32 %v2940, %v3310
        %v3312 = vpop.f32.mrf.mxu0
        %v3313 = vadd.f32 %v2940, %v3312
        %3314 = vmatmul.bf16.gmra.mxu0 %v2881
        %v3315 = vpop.f32.mrf.mxu0
        %v3316 = vadd.f32 %v2940, %v3315
        %v3317 = vpop.f32.mrf.mxu0
        %v3318 = vadd.f32 %v2940, %v3317
        %3319 = vmatmul.bf16.gmra.mxu0 %v2883
        %v3320 = vpop.f32.mrf.mxu0
        %v3321 = vadd.f32 %v2940, %v3320
        %v3322 = vpop.f32.mrf.mxu0
        %v3323 = vadd.f32 %v2940, %v3322
        %3324 = vmatmul.bf16.gmra.mxu0 %v2885
        %v3325 = vpop.f32.mrf.mxu0
        %v3326 = vadd.f32 %v2940, %v3325
        %v3327 = vpop.f32.mrf.mxu0
        %v3328 = vadd.f32 %v2940, %v3327
        %3329 = vmatmul.bf16.gmra.mxu0 %v2887
        %v3330 = vpop.f32.mrf.mxu0
        %v3331 = vadd.f32 %v2940, %v3330
        %v3332 = vpop.f32.mrf.mxu0
        %v3333 = vadd.f32 %v2940, %v3332
        %3334 = vmatmul.bf16.gmra.mxu0 %v2889
        %v3335 = vpop.f32.mrf.mxu0
        %v3336 = vadd.f32 %v2940, %v3335
        %v3337 = vpop.f32.mrf.mxu0
        %v3338 = vadd.f32 %v2940, %v3337
        %3339 = vmatmul.bf16.gmra.mxu0 %v2891
        %v3340 = vpop.f32.mrf.mxu0
        %v3341 = vadd.f32 %v2940, %v3340
        %v3342 = vpop.f32.mrf.mxu0
        %v3343 = vadd.f32 %v2940, %v3342
        %3344 = vmatmul.bf16.gmra.mxu0 %v2893
        %v3345 = vpop.f32.mrf.mxu0
        %v3346 = vadd.f32 %v2940, %v3345
        %v3347 = vpop.f32.mrf.mxu0
        %v3348 = vadd.f32 %v2940, %v3347
        %3349 = vmatmul.bf16.gmra.mxu0 %v2895
        %v3350 = vpop.f32.mrf.mxu0
        %v3351 = vadd.f32 %v2940, %v3350
        %v3352 = vpop.f32.mrf.mxu0
        %v3353 = vadd.f32 %v2940, %v3352
        %3354 = vmatmul.bf16.gmra.mxu0 %v2897
        %v3355 = vpop.f32.mrf.mxu0
        %v3356 = vadd.f32 %v2940, %v3355
        %v3357 = vpop.f32.mrf.mxu0
        %v3358 = vadd.f32 %v2940, %v3357
        %3359 = vmatmul.bf16.gmra.mxu0 %v2899
        %v3360 = vpop.f32.mrf.mxu0
        %v3361 = vadd.f32 %v2940, %v3360
        %v3362 = vpop.f32.mrf.mxu0
        %v3363 = vadd.f32 %v2940, %v3362
        %3364 = vmatmul.bf16.gmra.mxu0 %v2901
        %v3365 = vpop.f32.mrf.mxu0
        %v3366 = vadd.f32 %v2940, %v3365
        %v3367 = vpop.f32.mrf.mxu0
        %v3368 = vadd.f32 %v2940, %v3367
        %3369 = vdwg.mxu0
        %3370 = vmatpush.bf16.msra.mxu0 %v3070
        %3371 = vmatpush.bf16.msra.mxu0 %v3068
        %3372 = vmatpush.bf16.msra.mxu0 %v3066
        %3373 = vmatpush.bf16.msra.mxu0 %v3064
        %3374 = vmatpush.bf16.msra.mxu0 %v3062
        %3375 = vmatpush.bf16.msra.mxu0 %v3060
        %3376 = vmatpush.bf16.msra.mxu0 %v3058
        %3377 = vmatpush.bf16.msra.mxu0 %v3056
        %3378 = vmatmul.bf16.gmra.mxu0 %v2872
        %v3379 = vpop.f32.mrf.mxu0
        %v3380 = vadd.f32 %v3291, %v3379
        %v3381 = vpop.f32.mrf.mxu0
        %v3382 = vadd.f32 %v3293, %v3381
        %3383 = vmatmul.bf16.gmra.mxu0 %v2874
        %v3384 = vpop.f32.mrf.mxu0
        %v3385 = vadd.f32 %v3296, %v3384
        %v3386 = vpop.f32.mrf.mxu0
        %v3387 = vadd.f32 %v3298, %v3386
        %3388 = vmatmul.bf16.gmra.mxu0 %v2876
        %v3389 = vpop.f32.mrf.mxu0
        %v3390 = vadd.f32 %v3301, %v3389
        %v3391 = vpop.f32.mrf.mxu0
        %v3392 = vadd.f32 %v3303, %v3391
        %3393 = vmatmul.bf16.gmra.mxu0 %v2878
        %v3394 = vpop.f32.mrf.mxu0
        %v3395 = vadd.f32 %v3306, %v3394
        %v3396 = vpop.f32.mrf.mxu0
        %v3397 = vadd.f32 %v3308, %v3396
        %3398 = vmatmul.bf16.gmra.mxu0 %v2880
        %v3399 = vpop.f32.mrf.mxu0
        %v3400 = vadd.f32 %v3311, %v3399
        %v3401 = vpop.f32.mrf.mxu0
        %v3402 = vadd.f32 %v3313, %v3401
        %3403 = vmatmul.bf16.gmra.mxu0 %v2882
        %v3404 = vpop.f32.mrf.mxu0
        %v3405 = vadd.f32 %v3316, %v3404
        %v3406 = vpop.f32.mrf.mxu0
        %v3407 = vadd.f32 %v3318, %v3406
        %3408 = vmatmul.bf16.gmra.mxu0 %v2884
        %v3409 = vpop.f32.mrf.mxu0
        %v3410 = vadd.f32 %v3321, %v3409
        %v3411 = vpop.f32.mrf.mxu0
        %v3412 = vadd.f32 %v3323, %v3411
        %3413 = vmatmul.bf16.gmra.mxu0 %v2886
        %v3414 = vpop.f32.mrf.mxu0
        %v3415 = vadd.f32 %v3326, %v3414
        %v3416 = vpop.f32.mrf.mxu0
        %v3417 = vadd.f32 %v3328, %v3416
        %3418 = vmatmul.bf16.gmra.mxu0 %v2888
        %v3419 = vpop.f32.mrf.mxu0
        %v3420 = vadd.f32 %v3331, %v3419
        %v3421 = vpop.f32.mrf.mxu0
        %v3422 = vadd.f32 %v3333, %v3421
        %3423 = vmatmul.bf16.gmra.mxu0 %v2890
        %v3424 = vpop.f32.mrf.mxu0
        %v3425 = vadd.f32 %v3336, %v3424
        %v3426 = vpop.f32.mrf.mxu0
        %v3427 = vadd.f32 %v3338, %v3426
        %3428 = vmatmul.bf16.gmra.mxu0 %v2892
        %v3429 = vpop.f32.mrf.mxu0
        %v3430 = vadd.f32 %v3341, %v3429
        %v3431 = vpop.f32.mrf.mxu0
        %v3432 = vadd.f32 %v3343, %v3431
        %3433 = vmatmul.bf16.gmra.mxu0 %v2894
        %v3434 = vpop.f32.mrf.mxu0
        %v3435 = vadd.f32 %v3346, %v3434
        %v3436 = vpop.f32.mrf.mxu0
        %v3437 = vadd.f32 %v3348, %v3436
        %3438 = vmatmul.bf16.gmra.mxu0 %v2896
        %v3439 = vpop.f32.mrf.mxu0
        %v3440 = vadd.f32 %v3351, %v3439
        %v3441 = vpop.f32.mrf.mxu0
        %v3442 = vadd.f32 %v3353, %v3441
        %3443 = vmatmul.bf16.gmra.mxu0 %v2898
        %v3444 = vpop.f32.mrf.mxu0
        %v3445 = vadd.f32 %v3356, %v3444
        %v3446 = vpop.f32.mrf.mxu0
        %v3447 = vadd.f32 %v3358, %v3446
        %3448 = vmatmul.bf16.gmra.mxu0 %v2900
        %v3449 = vpop.f32.mrf.mxu0
        %v3450 = vadd.f32 %v3361, %v3449
        %v3451 = vpop.f32.mrf.mxu0
        %v3452 = vadd.f32 %v3363, %v3451
        %3453 = vmatmul.bf16.gmra.mxu0 %v2902
        %v3454 = vpop.f32.mrf.mxu0
        %v3455 = vadd.f32 %v3366, %v3454
        %v3456 = vpop.f32.mrf.mxu0
        %v3457 = vadd.f32 %v3368, %v3456
        %3458 = vdwg.mxu0
        %v3459 = vmax.f32 %v3202, 0.0
        %v3460 = vmax.f32 %v3380, 0.0
        %v3461 = vmax.f32 %v3204, 0.0
        %v3462 = vmax.f32 %v3382, 0.0
        %v3463 = vmax.f32 %v3207, 0.0
        %v3464 = vmax.f32 %v3385, 0.0
        %v3465 = vmax.f32 %v3209, 0.0
        %v3466 = vmax.f32 %v3387, 0.0
        %v3467 = vmax.f32 %v3212, 0.0
        %v3468 = vmax.f32 %v3390, 0.0
        %v3469 = vmax.f32 %v3214, 0.0
        %v3470 = vmax.f32 %v3392, 0.0
        %v3471 = vmax.f32 %v3217, 0.0
        %v3472 = vmax.f32 %v3395, 0.0
        %v3473 = vmax.f32 %v3219, 0.0
        %v3474 = vmax.f32 %v3397, 0.0
        %v3475 = vmax.f32 %v3222, 0.0
        %v3476 = vmax.f32 %v3400, 0.0
        %v3477 = vmax.f32 %v3224, 0.0
        %v3478 = vmax.f32 %v3402, 0.0
        %v3479 = vmax.f32 %v3227, 0.0
        %v3480 = vmax.f32 %v3405, 0.0
        %v3481 = vmax.f32 %v3229, 0.0
        %v3482 = vmax.f32 %v3407, 0.0
        %v3483 = vmax.f32 %v3232, 0.0
        %v3484 = vmax.f32 %v3410, 0.0
        %v3485 = vmax.f32 %v3234, 0.0
        %v3486 = vmax.f32 %v3412, 0.0
        %v3487 = vmax.f32 %v3237, 0.0
        %v3488 = vmax.f32 %v3415, 0.0
        %v3489 = vmax.f32 %v3239, 0.0
        %v3490 = vmax.f32 %v3417, 0.0
        %v3491 = vmax.f32 %v3242, 0.0
        %v3492 = vmax.f32 %v3420, 0.0
        %v3493 = vmax.f32 %v3244, 0.0
        %v3494 = vmax.f32 %v3422, 0.0
        %v3495 = vmax.f32 %v3247, 0.0
        %v3496 = vmax.f32 %v3425, 0.0
        %v3497 = vmax.f32 %v3249, 0.0
        %v3498 = vmax.f32 %v3427, 0.0
        %v3499 = vmax.f32 %v3252, 0.0
        %v3500 = vmax.f32 %v3430, 0.0
        %v3501 = vmax.f32 %v3254, 0.0
        %v3502 = vmax.f32 %v3432, 0.0
        %v3503 = vmax.f32 %v3257, 0.0
        %v3504 = vmax.f32 %v3435, 0.0
        %v3505 = vmax.f32 %v3259, 0.0
        %v3506 = vmax.f32 %v3437, 0.0
        %v3507 = vmax.f32 %v3262, 0.0
        %v3508 = vmax.f32 %v3440, 0.0
        %v3509 = vmax.f32 %v3264, 0.0
        %v3510 = vmax.f32 %v3442, 0.0
        %v3511 = vmax.f32 %v3267, 0.0
        %v3512 = vmax.f32 %v3445, 0.0
        %v3513 = vmax.f32 %v3269, 0.0
        %v3514 = vmax.f32 %v3447, 0.0
        %v3515 = vmax.f32 %v3272, 0.0
        %v3516 = vmax.f32 %v3450, 0.0
        %v3517 = vmax.f32 %v3274, 0.0
        %v3518 = vmax.f32 %v3452, 0.0
        %v3519 = vmax.f32 %v3277, 0.0
        %v3520 = vmax.f32 %v3455, 0.0
        %v3521 = vmax.f32 %v3279, 0.0
        %v3522 = vmax.f32 %v3457, 0.0
        %v3523 = vpack.c.bf16 %v3461, %v3459
        %v3524 = vpack.c.bf16 %v3462, %v3460
        %v3525 = vpack.c.bf16 %v3465, %v3463
        %v3526 = vpack.c.bf16 %v3466, %v3464
        %v3527 = vpack.c.bf16 %v3469, %v3467
        %v3528 = vpack.c.bf16 %v3470, %v3468
        %v3529 = vpack.c.bf16 %v3473, %v3471
        %v3530 = vpack.c.bf16 %v3474, %v3472
        %v3531 = vpack.c.bf16 %v3477, %v3475
        %v3532 = vpack.c.bf16 %v3478, %v3476
        %v3533 = vpack.c.bf16 %v3481, %v3479
        %v3534 = vpack.c.bf16 %v3482, %v3480
        %v3535 = vpack.c.bf16 %v3485, %v3483
        %v3536 = vpack.c.bf16 %v3486, %v3484
        %v3537 = vpack.c.bf16 %v3489, %v3487
        %v3538 = vpack.c.bf16 %v3490, %v3488
        %v3539 = vpack.c.bf16 %v3493, %v3491
        %v3540 = vpack.c.bf16 %v3494, %v3492
        %v3541 = vpack.c.bf16 %v3497, %v3495
        %v3542 = vpack.c.bf16 %v3498, %v3496
        %v3543 = vpack.c.bf16 %v3501, %v3499
        %v3544 = vpack.c.bf16 %v3502, %v3500
        %v3545 = vpack.c.bf16 %v3505, %v3503
        %v3546 = vpack.c.bf16 %v3506, %v3504
        %v3547 = vpack.c.bf16 %v3509, %v3507
        %v3548 = vpack.c.bf16 %v3510, %v3508
        %v3549 = vpack.c.bf16 %v3513, %v3511
        %v3550 = vpack.c.bf16 %v3514, %v3512
        %v3551 = vpack.c.bf16 %v3517, %v3515
        %v3552 = vpack.c.bf16 %v3518, %v3516
        %v3553 = vpack.c.bf16 %v3521, %v3519
        %v3554 = vpack.c.bf16 %v3522, %v3520
        %s3555 = scalar_lea.vmem [#allocation2], 256
        %v3556 = vld [vmem:[%s3555] sm:$0xff]
        %v3557 = vld [vmem:[%s3555 + $0x8] sm:$0xff]
        %v3558 = vld [vmem:[%s3555 + $0x10] sm:$0xff]
        %v3559 = vld [vmem:[%s3555 + $0x18] sm:$0xff]
        %v3560 = vld [vmem:[%s3555 + $0x20] sm:$0xff]
        %v3561 = vld [vmem:[%s3555 + $0x28] sm:$0xff]
        %v3562 = vld [vmem:[%s3555 + $0x30] sm:$0xff]
        %v3563 = vld [vmem:[%s3555 + $0x38] sm:$0xff]
        %v3564 = vld [vmem:[%s3555 + $0x40] sm:$0xff]
        %v3565 = vld [vmem:[%s3555 + $0x48] sm:$0xff]
        %v3566 = vld [vmem:[%s3555 + $0x50] sm:$0xff]
        %v3567 = vld [vmem:[%s3555 + $0x58] sm:$0xff]
        %v3568 = vld [vmem:[%s3555 + $0x60] sm:$0xff]
        %v3569 = vld [vmem:[%s3555 + $0x68] sm:$0xff]
        %v3570 = vld [vmem:[%s3555 + $0x70] sm:$0xff]
        %v3571 = vld [vmem:[%s3555 + $0x78] sm:$0xff]
        %v3572 = vld [vmem:[%s3555 + $0x80] sm:$0xff]
        %v3573 = vld [vmem:[%s3555 + $0x88] sm:$0xff]
        %v3574 = vld [vmem:[%s3555 + $0x90] sm:$0xff]
        %v3575 = vld [vmem:[%s3555 + $0x98] sm:$0xff]
        %v3576 = vld [vmem:[%s3555 + $0xa0] sm:$0xff]
        %v3577 = vld [vmem:[%s3555 + $0xa8] sm:$0xff]
        %v3578 = vld [vmem:[%s3555 + $0xb0] sm:$0xff]
        %v3579 = vld [vmem:[%s3555 + $0xb8] sm:$0xff]
        %v3580 = vld [vmem:[%s3555 + $0xc0] sm:$0xff]
        %v3581 = vld [vmem:[%s3555 + $0xc8] sm:$0xff]
        %v3582 = vld [vmem:[%s3555 + $0xd0] sm:$0xff]
        %v3583 = vld [vmem:[%s3555 + $0xd8] sm:$0xff]
        %v3584 = vld [vmem:[%s3555 + $0xe0] sm:$0xff]
        %v3585 = vld [vmem:[%s3555 + $0xe8] sm:$0xff]
        %v3586 = vld [vmem:[%s3555 + $0xf0] sm:$0xff]
        %v3587 = vld [vmem:[%s3555 + $0xf8] sm:$0xff]
        %s3588 = scalar_lea.vmem %s6, 2
        %v3589 = vld [vmem:[%s3588] sm:$0x3]
        %v3591 = vperm.slane %v3589, 0
        %v3592 = vperm.slane %v3589, 1
        %v3627 = vunpack.c.l.b16 %v3556
        %v3628 = vunpack.c.h.b16 %v3556
        %v3629 = vunpack.c.l.b16 %v3557
        %v3630 = vunpack.c.h.b16 %v3557
        %v3631 = vunpack.c.l.b16 %v3558
        %v3632 = vunpack.c.h.b16 %v3558
        %v3633 = vunpack.c.l.b16 %v3559
        %v3634 = vunpack.c.h.b16 %v3559
        %v3635 = vunpack.c.l.b16 %v3560
        %v3636 = vunpack.c.h.b16 %v3560
        %v3637 = vunpack.c.l.b16 %v3561
        %v3638 = vunpack.c.h.b16 %v3561
        %v3639 = vunpack.c.l.b16 %v3562
        %v3640 = vunpack.c.h.b16 %v3562
        %v3641 = vunpack.c.l.b16 %v3563
        %v3642 = vunpack.c.h.b16 %v3563
        %v3643 = vunpack.c.l.b16 %v3564
        %v3644 = vunpack.c.h.b16 %v3564
        %v3645 = vunpack.c.l.b16 %v3565
        %v3646 = vunpack.c.h.b16 %v3565
        %v3647 = vunpack.c.l.b16 %v3566
        %v3648 = vunpack.c.h.b16 %v3566
        %v3649 = vunpack.c.l.b16 %v3567
        %v3650 = vunpack.c.h.b16 %v3567
        %v3651 = vunpack.c.l.b16 %v3568
        %v3652 = vunpack.c.h.b16 %v3568
        %v3653 = vunpack.c.l.b16 %v3569
        %v3654 = vunpack.c.h.b16 %v3569
        %v3655 = vunpack.c.l.b16 %v3570
        %v3656 = vunpack.c.h.b16 %v3570
        %v3657 = vunpack.c.l.b16 %v3571
        %v3658 = vunpack.c.h.b16 %v3571
        %v3659 = vunpack.c.l.b16 %v3572
        %v3660 = vunpack.c.h.b16 %v3572
        %v3661 = vunpack.c.l.b16 %v3573
        %v3662 = vunpack.c.h.b16 %v3573
        %v3663 = vunpack.c.l.b16 %v3574
        %v3664 = vunpack.c.h.b16 %v3574
        %v3665 = vunpack.c.l.b16 %v3575
        %v3666 = vunpack.c.h.b16 %v3575
        %v3667 = vunpack.c.l.b16 %v3576
        %v3668 = vunpack.c.h.b16 %v3576
        %v3669 = vunpack.c.l.b16 %v3577
        %v3670 = vunpack.c.h.b16 %v3577
        %v3671 = vunpack.c.l.b16 %v3578
        %v3672 = vunpack.c.h.b16 %v3578
        %v3673 = vunpack.c.l.b16 %v3579
        %v3674 = vunpack.c.h.b16 %v3579
        %v3675 = vunpack.c.l.b16 %v3580
        %v3676 = vunpack.c.h.b16 %v3580
        %v3677 = vunpack.c.l.b16 %v3581
        %v3678 = vunpack.c.h.b16 %v3581
        %v3679 = vunpack.c.l.b16 %v3582
        %v3680 = vunpack.c.h.b16 %v3582
        %v3681 = vunpack.c.l.b16 %v3583
        %v3682 = vunpack.c.h.b16 %v3583
        %v3683 = vunpack.c.l.b16 %v3584
        %v3684 = vunpack.c.h.b16 %v3584
        %v3685 = vunpack.c.l.b16 %v3585
        %v3686 = vunpack.c.h.b16 %v3585
        %v3687 = vunpack.c.l.b16 %v3586
        %v3688 = vunpack.c.h.b16 %v3586
        %v3689 = vunpack.c.l.b16 %v3587
        %v3690 = vunpack.c.h.b16 %v3587
        %v3691 = vpack.c.b16 %v3629, %v3627
        %v3692 = vpack.c.b16 %v3630, %v3628
        %v3693 = vpack.c.b16 %v3633, %v3631
        %v3694 = vpack.c.b16 %v3634, %v3632
        %v3695 = vpack.c.b16 %v3637, %v3635
        %v3696 = vpack.c.b16 %v3638, %v3636
        %v3697 = vpack.c.b16 %v3641, %v3639
        %v3698 = vpack.c.b16 %v3642, %v3640
        %v3699 = vpack.c.b16 %v3645, %v3643
        %v3700 = vpack.c.b16 %v3646, %v3644
        %v3701 = vpack.c.b16 %v3649, %v3647
        %v3702 = vpack.c.b16 %v3650, %v3648
        %v3703 = vpack.c.b16 %v3653, %v3651
        %v3704 = vpack.c.b16 %v3654, %v3652
        %v3705 = vpack.c.b16 %v3657, %v3655
        %v3706 = vpack.c.b16 %v3658, %v3656
        %v3707 = vpack.c.b16 %v3661, %v3659
        %v3708 = vpack.c.b16 %v3662, %v3660
        %v3709 = vpack.c.b16 %v3665, %v3663
        %v3710 = vpack.c.b16 %v3666, %v3664
        %v3711 = vpack.c.b16 %v3669, %v3667
        %v3712 = vpack.c.b16 %v3670, %v3668
        %v3713 = vpack.c.b16 %v3673, %v3671
        %v3714 = vpack.c.b16 %v3674, %v3672
        %v3715 = vpack.c.b16 %v3677, %v3675
        %v3716 = vpack.c.b16 %v3678, %v3676
        %v3717 = vpack.c.b16 %v3681, %v3679
        %v3718 = vpack.c.b16 %v3682, %v3680
        %v3719 = vpack.c.b16 %v3685, %v3683
        %v3720 = vpack.c.b16 %v3686, %v3684
        %v3721 = vpack.c.b16 %v3689, %v3687
        %v3722 = vpack.c.b16 %v3690, %v3688
        %3755 = vmatpush.bf16.msra.mxu0 %v3705
        %3756 = vmatpush.bf16.msra.mxu0 %v3703
        %3757 = vmatpush.bf16.msra.mxu0 %v3701
        %3758 = vmatpush.bf16.msra.mxu0 %v3699
        %3759 = vmatpush.bf16.msra.mxu0 %v3697
        %3760 = vmatpush.bf16.msra.mxu0 %v3695
        %3761 = vmatpush.bf16.msra.mxu0 %v3693
        %3762 = vmatpush.bf16.msra.mxu0 %v3691
        %3763 = vmatmul.bf16.gmra.mxu0 %v3523
        %v3764 = vpop.f32.mrf.mxu0
        %v3765 = vadd.f32 %v3591, %v3764
        %v3766 = vpop.f32.mrf.mxu0
        %v3767 = vadd.f32 %v3591, %v3766
        %3768 = vmatmul.bf16.gmra.mxu0 %v3525
        %v3769 = vpop.f32.mrf.mxu0
        %v3770 = vadd.f32 %v3591, %v3769
        %v3771 = vpop.f32.mrf.mxu0
        %v3772 = vadd.f32 %v3591, %v3771
        %3773 = vmatmul.bf16.gmra.mxu0 %v3527
        %v3774 = vpop.f32.mrf.mxu0
        %v3775 = vadd.f32 %v3591, %v3774
        %v3776 = vpop.f32.mrf.mxu0
        %v3777 = vadd.f32 %v3591, %v3776
        %3778 = vmatmul.bf16.gmra.mxu0 %v3529
        %v3779 = vpop.f32.mrf.mxu0
        %v3780 = vadd.f32 %v3591, %v3779
        %v3781 = vpop.f32.mrf.mxu0
        %v3782 = vadd.f32 %v3591, %v3781
        %3783 = vmatmul.bf16.gmra.mxu0 %v3531
        %v3784 = vpop.f32.mrf.mxu0
        %v3785 = vadd.f32 %v3591, %v3784
        %v3786 = vpop.f32.mrf.mxu0
        %v3787 = vadd.f32 %v3591, %v3786
        %3788 = vmatmul.bf16.gmra.mxu0 %v3533
        %v3789 = vpop.f32.mrf.mxu0
        %v3790 = vadd.f32 %v3591, %v3789
        %v3791 = vpop.f32.mrf.mxu0
        %v3792 = vadd.f32 %v3591, %v3791
        %3793 = vmatmul.bf16.gmra.mxu0 %v3535
        %v3794 = vpop.f32.mrf.mxu0
        %v3795 = vadd.f32 %v3591, %v3794
        %v3796 = vpop.f32.mrf.mxu0
        %v3797 = vadd.f32 %v3591, %v3796
        %3798 = vmatmul.bf16.gmra.mxu0 %v3537
        %v3799 = vpop.f32.mrf.mxu0
        %v3800 = vadd.f32 %v3591, %v3799
        %v3801 = vpop.f32.mrf.mxu0
        %v3802 = vadd.f32 %v3591, %v3801
        %3803 = vmatmul.bf16.gmra.mxu0 %v3539
        %v3804 = vpop.f32.mrf.mxu0
        %v3805 = vadd.f32 %v3591, %v3804
        %v3806 = vpop.f32.mrf.mxu0
        %v3807 = vadd.f32 %v3591, %v3806
        %3808 = vmatmul.bf16.gmra.mxu0 %v3541
        %v3809 = vpop.f32.mrf.mxu0
        %v3810 = vadd.f32 %v3591, %v3809
        %v3811 = vpop.f32.mrf.mxu0
        %v3812 = vadd.f32 %v3591, %v3811
        %3813 = vmatmul.bf16.gmra.mxu0 %v3543
        %v3814 = vpop.f32.mrf.mxu0
        %v3815 = vadd.f32 %v3591, %v3814
        %v3816 = vpop.f32.mrf.mxu0
        %v3817 = vadd.f32 %v3591, %v3816
        %3818 = vmatmul.bf16.gmra.mxu0 %v3545
        %v3819 = vpop.f32.mrf.mxu0
        %v3820 = vadd.f32 %v3591, %v3819
        %v3821 = vpop.f32.mrf.mxu0
        %v3822 = vadd.f32 %v3591, %v3821
        %3823 = vmatmul.bf16.gmra.mxu0 %v3547
        %v3824 = vpop.f32.mrf.mxu0
        %v3825 = vadd.f32 %v3591, %v3824
        %v3826 = vpop.f32.mrf.mxu0
        %v3827 = vadd.f32 %v3591, %v3826
        %3828 = vmatmul.bf16.gmra.mxu0 %v3549
        %v3829 = vpop.f32.mrf.mxu0
        %v3830 = vadd.f32 %v3591, %v3829
        %v3831 = vpop.f32.mrf.mxu0
        %v3832 = vadd.f32 %v3591, %v3831
        %3833 = vmatmul.bf16.gmra.mxu0 %v3551
        %v3834 = vpop.f32.mrf.mxu0
        %v3835 = vadd.f32 %v3591, %v3834
        %v3836 = vpop.f32.mrf.mxu0
        %v3837 = vadd.f32 %v3591, %v3836
        %3838 = vmatmul.bf16.gmra.mxu0 %v3553
        %v3839 = vpop.f32.mrf.mxu0
        %v3840 = vadd.f32 %v3591, %v3839
        %v3841 = vpop.f32.mrf.mxu0
        %v3842 = vadd.f32 %v3591, %v3841
        %3843 = vdwg.mxu0
        %3844 = vmatpush.bf16.msra.mxu0 %v3721
        %3845 = vmatpush.bf16.msra.mxu0 %v3719
        %3846 = vmatpush.bf16.msra.mxu0 %v3717
        %3847 = vmatpush.bf16.msra.mxu0 %v3715
        %3848 = vmatpush.bf16.msra.mxu0 %v3713
        %3849 = vmatpush.bf16.msra.mxu0 %v3711
        %3850 = vmatpush.bf16.msra.mxu0 %v3709
        %3851 = vmatpush.bf16.msra.mxu0 %v3707
        %3852 = vmatmul.bf16.gmra.mxu0 %v3524
        %v3853 = vpop.f32.mrf.mxu0
        %v3854 = vadd.f32 %v3765, %v3853
        %v3855 = vpop.f32.mrf.mxu0
        %v3856 = vadd.f32 %v3767, %v3855
        %3857 = vmatmul.bf16.gmra.mxu0 %v3526
        %v3858 = vpop.f32.mrf.mxu0
        %v3859 = vadd.f32 %v3770, %v3858
        %v3860 = vpop.f32.mrf.mxu0
        %v3861 = vadd.f32 %v3772, %v3860
        %3862 = vmatmul.bf16.gmra.mxu0 %v3528
        %v3863 = vpop.f32.mrf.mxu0
        %v3864 = vadd.f32 %v3775, %v3863
        %v3865 = vpop.f32.mrf.mxu0
        %v3866 = vadd.f32 %v3777, %v3865
        %3867 = vmatmul.bf16.gmra.mxu0 %v3530
        %v3868 = vpop.f32.mrf.mxu0
        %v3869 = vadd.f32 %v3780, %v3868
        %v3870 = vpop.f32.mrf.mxu0
        %v3871 = vadd.f32 %v3782, %v3870
        %3872 = vmatmul.bf16.gmra.mxu0 %v3532
        %v3873 = vpop.f32.mrf.mxu0
        %v3874 = vadd.f32 %v3785, %v3873
        %v3875 = vpop.f32.mrf.mxu0
        %v3876 = vadd.f32 %v3787, %v3875
        %3877 = vmatmul.bf16.gmra.mxu0 %v3534
        %v3878 = vpop.f32.mrf.mxu0
        %v3879 = vadd.f32 %v3790, %v3878
        %v3880 = vpop.f32.mrf.mxu0
        %v3881 = vadd.f32 %v3792, %v3880
        %3882 = vmatmul.bf16.gmra.mxu0 %v3536
        %v3883 = vpop.f32.mrf.mxu0
        %v3884 = vadd.f32 %v3795, %v3883
        %v3885 = vpop.f32.mrf.mxu0
        %v3886 = vadd.f32 %v3797, %v3885
        %3887 = vmatmul.bf16.gmra.mxu0 %v3538
        %v3888 = vpop.f32.mrf.mxu0
        %v3889 = vadd.f32 %v3800, %v3888
        %v3890 = vpop.f32.mrf.mxu0
        %v3891 = vadd.f32 %v3802, %v3890
        %3892 = vmatmul.bf16.gmra.mxu0 %v3540
        %v3893 = vpop.f32.mrf.mxu0
        %v3894 = vadd.f32 %v3805, %v3893
        %v3895 = vpop.f32.mrf.mxu0
        %v3896 = vadd.f32 %v3807, %v3895
        %3897 = vmatmul.bf16.gmra.mxu0 %v3542
        %v3898 = vpop.f32.mrf.mxu0
        %v3899 = vadd.f32 %v3810, %v3898
        %v3900 = vpop.f32.mrf.mxu0
        %v3901 = vadd.f32 %v3812, %v3900
        %3902 = vmatmul.bf16.gmra.mxu0 %v3544
        %v3903 = vpop.f32.mrf.mxu0
        %v3904 = vadd.f32 %v3815, %v3903
        %v3905 = vpop.f32.mrf.mxu0
        %v3906 = vadd.f32 %v3817, %v3905
        %3907 = vmatmul.bf16.gmra.mxu0 %v3546
        %v3908 = vpop.f32.mrf.mxu0
        %v3909 = vadd.f32 %v3820, %v3908
        %v3910 = vpop.f32.mrf.mxu0
        %v3911 = vadd.f32 %v3822, %v3910
        %3912 = vmatmul.bf16.gmra.mxu0 %v3548
        %v3913 = vpop.f32.mrf.mxu0
        %v3914 = vadd.f32 %v3825, %v3913
        %v3915 = vpop.f32.mrf.mxu0
        %v3916 = vadd.f32 %v3827, %v3915
        %3917 = vmatmul.bf16.gmra.mxu0 %v3550
        %v3918 = vpop.f32.mrf.mxu0
        %v3919 = vadd.f32 %v3830, %v3918
        %v3920 = vpop.f32.mrf.mxu0
        %v3921 = vadd.f32 %v3832, %v3920
        %3922 = vmatmul.bf16.gmra.mxu0 %v3552
        %v3923 = vpop.f32.mrf.mxu0
        %v3924 = vadd.f32 %v3835, %v3923
        %v3925 = vpop.f32.mrf.mxu0
        %v3926 = vadd.f32 %v3837, %v3925
        %3927 = vmatmul.bf16.gmra.mxu0 %v3554
        %v3928 = vpop.f32.mrf.mxu0
        %v3929 = vadd.f32 %v3840, %v3928
        %v3930 = vpop.f32.mrf.mxu0
        %v3931 = vadd.f32 %v3842, %v3930
        %3932 = vdwg.mxu0
        %3933 = vmatpush.bf16.msra.mxu0 %v3706
        %3934 = vmatpush.bf16.msra.mxu0 %v3704
        %3935 = vmatpush.bf16.msra.mxu0 %v3702
        %3936 = vmatpush.bf16.msra.mxu0 %v3700
        %3937 = vmatpush.bf16.msra.mxu0 %v3698
        %3938 = vmatpush.bf16.msra.mxu0 %v3696
        %3939 = vmatpush.bf16.msra.mxu0 %v3694
        %3940 = vmatpush.bf16.msra.mxu0 %v3692
        %3941 = vmatmul.bf16.gmra.mxu0 %v3523
        %v3942 = vpop.f32.mrf.mxu0
        %v3943 = vadd.f32 %v3592, %v3942
        %v3944 = vpop.f32.mrf.mxu0
        %v3945 = vadd.f32 %v3592, %v3944
        %3946 = vmatmul.bf16.gmra.mxu0 %v3525
        %v3947 = vpop.f32.mrf.mxu0
        %v3948 = vadd.f32 %v3592, %v3947
        %v3949 = vpop.f32.mrf.mxu0
        %v3950 = vadd.f32 %v3592, %v3949
        %3951 = vmatmul.bf16.gmra.mxu0 %v3527
        %v3952 = vpop.f32.mrf.mxu0
        %v3953 = vadd.f32 %v3592, %v3952
        %v3954 = vpop.f32.mrf.mxu0
        %v3955 = vadd.f32 %v3592, %v3954
        %3956 = vmatmul.bf16.gmra.mxu0 %v3529
        %v3957 = vpop.f32.mrf.mxu0
        %v3958 = vadd.f32 %v3592, %v3957
        %v3959 = vpop.f32.mrf.mxu0
        %v3960 = vadd.f32 %v3592, %v3959
        %3961 = vmatmul.bf16.gmra.mxu0 %v3531
        %v3962 = vpop.f32.mrf.mxu0
        %v3963 = vadd.f32 %v3592, %v3962
        %v3964 = vpop.f32.mrf.mxu0
        %v3965 = vadd.f32 %v3592, %v3964
        %3966 = vmatmul.bf16.gmra.mxu0 %v3533
        %v3967 = vpop.f32.mrf.mxu0
        %v3968 = vadd.f32 %v3592, %v3967
        %v3969 = vpop.f32.mrf.mxu0
        %v3970 = vadd.f32 %v3592, %v3969
        %3971 = vmatmul.bf16.gmra.mxu0 %v3535
        %v3972 = vpop.f32.mrf.mxu0
        %v3973 = vadd.f32 %v3592, %v3972
        %v3974 = vpop.f32.mrf.mxu0
        %v3975 = vadd.f32 %v3592, %v3974
        %3976 = vmatmul.bf16.gmra.mxu0 %v3537
        %v3977 = vpop.f32.mrf.mxu0
        %v3978 = vadd.f32 %v3592, %v3977
        %v3979 = vpop.f32.mrf.mxu0
        %v3980 = vadd.f32 %v3592, %v3979
        %3981 = vmatmul.bf16.gmra.mxu0 %v3539
        %v3982 = vpop.f32.mrf.mxu0
        %v3983 = vadd.f32 %v3592, %v3982
        %v3984 = vpop.f32.mrf.mxu0
        %v3985 = vadd.f32 %v3592, %v3984
        %3986 = vmatmul.bf16.gmra.mxu0 %v3541
        %v3987 = vpop.f32.mrf.mxu0
        %v3988 = vadd.f32 %v3592, %v3987
        %v3989 = vpop.f32.mrf.mxu0
        %v3990 = vadd.f32 %v3592, %v3989
        %3991 = vmatmul.bf16.gmra.mxu0 %v3543
        %v3992 = vpop.f32.mrf.mxu0
        %v3993 = vadd.f32 %v3592, %v3992
        %v3994 = vpop.f32.mrf.mxu0
        %v3995 = vadd.f32 %v3592, %v3994
        %3996 = vmatmul.bf16.gmra.mxu0 %v3545
        %v3997 = vpop.f32.mrf.mxu0
        %v3998 = vadd.f32 %v3592, %v3997
        %v3999 = vpop.f32.mrf.mxu0
        %v4000 = vadd.f32 %v3592, %v3999
        %4001 = vmatmul.bf16.gmra.mxu0 %v3547
        %v4002 = vpop.f32.mrf.mxu0
        %v4003 = vadd.f32 %v3592, %v4002
        %v4004 = vpop.f32.mrf.mxu0
        %v4005 = vadd.f32 %v3592, %v4004
        %4006 = vmatmul.bf16.gmra.mxu0 %v3549
        %v4007 = vpop.f32.mrf.mxu0
        %v4008 = vadd.f32 %v3592, %v4007
        %v4009 = vpop.f32.mrf.mxu0
        %v4010 = vadd.f32 %v3592, %v4009
        %4011 = vmatmul.bf16.gmra.mxu0 %v3551
        %v4012 = vpop.f32.mrf.mxu0
        %v4013 = vadd.f32 %v3592, %v4012
        %v4014 = vpop.f32.mrf.mxu0
        %v4015 = vadd.f32 %v3592, %v4014
        %4016 = vmatmul.bf16.gmra.mxu0 %v3553
        %v4017 = vpop.f32.mrf.mxu0
        %v4018 = vadd.f32 %v3592, %v4017
        %v4019 = vpop.f32.mrf.mxu0
        %v4020 = vadd.f32 %v3592, %v4019
        %4021 = vdwg.mxu0
        %4022 = vmatpush.bf16.msra.mxu0 %v3722
        %4023 = vmatpush.bf16.msra.mxu0 %v3720
        %4024 = vmatpush.bf16.msra.mxu0 %v3718
        %4025 = vmatpush.bf16.msra.mxu0 %v3716
        %4026 = vmatpush.bf16.msra.mxu0 %v3714
        %4027 = vmatpush.bf16.msra.mxu0 %v3712
        %4028 = vmatpush.bf16.msra.mxu0 %v3710
        %4029 = vmatpush.bf16.msra.mxu0 %v3708
        %4030 = vmatmul.bf16.gmra.mxu0 %v3524
        %v4031 = vpop.f32.mrf.mxu0
        %v4032 = vadd.f32 %v3943, %v4031
        %v4033 = vpop.f32.mrf.mxu0
        %v4034 = vadd.f32 %v3945, %v4033
        %4035 = vmatmul.bf16.gmra.mxu0 %v3526
        %v4036 = vpop.f32.mrf.mxu0
        %v4037 = vadd.f32 %v3948, %v4036
        %v4038 = vpop.f32.mrf.mxu0
        %v4039 = vadd.f32 %v3950, %v4038
        %4040 = vmatmul.bf16.gmra.mxu0 %v3528
        %v4041 = vpop.f32.mrf.mxu0
        %v4042 = vadd.f32 %v3953, %v4041
        %v4043 = vpop.f32.mrf.mxu0
        %v4044 = vadd.f32 %v3955, %v4043
        %4045 = vmatmul.bf16.gmra.mxu0 %v3530
        %v4046 = vpop.f32.mrf.mxu0
        %v4047 = vadd.f32 %v3958, %v4046
        %v4048 = vpop.f32.mrf.mxu0
        %v4049 = vadd.f32 %v3960, %v4048
        %4050 = vmatmul.bf16.gmra.mxu0 %v3532
        %v4051 = vpop.f32.mrf.mxu0
        %v4052 = vadd.f32 %v3963, %v4051
        %v4053 = vpop.f32.mrf.mxu0
        %v4054 = vadd.f32 %v3965, %v4053
        %4055 = vmatmul.bf16.gmra.mxu0 %v3534
        %v4056 = vpop.f32.mrf.mxu0
        %v4057 = vadd.f32 %v3968, %v4056
        %v4058 = vpop.f32.mrf.mxu0
        %v4059 = vadd.f32 %v3970, %v4058
        %4060 = vmatmul.bf16.gmra.mxu0 %v3536
        %v4061 = vpop.f32.mrf.mxu0
        %v4062 = vadd.f32 %v3973, %v4061
        %v4063 = vpop.f32.mrf.mxu0
        %v4064 = vadd.f32 %v3975, %v4063
        %4065 = vmatmul.bf16.gmra.mxu0 %v3538
        %v4066 = vpop.f32.mrf.mxu0
        %v4067 = vadd.f32 %v3978, %v4066
        %v4068 = vpop.f32.mrf.mxu0
        %v4069 = vadd.f32 %v3980, %v4068
        %4070 = vmatmul.bf16.gmra.mxu0 %v3540
        %v4071 = vpop.f32.mrf.mxu0
        %v4072 = vadd.f32 %v3983, %v4071
        %v4073 = vpop.f32.mrf.mxu0
        %v4074 = vadd.f32 %v3985, %v4073
        %4075 = vmatmul.bf16.gmra.mxu0 %v3542
        %v4076 = vpop.f32.mrf.mxu0
        %v4077 = vadd.f32 %v3988, %v4076
        %v4078 = vpop.f32.mrf.mxu0
        %v4079 = vadd.f32 %v3990, %v4078
        %4080 = vmatmul.bf16.gmra.mxu0 %v3544
        %v4081 = vpop.f32.mrf.mxu0
        %v4082 = vadd.f32 %v3993, %v4081
        %v4083 = vpop.f32.mrf.mxu0
        %v4084 = vadd.f32 %v3995, %v4083
        %4085 = vmatmul.bf16.gmra.mxu0 %v3546
        %v4086 = vpop.f32.mrf.mxu0
        %v4087 = vadd.f32 %v3998, %v4086
        %v4088 = vpop.f32.mrf.mxu0
        %v4089 = vadd.f32 %v4000, %v4088
        %4090 = vmatmul.bf16.gmra.mxu0 %v3548
        %v4091 = vpop.f32.mrf.mxu0
        %v4092 = vadd.f32 %v4003, %v4091
        %v4093 = vpop.f32.mrf.mxu0
        %v4094 = vadd.f32 %v4005, %v4093
        %4095 = vmatmul.bf16.gmra.mxu0 %v3550
        %v4096 = vpop.f32.mrf.mxu0
        %v4097 = vadd.f32 %v4008, %v4096
        %v4098 = vpop.f32.mrf.mxu0
        %v4099 = vadd.f32 %v4010, %v4098
        %4100 = vmatmul.bf16.gmra.mxu0 %v3552
        %v4101 = vpop.f32.mrf.mxu0
        %v4102 = vadd.f32 %v4013, %v4101
        %v4103 = vpop.f32.mrf.mxu0
        %v4104 = vadd.f32 %v4015, %v4103
        %4105 = vmatmul.bf16.gmra.mxu0 %v3554
        %v4106 = vpop.f32.mrf.mxu0
        %v4107 = vadd.f32 %v4018, %v4106
        %v4108 = vpop.f32.mrf.mxu0
        %v4109 = vadd.f32 %v4020, %v4108
        %4110 = vdwg.mxu0
        %v4111 = vmax.f32 %v3854, 0.0
        %v4112 = vmax.f32 %v4032, 0.0
        %v4113 = vmax.f32 %v3856, 0.0
        %v4114 = vmax.f32 %v4034, 0.0
        %v4115 = vmax.f32 %v3859, 0.0
        %v4116 = vmax.f32 %v4037, 0.0
        %v4117 = vmax.f32 %v3861, 0.0
        %v4118 = vmax.f32 %v4039, 0.0
        %v4119 = vmax.f32 %v3864, 0.0
        %v4120 = vmax.f32 %v4042, 0.0
        %v4121 = vmax.f32 %v3866, 0.0
        %v4122 = vmax.f32 %v4044, 0.0
        %v4123 = vmax.f32 %v3869, 0.0
        %v4124 = vmax.f32 %v4047, 0.0
        %v4125 = vmax.f32 %v3871, 0.0
        %v4126 = vmax.f32 %v4049, 0.0
        %v4127 = vmax.f32 %v3874, 0.0
        %v4128 = vmax.f32 %v4052, 0.0
        %v4129 = vmax.f32 %v3876, 0.0
        %v4130 = vmax.f32 %v4054, 0.0
        %v4131 = vmax.f32 %v3879, 0.0
        %v4132 = vmax.f32 %v4057, 0.0
        %v4133 = vmax.f32 %v3881, 0.0
        %v4134 = vmax.f32 %v4059, 0.0
        %v4135 = vmax.f32 %v3884, 0.0
        %v4136 = vmax.f32 %v4062, 0.0
        %v4137 = vmax.f32 %v3886, 0.0
        %v4138 = vmax.f32 %v4064, 0.0
        %v4139 = vmax.f32 %v3889, 0.0
        %v4140 = vmax.f32 %v4067, 0.0
        %v4141 = vmax.f32 %v3891, 0.0
        %v4142 = vmax.f32 %v4069, 0.0
        %v4143 = vmax.f32 %v3894, 0.0
        %v4144 = vmax.f32 %v4072, 0.0
        %v4145 = vmax.f32 %v3896, 0.0
        %v4146 = vmax.f32 %v4074, 0.0
        %v4147 = vmax.f32 %v3899, 0.0
        %v4148 = vmax.f32 %v4077, 0.0
        %v4149 = vmax.f32 %v3901, 0.0
        %v4150 = vmax.f32 %v4079, 0.0
        %v4151 = vmax.f32 %v3904, 0.0
        %v4152 = vmax.f32 %v4082, 0.0
        %v4153 = vmax.f32 %v3906, 0.0
        %v4154 = vmax.f32 %v4084, 0.0
        %v4155 = vmax.f32 %v3909, 0.0
        %v4156 = vmax.f32 %v4087, 0.0
        %v4157 = vmax.f32 %v3911, 0.0
        %v4158 = vmax.f32 %v4089, 0.0
        %v4159 = vmax.f32 %v3914, 0.0
        %v4160 = vmax.f32 %v4092, 0.0
        %v4161 = vmax.f32 %v3916, 0.0
        %v4162 = vmax.f32 %v4094, 0.0
        %v4163 = vmax.f32 %v3919, 0.0
        %v4164 = vmax.f32 %v4097, 0.0
        %v4165 = vmax.f32 %v3921, 0.0
        %v4166 = vmax.f32 %v4099, 0.0
        %v4167 = vmax.f32 %v3924, 0.0
        %v4168 = vmax.f32 %v4102, 0.0
        %v4169 = vmax.f32 %v3926, 0.0
        %v4170 = vmax.f32 %v4104, 0.0
        %v4171 = vmax.f32 %v3929, 0.0
        %v4172 = vmax.f32 %v4107, 0.0
        %v4173 = vmax.f32 %v3931, 0.0
        %v4174 = vmax.f32 %v4109, 0.0
        %v4175 = vpack.c.bf16 %v4113, %v4111
        %v4176 = vpack.c.bf16 %v4114, %v4112
        %v4177 = vpack.c.bf16 %v4117, %v4115
        %v4178 = vpack.c.bf16 %v4118, %v4116
        %v4179 = vpack.c.bf16 %v4121, %v4119
        %v4180 = vpack.c.bf16 %v4122, %v4120
        %v4181 = vpack.c.bf16 %v4125, %v4123
        %v4182 = vpack.c.bf16 %v4126, %v4124
        %v4183 = vpack.c.bf16 %v4129, %v4127
        %v4184 = vpack.c.bf16 %v4130, %v4128
        %v4185 = vpack.c.bf16 %v4133, %v4131
        %v4186 = vpack.c.bf16 %v4134, %v4132
        %v4187 = vpack.c.bf16 %v4137, %v4135
        %v4188 = vpack.c.bf16 %v4138, %v4136
        %v4189 = vpack.c.bf16 %v4141, %v4139
        %v4190 = vpack.c.bf16 %v4142, %v4140
        %v4191 = vpack.c.bf16 %v4145, %v4143
        %v4192 = vpack.c.bf16 %v4146, %v4144
        %v4193 = vpack.c.bf16 %v4149, %v4147
        %v4194 = vpack.c.bf16 %v4150, %v4148
        %v4195 = vpack.c.bf16 %v4153, %v4151
        %v4196 = vpack.c.bf16 %v4154, %v4152
        %v4197 = vpack.c.bf16 %v4157, %v4155
        %v4198 = vpack.c.bf16 %v4158, %v4156
        %v4199 = vpack.c.bf16 %v4161, %v4159
        %v4200 = vpack.c.bf16 %v4162, %v4160
        %v4201 = vpack.c.bf16 %v4165, %v4163
        %v4202 = vpack.c.bf16 %v4166, %v4164
        %v4203 = vpack.c.bf16 %v4169, %v4167
        %v4204 = vpack.c.bf16 %v4170, %v4168
        %v4205 = vpack.c.bf16 %v4173, %v4171
        %v4206 = vpack.c.bf16 %v4174, %v4172
        %s4207 = scalar_lea.vmem %s7, 128
        %v4208 = vld [vmem:[%s4207] sm:$0xf]
        %v4209 = vld [vmem:[%s4207 + $0x4] sm:$0xf]
        %v4210 = vld [vmem:[%s4207 + $0x8] sm:$0xf]
        %v4211 = vld [vmem:[%s4207 + $0xc] sm:$0xf]
        %v4212 = vld [vmem:[%s4207 + $0x10] sm:$0xf]
        %v4213 = vld [vmem:[%s4207 + $0x14] sm:$0xf]
        %v4214 = vld [vmem:[%s4207 + $0x18] sm:$0xf]
        %v4215 = vld [vmem:[%s4207 + $0x1c] sm:$0xf]
        %v4216 = vld [vmem:[%s4207 + $0x20] sm:$0xf]
        %v4217 = vld [vmem:[%s4207 + $0x24] sm:$0xf]
        %v4218 = vld [vmem:[%s4207 + $0x28] sm:$0xf]
        %v4219 = vld [vmem:[%s4207 + $0x2c] sm:$0xf]
        %v4220 = vld [vmem:[%s4207 + $0x30] sm:$0xf]
        %v4221 = vld [vmem:[%s4207 + $0x34] sm:$0xf]
        %v4222 = vld [vmem:[%s4207 + $0x38] sm:$0xf]
        %v4223 = vld [vmem:[%s4207 + $0x3c] sm:$0xf]
        %v4224 = vld [vmem:[%s4207 + $0x40] sm:$0xf]
        %v4225 = vld [vmem:[%s4207 + $0x44] sm:$0xf]
        %v4226 = vld [vmem:[%s4207 + $0x48] sm:$0xf]
        %v4227 = vld [vmem:[%s4207 + $0x4c] sm:$0xf]
        %v4228 = vld [vmem:[%s4207 + $0x50] sm:$0xf]
        %v4229 = vld [vmem:[%s4207 + $0x54] sm:$0xf]
        %v4230 = vld [vmem:[%s4207 + $0x58] sm:$0xf]
        %v4231 = vld [vmem:[%s4207 + $0x5c] sm:$0xf]
        %v4232 = vld [vmem:[%s4207 + $0x60] sm:$0xf]
        %v4233 = vld [vmem:[%s4207 + $0x64] sm:$0xf]
        %v4234 = vld [vmem:[%s4207 + $0x68] sm:$0xf]
        %v4235 = vld [vmem:[%s4207 + $0x6c] sm:$0xf]
        %v4236 = vld [vmem:[%s4207 + $0x70] sm:$0xf]
        %v4237 = vld [vmem:[%s4207 + $0x74] sm:$0xf]
        %v4238 = vld [vmem:[%s4207 + $0x78] sm:$0xf]
        %v4239 = vld [vmem:[%s4207 + $0x7c] sm:$0xf]
        %s4240 = scalar_lea.vmem %s8, 1
        %v4241 = vld [vmem:[%s4240] sm:$0x1]
        %v4243 = vperm.slane %v4241, 0
        %v4277 = vunpack.c.l.b16 %v4208
        %v4278 = vunpack.c.l.b16 %v4209
        %v4279 = vunpack.c.l.b16 %v4210
        %v4280 = vunpack.c.l.b16 %v4211
        %v4281 = vunpack.c.l.b16 %v4212
        %v4282 = vunpack.c.l.b16 %v4213
        %v4283 = vunpack.c.l.b16 %v4214
        %v4284 = vunpack.c.l.b16 %v4215
        %v4285 = vunpack.c.l.b16 %v4216
        %v4286 = vunpack.c.l.b16 %v4217
        %v4287 = vunpack.c.l.b16 %v4218
        %v4288 = vunpack.c.l.b16 %v4219
        %v4289 = vunpack.c.l.b16 %v4220
        %v4290 = vunpack.c.l.b16 %v4221
        %v4291 = vunpack.c.l.b16 %v4222
        %v4292 = vunpack.c.l.b16 %v4223
        %v4293 = vunpack.c.l.b16 %v4224
        %v4294 = vunpack.c.l.b16 %v4225
        %v4295 = vunpack.c.l.b16 %v4226
        %v4296 = vunpack.c.l.b16 %v4227
        %v4297 = vunpack.c.l.b16 %v4228
        %v4298 = vunpack.c.l.b16 %v4229
        %v4299 = vunpack.c.l.b16 %v4230
        %v4300 = vunpack.c.l.b16 %v4231
        %v4301 = vunpack.c.l.b16 %v4232
        %v4302 = vunpack.c.l.b16 %v4233
        %v4303 = vunpack.c.l.b16 %v4234
        %v4304 = vunpack.c.l.b16 %v4235
        %v4305 = vunpack.c.l.b16 %v4236
        %v4306 = vunpack.c.l.b16 %v4237
        %v4307 = vunpack.c.l.b16 %v4238
        %v4308 = vunpack.c.l.b16 %v4239
        %v4309 = vpack.c.b16 %v4278, %v4277
        %v4310 = vpack.c.b16 %v4280, %v4279
        %v4311 = vpack.c.b16 %v4282, %v4281
        %v4312 = vpack.c.b16 %v4284, %v4283
        %v4313 = vpack.c.b16 %v4286, %v4285
        %v4314 = vpack.c.b16 %v4288, %v4287
        %v4315 = vpack.c.b16 %v4290, %v4289
        %v4316 = vpack.c.b16 %v4292, %v4291
        %v4317 = vpack.c.b16 %v4294, %v4293
        %v4318 = vpack.c.b16 %v4296, %v4295
        %v4319 = vpack.c.b16 %v4298, %v4297
        %v4320 = vpack.c.b16 %v4300, %v4299
        %v4321 = vpack.c.b16 %v4302, %v4301
        %v4322 = vpack.c.b16 %v4304, %v4303
        %v4323 = vpack.c.b16 %v4306, %v4305
        %v4324 = vpack.c.b16 %v4308, %v4307
        %4341 = vmatpush.bf16.msra.mxu0 %v4316
        %4342 = vmatpush.bf16.msra.mxu0 %v4315
        %4343 = vmatpush.bf16.msra.mxu0 %v4314
        %4344 = vmatpush.bf16.msra.mxu0 %v4313
        %4345 = vmatpush.bf16.msra.mxu0 %v4312
        %4346 = vmatpush.bf16.msra.mxu0 %v4311
        %4347 = vmatpush.bf16.msra.mxu0 %v4310
        %4348 = vmatpush.bf16.msra.mxu0 %v4309
        %4349 = vmatmul.bf16.gmra.mxu0 %v4175
        %v4350 = vpop.f32.mrf.mxu0
        %v4351 = vadd.f32 %v4243, %v4350
        %v4352 = vpop.f32.mrf.mxu0
        %v4353 = vadd.f32 %v4243, %v4352
        %4354 = vmatmul.bf16.gmra.mxu0 %v4177
        %v4355 = vpop.f32.mrf.mxu0
        %v4356 = vadd.f32 %v4243, %v4355
        %v4357 = vpop.f32.mrf.mxu0
        %v4358 = vadd.f32 %v4243, %v4357
        %4359 = vmatmul.bf16.gmra.mxu0 %v4179
        %v4360 = vpop.f32.mrf.mxu0
        %v4361 = vadd.f32 %v4243, %v4360
        %v4362 = vpop.f32.mrf.mxu0
        %v4363 = vadd.f32 %v4243, %v4362
        %4364 = vmatmul.bf16.gmra.mxu0 %v4181
        %v4365 = vpop.f32.mrf.mxu0
        %v4366 = vadd.f32 %v4243, %v4365
        %v4367 = vpop.f32.mrf.mxu0
        %v4368 = vadd.f32 %v4243, %v4367
        %4369 = vmatmul.bf16.gmra.mxu0 %v4183
        %v4370 = vpop.f32.mrf.mxu0
        %v4371 = vadd.f32 %v4243, %v4370
        %v4372 = vpop.f32.mrf.mxu0
        %v4373 = vadd.f32 %v4243, %v4372
        %4374 = vmatmul.bf16.gmra.mxu0 %v4185
        %v4375 = vpop.f32.mrf.mxu0
        %v4376 = vadd.f32 %v4243, %v4375
        %v4377 = vpop.f32.mrf.mxu0
        %v4378 = vadd.f32 %v4243, %v4377
        %4379 = vmatmul.bf16.gmra.mxu0 %v4187
        %v4380 = vpop.f32.mrf.mxu0
        %v4381 = vadd.f32 %v4243, %v4380
        %v4382 = vpop.f32.mrf.mxu0
        %v4383 = vadd.f32 %v4243, %v4382
        %4384 = vmatmul.bf16.gmra.mxu0 %v4189
        %v4385 = vpop.f32.mrf.mxu0
        %v4386 = vadd.f32 %v4243, %v4385
        %v4387 = vpop.f32.mrf.mxu0
        %v4388 = vadd.f32 %v4243, %v4387
        %4389 = vmatmul.bf16.gmra.mxu0 %v4191
        %v4390 = vpop.f32.mrf.mxu0
        %v4391 = vadd.f32 %v4243, %v4390
        %v4392 = vpop.f32.mrf.mxu0
        %v4393 = vadd.f32 %v4243, %v4392
        %4394 = vmatmul.bf16.gmra.mxu0 %v4193
        %v4395 = vpop.f32.mrf.mxu0
        %v4396 = vadd.f32 %v4243, %v4395
        %v4397 = vpop.f32.mrf.mxu0
        %v4398 = vadd.f32 %v4243, %v4397
        %4399 = vmatmul.bf16.gmra.mxu0 %v4195
        %v4400 = vpop.f32.mrf.mxu0
        %v4401 = vadd.f32 %v4243, %v4400
        %v4402 = vpop.f32.mrf.mxu0
        %v4403 = vadd.f32 %v4243, %v4402
        %4404 = vmatmul.bf16.gmra.mxu0 %v4197
        %v4405 = vpop.f32.mrf.mxu0
        %v4406 = vadd.f32 %v4243, %v4405
        %v4407 = vpop.f32.mrf.mxu0
        %v4408 = vadd.f32 %v4243, %v4407
        %4409 = vmatmul.bf16.gmra.mxu0 %v4199
        %v4410 = vpop.f32.mrf.mxu0
        %v4411 = vadd.f32 %v4243, %v4410
        %v4412 = vpop.f32.mrf.mxu0
        %v4413 = vadd.f32 %v4243, %v4412
        %4414 = vmatmul.bf16.gmra.mxu0 %v4201
        %v4415 = vpop.f32.mrf.mxu0
        %v4416 = vadd.f32 %v4243, %v4415
        %v4417 = vpop.f32.mrf.mxu0
        %v4418 = vadd.f32 %v4243, %v4417
        %4419 = vmatmul.bf16.gmra.mxu0 %v4203
        %v4420 = vpop.f32.mrf.mxu0
        %v4421 = vadd.f32 %v4243, %v4420
        %v4422 = vpop.f32.mrf.mxu0
        %v4423 = vadd.f32 %v4243, %v4422
        %4424 = vmatmul.bf16.gmra.mxu0 %v4205
        %v4425 = vpop.f32.mrf.mxu0
        %v4426 = vadd.f32 %v4243, %v4425
        %v4427 = vpop.f32.mrf.mxu0
        %v4428 = vadd.f32 %v4243, %v4427
        %4429 = vdwg.mxu0
        %4430 = vmatpush.bf16.msra.mxu0 %v4324
        %4431 = vmatpush.bf16.msra.mxu0 %v4323
        %4432 = vmatpush.bf16.msra.mxu0 %v4322
        %4433 = vmatpush.bf16.msra.mxu0 %v4321
        %4434 = vmatpush.bf16.msra.mxu0 %v4320
        %4435 = vmatpush.bf16.msra.mxu0 %v4319
        %4436 = vmatpush.bf16.msra.mxu0 %v4318
        %4437 = vmatpush.bf16.msra.mxu0 %v4317
        %4438 = vmatmul.bf16.gmra.mxu0 %v4176
        %v4439 = vpop.f32.mrf.mxu0
        %v4440 = vadd.f32 %v4351, %v4439
        %v4441 = vpop.f32.mrf.mxu0
        %v4442 = vadd.f32 %v4353, %v4441
        %4443 = vmatmul.bf16.gmra.mxu0 %v4178
        %v4444 = vpop.f32.mrf.mxu0
        %v4445 = vadd.f32 %v4356, %v4444
        %v4446 = vpop.f32.mrf.mxu0
        %v4447 = vadd.f32 %v4358, %v4446
        %4448 = vmatmul.bf16.gmra.mxu0 %v4180
        %v4449 = vpop.f32.mrf.mxu0
        %v4450 = vadd.f32 %v4361, %v4449
        %v4451 = vpop.f32.mrf.mxu0
        %v4452 = vadd.f32 %v4363, %v4451
        %4453 = vmatmul.bf16.gmra.mxu0 %v4182
        %v4454 = vpop.f32.mrf.mxu0
        %v4455 = vadd.f32 %v4366, %v4454
        %v4456 = vpop.f32.mrf.mxu0
        %v4457 = vadd.f32 %v4368, %v4456
        %4458 = vmatmul.bf16.gmra.mxu0 %v4184
        %v4459 = vpop.f32.mrf.mxu0
        %v4460 = vadd.f32 %v4371, %v4459
        %v4461 = vpop.f32.mrf.mxu0
        %v4462 = vadd.f32 %v4373, %v4461
        %4463 = vmatmul.bf16.gmra.mxu0 %v4186
        %v4464 = vpop.f32.mrf.mxu0
        %v4465 = vadd.f32 %v4376, %v4464
        %v4466 = vpop.f32.mrf.mxu0
        %v4467 = vadd.f32 %v4378, %v4466
        %4468 = vmatmul.bf16.gmra.mxu0 %v4188
        %v4469 = vpop.f32.mrf.mxu0
        %v4470 = vadd.f32 %v4381, %v4469
        %v4471 = vpop.f32.mrf.mxu0
        %v4472 = vadd.f32 %v4383, %v4471
        %4473 = vmatmul.bf16.gmra.mxu0 %v4190
        %v4474 = vpop.f32.mrf.mxu0
        %v4475 = vadd.f32 %v4386, %v4474
        %v4476 = vpop.f32.mrf.mxu0
        %v4477 = vadd.f32 %v4388, %v4476
        %4478 = vmatmul.bf16.gmra.mxu0 %v4192
        %v4479 = vpop.f32.mrf.mxu0
        %v4480 = vadd.f32 %v4391, %v4479
        %v4481 = vpop.f32.mrf.mxu0
        %v4482 = vadd.f32 %v4393, %v4481
        %4483 = vmatmul.bf16.gmra.mxu0 %v4194
        %v4484 = vpop.f32.mrf.mxu0
        %v4485 = vadd.f32 %v4396, %v4484
        %v4486 = vpop.f32.mrf.mxu0
        %v4487 = vadd.f32 %v4398, %v4486
        %4488 = vmatmul.bf16.gmra.mxu0 %v4196
        %v4489 = vpop.f32.mrf.mxu0
        %v4490 = vadd.f32 %v4401, %v4489
        %v4491 = vpop.f32.mrf.mxu0
        %v4492 = vadd.f32 %v4403, %v4491
        %4493 = vmatmul.bf16.gmra.mxu0 %v4198
        %v4494 = vpop.f32.mrf.mxu0
        %v4495 = vadd.f32 %v4406, %v4494
        %v4496 = vpop.f32.mrf.mxu0
        %v4497 = vadd.f32 %v4408, %v4496
        %4498 = vmatmul.bf16.gmra.mxu0 %v4200
        %v4499 = vpop.f32.mrf.mxu0
        %v4500 = vadd.f32 %v4411, %v4499
        %v4501 = vpop.f32.mrf.mxu0
        %v4502 = vadd.f32 %v4413, %v4501
        %4503 = vmatmul.bf16.gmra.mxu0 %v4202
        %v4504 = vpop.f32.mrf.mxu0
        %v4505 = vadd.f32 %v4416, %v4504
        %v4506 = vpop.f32.mrf.mxu0
        %v4507 = vadd.f32 %v4418, %v4506
        %4508 = vmatmul.bf16.gmra.mxu0 %v4204
        %v4509 = vpop.f32.mrf.mxu0
        %v4510 = vadd.f32 %v4421, %v4509
        %v4511 = vpop.f32.mrf.mxu0
        %v4512 = vadd.f32 %v4423, %v4511
        %4513 = vmatmul.bf16.gmra.mxu0 %v4206
        %v4514 = vpop.f32.mrf.mxu0
        %v4515 = vadd.f32 %v4426, %v4514
        %v4516 = vpop.f32.mrf.mxu0
        %v4517 = vadd.f32 %v4428, %v4516
        %4518 = vdwg.mxu0
        %v4519 = vadd.f32 %v2353, %v4440
        %v4520 = vadd.f32 %v2354, %v4442
        %v4521 = vadd.f32 %v2355, %v4445
        %v4522 = vadd.f32 %v2356, %v4447
        %v4523 = vadd.f32 %v2357, %v4450
        %v4524 = vadd.f32 %v2358, %v4452
        %v4525 = vadd.f32 %v2359, %v4455
        %v4526 = vadd.f32 %v2360, %v4457
        %v4527 = vadd.f32 %v2361, %v4460
        %v4528 = vadd.f32 %v2362, %v4462
        %v4529 = vadd.f32 %v2363, %v4465
        %v4530 = vadd.f32 %v2364, %v4467
        %v4531 = vadd.f32 %v2365, %v4470
        %v4532 = vadd.f32 %v2366, %v4472
        %v4533 = vadd.f32 %v2367, %v4475
        %v4534 = vadd.f32 %v2368, %v4477
        %v4535 = vadd.f32 %v2369, %v4480
        %v4536 = vadd.f32 %v2370, %v4482
        %v4537 = vadd.f32 %v2371, %v4485
        %v4538 = vadd.f32 %v2372, %v4487
        %v4539 = vadd.f32 %v2373, %v4490
        %v4540 = vadd.f32 %v2374, %v4492
        %v4541 = vadd.f32 %v2375, %v4495
        %v4542 = vadd.f32 %v2376, %v4497
        %v4543 = vadd.f32 %v2377, %v4500
        %v4544 = vadd.f32 %v2378, %v4502
        %v4545 = vadd.f32 %v2379, %v4505
        %v4546 = vadd.f32 %v2380, %v4507
        %v4547 = vadd.f32 %v2381, %v4510
        %v4548 = vadd.f32 %v2382, %v4512
        %v4549 = vadd.f32 %v2383, %v4515
        %v4550 = vadd.f32 %v2384, %v4517
        %4583 = vrot.lane.b32.xlu0 %v4440, 112
        %v4584 = vpop.permute.xlu0 %4583
        %4585 = vrot.lane.b32.xlu0 %v4442, 112
        %v4586 = vpop.permute.xlu0 %4585
        %4587 = vrot.lane.b32.xlu0 %v4445, 112
        %v4588 = vpop.permute.xlu0 %4587
        %4589 = vrot.lane.b32.xlu0 %v4447, 112
        %v4590 = vpop.permute.xlu0 %4589
        %4591 = vrot.lane.b32.xlu0 %v4450, 112
        %v4592 = vpop.permute.xlu0 %4591
        %4593 = vrot.lane.b32.xlu0 %v4452, 112
        %v4594 = vpop.permute.xlu0 %4593
        %4595 = vrot.lane.b32.xlu0 %v4455, 112
        %v4596 = vpop.permute.xlu0 %4595
        %4597 = vrot.lane.b32.xlu0 %v4457, 112
        %v4598 = vpop.permute.xlu0 %4597
        %4599 = vrot.lane.b32.xlu0 %v4460, 112
        %v4600 = vpop.permute.xlu0 %4599
        %4601 = vrot.lane.b32.xlu0 %v4462, 112
        %v4602 = vpop.permute.xlu0 %4601
        %4603 = vrot.lane.b32.xlu0 %v4465, 112
        %v4604 = vpop.permute.xlu0 %4603
        %4605 = vrot.lane.b32.xlu0 %v4467, 112
        %v4606 = vpop.permute.xlu0 %4605
        %4607 = vrot.lane.b32.xlu0 %v4470, 112
        %v4608 = vpop.permute.xlu0 %4607
        %4609 = vrot.lane.b32.xlu0 %v4472, 112
        %v4610 = vpop.permute.xlu0 %4609
        %4611 = vrot.lane.b32.xlu0 %v4475, 112
        %v4612 = vpop.permute.xlu0 %4611
        %4613 = vrot.lane.b32.xlu0 %v4477, 112
        %v4614 = vpop.permute.xlu0 %4613
        %4615 = vrot.lane.b32.xlu0 %v4480, 112
        %v4616 = vpop.permute.xlu0 %4615
        %4617 = vrot.lane.b32.xlu0 %v4482, 112
        %v4618 = vpop.permute.xlu0 %4617
        %4619 = vrot.lane.b32.xlu0 %v4485, 112
        %v4620 = vpop.permute.xlu0 %4619
        %4621 = vrot.lane.b32.xlu0 %v4487, 112
        %v4622 = vpop.permute.xlu0 %4621
        %4623 = vrot.lane.b32.xlu0 %v4490, 112
        %v4624 = vpop.permute.xlu0 %4623
        %4625 = vrot.lane.b32.xlu0 %v4492, 112
        %v4626 = vpop.permute.xlu0 %4625
        %4627 = vrot.lane.b32.xlu0 %v4495, 112
        %v4628 = vpop.permute.xlu0 %4627
        %4629 = vrot.lane.b32.xlu0 %v4497, 112
        %v4630 = vpop.permute.xlu0 %4629
        %4631 = vrot.lane.b32.xlu0 %v4500, 112
        %v4632 = vpop.permute.xlu0 %4631
        %4633 = vrot.lane.b32.xlu0 %v4502, 112
        %v4634 = vpop.permute.xlu0 %4633
        %4635 = vrot.lane.b32.xlu0 %v4505, 112
        %v4636 = vpop.permute.xlu0 %4635
        %4637 = vrot.lane.b32.xlu0 %v4507, 112
        %v4638 = vpop.permute.xlu0 %4637
        %4639 = vrot.lane.b32.xlu0 %v4510, 112
        %v4640 = vpop.permute.xlu0 %4639
        %4641 = vrot.lane.b32.xlu0 %v4512, 112
        %v4642 = vpop.permute.xlu0 %4641
        %4643 = vrot.lane.b32.xlu0 %v4515, 112
        %v4644 = vpop.permute.xlu0 %4643
        %4645 = vrot.lane.b32.xlu0 %v4517, 112
        %v4646 = vpop.permute.xlu0 %4645
        %v4679 = vsub.f32 %v2513, %v4584
        %v4680 = vsub.f32 %v2514, %v4586
        %v4681 = vsub.f32 %v2515, %v4588
        %v4682 = vsub.f32 %v2516, %v4590
        %v4683 = vsub.f32 %v2517, %v4592
        %v4684 = vsub.f32 %v2518, %v4594
        %v4685 = vsub.f32 %v2519, %v4596
        %v4686 = vsub.f32 %v2520, %v4598
        %v4687 = vsub.f32 %v2521, %v4600
        %v4688 = vsub.f32 %v2522, %v4602
        %v4689 = vsub.f32 %v2523, %v4604
        %v4690 = vsub.f32 %v2524, %v4606
        %v4691 = vsub.f32 %v2525, %v4608
        %v4692 = vsub.f32 %v2526, %v4610
        %v4693 = vsub.f32 %v2527, %v4612
        %v4694 = vsub.f32 %v2528, %v4614
        %v4695 = vsub.f32 %v2529, %v4616
        %v4696 = vsub.f32 %v2530, %v4618
        %v4697 = vsub.f32 %v2531, %v4620
        %v4698 = vsub.f32 %v2532, %v4622
        %v4699 = vsub.f32 %v2533, %v4624
        %v4700 = vsub.f32 %v2534, %v4626
        %v4701 = vsub.f32 %v2535, %v4628
        %v4702 = vsub.f32 %v2536, %v4630
        %v4703 = vsub.f32 %v2537, %v4632
        %v4704 = vsub.f32 %v2538, %v4634
        %v4705 = vsub.f32 %v2539, %v4636
        %v4706 = vsub.f32 %v2540, %v4638
        %v4707 = vsub.f32 %v2541, %v4640
        %v4708 = vsub.f32 %v2542, %v4642
        %v4709 = vsub.f32 %v2543, %v4644
        %v4710 = vsub.f32 %v2544, %v4646
        %v4711 = vpack.c.bf16 %v4680, %v4679
        %v4712 = vpack.c.bf16 %v4682, %v4681
        %v4713 = vpack.c.bf16 %v4684, %v4683
        %v4714 = vpack.c.bf16 %v4686, %v4685
        %v4715 = vpack.c.bf16 %v4688, %v4687
        %v4716 = vpack.c.bf16 %v4690, %v4689
        %v4717 = vpack.c.bf16 %v4692, %v4691
        %v4718 = vpack.c.bf16 %v4694, %v4693
        %v4719 = vpack.c.bf16 %v4696, %v4695
        %v4720 = vpack.c.bf16 %v4698, %v4697
        %v4721 = vpack.c.bf16 %v4700, %v4699
        %v4722 = vpack.c.bf16 %v4702, %v4701
        %v4723 = vpack.c.bf16 %v4704, %v4703
        %v4724 = vpack.c.bf16 %v4706, %v4705
        %v4725 = vpack.c.bf16 %v4708, %v4707
        %v4726 = vpack.c.bf16 %v4710, %v4709
        %s4727 = scalar_lea.vmem %s1, 32
        %v4728 = vld [vmem:[%s4727] sm:$0xff]
        %v4729 = vld [vmem:[%s4727 + $0x8] sm:$0xff]
        %s4730 = scalar_lea.vmem %s2, 4
        %v4731 = vld [vmem:[%s4730] sm:$0x3]
        %v4733 = vperm.slane %v4731, 0
        %v4734 = vperm.slane %v4731, 1
        %v4739 = vunpack.c.l.b16 %v4728
        %v4740 = vunpack.c.h.b16 %v4728
        %v4741 = vunpack.c.l.b16 %v4729
        %v4742 = vunpack.c.h.b16 %v4729
        %v4743 = vpack.c.b16 %v4741, %v4739
        %v4744 = vpack.c.b16 %v4742, %v4740
        %v4748 = vsel %vm420, %v4711, 0
        %v4751 = vsel %vm420, %v4712, 0
        %v4754 = vsel %vm420, %v4713, 0
        %v4757 = vsel %vm420, %v4714, 0
        %v4760 = vsel %vm420, %v4715, 0
        %v4763 = vsel %vm420, %v4716, 0
        %v4766 = vsel %vm420, %v4717, 0
        %v4769 = vsel %vm420, %v4718, 0
        %v4772 = vsel %vm420, %v4719, 0
        %v4775 = vsel %vm420, %v4720, 0
        %v4778 = vsel %vm420, %v4721, 0
        %v4781 = vsel %vm420, %v4722, 0
        %v4784 = vsel %vm420, %v4723, 0
        %v4787 = vsel %vm420, %v4724, 0
        %v4790 = vsel %vm420, %v4725, 0
        %v4793 = vsel %vm420, %v4726, 0
        %4795 = vmatpush.bf16.msra.mxu0 0
        %4796 = vmatpush.bf16.msra.mxu0 0
        %4797 = vmatpush.bf16.msra.mxu0 0
        %4798 = vmatpush.bf16.msra.mxu0 0
        %4799 = vmatpush.bf16.msra.mxu0 0
        %4800 = vmatpush.bf16.msra.mxu0 0
        %4801 = vmatpush.bf16.msra.mxu0 0
        %4802 = vmatpush.bf16.msra.mxu0 %v4743
        %4803 = vmatmul.bf16.gmra.mxu0 %v4748
        %v4804 = vpop.f32.mrf.mxu0
        %v4805 = vadd.f32 %v4733, %v4804
        %v4806 = vpop.f32.mrf.mxu0
        %v4807 = vadd.f32 %v4733, %v4806
        %4808 = vmatmul.bf16.gmra.mxu0 %v4751
        %v4809 = vpop.f32.mrf.mxu0
        %v4810 = vadd.f32 %v4733, %v4809
        %v4811 = vpop.f32.mrf.mxu0
        %v4812 = vadd.f32 %v4733, %v4811
        %4813 = vmatmul.bf16.gmra.mxu0 %v4754
        %v4814 = vpop.f32.mrf.mxu0
        %v4815 = vadd.f32 %v4733, %v4814
        %v4816 = vpop.f32.mrf.mxu0
        %v4817 = vadd.f32 %v4733, %v4816
        %4818 = vmatmul.bf16.gmra.mxu0 %v4757
        %v4819 = vpop.f32.mrf.mxu0
        %v4820 = vadd.f32 %v4733, %v4819
        %v4821 = vpop.f32.mrf.mxu0
        %v4822 = vadd.f32 %v4733, %v4821
        %4823 = vmatmul.bf16.gmra.mxu0 %v4760
        %v4824 = vpop.f32.mrf.mxu0
        %v4825 = vadd.f32 %v4733, %v4824
        %v4826 = vpop.f32.mrf.mxu0
        %v4827 = vadd.f32 %v4733, %v4826
        %4828 = vmatmul.bf16.gmra.mxu0 %v4763
        %v4829 = vpop.f32.mrf.mxu0
        %v4830 = vadd.f32 %v4733, %v4829
        %v4831 = vpop.f32.mrf.mxu0
        %v4832 = vadd.f32 %v4733, %v4831
        %4833 = vmatmul.bf16.gmra.mxu0 %v4766
        %v4834 = vpop.f32.mrf.mxu0
        %v4835 = vadd.f32 %v4733, %v4834
        %v4836 = vpop.f32.mrf.mxu0
        %v4837 = vadd.f32 %v4733, %v4836
        %4838 = vmatmul.bf16.gmra.mxu0 %v4769
        %v4839 = vpop.f32.mrf.mxu0
        %v4840 = vadd.f32 %v4733, %v4839
        %v4841 = vpop.f32.mrf.mxu0
        %v4842 = vadd.f32 %v4733, %v4841
        %4843 = vmatmul.bf16.gmra.mxu0 %v4772
        %v4844 = vpop.f32.mrf.mxu0
        %v4845 = vadd.f32 %v4733, %v4844
        %v4846 = vpop.f32.mrf.mxu0
        %v4847 = vadd.f32 %v4733, %v4846
        %4848 = vmatmul.bf16.gmra.mxu0 %v4775
        %v4849 = vpop.f32.mrf.mxu0
        %v4850 = vadd.f32 %v4733, %v4849
        %v4851 = vpop.f32.mrf.mxu0
        %v4852 = vadd.f32 %v4733, %v4851
        %4853 = vmatmul.bf16.gmra.mxu0 %v4778
        %v4854 = vpop.f32.mrf.mxu0
        %v4855 = vadd.f32 %v4733, %v4854
        %v4856 = vpop.f32.mrf.mxu0
        %v4857 = vadd.f32 %v4733, %v4856
        %4858 = vmatmul.bf16.gmra.mxu0 %v4781
        %v4859 = vpop.f32.mrf.mxu0
        %v4860 = vadd.f32 %v4733, %v4859
        %v4861 = vpop.f32.mrf.mxu0
        %v4862 = vadd.f32 %v4733, %v4861
        %4863 = vmatmul.bf16.gmra.mxu0 %v4784
        %v4864 = vpop.f32.mrf.mxu0
        %v4865 = vadd.f32 %v4733, %v4864
        %v4866 = vpop.f32.mrf.mxu0
        %v4867 = vadd.f32 %v4733, %v4866
        %4868 = vmatmul.bf16.gmra.mxu0 %v4787
        %v4869 = vpop.f32.mrf.mxu0
        %v4870 = vadd.f32 %v4733, %v4869
        %v4871 = vpop.f32.mrf.mxu0
        %v4872 = vadd.f32 %v4733, %v4871
        %4873 = vmatmul.bf16.gmra.mxu0 %v4790
        %v4874 = vpop.f32.mrf.mxu0
        %v4875 = vadd.f32 %v4733, %v4874
        %v4876 = vpop.f32.mrf.mxu0
        %v4877 = vadd.f32 %v4733, %v4876
        %4878 = vmatmul.bf16.gmra.mxu0 %v4793
        %v4879 = vpop.f32.mrf.mxu0
        %v4880 = vadd.f32 %v4733, %v4879
        %v4881 = vpop.f32.mrf.mxu0
        %v4882 = vadd.f32 %v4733, %v4881
        %4883 = vdwg.mxu0
        %4884 = vmatpush.bf16.msra.mxu0 0
        %4885 = vmatpush.bf16.msra.mxu0 0
        %4886 = vmatpush.bf16.msra.mxu0 0
        %4887 = vmatpush.bf16.msra.mxu0 0
        %4888 = vmatpush.bf16.msra.mxu0 0
        %4889 = vmatpush.bf16.msra.mxu0 0
        %4890 = vmatpush.bf16.msra.mxu0 0
        %4891 = vmatpush.bf16.msra.mxu0 %v4744
        %4892 = vmatmul.bf16.gmra.mxu0 %v4748
        %v4893 = vpop.f32.mrf.mxu0
        %v4894 = vadd.f32 %v4734, %v4893
        %v4895 = vpop.f32.mrf.mxu0
        %v4896 = vadd.f32 %v4734, %v4895
        %4897 = vmatmul.bf16.gmra.mxu0 %v4751
        %v4898 = vpop.f32.mrf.mxu0
        %v4899 = vadd.f32 %v4734, %v4898
        %v4900 = vpop.f32.mrf.mxu0
        %v4901 = vadd.f32 %v4734, %v4900
        %4902 = vmatmul.bf16.gmra.mxu0 %v4754
        %v4903 = vpop.f32.mrf.mxu0
        %v4904 = vadd.f32 %v4734, %v4903
        %v4905 = vpop.f32.mrf.mxu0
        %v4906 = vadd.f32 %v4734, %v4905
        %4907 = vmatmul.bf16.gmra.mxu0 %v4757
        %v4908 = vpop.f32.mrf.mxu0
        %v4909 = vadd.f32 %v4734, %v4908
        %v4910 = vpop.f32.mrf.mxu0
        %v4911 = vadd.f32 %v4734, %v4910
        %4912 = vmatmul.bf16.gmra.mxu0 %v4760
        %v4913 = vpop.f32.mrf.mxu0
        %v4914 = vadd.f32 %v4734, %v4913
        %v4915 = vpop.f32.mrf.mxu0
        %v4916 = vadd.f32 %v4734, %v4915
        %4917 = vmatmul.bf16.gmra.mxu0 %v4763
        %v4918 = vpop.f32.mrf.mxu0
        %v4919 = vadd.f32 %v4734, %v4918
        %v4920 = vpop.f32.mrf.mxu0
        %v4921 = vadd.f32 %v4734, %v4920
        %4922 = vmatmul.bf16.gmra.mxu0 %v4766
        %v4923 = vpop.f32.mrf.mxu0
        %v4924 = vadd.f32 %v4734, %v4923
        %v4925 = vpop.f32.mrf.mxu0
        %v4926 = vadd.f32 %v4734, %v4925
        %4927 = vmatmul.bf16.gmra.mxu0 %v4769
        %v4928 = vpop.f32.mrf.mxu0
        %v4929 = vadd.f32 %v4734, %v4928
        %v4930 = vpop.f32.mrf.mxu0
        %v4931 = vadd.f32 %v4734, %v4930
        %4932 = vmatmul.bf16.gmra.mxu0 %v4772
        %v4933 = vpop.f32.mrf.mxu0
        %v4934 = vadd.f32 %v4734, %v4933
        %v4935 = vpop.f32.mrf.mxu0
        %v4936 = vadd.f32 %v4734, %v4935
        %4937 = vmatmul.bf16.gmra.mxu0 %v4775
        %v4938 = vpop.f32.mrf.mxu0
        %v4939 = vadd.f32 %v4734, %v4938
        %v4940 = vpop.f32.mrf.mxu0
        %v4941 = vadd.f32 %v4734, %v4940
        %4942 = vmatmul.bf16.gmra.mxu0 %v4778
        %v4943 = vpop.f32.mrf.mxu0
        %v4944 = vadd.f32 %v4734, %v4943
        %v4945 = vpop.f32.mrf.mxu0
        %v4946 = vadd.f32 %v4734, %v4945
        %4947 = vmatmul.bf16.gmra.mxu0 %v4781
        %v4948 = vpop.f32.mrf.mxu0
        %v4949 = vadd.f32 %v4734, %v4948
        %v4950 = vpop.f32.mrf.mxu0
        %v4951 = vadd.f32 %v4734, %v4950
        %4952 = vmatmul.bf16.gmra.mxu0 %v4784
        %v4953 = vpop.f32.mrf.mxu0
        %v4954 = vadd.f32 %v4734, %v4953
        %v4955 = vpop.f32.mrf.mxu0
        %v4956 = vadd.f32 %v4734, %v4955
        %4957 = vmatmul.bf16.gmra.mxu0 %v4787
        %v4958 = vpop.f32.mrf.mxu0
        %v4959 = vadd.f32 %v4734, %v4958
        %v4960 = vpop.f32.mrf.mxu0
        %v4961 = vadd.f32 %v4734, %v4960
        %4962 = vmatmul.bf16.gmra.mxu0 %v4790
        %v4963 = vpop.f32.mrf.mxu0
        %v4964 = vadd.f32 %v4734, %v4963
        %v4965 = vpop.f32.mrf.mxu0
        %v4966 = vadd.f32 %v4734, %v4965
        %4967 = vmatmul.bf16.gmra.mxu0 %v4793
        %v4968 = vpop.f32.mrf.mxu0
        %v4969 = vadd.f32 %v4734, %v4968
        %v4970 = vpop.f32.mrf.mxu0
        %v4971 = vadd.f32 %v4734, %v4970
        %4972 = vdwg.mxu0
        %v4973 = vmax.f32 %v4805, 0.0
        %v4974 = vmax.f32 %v4894, 0.0
        %v4975 = vmax.f32 %v4807, 0.0
        %v4976 = vmax.f32 %v4896, 0.0
        %v4977 = vmax.f32 %v4810, 0.0
        %v4978 = vmax.f32 %v4899, 0.0
        %v4979 = vmax.f32 %v4812, 0.0
        %v4980 = vmax.f32 %v4901, 0.0
        %v4981 = vmax.f32 %v4815, 0.0
        %v4982 = vmax.f32 %v4904, 0.0
        %v4983 = vmax.f32 %v4817, 0.0
        %v4984 = vmax.f32 %v4906, 0.0
        %v4985 = vmax.f32 %v4820, 0.0
        %v4986 = vmax.f32 %v4909, 0.0
        %v4987 = vmax.f32 %v4822, 0.0
        %v4988 = vmax.f32 %v4911, 0.0
        %v4989 = vmax.f32 %v4825, 0.0
        %v4990 = vmax.f32 %v4914, 0.0
        %v4991 = vmax.f32 %v4827, 0.0
        %v4992 = vmax.f32 %v4916, 0.0
        %v4993 = vmax.f32 %v4830, 0.0
        %v4994 = vmax.f32 %v4919, 0.0
        %v4995 = vmax.f32 %v4832, 0.0
        %v4996 = vmax.f32 %v4921, 0.0
        %v4997 = vmax.f32 %v4835, 0.0
        %v4998 = vmax.f32 %v4924, 0.0
        %v4999 = vmax.f32 %v4837, 0.0
        %v5000 = vmax.f32 %v4926, 0.0
        %v5001 = vmax.f32 %v4840, 0.0
        %v5002 = vmax.f32 %v4929, 0.0
        %v5003 = vmax.f32 %v4842, 0.0
        %v5004 = vmax.f32 %v4931, 0.0
        %v5005 = vmax.f32 %v4845, 0.0
        %v5006 = vmax.f32 %v4934, 0.0
        %v5007 = vmax.f32 %v4847, 0.0
        %v5008 = vmax.f32 %v4936, 0.0
        %v5009 = vmax.f32 %v4850, 0.0
        %v5010 = vmax.f32 %v4939, 0.0
        %v5011 = vmax.f32 %v4852, 0.0
        %v5012 = vmax.f32 %v4941, 0.0
        %v5013 = vmax.f32 %v4855, 0.0
        %v5014 = vmax.f32 %v4944, 0.0
        %v5015 = vmax.f32 %v4857, 0.0
        %v5016 = vmax.f32 %v4946, 0.0
        %v5017 = vmax.f32 %v4860, 0.0
        %v5018 = vmax.f32 %v4949, 0.0
        %v5019 = vmax.f32 %v4862, 0.0
        %v5020 = vmax.f32 %v4951, 0.0
        %v5021 = vmax.f32 %v4865, 0.0
        %v5022 = vmax.f32 %v4954, 0.0
        %v5023 = vmax.f32 %v4867, 0.0
        %v5024 = vmax.f32 %v4956, 0.0
        %v5025 = vmax.f32 %v4870, 0.0
        %v5026 = vmax.f32 %v4959, 0.0
        %v5027 = vmax.f32 %v4872, 0.0
        %v5028 = vmax.f32 %v4961, 0.0
        %v5029 = vmax.f32 %v4875, 0.0
        %v5030 = vmax.f32 %v4964, 0.0
        %v5031 = vmax.f32 %v4877, 0.0
        %v5032 = vmax.f32 %v4966, 0.0
        %v5033 = vmax.f32 %v4880, 0.0
        %v5034 = vmax.f32 %v4969, 0.0
        %v5035 = vmax.f32 %v4882, 0.0
        %v5036 = vmax.f32 %v4971, 0.0
        %v5037 = vpack.c.bf16 %v4975, %v4973
        %v5038 = vpack.c.bf16 %v4976, %v4974
        %v5039 = vpack.c.bf16 %v4979, %v4977
        %v5040 = vpack.c.bf16 %v4980, %v4978
        %v5041 = vpack.c.bf16 %v4983, %v4981
        %v5042 = vpack.c.bf16 %v4984, %v4982
        %v5043 = vpack.c.bf16 %v4987, %v4985
        %v5044 = vpack.c.bf16 %v4988, %v4986
        %v5045 = vpack.c.bf16 %v4991, %v4989
        %v5046 = vpack.c.bf16 %v4992, %v4990
        %v5047 = vpack.c.bf16 %v4995, %v4993
        %v5048 = vpack.c.bf16 %v4996, %v4994
        %v5049 = vpack.c.bf16 %v4999, %v4997
        %v5050 = vpack.c.bf16 %v5000, %v4998
        %v5051 = vpack.c.bf16 %v5003, %v5001
        %v5052 = vpack.c.bf16 %v5004, %v5002
        %v5053 = vpack.c.bf16 %v5007, %v5005
        %v5054 = vpack.c.bf16 %v5008, %v5006
        %v5055 = vpack.c.bf16 %v5011, %v5009
        %v5056 = vpack.c.bf16 %v5012, %v5010
        %v5057 = vpack.c.bf16 %v5015, %v5013
        %v5058 = vpack.c.bf16 %v5016, %v5014
        %v5059 = vpack.c.bf16 %v5019, %v5017
        %v5060 = vpack.c.bf16 %v5020, %v5018
        %v5061 = vpack.c.bf16 %v5023, %v5021
        %v5062 = vpack.c.bf16 %v5024, %v5022
        %v5063 = vpack.c.bf16 %v5027, %v5025
        %v5064 = vpack.c.bf16 %v5028, %v5026
        %v5065 = vpack.c.bf16 %v5031, %v5029
        %v5066 = vpack.c.bf16 %v5032, %v5030
        %v5067 = vpack.c.bf16 %v5035, %v5033
        %v5068 = vpack.c.bf16 %v5036, %v5034
        %s5069 = scalar_lea.vmem %s3, 512
        %v5070 = vld [vmem:[%s5069] sm:$0xff]
        %v5071 = vld [vmem:[%s5069 + $0x8] sm:$0xff]
        %v5072 = vld [vmem:[%s5069 + $0x10] sm:$0xff]
        %v5073 = vld [vmem:[%s5069 + $0x18] sm:$0xff]
        %v5074 = vld [vmem:[%s5069 + $0x20] sm:$0xff]
        %v5075 = vld [vmem:[%s5069 + $0x28] sm:$0xff]
        %v5076 = vld [vmem:[%s5069 + $0x30] sm:$0xff]
        %v5077 = vld [vmem:[%s5069 + $0x38] sm:$0xff]
        %v5078 = vld [vmem:[%s5069 + $0x40] sm:$0xff]
        %v5079 = vld [vmem:[%s5069 + $0x48] sm:$0xff]
        %v5080 = vld [vmem:[%s5069 + $0x50] sm:$0xff]
        %v5081 = vld [vmem:[%s5069 + $0x58] sm:$0xff]
        %v5082 = vld [vmem:[%s5069 + $0x60] sm:$0xff]
        %v5083 = vld [vmem:[%s5069 + $0x68] sm:$0xff]
        %v5084 = vld [vmem:[%s5069 + $0x70] sm:$0xff]
        %v5085 = vld [vmem:[%s5069 + $0x78] sm:$0xff]
        %v5086 = vld [vmem:[%s5069 + $0x80] sm:$0xff]
        %v5087 = vld [vmem:[%s5069 + $0x88] sm:$0xff]
        %v5088 = vld [vmem:[%s5069 + $0x90] sm:$0xff]
        %v5089 = vld [vmem:[%s5069 + $0x98] sm:$0xff]
        %v5090 = vld [vmem:[%s5069 + $0xa0] sm:$0xff]
        %v5091 = vld [vmem:[%s5069 + $0xa8] sm:$0xff]
        %v5092 = vld [vmem:[%s5069 + $0xb0] sm:$0xff]
        %v5093 = vld [vmem:[%s5069 + $0xb8] sm:$0xff]
        %v5094 = vld [vmem:[%s5069 + $0xc0] sm:$0xff]
        %v5095 = vld [vmem:[%s5069 + $0xc8] sm:$0xff]
        %v5096 = vld [vmem:[%s5069 + $0xd0] sm:$0xff]
        %v5097 = vld [vmem:[%s5069 + $0xd8] sm:$0xff]
        %v5098 = vld [vmem:[%s5069 + $0xe0] sm:$0xff]
        %v5099 = vld [vmem:[%s5069 + $0xe8] sm:$0xff]
        %v5100 = vld [vmem:[%s5069 + $0xf0] sm:$0xff]
        %v5101 = vld [vmem:[%s5069 + $0xf8] sm:$0xff]
        %s5102 = scalar_lea.vmem %s4, 4
        %v5103 = vld [vmem:[%s5102] sm:$0x3]
        %v5105 = vperm.slane %v5103, 0
        %v5106 = vperm.slane %v5103, 1
        %v5141 = vunpack.c.l.b16 %v5070
        %v5142 = vunpack.c.h.b16 %v5070
        %v5143 = vunpack.c.l.b16 %v5071
        %v5144 = vunpack.c.h.b16 %v5071
        %v5145 = vunpack.c.l.b16 %v5072
        %v5146 = vunpack.c.h.b16 %v5072
        %v5147 = vunpack.c.l.b16 %v5073
        %v5148 = vunpack.c.h.b16 %v5073
        %v5149 = vunpack.c.l.b16 %v5074
        %v5150 = vunpack.c.h.b16 %v5074
        %v5151 = vunpack.c.l.b16 %v5075
        %v5152 = vunpack.c.h.b16 %v5075
        %v5153 = vunpack.c.l.b16 %v5076
        %v5154 = vunpack.c.h.b16 %v5076
        %v5155 = vunpack.c.l.b16 %v5077
        %v5156 = vunpack.c.h.b16 %v5077
        %v5157 = vunpack.c.l.b16 %v5078
        %v5158 = vunpack.c.h.b16 %v5078
        %v5159 = vunpack.c.l.b16 %v5079
        %v5160 = vunpack.c.h.b16 %v5079
        %v5161 = vunpack.c.l.b16 %v5080
        %v5162 = vunpack.c.h.b16 %v5080
        %v5163 = vunpack.c.l.b16 %v5081
        %v5164 = vunpack.c.h.b16 %v5081
        %v5165 = vunpack.c.l.b16 %v5082
        %v5166 = vunpack.c.h.b16 %v5082
        %v5167 = vunpack.c.l.b16 %v5083
        %v5168 = vunpack.c.h.b16 %v5083
        %v5169 = vunpack.c.l.b16 %v5084
        %v5170 = vunpack.c.h.b16 %v5084
        %v5171 = vunpack.c.l.b16 %v5085
        %v5172 = vunpack.c.h.b16 %v5085
        %v5173 = vunpack.c.l.b16 %v5086
        %v5174 = vunpack.c.h.b16 %v5086
        %v5175 = vunpack.c.l.b16 %v5087
        %v5176 = vunpack.c.h.b16 %v5087
        %v5177 = vunpack.c.l.b16 %v5088
        %v5178 = vunpack.c.h.b16 %v5088
        %v5179 = vunpack.c.l.b16 %v5089
        %v5180 = vunpack.c.h.b16 %v5089
        %v5181 = vunpack.c.l.b16 %v5090
        %v5182 = vunpack.c.h.b16 %v5090
        %v5183 = vunpack.c.l.b16 %v5091
        %v5184 = vunpack.c.h.b16 %v5091
        %v5185 = vunpack.c.l.b16 %v5092
        %v5186 = vunpack.c.h.b16 %v5092
        %v5187 = vunpack.c.l.b16 %v5093
        %v5188 = vunpack.c.h.b16 %v5093
        %v5189 = vunpack.c.l.b16 %v5094
        %v5190 = vunpack.c.h.b16 %v5094
        %v5191 = vunpack.c.l.b16 %v5095
        %v5192 = vunpack.c.h.b16 %v5095
        %v5193 = vunpack.c.l.b16 %v5096
        %v5194 = vunpack.c.h.b16 %v5096
        %v5195 = vunpack.c.l.b16 %v5097
        %v5196 = vunpack.c.h.b16 %v5097
        %v5197 = vunpack.c.l.b16 %v5098
        %v5198 = vunpack.c.h.b16 %v5098
        %v5199 = vunpack.c.l.b16 %v5099
        %v5200 = vunpack.c.h.b16 %v5099
        %v5201 = vunpack.c.l.b16 %v5100
        %v5202 = vunpack.c.h.b16 %v5100
        %v5203 = vunpack.c.l.b16 %v5101
        %v5204 = vunpack.c.h.b16 %v5101
        %v5205 = vpack.c.b16 %v5143, %v5141
        %v5206 = vpack.c.b16 %v5144, %v5142
        %v5207 = vpack.c.b16 %v5147, %v5145
        %v5208 = vpack.c.b16 %v5148, %v5146
        %v5209 = vpack.c.b16 %v5151, %v5149
        %v5210 = vpack.c.b16 %v5152, %v5150
        %v5211 = vpack.c.b16 %v5155, %v5153
        %v5212 = vpack.c.b16 %v5156, %v5154
        %v5213 = vpack.c.b16 %v5159, %v5157
        %v5214 = vpack.c.b16 %v5160, %v5158
        %v5215 = vpack.c.b16 %v5163, %v5161
        %v5216 = vpack.c.b16 %v5164, %v5162
        %v5217 = vpack.c.b16 %v5167, %v5165
        %v5218 = vpack.c.b16 %v5168, %v5166
        %v5219 = vpack.c.b16 %v5171, %v5169
        %v5220 = vpack.c.b16 %v5172, %v5170
        %v5221 = vpack.c.b16 %v5175, %v5173
        %v5222 = vpack.c.b16 %v5176, %v5174
        %v5223 = vpack.c.b16 %v5179, %v5177
        %v5224 = vpack.c.b16 %v5180, %v5178
        %v5225 = vpack.c.b16 %v5183, %v5181
        %v5226 = vpack.c.b16 %v5184, %v5182
        %v5227 = vpack.c.b16 %v5187, %v5185
        %v5228 = vpack.c.b16 %v5188, %v5186
        %v5229 = vpack.c.b16 %v5191, %v5189
        %v5230 = vpack.c.b16 %v5192, %v5190
        %v5231 = vpack.c.b16 %v5195, %v5193
        %v5232 = vpack.c.b16 %v5196, %v5194
        %v5233 = vpack.c.b16 %v5199, %v5197
        %v5234 = vpack.c.b16 %v5200, %v5198
        %v5235 = vpack.c.b16 %v5203, %v5201
        %v5236 = vpack.c.b16 %v5204, %v5202
        %5269 = vmatpush.bf16.msra.mxu0 %v5219
        %5270 = vmatpush.bf16.msra.mxu0 %v5217
        %5271 = vmatpush.bf16.msra.mxu0 %v5215
        %5272 = vmatpush.bf16.msra.mxu0 %v5213
        %5273 = vmatpush.bf16.msra.mxu0 %v5211
        %5274 = vmatpush.bf16.msra.mxu0 %v5209
        %5275 = vmatpush.bf16.msra.mxu0 %v5207
        %5276 = vmatpush.bf16.msra.mxu0 %v5205
        %5277 = vmatmul.bf16.gmra.mxu0 %v5037
        %v5278 = vpop.f32.mrf.mxu0
        %v5279 = vadd.f32 %v5105, %v5278
        %v5280 = vpop.f32.mrf.mxu0
        %v5281 = vadd.f32 %v5105, %v5280
        %5282 = vmatmul.bf16.gmra.mxu0 %v5039
        %v5283 = vpop.f32.mrf.mxu0
        %v5284 = vadd.f32 %v5105, %v5283
        %v5285 = vpop.f32.mrf.mxu0
        %v5286 = vadd.f32 %v5105, %v5285
        %5287 = vmatmul.bf16.gmra.mxu0 %v5041
        %v5288 = vpop.f32.mrf.mxu0
        %v5289 = vadd.f32 %v5105, %v5288
        %v5290 = vpop.f32.mrf.mxu0
        %v5291 = vadd.f32 %v5105, %v5290
        %5292 = vmatmul.bf16.gmra.mxu0 %v5043
        %v5293 = vpop.f32.mrf.mxu0
        %v5294 = vadd.f32 %v5105, %v5293
        %v5295 = vpop.f32.mrf.mxu0
        %v5296 = vadd.f32 %v5105, %v5295
        %5297 = vmatmul.bf16.gmra.mxu0 %v5045
        %v5298 = vpop.f32.mrf.mxu0
        %v5299 = vadd.f32 %v5105, %v5298
        %v5300 = vpop.f32.mrf.mxu0
        %v5301 = vadd.f32 %v5105, %v5300
        %5302 = vmatmul.bf16.gmra.mxu0 %v5047
        %v5303 = vpop.f32.mrf.mxu0
        %v5304 = vadd.f32 %v5105, %v5303
        %v5305 = vpop.f32.mrf.mxu0
        %v5306 = vadd.f32 %v5105, %v5305
        %5307 = vmatmul.bf16.gmra.mxu0 %v5049
        %v5308 = vpop.f32.mrf.mxu0
        %v5309 = vadd.f32 %v5105, %v5308
        %v5310 = vpop.f32.mrf.mxu0
        %v5311 = vadd.f32 %v5105, %v5310
        %5312 = vmatmul.bf16.gmra.mxu0 %v5051
        %v5313 = vpop.f32.mrf.mxu0
        %v5314 = vadd.f32 %v5105, %v5313
        %v5315 = vpop.f32.mrf.mxu0
        %v5316 = vadd.f32 %v5105, %v5315
        %5317 = vmatmul.bf16.gmra.mxu0 %v5053
        %v5318 = vpop.f32.mrf.mxu0
        %v5319 = vadd.f32 %v5105, %v5318
        %v5320 = vpop.f32.mrf.mxu0
        %v5321 = vadd.f32 %v5105, %v5320
        %5322 = vmatmul.bf16.gmra.mxu0 %v5055
        %v5323 = vpop.f32.mrf.mxu0
        %v5324 = vadd.f32 %v5105, %v5323
        %v5325 = vpop.f32.mrf.mxu0
        %v5326 = vadd.f32 %v5105, %v5325
        %5327 = vmatmul.bf16.gmra.mxu0 %v5057
        %v5328 = vpop.f32.mrf.mxu0
        %v5329 = vadd.f32 %v5105, %v5328
        %v5330 = vpop.f32.mrf.mxu0
        %v5331 = vadd.f32 %v5105, %v5330
        %5332 = vmatmul.bf16.gmra.mxu0 %v5059
        %v5333 = vpop.f32.mrf.mxu0
        %v5334 = vadd.f32 %v5105, %v5333
        %v5335 = vpop.f32.mrf.mxu0
        %v5336 = vadd.f32 %v5105, %v5335
        %5337 = vmatmul.bf16.gmra.mxu0 %v5061
        %v5338 = vpop.f32.mrf.mxu0
        %v5339 = vadd.f32 %v5105, %v5338
        %v5340 = vpop.f32.mrf.mxu0
        %v5341 = vadd.f32 %v5105, %v5340
        %5342 = vmatmul.bf16.gmra.mxu0 %v5063
        %v5343 = vpop.f32.mrf.mxu0
        %v5344 = vadd.f32 %v5105, %v5343
        %v5345 = vpop.f32.mrf.mxu0
        %v5346 = vadd.f32 %v5105, %v5345
        %5347 = vmatmul.bf16.gmra.mxu0 %v5065
        %v5348 = vpop.f32.mrf.mxu0
        %v5349 = vadd.f32 %v5105, %v5348
        %v5350 = vpop.f32.mrf.mxu0
        %v5351 = vadd.f32 %v5105, %v5350
        %5352 = vmatmul.bf16.gmra.mxu0 %v5067
        %v5353 = vpop.f32.mrf.mxu0
        %v5354 = vadd.f32 %v5105, %v5353
        %v5355 = vpop.f32.mrf.mxu0
        %v5356 = vadd.f32 %v5105, %v5355
        %5357 = vdwg.mxu0
        %5358 = vmatpush.bf16.msra.mxu0 %v5235
        %5359 = vmatpush.bf16.msra.mxu0 %v5233
        %5360 = vmatpush.bf16.msra.mxu0 %v5231
        %5361 = vmatpush.bf16.msra.mxu0 %v5229
        %5362 = vmatpush.bf16.msra.mxu0 %v5227
        %5363 = vmatpush.bf16.msra.mxu0 %v5225
        %5364 = vmatpush.bf16.msra.mxu0 %v5223
        %5365 = vmatpush.bf16.msra.mxu0 %v5221
        %5366 = vmatmul.bf16.gmra.mxu0 %v5038
        %v5367 = vpop.f32.mrf.mxu0
        %v5368 = vadd.f32 %v5279, %v5367
        %v5369 = vpop.f32.mrf.mxu0
        %v5370 = vadd.f32 %v5281, %v5369
        %5371 = vmatmul.bf16.gmra.mxu0 %v5040
        %v5372 = vpop.f32.mrf.mxu0
        %v5373 = vadd.f32 %v5284, %v5372
        %v5374 = vpop.f32.mrf.mxu0
        %v5375 = vadd.f32 %v5286, %v5374
        %5376 = vmatmul.bf16.gmra.mxu0 %v5042
        %v5377 = vpop.f32.mrf.mxu0
        %v5378 = vadd.f32 %v5289, %v5377
        %v5379 = vpop.f32.mrf.mxu0
        %v5380 = vadd.f32 %v5291, %v5379
        %5381 = vmatmul.bf16.gmra.mxu0 %v5044
        %v5382 = vpop.f32.mrf.mxu0
        %v5383 = vadd.f32 %v5294, %v5382
        %v5384 = vpop.f32.mrf.mxu0
        %v5385 = vadd.f32 %v5296, %v5384
        %5386 = vmatmul.bf16.gmra.mxu0 %v5046
        %v5387 = vpop.f32.mrf.mxu0
        %v5388 = vadd.f32 %v5299, %v5387
        %v5389 = vpop.f32.mrf.mxu0
        %v5390 = vadd.f32 %v5301, %v5389
        %5391 = vmatmul.bf16.gmra.mxu0 %v5048
        %v5392 = vpop.f32.mrf.mxu0
        %v5393 = vadd.f32 %v5304, %v5392
        %v5394 = vpop.f32.mrf.mxu0
        %v5395 = vadd.f32 %v5306, %v5394
        %5396 = vmatmul.bf16.gmra.mxu0 %v5050
        %v5397 = vpop.f32.mrf.mxu0
        %v5398 = vadd.f32 %v5309, %v5397
        %v5399 = vpop.f32.mrf.mxu0
        %v5400 = vadd.f32 %v5311, %v5399
        %5401 = vmatmul.bf16.gmra.mxu0 %v5052
        %v5402 = vpop.f32.mrf.mxu0
        %v5403 = vadd.f32 %v5314, %v5402
        %v5404 = vpop.f32.mrf.mxu0
        %v5405 = vadd.f32 %v5316, %v5404
        %5406 = vmatmul.bf16.gmra.mxu0 %v5054
        %v5407 = vpop.f32.mrf.mxu0
        %v5408 = vadd.f32 %v5319, %v5407
        %v5409 = vpop.f32.mrf.mxu0
        %v5410 = vadd.f32 %v5321, %v5409
        %5411 = vmatmul.bf16.gmra.mxu0 %v5056
        %v5412 = vpop.f32.mrf.mxu0
        %v5413 = vadd.f32 %v5324, %v5412
        %v5414 = vpop.f32.mrf.mxu0
        %v5415 = vadd.f32 %v5326, %v5414
        %5416 = vmatmul.bf16.gmra.mxu0 %v5058
        %v5417 = vpop.f32.mrf.mxu0
        %v5418 = vadd.f32 %v5329, %v5417
        %v5419 = vpop.f32.mrf.mxu0
        %v5420 = vadd.f32 %v5331, %v5419
        %5421 = vmatmul.bf16.gmra.mxu0 %v5060
        %v5422 = vpop.f32.mrf.mxu0
        %v5423 = vadd.f32 %v5334, %v5422
        %v5424 = vpop.f32.mrf.mxu0
        %v5425 = vadd.f32 %v5336, %v5424
        %5426 = vmatmul.bf16.gmra.mxu0 %v5062
        %v5427 = vpop.f32.mrf.mxu0
        %v5428 = vadd.f32 %v5339, %v5427
        %v5429 = vpop.f32.mrf.mxu0
        %v5430 = vadd.f32 %v5341, %v5429
        %5431 = vmatmul.bf16.gmra.mxu0 %v5064
        %v5432 = vpop.f32.mrf.mxu0
        %v5433 = vadd.f32 %v5344, %v5432
        %v5434 = vpop.f32.mrf.mxu0
        %v5435 = vadd.f32 %v5346, %v5434
        %5436 = vmatmul.bf16.gmra.mxu0 %v5066
        %v5437 = vpop.f32.mrf.mxu0
        %v5438 = vadd.f32 %v5349, %v5437
        %v5439 = vpop.f32.mrf.mxu0
        %v5440 = vadd.f32 %v5351, %v5439
        %5441 = vmatmul.bf16.gmra.mxu0 %v5068
        %v5442 = vpop.f32.mrf.mxu0
        %v5443 = vadd.f32 %v5354, %v5442
        %v5444 = vpop.f32.mrf.mxu0
        %v5445 = vadd.f32 %v5356, %v5444
        %5446 = vdwg.mxu0
        %5447 = vmatpush.bf16.msra.mxu0 %v5220
        %5448 = vmatpush.bf16.msra.mxu0 %v5218
        %5449 = vmatpush.bf16.msra.mxu0 %v5216
        %5450 = vmatpush.bf16.msra.mxu0 %v5214
        %5451 = vmatpush.bf16.msra.mxu0 %v5212
        %5452 = vmatpush.bf16.msra.mxu0 %v5210
        %5453 = vmatpush.bf16.msra.mxu0 %v5208
        %5454 = vmatpush.bf16.msra.mxu0 %v5206
        %5455 = vmatmul.bf16.gmra.mxu0 %v5037
        %v5456 = vpop.f32.mrf.mxu0
        %v5457 = vadd.f32 %v5106, %v5456
        %v5458 = vpop.f32.mrf.mxu0
        %v5459 = vadd.f32 %v5106, %v5458
        %5460 = vmatmul.bf16.gmra.mxu0 %v5039
        %v5461 = vpop.f32.mrf.mxu0
        %v5462 = vadd.f32 %v5106, %v5461
        %v5463 = vpop.f32.mrf.mxu0
        %v5464 = vadd.f32 %v5106, %v5463
        %5465 = vmatmul.bf16.gmra.mxu0 %v5041
        %v5466 = vpop.f32.mrf.mxu0
        %v5467 = vadd.f32 %v5106, %v5466
        %v5468 = vpop.f32.mrf.mxu0
        %v5469 = vadd.f32 %v5106, %v5468
        %5470 = vmatmul.bf16.gmra.mxu0 %v5043
        %v5471 = vpop.f32.mrf.mxu0
        %v5472 = vadd.f32 %v5106, %v5471
        %v5473 = vpop.f32.mrf.mxu0
        %v5474 = vadd.f32 %v5106, %v5473
        %5475 = vmatmul.bf16.gmra.mxu0 %v5045
        %v5476 = vpop.f32.mrf.mxu0
        %v5477 = vadd.f32 %v5106, %v5476
        %v5478 = vpop.f32.mrf.mxu0
        %v5479 = vadd.f32 %v5106, %v5478
        %5480 = vmatmul.bf16.gmra.mxu0 %v5047
        %v5481 = vpop.f32.mrf.mxu0
        %v5482 = vadd.f32 %v5106, %v5481
        %v5483 = vpop.f32.mrf.mxu0
        %v5484 = vadd.f32 %v5106, %v5483
        %5485 = vmatmul.bf16.gmra.mxu0 %v5049
        %v5486 = vpop.f32.mrf.mxu0
        %v5487 = vadd.f32 %v5106, %v5486
        %v5488 = vpop.f32.mrf.mxu0
        %v5489 = vadd.f32 %v5106, %v5488
        %5490 = vmatmul.bf16.gmra.mxu0 %v5051
        %v5491 = vpop.f32.mrf.mxu0
        %v5492 = vadd.f32 %v5106, %v5491
        %v5493 = vpop.f32.mrf.mxu0
        %v5494 = vadd.f32 %v5106, %v5493
        %5495 = vmatmul.bf16.gmra.mxu0 %v5053
        %v5496 = vpop.f32.mrf.mxu0
        %v5497 = vadd.f32 %v5106, %v5496
        %v5498 = vpop.f32.mrf.mxu0
        %v5499 = vadd.f32 %v5106, %v5498
        %5500 = vmatmul.bf16.gmra.mxu0 %v5055
        %v5501 = vpop.f32.mrf.mxu0
        %v5502 = vadd.f32 %v5106, %v5501
        %v5503 = vpop.f32.mrf.mxu0
        %v5504 = vadd.f32 %v5106, %v5503
        %5505 = vmatmul.bf16.gmra.mxu0 %v5057
        %v5506 = vpop.f32.mrf.mxu0
        %v5507 = vadd.f32 %v5106, %v5506
        %v5508 = vpop.f32.mrf.mxu0
        %v5509 = vadd.f32 %v5106, %v5508
        %5510 = vmatmul.bf16.gmra.mxu0 %v5059
        %v5511 = vpop.f32.mrf.mxu0
        %v5512 = vadd.f32 %v5106, %v5511
        %v5513 = vpop.f32.mrf.mxu0
        %v5514 = vadd.f32 %v5106, %v5513
        %5515 = vmatmul.bf16.gmra.mxu0 %v5061
        %v5516 = vpop.f32.mrf.mxu0
        %v5517 = vadd.f32 %v5106, %v5516
        %v5518 = vpop.f32.mrf.mxu0
        %v5519 = vadd.f32 %v5106, %v5518
        %5520 = vmatmul.bf16.gmra.mxu0 %v5063
        %v5521 = vpop.f32.mrf.mxu0
        %v5522 = vadd.f32 %v5106, %v5521
        %v5523 = vpop.f32.mrf.mxu0
        %v5524 = vadd.f32 %v5106, %v5523
        %5525 = vmatmul.bf16.gmra.mxu0 %v5065
        %v5526 = vpop.f32.mrf.mxu0
        %v5527 = vadd.f32 %v5106, %v5526
        %v5528 = vpop.f32.mrf.mxu0
        %v5529 = vadd.f32 %v5106, %v5528
        %5530 = vmatmul.bf16.gmra.mxu0 %v5067
        %v5531 = vpop.f32.mrf.mxu0
        %v5532 = vadd.f32 %v5106, %v5531
        %v5533 = vpop.f32.mrf.mxu0
        %v5534 = vadd.f32 %v5106, %v5533
        %5535 = vdwg.mxu0
        %5536 = vmatpush.bf16.msra.mxu0 %v5236
        %5537 = vmatpush.bf16.msra.mxu0 %v5234
        %5538 = vmatpush.bf16.msra.mxu0 %v5232
        %5539 = vmatpush.bf16.msra.mxu0 %v5230
        %5540 = vmatpush.bf16.msra.mxu0 %v5228
        %5541 = vmatpush.bf16.msra.mxu0 %v5226
        %5542 = vmatpush.bf16.msra.mxu0 %v5224
        %5543 = vmatpush.bf16.msra.mxu0 %v5222
        %5544 = vmatmul.bf16.gmra.mxu0 %v5038
        %v5545 = vpop.f32.mrf.mxu0
        %v5546 = vadd.f32 %v5457, %v5545
        %v5547 = vpop.f32.mrf.mxu0
        %v5548 = vadd.f32 %v5459, %v5547
        %5549 = vmatmul.bf16.gmra.mxu0 %v5040
        %v5550 = vpop.f32.mrf.mxu0
        %v5551 = vadd.f32 %v5462, %v5550
        %v5552 = vpop.f32.mrf.mxu0
        %v5553 = vadd.f32 %v5464, %v5552
        %5554 = vmatmul.bf16.gmra.mxu0 %v5042
        %v5555 = vpop.f32.mrf.mxu0
        %v5556 = vadd.f32 %v5467, %v5555
        %v5557 = vpop.f32.mrf.mxu0
        %v5558 = vadd.f32 %v5469, %v5557
        %5559 = vmatmul.bf16.gmra.mxu0 %v5044
        %v5560 = vpop.f32.mrf.mxu0
        %v5561 = vadd.f32 %v5472, %v5560
        %v5562 = vpop.f32.mrf.mxu0
        %v5563 = vadd.f32 %v5474, %v5562
        %5564 = vmatmul.bf16.gmra.mxu0 %v5046
        %v5565 = vpop.f32.mrf.mxu0
        %v5566 = vadd.f32 %v5477, %v5565
        %v5567 = vpop.f32.mrf.mxu0
        %v5568 = vadd.f32 %v5479, %v5567
        %5569 = vmatmul.bf16.gmra.mxu0 %v5048
        %v5570 = vpop.f32.mrf.mxu0
        %v5571 = vadd.f32 %v5482, %v5570
        %v5572 = vpop.f32.mrf.mxu0
        %v5573 = vadd.f32 %v5484, %v5572
        %5574 = vmatmul.bf16.gmra.mxu0 %v5050
        %v5575 = vpop.f32.mrf.mxu0
        %v5576 = vadd.f32 %v5487, %v5575
        %v5577 = vpop.f32.mrf.mxu0
        %v5578 = vadd.f32 %v5489, %v5577
        %5579 = vmatmul.bf16.gmra.mxu0 %v5052
        %v5580 = vpop.f32.mrf.mxu0
        %v5581 = vadd.f32 %v5492, %v5580
        %v5582 = vpop.f32.mrf.mxu0
        %v5583 = vadd.f32 %v5494, %v5582
        %5584 = vmatmul.bf16.gmra.mxu0 %v5054
        %v5585 = vpop.f32.mrf.mxu0
        %v5586 = vadd.f32 %v5497, %v5585
        %v5587 = vpop.f32.mrf.mxu0
        %v5588 = vadd.f32 %v5499, %v5587
        %5589 = vmatmul.bf16.gmra.mxu0 %v5056
        %v5590 = vpop.f32.mrf.mxu0
        %v5591 = vadd.f32 %v5502, %v5590
        %v5592 = vpop.f32.mrf.mxu0
        %v5593 = vadd.f32 %v5504, %v5592
        %5594 = vmatmul.bf16.gmra.mxu0 %v5058
        %v5595 = vpop.f32.mrf.mxu0
        %v5596 = vadd.f32 %v5507, %v5595
        %v5597 = vpop.f32.mrf.mxu0
        %v5598 = vadd.f32 %v5509, %v5597
        %5599 = vmatmul.bf16.gmra.mxu0 %v5060
        %v5600 = vpop.f32.mrf.mxu0
        %v5601 = vadd.f32 %v5512, %v5600
        %v5602 = vpop.f32.mrf.mxu0
        %v5603 = vadd.f32 %v5514, %v5602
        %5604 = vmatmul.bf16.gmra.mxu0 %v5062
        %v5605 = vpop.f32.mrf.mxu0
        %v5606 = vadd.f32 %v5517, %v5605
        %v5607 = vpop.f32.mrf.mxu0
        %v5608 = vadd.f32 %v5519, %v5607
        %5609 = vmatmul.bf16.gmra.mxu0 %v5064
        %v5610 = vpop.f32.mrf.mxu0
        %v5611 = vadd.f32 %v5522, %v5610
        %v5612 = vpop.f32.mrf.mxu0
        %v5613 = vadd.f32 %v5524, %v5612
        %5614 = vmatmul.bf16.gmra.mxu0 %v5066
        %v5615 = vpop.f32.mrf.mxu0
        %v5616 = vadd.f32 %v5527, %v5615
        %v5617 = vpop.f32.mrf.mxu0
        %v5618 = vadd.f32 %v5529, %v5617
        %5619 = vmatmul.bf16.gmra.mxu0 %v5068
        %v5620 = vpop.f32.mrf.mxu0
        %v5621 = vadd.f32 %v5532, %v5620
        %v5622 = vpop.f32.mrf.mxu0
        %v5623 = vadd.f32 %v5534, %v5622
        %5624 = vdwg.mxu0
        %v5625 = vmax.f32 %v5368, 0.0
        %v5626 = vmax.f32 %v5546, 0.0
        %v5627 = vmax.f32 %v5370, 0.0
        %v5628 = vmax.f32 %v5548, 0.0
        %v5629 = vmax.f32 %v5373, 0.0
        %v5630 = vmax.f32 %v5551, 0.0
        %v5631 = vmax.f32 %v5375, 0.0
        %v5632 = vmax.f32 %v5553, 0.0
        %v5633 = vmax.f32 %v5378, 0.0
        %v5634 = vmax.f32 %v5556, 0.0
        %v5635 = vmax.f32 %v5380, 0.0
        %v5636 = vmax.f32 %v5558, 0.0
        %v5637 = vmax.f32 %v5383, 0.0
        %v5638 = vmax.f32 %v5561, 0.0
        %v5639 = vmax.f32 %v5385, 0.0
        %v5640 = vmax.f32 %v5563, 0.0
        %v5641 = vmax.f32 %v5388, 0.0
        %v5642 = vmax.f32 %v5566, 0.0
        %v5643 = vmax.f32 %v5390, 0.0
        %v5644 = vmax.f32 %v5568, 0.0
        %v5645 = vmax.f32 %v5393, 0.0
        %v5646 = vmax.f32 %v5571, 0.0
        %v5647 = vmax.f32 %v5395, 0.0
        %v5648 = vmax.f32 %v5573, 0.0
        %v5649 = vmax.f32 %v5398, 0.0
        %v5650 = vmax.f32 %v5576, 0.0
        %v5651 = vmax.f32 %v5400, 0.0
        %v5652 = vmax.f32 %v5578, 0.0
        %v5653 = vmax.f32 %v5403, 0.0
        %v5654 = vmax.f32 %v5581, 0.0
        %v5655 = vmax.f32 %v5405, 0.0
        %v5656 = vmax.f32 %v5583, 0.0
        %v5657 = vmax.f32 %v5408, 0.0
        %v5658 = vmax.f32 %v5586, 0.0
        %v5659 = vmax.f32 %v5410, 0.0
        %v5660 = vmax.f32 %v5588, 0.0
        %v5661 = vmax.f32 %v5413, 0.0
        %v5662 = vmax.f32 %v5591, 0.0
        %v5663 = vmax.f32 %v5415, 0.0
        %v5664 = vmax.f32 %v5593, 0.0
        %v5665 = vmax.f32 %v5418, 0.0
        %v5666 = vmax.f32 %v5596, 0.0
        %v5667 = vmax.f32 %v5420, 0.0
        %v5668 = vmax.f32 %v5598, 0.0
        %v5669 = vmax.f32 %v5423, 0.0
        %v5670 = vmax.f32 %v5601, 0.0
        %v5671 = vmax.f32 %v5425, 0.0
        %v5672 = vmax.f32 %v5603, 0.0
        %v5673 = vmax.f32 %v5428, 0.0
        %v5674 = vmax.f32 %v5606, 0.0
        %v5675 = vmax.f32 %v5430, 0.0
        %v5676 = vmax.f32 %v5608, 0.0
        %v5677 = vmax.f32 %v5433, 0.0
        %v5678 = vmax.f32 %v5611, 0.0
        %v5679 = vmax.f32 %v5435, 0.0
        %v5680 = vmax.f32 %v5613, 0.0
        %v5681 = vmax.f32 %v5438, 0.0
        %v5682 = vmax.f32 %v5616, 0.0
        %v5683 = vmax.f32 %v5440, 0.0
        %v5684 = vmax.f32 %v5618, 0.0
        %v5685 = vmax.f32 %v5443, 0.0
        %v5686 = vmax.f32 %v5621, 0.0
        %v5687 = vmax.f32 %v5445, 0.0
        %v5688 = vmax.f32 %v5623, 0.0
        %v5689 = vpack.c.bf16 %v5627, %v5625
        %v5690 = vpack.c.bf16 %v5628, %v5626
        %v5691 = vpack.c.bf16 %v5631, %v5629
        %v5692 = vpack.c.bf16 %v5632, %v5630
        %v5693 = vpack.c.bf16 %v5635, %v5633
        %v5694 = vpack.c.bf16 %v5636, %v5634
        %v5695 = vpack.c.bf16 %v5639, %v5637
        %v5696 = vpack.c.bf16 %v5640, %v5638
        %v5697 = vpack.c.bf16 %v5643, %v5641
        %v5698 = vpack.c.bf16 %v5644, %v5642
        %v5699 = vpack.c.bf16 %v5647, %v5645
        %v5700 = vpack.c.bf16 %v5648, %v5646
        %v5701 = vpack.c.bf16 %v5651, %v5649
        %v5702 = vpack.c.bf16 %v5652, %v5650
        %v5703 = vpack.c.bf16 %v5655, %v5653
        %v5704 = vpack.c.bf16 %v5656, %v5654
        %v5705 = vpack.c.bf16 %v5659, %v5657
        %v5706 = vpack.c.bf16 %v5660, %v5658
        %v5707 = vpack.c.bf16 %v5663, %v5661
        %v5708 = vpack.c.bf16 %v5664, %v5662
        %v5709 = vpack.c.bf16 %v5667, %v5665
        %v5710 = vpack.c.bf16 %v5668, %v5666
        %v5711 = vpack.c.bf16 %v5671, %v5669
        %v5712 = vpack.c.bf16 %v5672, %v5670
        %v5713 = vpack.c.bf16 %v5675, %v5673
        %v5714 = vpack.c.bf16 %v5676, %v5674
        %v5715 = vpack.c.bf16 %v5679, %v5677
        %v5716 = vpack.c.bf16 %v5680, %v5678
        %v5717 = vpack.c.bf16 %v5683, %v5681
        %v5718 = vpack.c.bf16 %v5684, %v5682
        %v5719 = vpack.c.bf16 %v5687, %v5685
        %v5720 = vpack.c.bf16 %v5688, %v5686
        %s5721 = scalar_lea.vmem [#allocation2], 512
        %v5722 = vld [vmem:[%s5721] sm:$0xff]
        %v5723 = vld [vmem:[%s5721 + $0x8] sm:$0xff]
        %v5724 = vld [vmem:[%s5721 + $0x10] sm:$0xff]
        %v5725 = vld [vmem:[%s5721 + $0x18] sm:$0xff]
        %v5726 = vld [vmem:[%s5721 + $0x20] sm:$0xff]
        %v5727 = vld [vmem:[%s5721 + $0x28] sm:$0xff]
        %v5728 = vld [vmem:[%s5721 + $0x30] sm:$0xff]
        %v5729 = vld [vmem:[%s5721 + $0x38] sm:$0xff]
        %v5730 = vld [vmem:[%s5721 + $0x40] sm:$0xff]
        %v5731 = vld [vmem:[%s5721 + $0x48] sm:$0xff]
        %v5732 = vld [vmem:[%s5721 + $0x50] sm:$0xff]
        %v5733 = vld [vmem:[%s5721 + $0x58] sm:$0xff]
        %v5734 = vld [vmem:[%s5721 + $0x60] sm:$0xff]
        %v5735 = vld [vmem:[%s5721 + $0x68] sm:$0xff]
        %v5736 = vld [vmem:[%s5721 + $0x70] sm:$0xff]
        %v5737 = vld [vmem:[%s5721 + $0x78] sm:$0xff]
        %v5738 = vld [vmem:[%s5721 + $0x80] sm:$0xff]
        %v5739 = vld [vmem:[%s5721 + $0x88] sm:$0xff]
        %v5740 = vld [vmem:[%s5721 + $0x90] sm:$0xff]
        %v5741 = vld [vmem:[%s5721 + $0x98] sm:$0xff]
        %v5742 = vld [vmem:[%s5721 + $0xa0] sm:$0xff]
        %v5743 = vld [vmem:[%s5721 + $0xa8] sm:$0xff]
        %v5744 = vld [vmem:[%s5721 + $0xb0] sm:$0xff]
        %v5745 = vld [vmem:[%s5721 + $0xb8] sm:$0xff]
        %v5746 = vld [vmem:[%s5721 + $0xc0] sm:$0xff]
        %v5747 = vld [vmem:[%s5721 + $0xc8] sm:$0xff]
        %v5748 = vld [vmem:[%s5721 + $0xd0] sm:$0xff]
        %v5749 = vld [vmem:[%s5721 + $0xd8] sm:$0xff]
        %v5750 = vld [vmem:[%s5721 + $0xe0] sm:$0xff]
        %v5751 = vld [vmem:[%s5721 + $0xe8] sm:$0xff]
        %v5752 = vld [vmem:[%s5721 + $0xf0] sm:$0xff]
        %v5753 = vld [vmem:[%s5721 + $0xf8] sm:$0xff]
        %s5754 = scalar_lea.vmem %s6, 4
        %v5755 = vld [vmem:[%s5754] sm:$0x3]
        %v5757 = vperm.slane %v5755, 0
        %v5758 = vperm.slane %v5755, 1
        %v5793 = vunpack.c.l.b16 %v5722
        %v5794 = vunpack.c.h.b16 %v5722
        %v5795 = vunpack.c.l.b16 %v5723
        %v5796 = vunpack.c.h.b16 %v5723
        %v5797 = vunpack.c.l.b16 %v5724
        %v5798 = vunpack.c.h.b16 %v5724
        %v5799 = vunpack.c.l.b16 %v5725
        %v5800 = vunpack.c.h.b16 %v5725
        %v5801 = vunpack.c.l.b16 %v5726
        %v5802 = vunpack.c.h.b16 %v5726
        %v5803 = vunpack.c.l.b16 %v5727
        %v5804 = vunpack.c.h.b16 %v5727
        %v5805 = vunpack.c.l.b16 %v5728
        %v5806 = vunpack.c.h.b16 %v5728
        %v5807 = vunpack.c.l.b16 %v5729
        %v5808 = vunpack.c.h.b16 %v5729
        %v5809 = vunpack.c.l.b16 %v5730
        %v5810 = vunpack.c.h.b16 %v5730
        %v5811 = vunpack.c.l.b16 %v5731
        %v5812 = vunpack.c.h.b16 %v5731
        %v5813 = vunpack.c.l.b16 %v5732
        %v5814 = vunpack.c.h.b16 %v5732
        %v5815 = vunpack.c.l.b16 %v5733
        %v5816 = vunpack.c.h.b16 %v5733
        %v5817 = vunpack.c.l.b16 %v5734
        %v5818 = vunpack.c.h.b16 %v5734
        %v5819 = vunpack.c.l.b16 %v5735
        %v5820 = vunpack.c.h.b16 %v5735
        %v5821 = vunpack.c.l.b16 %v5736
        %v5822 = vunpack.c.h.b16 %v5736
        %v5823 = vunpack.c.l.b16 %v5737
        %v5824 = vunpack.c.h.b16 %v5737
        %v5825 = vunpack.c.l.b16 %v5738
        %v5826 = vunpack.c.h.b16 %v5738
        %v5827 = vunpack.c.l.b16 %v5739
        %v5828 = vunpack.c.h.b16 %v5739
        %v5829 = vunpack.c.l.b16 %v5740
        %v5830 = vunpack.c.h.b16 %v5740
        %v5831 = vunpack.c.l.b16 %v5741
        %v5832 = vunpack.c.h.b16 %v5741
        %v5833 = vunpack.c.l.b16 %v5742
        %v5834 = vunpack.c.h.b16 %v5742
        %v5835 = vunpack.c.l.b16 %v5743
        %v5836 = vunpack.c.h.b16 %v5743
        %v5837 = vunpack.c.l.b16 %v5744
        %v5838 = vunpack.c.h.b16 %v5744
        %v5839 = vunpack.c.l.b16 %v5745
        %v5840 = vunpack.c.h.b16 %v5745
        %v5841 = vunpack.c.l.b16 %v5746
        %v5842 = vunpack.c.h.b16 %v5746
        %v5843 = vunpack.c.l.b16 %v5747
        %v5844 = vunpack.c.h.b16 %v5747
        %v5845 = vunpack.c.l.b16 %v5748
        %v5846 = vunpack.c.h.b16 %v5748
        %v5847 = vunpack.c.l.b16 %v5749
        %v5848 = vunpack.c.h.b16 %v5749
        %v5849 = vunpack.c.l.b16 %v5750
        %v5850 = vunpack.c.h.b16 %v5750
        %v5851 = vunpack.c.l.b16 %v5751
        %v5852 = vunpack.c.h.b16 %v5751
        %v5853 = vunpack.c.l.b16 %v5752
        %v5854 = vunpack.c.h.b16 %v5752
        %v5855 = vunpack.c.l.b16 %v5753
        %v5856 = vunpack.c.h.b16 %v5753
        %v5857 = vpack.c.b16 %v5795, %v5793
        %v5858 = vpack.c.b16 %v5796, %v5794
        %v5859 = vpack.c.b16 %v5799, %v5797
        %v5860 = vpack.c.b16 %v5800, %v5798
        %v5861 = vpack.c.b16 %v5803, %v5801
        %v5862 = vpack.c.b16 %v5804, %v5802
        %v5863 = vpack.c.b16 %v5807, %v5805
        %v5864 = vpack.c.b16 %v5808, %v5806
        %v5865 = vpack.c.b16 %v5811, %v5809
        %v5866 = vpack.c.b16 %v5812, %v5810
        %v5867 = vpack.c.b16 %v5815, %v5813
        %v5868 = vpack.c.b16 %v5816, %v5814
        %v5869 = vpack.c.b16 %v5819, %v5817
        %v5870 = vpack.c.b16 %v5820, %v5818
        %v5871 = vpack.c.b16 %v5823, %v5821
        %v5872 = vpack.c.b16 %v5824, %v5822
        %v5873 = vpack.c.b16 %v5827, %v5825
        %v5874 = vpack.c.b16 %v5828, %v5826
        %v5875 = vpack.c.b16 %v5831, %v5829
        %v5876 = vpack.c.b16 %v5832, %v5830
        %v5877 = vpack.c.b16 %v5835, %v5833
        %v5878 = vpack.c.b16 %v5836, %v5834
        %v5879 = vpack.c.b16 %v5839, %v5837
        %v5880 = vpack.c.b16 %v5840, %v5838
        %v5881 = vpack.c.b16 %v5843, %v5841
        %v5882 = vpack.c.b16 %v5844, %v5842
        %v5883 = vpack.c.b16 %v5847, %v5845
        %v5884 = vpack.c.b16 %v5848, %v5846
        %v5885 = vpack.c.b16 %v5851, %v5849
        %v5886 = vpack.c.b16 %v5852, %v5850
        %v5887 = vpack.c.b16 %v5855, %v5853
        %v5888 = vpack.c.b16 %v5856, %v5854
        %5921 = vmatpush.bf16.msra.mxu0 %v5871
        %5922 = vmatpush.bf16.msra.mxu0 %v5869
        %5923 = vmatpush.bf16.msra.mxu0 %v5867
        %5924 = vmatpush.bf16.msra.mxu0 %v5865
        %5925 = vmatpush.bf16.msra.mxu0 %v5863
        %5926 = vmatpush.bf16.msra.mxu0 %v5861
        %5927 = vmatpush.bf16.msra.mxu0 %v5859
        %5928 = vmatpush.bf16.msra.mxu0 %v5857
        %5929 = vmatmul.bf16.gmra.mxu0 %v5689
        %v5930 = vpop.f32.mrf.mxu0
        %v5931 = vadd.f32 %v5757, %v5930
        %v5932 = vpop.f32.mrf.mxu0
        %v5933 = vadd.f32 %v5757, %v5932
        %5934 = vmatmul.bf16.gmra.mxu0 %v5691
        %v5935 = vpop.f32.mrf.mxu0
        %v5936 = vadd.f32 %v5757, %v5935
        %v5937 = vpop.f32.mrf.mxu0
        %v5938 = vadd.f32 %v5757, %v5937
        %5939 = vmatmul.bf16.gmra.mxu0 %v5693
        %v5940 = vpop.f32.mrf.mxu0
        %v5941 = vadd.f32 %v5757, %v5940
        %v5942 = vpop.f32.mrf.mxu0
        %v5943 = vadd.f32 %v5757, %v5942
        %5944 = vmatmul.bf16.gmra.mxu0 %v5695
        %v5945 = vpop.f32.mrf.mxu0
        %v5946 = vadd.f32 %v5757, %v5945
        %v5947 = vpop.f32.mrf.mxu0
        %v5948 = vadd.f32 %v5757, %v5947
        %5949 = vmatmul.bf16.gmra.mxu0 %v5697
        %v5950 = vpop.f32.mrf.mxu0
        %v5951 = vadd.f32 %v5757, %v5950
        %v5952 = vpop.f32.mrf.mxu0
        %v5953 = vadd.f32 %v5757, %v5952
        %5954 = vmatmul.bf16.gmra.mxu0 %v5699
        %v5955 = vpop.f32.mrf.mxu0
        %v5956 = vadd.f32 %v5757, %v5955
        %v5957 = vpop.f32.mrf.mxu0
        %v5958 = vadd.f32 %v5757, %v5957
        %5959 = vmatmul.bf16.gmra.mxu0 %v5701
        %v5960 = vpop.f32.mrf.mxu0
        %v5961 = vadd.f32 %v5757, %v5960
        %v5962 = vpop.f32.mrf.mxu0
        %v5963 = vadd.f32 %v5757, %v5962
        %5964 = vmatmul.bf16.gmra.mxu0 %v5703
        %v5965 = vpop.f32.mrf.mxu0
        %v5966 = vadd.f32 %v5757, %v5965
        %v5967 = vpop.f32.mrf.mxu0
        %v5968 = vadd.f32 %v5757, %v5967
        %5969 = vmatmul.bf16.gmra.mxu0 %v5705
        %v5970 = vpop.f32.mrf.mxu0
        %v5971 = vadd.f32 %v5757, %v5970
        %v5972 = vpop.f32.mrf.mxu0
        %v5973 = vadd.f32 %v5757, %v5972
        %5974 = vmatmul.bf16.gmra.mxu0 %v5707
        %v5975 = vpop.f32.mrf.mxu0
        %v5976 = vadd.f32 %v5757, %v5975
        %v5977 = vpop.f32.mrf.mxu0
        %v5978 = vadd.f32 %v5757, %v5977
        %5979 = vmatmul.bf16.gmra.mxu0 %v5709
        %v5980 = vpop.f32.mrf.mxu0
        %v5981 = vadd.f32 %v5757, %v5980
        %v5982 = vpop.f32.mrf.mxu0
        %v5983 = vadd.f32 %v5757, %v5982
        %5984 = vmatmul.bf16.gmra.mxu0 %v5711
        %v5985 = vpop.f32.mrf.mxu0
        %v5986 = vadd.f32 %v5757, %v5985
        %v5987 = vpop.f32.mrf.mxu0
        %v5988 = vadd.f32 %v5757, %v5987
        %5989 = vmatmul.bf16.gmra.mxu0 %v5713
        %v5990 = vpop.f32.mrf.mxu0
        %v5991 = vadd.f32 %v5757, %v5990
        %v5992 = vpop.f32.mrf.mxu0
        %v5993 = vadd.f32 %v5757, %v5992
        %5994 = vmatmul.bf16.gmra.mxu0 %v5715
        %v5995 = vpop.f32.mrf.mxu0
        %v5996 = vadd.f32 %v5757, %v5995
        %v5997 = vpop.f32.mrf.mxu0
        %v5998 = vadd.f32 %v5757, %v5997
        %5999 = vmatmul.bf16.gmra.mxu0 %v5717
        %v6000 = vpop.f32.mrf.mxu0
        %v6001 = vadd.f32 %v5757, %v6000
        %v6002 = vpop.f32.mrf.mxu0
        %v6003 = vadd.f32 %v5757, %v6002
        %6004 = vmatmul.bf16.gmra.mxu0 %v5719
        %v6005 = vpop.f32.mrf.mxu0
        %v6006 = vadd.f32 %v5757, %v6005
        %v6007 = vpop.f32.mrf.mxu0
        %v6008 = vadd.f32 %v5757, %v6007
        %6009 = vdwg.mxu0
        %6010 = vmatpush.bf16.msra.mxu0 %v5887
        %6011 = vmatpush.bf16.msra.mxu0 %v5885
        %6012 = vmatpush.bf16.msra.mxu0 %v5883
        %6013 = vmatpush.bf16.msra.mxu0 %v5881
        %6014 = vmatpush.bf16.msra.mxu0 %v5879
        %6015 = vmatpush.bf16.msra.mxu0 %v5877
        %6016 = vmatpush.bf16.msra.mxu0 %v5875
        %6017 = vmatpush.bf16.msra.mxu0 %v5873
        %6018 = vmatmul.bf16.gmra.mxu0 %v5690
        %v6019 = vpop.f32.mrf.mxu0
        %v6020 = vadd.f32 %v5931, %v6019
        %v6021 = vpop.f32.mrf.mxu0
        %v6022 = vadd.f32 %v5933, %v6021
        %6023 = vmatmul.bf16.gmra.mxu0 %v5692
        %v6024 = vpop.f32.mrf.mxu0
        %v6025 = vadd.f32 %v5936, %v6024
        %v6026 = vpop.f32.mrf.mxu0
        %v6027 = vadd.f32 %v5938, %v6026
        %6028 = vmatmul.bf16.gmra.mxu0 %v5694
        %v6029 = vpop.f32.mrf.mxu0
        %v6030 = vadd.f32 %v5941, %v6029
        %v6031 = vpop.f32.mrf.mxu0
        %v6032 = vadd.f32 %v5943, %v6031
        %6033 = vmatmul.bf16.gmra.mxu0 %v5696
        %v6034 = vpop.f32.mrf.mxu0
        %v6035 = vadd.f32 %v5946, %v6034
        %v6036 = vpop.f32.mrf.mxu0
        %v6037 = vadd.f32 %v5948, %v6036
        %6038 = vmatmul.bf16.gmra.mxu0 %v5698
        %v6039 = vpop.f32.mrf.mxu0
        %v6040 = vadd.f32 %v5951, %v6039
        %v6041 = vpop.f32.mrf.mxu0
        %v6042 = vadd.f32 %v5953, %v6041
        %6043 = vmatmul.bf16.gmra.mxu0 %v5700
        %v6044 = vpop.f32.mrf.mxu0
        %v6045 = vadd.f32 %v5956, %v6044
        %v6046 = vpop.f32.mrf.mxu0
        %v6047 = vadd.f32 %v5958, %v6046
        %6048 = vmatmul.bf16.gmra.mxu0 %v5702
        %v6049 = vpop.f32.mrf.mxu0
        %v6050 = vadd.f32 %v5961, %v6049
        %v6051 = vpop.f32.mrf.mxu0
        %v6052 = vadd.f32 %v5963, %v6051
        %6053 = vmatmul.bf16.gmra.mxu0 %v5704
        %v6054 = vpop.f32.mrf.mxu0
        %v6055 = vadd.f32 %v5966, %v6054
        %v6056 = vpop.f32.mrf.mxu0
        %v6057 = vadd.f32 %v5968, %v6056
        %6058 = vmatmul.bf16.gmra.mxu0 %v5706
        %v6059 = vpop.f32.mrf.mxu0
        %v6060 = vadd.f32 %v5971, %v6059
        %v6061 = vpop.f32.mrf.mxu0
        %v6062 = vadd.f32 %v5973, %v6061
        %6063 = vmatmul.bf16.gmra.mxu0 %v5708
        %v6064 = vpop.f32.mrf.mxu0
        %v6065 = vadd.f32 %v5976, %v6064
        %v6066 = vpop.f32.mrf.mxu0
        %v6067 = vadd.f32 %v5978, %v6066
        %6068 = vmatmul.bf16.gmra.mxu0 %v5710
        %v6069 = vpop.f32.mrf.mxu0
        %v6070 = vadd.f32 %v5981, %v6069
        %v6071 = vpop.f32.mrf.mxu0
        %v6072 = vadd.f32 %v5983, %v6071
        %6073 = vmatmul.bf16.gmra.mxu0 %v5712
        %v6074 = vpop.f32.mrf.mxu0
        %v6075 = vadd.f32 %v5986, %v6074
        %v6076 = vpop.f32.mrf.mxu0
        %v6077 = vadd.f32 %v5988, %v6076
        %6078 = vmatmul.bf16.gmra.mxu0 %v5714
        %v6079 = vpop.f32.mrf.mxu0
        %v6080 = vadd.f32 %v5991, %v6079
        %v6081 = vpop.f32.mrf.mxu0
        %v6082 = vadd.f32 %v5993, %v6081
        %6083 = vmatmul.bf16.gmra.mxu0 %v5716
        %v6084 = vpop.f32.mrf.mxu0
        %v6085 = vadd.f32 %v5996, %v6084
        %v6086 = vpop.f32.mrf.mxu0
        %v6087 = vadd.f32 %v5998, %v6086
        %6088 = vmatmul.bf16.gmra.mxu0 %v5718
        %v6089 = vpop.f32.mrf.mxu0
        %v6090 = vadd.f32 %v6001, %v6089
        %v6091 = vpop.f32.mrf.mxu0
        %v6092 = vadd.f32 %v6003, %v6091
        %6093 = vmatmul.bf16.gmra.mxu0 %v5720
        %v6094 = vpop.f32.mrf.mxu0
        %v6095 = vadd.f32 %v6006, %v6094
        %v6096 = vpop.f32.mrf.mxu0
        %v6097 = vadd.f32 %v6008, %v6096
        %6098 = vdwg.mxu0
        %6099 = vmatpush.bf16.msra.mxu0 %v5872
        %6100 = vmatpush.bf16.msra.mxu0 %v5870
        %6101 = vmatpush.bf16.msra.mxu0 %v5868
        %6102 = vmatpush.bf16.msra.mxu0 %v5866
        %6103 = vmatpush.bf16.msra.mxu0 %v5864
        %6104 = vmatpush.bf16.msra.mxu0 %v5862
        %6105 = vmatpush.bf16.msra.mxu0 %v5860
        %6106 = vmatpush.bf16.msra.mxu0 %v5858
        %6107 = vmatmul.bf16.gmra.mxu0 %v5689
        %v6108 = vpop.f32.mrf.mxu0
        %v6109 = vadd.f32 %v5758, %v6108
        %v6110 = vpop.f32.mrf.mxu0
        %v6111 = vadd.f32 %v5758, %v6110
        %6112 = vmatmul.bf16.gmra.mxu0 %v5691
        %v6113 = vpop.f32.mrf.mxu0
        %v6114 = vadd.f32 %v5758, %v6113
        %v6115 = vpop.f32.mrf.mxu0
        %v6116 = vadd.f32 %v5758, %v6115
        %6117 = vmatmul.bf16.gmra.mxu0 %v5693
        %v6118 = vpop.f32.mrf.mxu0
        %v6119 = vadd.f32 %v5758, %v6118
        %v6120 = vpop.f32.mrf.mxu0
        %v6121 = vadd.f32 %v5758, %v6120
        %6122 = vmatmul.bf16.gmra.mxu0 %v5695
        %v6123 = vpop.f32.mrf.mxu0
        %v6124 = vadd.f32 %v5758, %v6123
        %v6125 = vpop.f32.mrf.mxu0
        %v6126 = vadd.f32 %v5758, %v6125
        %6127 = vmatmul.bf16.gmra.mxu0 %v5697
        %v6128 = vpop.f32.mrf.mxu0
        %v6129 = vadd.f32 %v5758, %v6128
        %v6130 = vpop.f32.mrf.mxu0
        %v6131 = vadd.f32 %v5758, %v6130
        %6132 = vmatmul.bf16.gmra.mxu0 %v5699
        %v6133 = vpop.f32.mrf.mxu0
        %v6134 = vadd.f32 %v5758, %v6133
        %v6135 = vpop.f32.mrf.mxu0
        %v6136 = vadd.f32 %v5758, %v6135
        %6137 = vmatmul.bf16.gmra.mxu0 %v5701
        %v6138 = vpop.f32.mrf.mxu0
        %v6139 = vadd.f32 %v5758, %v6138
        %v6140 = vpop.f32.mrf.mxu0
        %v6141 = vadd.f32 %v5758, %v6140
        %6142 = vmatmul.bf16.gmra.mxu0 %v5703
        %v6143 = vpop.f32.mrf.mxu0
        %v6144 = vadd.f32 %v5758, %v6143
        %v6145 = vpop.f32.mrf.mxu0
        %v6146 = vadd.f32 %v5758, %v6145
        %6147 = vmatmul.bf16.gmra.mxu0 %v5705
        %v6148 = vpop.f32.mrf.mxu0
        %v6149 = vadd.f32 %v5758, %v6148
        %v6150 = vpop.f32.mrf.mxu0
        %v6151 = vadd.f32 %v5758, %v6150
        %6152 = vmatmul.bf16.gmra.mxu0 %v5707
        %v6153 = vpop.f32.mrf.mxu0
        %v6154 = vadd.f32 %v5758, %v6153
        %v6155 = vpop.f32.mrf.mxu0
        %v6156 = vadd.f32 %v5758, %v6155
        %6157 = vmatmul.bf16.gmra.mxu0 %v5709
        %v6158 = vpop.f32.mrf.mxu0
        %v6159 = vadd.f32 %v5758, %v6158
        %v6160 = vpop.f32.mrf.mxu0
        %v6161 = vadd.f32 %v5758, %v6160
        %6162 = vmatmul.bf16.gmra.mxu0 %v5711
        %v6163 = vpop.f32.mrf.mxu0
        %v6164 = vadd.f32 %v5758, %v6163
        %v6165 = vpop.f32.mrf.mxu0
        %v6166 = vadd.f32 %v5758, %v6165
        %6167 = vmatmul.bf16.gmra.mxu0 %v5713
        %v6168 = vpop.f32.mrf.mxu0
        %v6169 = vadd.f32 %v5758, %v6168
        %v6170 = vpop.f32.mrf.mxu0
        %v6171 = vadd.f32 %v5758, %v6170
        %6172 = vmatmul.bf16.gmra.mxu0 %v5715
        %v6173 = vpop.f32.mrf.mxu0
        %v6174 = vadd.f32 %v5758, %v6173
        %v6175 = vpop.f32.mrf.mxu0
        %v6176 = vadd.f32 %v5758, %v6175
        %6177 = vmatmul.bf16.gmra.mxu0 %v5717
        %v6178 = vpop.f32.mrf.mxu0
        %v6179 = vadd.f32 %v5758, %v6178
        %v6180 = vpop.f32.mrf.mxu0
        %v6181 = vadd.f32 %v5758, %v6180
        %6182 = vmatmul.bf16.gmra.mxu0 %v5719
        %v6183 = vpop.f32.mrf.mxu0
        %v6184 = vadd.f32 %v5758, %v6183
        %v6185 = vpop.f32.mrf.mxu0
        %v6186 = vadd.f32 %v5758, %v6185
        %6187 = vdwg.mxu0
        %6188 = vmatpush.bf16.msra.mxu0 %v5888
        %6189 = vmatpush.bf16.msra.mxu0 %v5886
        %6190 = vmatpush.bf16.msra.mxu0 %v5884
        %6191 = vmatpush.bf16.msra.mxu0 %v5882
        %6192 = vmatpush.bf16.msra.mxu0 %v5880
        %6193 = vmatpush.bf16.msra.mxu0 %v5878
        %6194 = vmatpush.bf16.msra.mxu0 %v5876
        %6195 = vmatpush.bf16.msra.mxu0 %v5874
        %6196 = vmatmul.bf16.gmra.mxu0 %v5690
        %v6197 = vpop.f32.mrf.mxu0
        %v6198 = vadd.f32 %v6109, %v6197
        %v6199 = vpop.f32.mrf.mxu0
        %v6200 = vadd.f32 %v6111, %v6199
        %6201 = vmatmul.bf16.gmra.mxu0 %v5692
        %v6202 = vpop.f32.mrf.mxu0
        %v6203 = vadd.f32 %v6114, %v6202
        %v6204 = vpop.f32.mrf.mxu0
        %v6205 = vadd.f32 %v6116, %v6204
        %6206 = vmatmul.bf16.gmra.mxu0 %v5694
        %v6207 = vpop.f32.mrf.mxu0
        %v6208 = vadd.f32 %v6119, %v6207
        %v6209 = vpop.f32.mrf.mxu0
        %v6210 = vadd.f32 %v6121, %v6209
        %6211 = vmatmul.bf16.gmra.mxu0 %v5696
        %v6212 = vpop.f32.mrf.mxu0
        %v6213 = vadd.f32 %v6124, %v6212
        %v6214 = vpop.f32.mrf.mxu0
        %v6215 = vadd.f32 %v6126, %v6214
        %6216 = vmatmul.bf16.gmra.mxu0 %v5698
        %v6217 = vpop.f32.mrf.mxu0
        %v6218 = vadd.f32 %v6129, %v6217
        %v6219 = vpop.f32.mrf.mxu0
        %v6220 = vadd.f32 %v6131, %v6219
        %6221 = vmatmul.bf16.gmra.mxu0 %v5700
        %v6222 = vpop.f32.mrf.mxu0
        %v6223 = vadd.f32 %v6134, %v6222
        %v6224 = vpop.f32.mrf.mxu0
        %v6225 = vadd.f32 %v6136, %v6224
        %6226 = vmatmul.bf16.gmra.mxu0 %v5702
        %v6227 = vpop.f32.mrf.mxu0
        %v6228 = vadd.f32 %v6139, %v6227
        %v6229 = vpop.f32.mrf.mxu0
        %v6230 = vadd.f32 %v6141, %v6229
        %6231 = vmatmul.bf16.gmra.mxu0 %v5704
        %v6232 = vpop.f32.mrf.mxu0
        %v6233 = vadd.f32 %v6144, %v6232
        %v6234 = vpop.f32.mrf.mxu0
        %v6235 = vadd.f32 %v6146, %v6234
        %6236 = vmatmul.bf16.gmra.mxu0 %v5706
        %v6237 = vpop.f32.mrf.mxu0
        %v6238 = vadd.f32 %v6149, %v6237
        %v6239 = vpop.f32.mrf.mxu0
        %v6240 = vadd.f32 %v6151, %v6239
        %6241 = vmatmul.bf16.gmra.mxu0 %v5708
        %v6242 = vpop.f32.mrf.mxu0
        %v6243 = vadd.f32 %v6154, %v6242
        %v6244 = vpop.f32.mrf.mxu0
        %v6245 = vadd.f32 %v6156, %v6244
        %6246 = vmatmul.bf16.gmra.mxu0 %v5710
        %v6247 = vpop.f32.mrf.mxu0
        %v6248 = vadd.f32 %v6159, %v6247
        %v6249 = vpop.f32.mrf.mxu0
        %v6250 = vadd.f32 %v6161, %v6249
        %6251 = vmatmul.bf16.gmra.mxu0 %v5712
        %v6252 = vpop.f32.mrf.mxu0
        %v6253 = vadd.f32 %v6164, %v6252
        %v6254 = vpop.f32.mrf.mxu0
        %v6255 = vadd.f32 %v6166, %v6254
        %6256 = vmatmul.bf16.gmra.mxu0 %v5714
        %v6257 = vpop.f32.mrf.mxu0
        %v6258 = vadd.f32 %v6169, %v6257
        %v6259 = vpop.f32.mrf.mxu0
        %v6260 = vadd.f32 %v6171, %v6259
        %6261 = vmatmul.bf16.gmra.mxu0 %v5716
        %v6262 = vpop.f32.mrf.mxu0
        %v6263 = vadd.f32 %v6174, %v6262
        %v6264 = vpop.f32.mrf.mxu0
        %v6265 = vadd.f32 %v6176, %v6264
        %6266 = vmatmul.bf16.gmra.mxu0 %v5718
        %v6267 = vpop.f32.mrf.mxu0
        %v6268 = vadd.f32 %v6179, %v6267
        %v6269 = vpop.f32.mrf.mxu0
        %v6270 = vadd.f32 %v6181, %v6269
        %6271 = vmatmul.bf16.gmra.mxu0 %v5720
        %v6272 = vpop.f32.mrf.mxu0
        %v6273 = vadd.f32 %v6184, %v6272
        %v6274 = vpop.f32.mrf.mxu0
        %v6275 = vadd.f32 %v6186, %v6274
        %6276 = vdwg.mxu0
        %v6277 = vmax.f32 %v6020, 0.0
        %v6278 = vmax.f32 %v6198, 0.0
        %v6279 = vmax.f32 %v6022, 0.0
        %v6280 = vmax.f32 %v6200, 0.0
        %v6281 = vmax.f32 %v6025, 0.0
        %v6282 = vmax.f32 %v6203, 0.0
        %v6283 = vmax.f32 %v6027, 0.0
        %v6284 = vmax.f32 %v6205, 0.0
        %v6285 = vmax.f32 %v6030, 0.0
        %v6286 = vmax.f32 %v6208, 0.0
        %v6287 = vmax.f32 %v6032, 0.0
        %v6288 = vmax.f32 %v6210, 0.0
        %v6289 = vmax.f32 %v6035, 0.0
        %v6290 = vmax.f32 %v6213, 0.0
        %v6291 = vmax.f32 %v6037, 0.0
        %v6292 = vmax.f32 %v6215, 0.0
        %v6293 = vmax.f32 %v6040, 0.0
        %v6294 = vmax.f32 %v6218, 0.0
        %v6295 = vmax.f32 %v6042, 0.0
        %v6296 = vmax.f32 %v6220, 0.0
        %v6297 = vmax.f32 %v6045, 0.0
        %v6298 = vmax.f32 %v6223, 0.0
        %v6299 = vmax.f32 %v6047, 0.0
        %v6300 = vmax.f32 %v6225, 0.0
        %v6301 = vmax.f32 %v6050, 0.0
        %v6302 = vmax.f32 %v6228, 0.0
        %v6303 = vmax.f32 %v6052, 0.0
        %v6304 = vmax.f32 %v6230, 0.0
        %v6305 = vmax.f32 %v6055, 0.0
        %v6306 = vmax.f32 %v6233, 0.0
        %v6307 = vmax.f32 %v6057, 0.0
        %v6308 = vmax.f32 %v6235, 0.0
        %v6309 = vmax.f32 %v6060, 0.0
        %v6310 = vmax.f32 %v6238, 0.0
        %v6311 = vmax.f32 %v6062, 0.0
        %v6312 = vmax.f32 %v6240, 0.0
        %v6313 = vmax.f32 %v6065, 0.0
        %v6314 = vmax.f32 %v6243, 0.0
        %v6315 = vmax.f32 %v6067, 0.0
        %v6316 = vmax.f32 %v6245, 0.0
        %v6317 = vmax.f32 %v6070, 0.0
        %v6318 = vmax.f32 %v6248, 0.0
        %v6319 = vmax.f32 %v6072, 0.0
        %v6320 = vmax.f32 %v6250, 0.0
        %v6321 = vmax.f32 %v6075, 0.0
        %v6322 = vmax.f32 %v6253, 0.0
        %v6323 = vmax.f32 %v6077, 0.0
        %v6324 = vmax.f32 %v6255, 0.0
        %v6325 = vmax.f32 %v6080, 0.0
        %v6326 = vmax.f32 %v6258, 0.0
        %v6327 = vmax.f32 %v6082, 0.0
        %v6328 = vmax.f32 %v6260, 0.0
        %v6329 = vmax.f32 %v6085, 0.0
        %v6330 = vmax.f32 %v6263, 0.0
        %v6331 = vmax.f32 %v6087, 0.0
        %v6332 = vmax.f32 %v6265, 0.0
        %v6333 = vmax.f32 %v6090, 0.0
        %v6334 = vmax.f32 %v6268, 0.0
        %v6335 = vmax.f32 %v6092, 0.0
        %v6336 = vmax.f32 %v6270, 0.0
        %v6337 = vmax.f32 %v6095, 0.0
        %v6338 = vmax.f32 %v6273, 0.0
        %v6339 = vmax.f32 %v6097, 0.0
        %v6340 = vmax.f32 %v6275, 0.0
        %v6341 = vpack.c.bf16 %v6279, %v6277
        %v6342 = vpack.c.bf16 %v6280, %v6278
        %v6343 = vpack.c.bf16 %v6283, %v6281
        %v6344 = vpack.c.bf16 %v6284, %v6282
        %v6345 = vpack.c.bf16 %v6287, %v6285
        %v6346 = vpack.c.bf16 %v6288, %v6286
        %v6347 = vpack.c.bf16 %v6291, %v6289
        %v6348 = vpack.c.bf16 %v6292, %v6290
        %v6349 = vpack.c.bf16 %v6295, %v6293
        %v6350 = vpack.c.bf16 %v6296, %v6294
        %v6351 = vpack.c.bf16 %v6299, %v6297
        %v6352 = vpack.c.bf16 %v6300, %v6298
        %v6353 = vpack.c.bf16 %v6303, %v6301
        %v6354 = vpack.c.bf16 %v6304, %v6302
        %v6355 = vpack.c.bf16 %v6307, %v6305
        %v6356 = vpack.c.bf16 %v6308, %v6306
        %v6357 = vpack.c.bf16 %v6311, %v6309
        %v6358 = vpack.c.bf16 %v6312, %v6310
        %v6359 = vpack.c.bf16 %v6315, %v6313
        %v6360 = vpack.c.bf16 %v6316, %v6314
        %v6361 = vpack.c.bf16 %v6319, %v6317
        %v6362 = vpack.c.bf16 %v6320, %v6318
        %v6363 = vpack.c.bf16 %v6323, %v6321
        %v6364 = vpack.c.bf16 %v6324, %v6322
        %v6365 = vpack.c.bf16 %v6327, %v6325
        %v6366 = vpack.c.bf16 %v6328, %v6326
        %v6367 = vpack.c.bf16 %v6331, %v6329
        %v6368 = vpack.c.bf16 %v6332, %v6330
        %v6369 = vpack.c.bf16 %v6335, %v6333
        %v6370 = vpack.c.bf16 %v6336, %v6334
        %v6371 = vpack.c.bf16 %v6339, %v6337
        %v6372 = vpack.c.bf16 %v6340, %v6338
        %s6373 = scalar_lea.vmem %s7, 256
        %v6374 = vld [vmem:[%s6373] sm:$0xf]
        %v6375 = vld [vmem:[%s6373 + $0x4] sm:$0xf]
        %v6376 = vld [vmem:[%s6373 + $0x8] sm:$0xf]
        %v6377 = vld [vmem:[%s6373 + $0xc] sm:$0xf]
        %v6378 = vld [vmem:[%s6373 + $0x10] sm:$0xf]
        %v6379 = vld [vmem:[%s6373 + $0x14] sm:$0xf]
        %v6380 = vld [vmem:[%s6373 + $0x18] sm:$0xf]
        %v6381 = vld [vmem:[%s6373 + $0x1c] sm:$0xf]
        %v6382 = vld [vmem:[%s6373 + $0x20] sm:$0xf]
        %v6383 = vld [vmem:[%s6373 + $0x24] sm:$0xf]
        %v6384 = vld [vmem:[%s6373 + $0x28] sm:$0xf]
        %v6385 = vld [vmem:[%s6373 + $0x2c] sm:$0xf]
        %v6386 = vld [vmem:[%s6373 + $0x30] sm:$0xf]
        %v6387 = vld [vmem:[%s6373 + $0x34] sm:$0xf]
        %v6388 = vld [vmem:[%s6373 + $0x38] sm:$0xf]
        %v6389 = vld [vmem:[%s6373 + $0x3c] sm:$0xf]
        %v6390 = vld [vmem:[%s6373 + $0x40] sm:$0xf]
        %v6391 = vld [vmem:[%s6373 + $0x44] sm:$0xf]
        %v6392 = vld [vmem:[%s6373 + $0x48] sm:$0xf]
        %v6393 = vld [vmem:[%s6373 + $0x4c] sm:$0xf]
        %v6394 = vld [vmem:[%s6373 + $0x50] sm:$0xf]
        %v6395 = vld [vmem:[%s6373 + $0x54] sm:$0xf]
        %v6396 = vld [vmem:[%s6373 + $0x58] sm:$0xf]
        %v6397 = vld [vmem:[%s6373 + $0x5c] sm:$0xf]
        %v6398 = vld [vmem:[%s6373 + $0x60] sm:$0xf]
        %v6399 = vld [vmem:[%s6373 + $0x64] sm:$0xf]
        %v6400 = vld [vmem:[%s6373 + $0x68] sm:$0xf]
        %v6401 = vld [vmem:[%s6373 + $0x6c] sm:$0xf]
        %v6402 = vld [vmem:[%s6373 + $0x70] sm:$0xf]
        %v6403 = vld [vmem:[%s6373 + $0x74] sm:$0xf]
        %v6404 = vld [vmem:[%s6373 + $0x78] sm:$0xf]
        %v6405 = vld [vmem:[%s6373 + $0x7c] sm:$0xf]
        %s6406 = scalar_lea.vmem %s8, 2
        %v6407 = vld [vmem:[%s6406] sm:$0x1]
        %v6409 = vperm.slane %v6407, 0
        %v6443 = vunpack.c.l.b16 %v6374
        %v6444 = vunpack.c.l.b16 %v6375
        %v6445 = vunpack.c.l.b16 %v6376
        %v6446 = vunpack.c.l.b16 %v6377
        %v6447 = vunpack.c.l.b16 %v6378
        %v6448 = vunpack.c.l.b16 %v6379
        %v6449 = vunpack.c.l.b16 %v6380
        %v6450 = vunpack.c.l.b16 %v6381
        %v6451 = vunpack.c.l.b16 %v6382
        %v6452 = vunpack.c.l.b16 %v6383
        %v6453 = vunpack.c.l.b16 %v6384
        %v6454 = vunpack.c.l.b16 %v6385
        %v6455 = vunpack.c.l.b16 %v6386
        %v6456 = vunpack.c.l.b16 %v6387
        %v6457 = vunpack.c.l.b16 %v6388
        %v6458 = vunpack.c.l.b16 %v6389
        %v6459 = vunpack.c.l.b16 %v6390
        %v6460 = vunpack.c.l.b16 %v6391
        %v6461 = vunpack.c.l.b16 %v6392
        %v6462 = vunpack.c.l.b16 %v6393
        %v6463 = vunpack.c.l.b16 %v6394
        %v6464 = vunpack.c.l.b16 %v6395
        %v6465 = vunpack.c.l.b16 %v6396
        %v6466 = vunpack.c.l.b16 %v6397
        %v6467 = vunpack.c.l.b16 %v6398
        %v6468 = vunpack.c.l.b16 %v6399
        %v6469 = vunpack.c.l.b16 %v6400
        %v6470 = vunpack.c.l.b16 %v6401
        %v6471 = vunpack.c.l.b16 %v6402
        %v6472 = vunpack.c.l.b16 %v6403
        %v6473 = vunpack.c.l.b16 %v6404
        %v6474 = vunpack.c.l.b16 %v6405
        %v6475 = vpack.c.b16 %v6444, %v6443
        %v6476 = vpack.c.b16 %v6446, %v6445
        %v6477 = vpack.c.b16 %v6448, %v6447
        %v6478 = vpack.c.b16 %v6450, %v6449
        %v6479 = vpack.c.b16 %v6452, %v6451
        %v6480 = vpack.c.b16 %v6454, %v6453
        %v6481 = vpack.c.b16 %v6456, %v6455
        %v6482 = vpack.c.b16 %v6458, %v6457
        %v6483 = vpack.c.b16 %v6460, %v6459
        %v6484 = vpack.c.b16 %v6462, %v6461
        %v6485 = vpack.c.b16 %v6464, %v6463
        %v6486 = vpack.c.b16 %v6466, %v6465
        %v6487 = vpack.c.b16 %v6468, %v6467
        %v6488 = vpack.c.b16 %v6470, %v6469
        %v6489 = vpack.c.b16 %v6472, %v6471
        %v6490 = vpack.c.b16 %v6474, %v6473
        %6507 = vmatpush.bf16.msra.mxu0 %v6482
        %6508 = vmatpush.bf16.msra.mxu0 %v6481
        %6509 = vmatpush.bf16.msra.mxu0 %v6480
        %6510 = vmatpush.bf16.msra.mxu0 %v6479
        %6511 = vmatpush.bf16.msra.mxu0 %v6478
        %6512 = vmatpush.bf16.msra.mxu0 %v6477
        %6513 = vmatpush.bf16.msra.mxu0 %v6476
        %6514 = vmatpush.bf16.msra.mxu0 %v6475
        %6515 = vmatmul.bf16.gmra.mxu0 %v6341
        %v6516 = vpop.f32.mrf.mxu0
        %v6517 = vadd.f32 %v6409, %v6516
        %v6518 = vpop.f32.mrf.mxu0
        %v6519 = vadd.f32 %v6409, %v6518
        %6520 = vmatmul.bf16.gmra.mxu0 %v6343
        %v6521 = vpop.f32.mrf.mxu0
        %v6522 = vadd.f32 %v6409, %v6521
        %v6523 = vpop.f32.mrf.mxu0
        %v6524 = vadd.f32 %v6409, %v6523
        %6525 = vmatmul.bf16.gmra.mxu0 %v6345
        %v6526 = vpop.f32.mrf.mxu0
        %v6527 = vadd.f32 %v6409, %v6526
        %v6528 = vpop.f32.mrf.mxu0
        %v6529 = vadd.f32 %v6409, %v6528
        %6530 = vmatmul.bf16.gmra.mxu0 %v6347
        %v6531 = vpop.f32.mrf.mxu0
        %v6532 = vadd.f32 %v6409, %v6531
        %v6533 = vpop.f32.mrf.mxu0
        %v6534 = vadd.f32 %v6409, %v6533
        %6535 = vmatmul.bf16.gmra.mxu0 %v6349
        %v6536 = vpop.f32.mrf.mxu0
        %v6537 = vadd.f32 %v6409, %v6536
        %v6538 = vpop.f32.mrf.mxu0
        %v6539 = vadd.f32 %v6409, %v6538
        %6540 = vmatmul.bf16.gmra.mxu0 %v6351
        %v6541 = vpop.f32.mrf.mxu0
        %v6542 = vadd.f32 %v6409, %v6541
        %v6543 = vpop.f32.mrf.mxu0
        %v6544 = vadd.f32 %v6409, %v6543
        %6545 = vmatmul.bf16.gmra.mxu0 %v6353
        %v6546 = vpop.f32.mrf.mxu0
        %v6547 = vadd.f32 %v6409, %v6546
        %v6548 = vpop.f32.mrf.mxu0
        %v6549 = vadd.f32 %v6409, %v6548
        %6550 = vmatmul.bf16.gmra.mxu0 %v6355
        %v6551 = vpop.f32.mrf.mxu0
        %v6552 = vadd.f32 %v6409, %v6551
        %v6553 = vpop.f32.mrf.mxu0
        %v6554 = vadd.f32 %v6409, %v6553
        %6555 = vmatmul.bf16.gmra.mxu0 %v6357
        %v6556 = vpop.f32.mrf.mxu0
        %v6557 = vadd.f32 %v6409, %v6556
        %v6558 = vpop.f32.mrf.mxu0
        %v6559 = vadd.f32 %v6409, %v6558
        %6560 = vmatmul.bf16.gmra.mxu0 %v6359
        %v6561 = vpop.f32.mrf.mxu0
        %v6562 = vadd.f32 %v6409, %v6561
        %v6563 = vpop.f32.mrf.mxu0
        %v6564 = vadd.f32 %v6409, %v6563
        %6565 = vmatmul.bf16.gmra.mxu0 %v6361
        %v6566 = vpop.f32.mrf.mxu0
        %v6567 = vadd.f32 %v6409, %v6566
        %v6568 = vpop.f32.mrf.mxu0
        %v6569 = vadd.f32 %v6409, %v6568
        %6570 = vmatmul.bf16.gmra.mxu0 %v6363
        %v6571 = vpop.f32.mrf.mxu0
        %v6572 = vadd.f32 %v6409, %v6571
        %v6573 = vpop.f32.mrf.mxu0
        %v6574 = vadd.f32 %v6409, %v6573
        %6575 = vmatmul.bf16.gmra.mxu0 %v6365
        %v6576 = vpop.f32.mrf.mxu0
        %v6577 = vadd.f32 %v6409, %v6576
        %v6578 = vpop.f32.mrf.mxu0
        %v6579 = vadd.f32 %v6409, %v6578
        %6580 = vmatmul.bf16.gmra.mxu0 %v6367
        %v6581 = vpop.f32.mrf.mxu0
        %v6582 = vadd.f32 %v6409, %v6581
        %v6583 = vpop.f32.mrf.mxu0
        %v6584 = vadd.f32 %v6409, %v6583
        %6585 = vmatmul.bf16.gmra.mxu0 %v6369
        %v6586 = vpop.f32.mrf.mxu0
        %v6587 = vadd.f32 %v6409, %v6586
        %v6588 = vpop.f32.mrf.mxu0
        %v6589 = vadd.f32 %v6409, %v6588
        %6590 = vmatmul.bf16.gmra.mxu0 %v6371
        %v6591 = vpop.f32.mrf.mxu0
        %v6592 = vadd.f32 %v6409, %v6591
        %v6593 = vpop.f32.mrf.mxu0
        %v6594 = vadd.f32 %v6409, %v6593
        %6595 = vdwg.mxu0
        %6596 = vmatpush.bf16.msra.mxu0 %v6490
        %6597 = vmatpush.bf16.msra.mxu0 %v6489
        %6598 = vmatpush.bf16.msra.mxu0 %v6488
        %6599 = vmatpush.bf16.msra.mxu0 %v6487
        %6600 = vmatpush.bf16.msra.mxu0 %v6486
        %6601 = vmatpush.bf16.msra.mxu0 %v6485
        %6602 = vmatpush.bf16.msra.mxu0 %v6484
        %6603 = vmatpush.bf16.msra.mxu0 %v6483
        %6604 = vmatmul.bf16.gmra.mxu0 %v6342
        %v6605 = vpop.f32.mrf.mxu0
        %v6606 = vadd.f32 %v6517, %v6605
        %v6607 = vpop.f32.mrf.mxu0
        %v6608 = vadd.f32 %v6519, %v6607
        %6609 = vmatmul.bf16.gmra.mxu0 %v6344
        %v6610 = vpop.f32.mrf.mxu0
        %v6611 = vadd.f32 %v6522, %v6610
        %v6612 = vpop.f32.mrf.mxu0
        %v6613 = vadd.f32 %v6524, %v6612
        %6614 = vmatmul.bf16.gmra.mxu0 %v6346
        %v6615 = vpop.f32.mrf.mxu0
        %v6616 = vadd.f32 %v6527, %v6615
        %v6617 = vpop.f32.mrf.mxu0
        %v6618 = vadd.f32 %v6529, %v6617
        %6619 = vmatmul.bf16.gmra.mxu0 %v6348
        %v6620 = vpop.f32.mrf.mxu0
        %v6621 = vadd.f32 %v6532, %v6620
        %v6622 = vpop.f32.mrf.mxu0
        %v6623 = vadd.f32 %v6534, %v6622
        %6624 = vmatmul.bf16.gmra.mxu0 %v6350
        %v6625 = vpop.f32.mrf.mxu0
        %v6626 = vadd.f32 %v6537, %v6625
        %v6627 = vpop.f32.mrf.mxu0
        %v6628 = vadd.f32 %v6539, %v6627
        %6629 = vmatmul.bf16.gmra.mxu0 %v6352
        %v6630 = vpop.f32.mrf.mxu0
        %v6631 = vadd.f32 %v6542, %v6630
        %v6632 = vpop.f32.mrf.mxu0
        %v6633 = vadd.f32 %v6544, %v6632
        %6634 = vmatmul.bf16.gmra.mxu0 %v6354
        %v6635 = vpop.f32.mrf.mxu0
        %v6636 = vadd.f32 %v6547, %v6635
        %v6637 = vpop.f32.mrf.mxu0
        %v6638 = vadd.f32 %v6549, %v6637
        %6639 = vmatmul.bf16.gmra.mxu0 %v6356
        %v6640 = vpop.f32.mrf.mxu0
        %v6641 = vadd.f32 %v6552, %v6640
        %v6642 = vpop.f32.mrf.mxu0
        %v6643 = vadd.f32 %v6554, %v6642
        %6644 = vmatmul.bf16.gmra.mxu0 %v6358
        %v6645 = vpop.f32.mrf.mxu0
        %v6646 = vadd.f32 %v6557, %v6645
        %v6647 = vpop.f32.mrf.mxu0
        %v6648 = vadd.f32 %v6559, %v6647
        %6649 = vmatmul.bf16.gmra.mxu0 %v6360
        %v6650 = vpop.f32.mrf.mxu0
        %v6651 = vadd.f32 %v6562, %v6650
        %v6652 = vpop.f32.mrf.mxu0
        %v6653 = vadd.f32 %v6564, %v6652
        %6654 = vmatmul.bf16.gmra.mxu0 %v6362
        %v6655 = vpop.f32.mrf.mxu0
        %v6656 = vadd.f32 %v6567, %v6655
        %v6657 = vpop.f32.mrf.mxu0
        %v6658 = vadd.f32 %v6569, %v6657
        %6659 = vmatmul.bf16.gmra.mxu0 %v6364
        %v6660 = vpop.f32.mrf.mxu0
        %v6661 = vadd.f32 %v6572, %v6660
        %v6662 = vpop.f32.mrf.mxu0
        %v6663 = vadd.f32 %v6574, %v6662
        %6664 = vmatmul.bf16.gmra.mxu0 %v6366
        %v6665 = vpop.f32.mrf.mxu0
        %v6666 = vadd.f32 %v6577, %v6665
        %v6667 = vpop.f32.mrf.mxu0
        %v6668 = vadd.f32 %v6579, %v6667
        %6669 = vmatmul.bf16.gmra.mxu0 %v6368
        %v6670 = vpop.f32.mrf.mxu0
        %v6671 = vadd.f32 %v6582, %v6670
        %v6672 = vpop.f32.mrf.mxu0
        %v6673 = vadd.f32 %v6584, %v6672
        %6674 = vmatmul.bf16.gmra.mxu0 %v6370
        %v6675 = vpop.f32.mrf.mxu0
        %v6676 = vadd.f32 %v6587, %v6675
        %v6677 = vpop.f32.mrf.mxu0
        %v6678 = vadd.f32 %v6589, %v6677
        %6679 = vmatmul.bf16.gmra.mxu0 %v6372
        %v6680 = vpop.f32.mrf.mxu0
        %v6681 = vadd.f32 %v6592, %v6680
        %v6682 = vpop.f32.mrf.mxu0
        %v6683 = vadd.f32 %v6594, %v6682
        %6684 = vdwg.mxu0
        %v6685 = vadd.f32 %v4519, %v6606
        %v6686 = vadd.f32 %v4520, %v6608
        %v6687 = vadd.f32 %v4521, %v6611
        %v6688 = vadd.f32 %v4522, %v6613
        %v6689 = vadd.f32 %v4523, %v6616
        %v6690 = vadd.f32 %v4524, %v6618
        %v6691 = vadd.f32 %v4525, %v6621
        %v6692 = vadd.f32 %v4526, %v6623
        %v6693 = vadd.f32 %v4527, %v6626
        %v6694 = vadd.f32 %v4528, %v6628
        %v6695 = vadd.f32 %v4529, %v6631
        %v6696 = vadd.f32 %v4530, %v6633
        %v6697 = vadd.f32 %v4531, %v6636
        %v6698 = vadd.f32 %v4532, %v6638
        %v6699 = vadd.f32 %v4533, %v6641
        %v6700 = vadd.f32 %v4534, %v6643
        %v6701 = vadd.f32 %v4535, %v6646
        %v6702 = vadd.f32 %v4536, %v6648
        %v6703 = vadd.f32 %v4537, %v6651
        %v6704 = vadd.f32 %v4538, %v6653
        %v6705 = vadd.f32 %v4539, %v6656
        %v6706 = vadd.f32 %v4540, %v6658
        %v6707 = vadd.f32 %v4541, %v6661
        %v6708 = vadd.f32 %v4542, %v6663
        %v6709 = vadd.f32 %v4543, %v6666
        %v6710 = vadd.f32 %v4544, %v6668
        %v6711 = vadd.f32 %v4545, %v6671
        %v6712 = vadd.f32 %v4546, %v6673
        %v6713 = vadd.f32 %v4547, %v6676
        %v6714 = vadd.f32 %v4548, %v6678
        %v6715 = vadd.f32 %v4549, %v6681
        %v6716 = vadd.f32 %v4550, %v6683
        %6749 = vrot.lane.b32.xlu0 %v6606, 112
        %v6750 = vpop.permute.xlu0 %6749
        %6751 = vrot.lane.b32.xlu0 %v6608, 112
        %v6752 = vpop.permute.xlu0 %6751
        %6753 = vrot.lane.b32.xlu0 %v6611, 112
        %v6754 = vpop.permute.xlu0 %6753
        %6755 = vrot.lane.b32.xlu0 %v6613, 112
        %v6756 = vpop.permute.xlu0 %6755
        %6757 = vrot.lane.b32.xlu0 %v6616, 112
        %v6758 = vpop.permute.xlu0 %6757
        %6759 = vrot.lane.b32.xlu0 %v6618, 112
        %v6760 = vpop.permute.xlu0 %6759
        %6761 = vrot.lane.b32.xlu0 %v6621, 112
        %v6762 = vpop.permute.xlu0 %6761
        %6763 = vrot.lane.b32.xlu0 %v6623, 112
        %v6764 = vpop.permute.xlu0 %6763
        %6765 = vrot.lane.b32.xlu0 %v6626, 112
        %v6766 = vpop.permute.xlu0 %6765
        %6767 = vrot.lane.b32.xlu0 %v6628, 112
        %v6768 = vpop.permute.xlu0 %6767
        %6769 = vrot.lane.b32.xlu0 %v6631, 112
        %v6770 = vpop.permute.xlu0 %6769
        %6771 = vrot.lane.b32.xlu0 %v6633, 112
        %v6772 = vpop.permute.xlu0 %6771
        %6773 = vrot.lane.b32.xlu0 %v6636, 112
        %v6774 = vpop.permute.xlu0 %6773
        %6775 = vrot.lane.b32.xlu0 %v6638, 112
        %v6776 = vpop.permute.xlu0 %6775
        %6777 = vrot.lane.b32.xlu0 %v6641, 112
        %v6778 = vpop.permute.xlu0 %6777
        %6779 = vrot.lane.b32.xlu0 %v6643, 112
        %v6780 = vpop.permute.xlu0 %6779
        %6781 = vrot.lane.b32.xlu0 %v6646, 112
        %v6782 = vpop.permute.xlu0 %6781
        %6783 = vrot.lane.b32.xlu0 %v6648, 112
        %v6784 = vpop.permute.xlu0 %6783
        %6785 = vrot.lane.b32.xlu0 %v6651, 112
        %v6786 = vpop.permute.xlu0 %6785
        %6787 = vrot.lane.b32.xlu0 %v6653, 112
        %v6788 = vpop.permute.xlu0 %6787
        %6789 = vrot.lane.b32.xlu0 %v6656, 112
        %v6790 = vpop.permute.xlu0 %6789
        %6791 = vrot.lane.b32.xlu0 %v6658, 112
        %v6792 = vpop.permute.xlu0 %6791
        %6793 = vrot.lane.b32.xlu0 %v6661, 112
        %v6794 = vpop.permute.xlu0 %6793
        %6795 = vrot.lane.b32.xlu0 %v6663, 112
        %v6796 = vpop.permute.xlu0 %6795
        %6797 = vrot.lane.b32.xlu0 %v6666, 112
        %v6798 = vpop.permute.xlu0 %6797
        %6799 = vrot.lane.b32.xlu0 %v6668, 112
        %v6800 = vpop.permute.xlu0 %6799
        %6801 = vrot.lane.b32.xlu0 %v6671, 112
        %v6802 = vpop.permute.xlu0 %6801
        %6803 = vrot.lane.b32.xlu0 %v6673, 112
        %v6804 = vpop.permute.xlu0 %6803
        %6805 = vrot.lane.b32.xlu0 %v6676, 112
        %v6806 = vpop.permute.xlu0 %6805
        %6807 = vrot.lane.b32.xlu0 %v6678, 112
        %v6808 = vpop.permute.xlu0 %6807
        %6809 = vrot.lane.b32.xlu0 %v6681, 112
        %v6810 = vpop.permute.xlu0 %6809
        %6811 = vrot.lane.b32.xlu0 %v6683, 112
        %v6812 = vpop.permute.xlu0 %6811
        %v6845 = vsub.f32 %v4679, %v6750
        %v6846 = vsub.f32 %v4680, %v6752
        %v6847 = vsub.f32 %v4681, %v6754
        %v6848 = vsub.f32 %v4682, %v6756
        %v6849 = vsub.f32 %v4683, %v6758
        %v6850 = vsub.f32 %v4684, %v6760
        %v6851 = vsub.f32 %v4685, %v6762
        %v6852 = vsub.f32 %v4686, %v6764
        %v6853 = vsub.f32 %v4687, %v6766
        %v6854 = vsub.f32 %v4688, %v6768
        %v6855 = vsub.f32 %v4689, %v6770
        %v6856 = vsub.f32 %v4690, %v6772
        %v6857 = vsub.f32 %v4691, %v6774
        %v6858 = vsub.f32 %v4692, %v6776
        %v6859 = vsub.f32 %v4693, %v6778
        %v6860 = vsub.f32 %v4694, %v6780
        %v6861 = vsub.f32 %v4695, %v6782
        %v6862 = vsub.f32 %v4696, %v6784
        %v6863 = vsub.f32 %v4697, %v6786
        %v6864 = vsub.f32 %v4698, %v6788
        %v6865 = vsub.f32 %v4699, %v6790
        %v6866 = vsub.f32 %v4700, %v6792
        %v6867 = vsub.f32 %v4701, %v6794
        %v6868 = vsub.f32 %v4702, %v6796
        %v6869 = vsub.f32 %v4703, %v6798
        %v6870 = vsub.f32 %v4704, %v6800
        %v6871 = vsub.f32 %v4705, %v6802
        %v6872 = vsub.f32 %v4706, %v6804
        %v6873 = vsub.f32 %v4707, %v6806
        %v6874 = vsub.f32 %v4708, %v6808
        %v6875 = vsub.f32 %v4709, %v6810
        %v6876 = vsub.f32 %v4710, %v6812
        %vm6877 = vcmask 392192
        %6878 = vst.msk [vmem:[%s351] sm:$0xff] %vm6877, %v6685
        %6879 = vst.msk [vmem:[%s351 + $0x8] sm:$0xff] %vm6877, %v6686
        %6880 = vst.msk [vmem:[%s351 + $0x10] sm:$0xff] %vm6877, %v6687
        %6881 = vst.msk [vmem:[%s351 + $0x18] sm:$0xff] %vm6877, %v6688
        %6882 = vst.msk [vmem:[%s351 + $0x20] sm:$0xff] %vm6877, %v6689
        %6883 = vst.msk [vmem:[%s351 + $0x28] sm:$0xff] %vm6877, %v6690
        %6884 = vst.msk [vmem:[%s351 + $0x30] sm:$0xff] %vm6877, %v6691
        %6885 = vst.msk [vmem:[%s351 + $0x38] sm:$0xff] %vm6877, %v6692
        %6886 = vst.msk [vmem:[%s351 + $0x40] sm:$0xff] %vm6877, %v6693
        %6887 = vst.msk [vmem:[%s351 + $0x48] sm:$0xff] %vm6877, %v6694
        %6888 = vst.msk [vmem:[%s351 + $0x50] sm:$0xff] %vm6877, %v6695
        %6889 = vst.msk [vmem:[%s351 + $0x58] sm:$0xff] %vm6877, %v6696
        %6890 = vst.msk [vmem:[%s351 + $0x60] sm:$0xff] %vm6877, %v6697
        %6891 = vst.msk [vmem:[%s351 + $0x68] sm:$0xff] %vm6877, %v6698
        %6892 = vst.msk [vmem:[%s351 + $0x70] sm:$0xff] %vm6877, %v6699
        %6893 = vst.msk [vmem:[%s351 + $0x78] sm:$0xff] %vm6877, %v6700
        %6894 = vst.msk [vmem:[%s351 + $0x80] sm:$0xff] %vm6877, %v6701
        %6895 = vst.msk [vmem:[%s351 + $0x88] sm:$0xff] %vm6877, %v6702
        %6896 = vst.msk [vmem:[%s351 + $0x90] sm:$0xff] %vm6877, %v6703
        %6897 = vst.msk [vmem:[%s351 + $0x98] sm:$0xff] %vm6877, %v6704
        %6898 = vst.msk [vmem:[%s351 + $0xa0] sm:$0xff] %vm6877, %v6705
        %6899 = vst.msk [vmem:[%s351 + $0xa8] sm:$0xff] %vm6877, %v6706
        %6900 = vst.msk [vmem:[%s351 + $0xb0] sm:$0xff] %vm6877, %v6707
        %6901 = vst.msk [vmem:[%s351 + $0xb8] sm:$0xff] %vm6877, %v6708
        %6902 = vst.msk [vmem:[%s351 + $0xc0] sm:$0xff] %vm6877, %v6709
        %6903 = vst.msk [vmem:[%s351 + $0xc8] sm:$0xff] %vm6877, %v6710
        %6904 = vst.msk [vmem:[%s351 + $0xd0] sm:$0xff] %vm6877, %v6711
        %6905 = vst.msk [vmem:[%s351 + $0xd8] sm:$0xff] %vm6877, %v6712
        %6906 = vst.msk [vmem:[%s351 + $0xe0] sm:$0xff] %vm6877, %v6713
        %6907 = vst.msk [vmem:[%s351 + $0xe8] sm:$0xff] %vm6877, %v6714
        %6908 = vst.msk [vmem:[%s351 + $0xf0] sm:$0xff] %vm6877, %v6715
        %6909 = vst.msk [vmem:[%s351 + $0xf8] sm:$0xff] %vm6877, %v6716
        %6942 = vrot.lane.b32.xlu0 %v6845, 48
        %v6943 = vpop.permute.xlu0 %6942
        %6944 = vrot.lane.b32.xlu0 %v6846, 48
        %v6945 = vpop.permute.xlu0 %6944
        %6946 = vrot.lane.b32.xlu0 %v6847, 48
        %v6947 = vpop.permute.xlu0 %6946
        %6948 = vrot.lane.b32.xlu0 %v6848, 48
        %v6949 = vpop.permute.xlu0 %6948
        %6950 = vrot.lane.b32.xlu0 %v6849, 48
        %v6951 = vpop.permute.xlu0 %6950
        %6952 = vrot.lane.b32.xlu0 %v6850, 48
        %v6953 = vpop.permute.xlu0 %6952
        %6954 = vrot.lane.b32.xlu0 %v6851, 48
        %v6955 = vpop.permute.xlu0 %6954
        %6956 = vrot.lane.b32.xlu0 %v6852, 48
        %v6957 = vpop.permute.xlu0 %6956
        %6958 = vrot.lane.b32.xlu0 %v6853, 48
        %v6959 = vpop.permute.xlu0 %6958
        %6960 = vrot.lane.b32.xlu0 %v6854, 48
        %v6961 = vpop.permute.xlu0 %6960
        %6962 = vrot.lane.b32.xlu0 %v6855, 48
        %v6963 = vpop.permute.xlu0 %6962
        %6964 = vrot.lane.b32.xlu0 %v6856, 48
        %v6965 = vpop.permute.xlu0 %6964
        %6966 = vrot.lane.b32.xlu0 %v6857, 48
        %v6967 = vpop.permute.xlu0 %6966
        %6968 = vrot.lane.b32.xlu0 %v6858, 48
        %v6969 = vpop.permute.xlu0 %6968
        %6970 = vrot.lane.b32.xlu0 %v6859, 48
        %v6971 = vpop.permute.xlu0 %6970
        %6972 = vrot.lane.b32.xlu0 %v6860, 48
        %v6973 = vpop.permute.xlu0 %6972
        %6974 = vrot.lane.b32.xlu0 %v6861, 48
        %v6975 = vpop.permute.xlu0 %6974
        %6976 = vrot.lane.b32.xlu0 %v6862, 48
        %v6977 = vpop.permute.xlu0 %6976
        %6978 = vrot.lane.b32.xlu0 %v6863, 48
        %v6979 = vpop.permute.xlu0 %6978
        %6980 = vrot.lane.b32.xlu0 %v6864, 48
        %v6981 = vpop.permute.xlu0 %6980
        %6982 = vrot.lane.b32.xlu0 %v6865, 48
        %v6983 = vpop.permute.xlu0 %6982
        %6984 = vrot.lane.b32.xlu0 %v6866, 48
        %v6985 = vpop.permute.xlu0 %6984
        %6986 = vrot.lane.b32.xlu0 %v6867, 48
        %v6987 = vpop.permute.xlu0 %6986
        %6988 = vrot.lane.b32.xlu0 %v6868, 48
        %v6989 = vpop.permute.xlu0 %6988
        %6990 = vrot.lane.b32.xlu0 %v6869, 48
        %v6991 = vpop.permute.xlu0 %6990
        %6992 = vrot.lane.b32.xlu0 %v6870, 48
        %v6993 = vpop.permute.xlu0 %6992
        %6994 = vrot.lane.b32.xlu0 %v6871, 48
        %v6995 = vpop.permute.xlu0 %6994
        %6996 = vrot.lane.b32.xlu0 %v6872, 48
        %v6997 = vpop.permute.xlu0 %6996
        %6998 = vrot.lane.b32.xlu0 %v6873, 48
        %v6999 = vpop.permute.xlu0 %6998
        %7000 = vrot.lane.b32.xlu0 %v6874, 48
        %v7001 = vpop.permute.xlu0 %7000
        %7002 = vrot.lane.b32.xlu0 %v6875, 48
        %v7003 = vpop.permute.xlu0 %7002
        %7004 = vrot.lane.b32.xlu0 %v6876, 48
        %v7005 = vpop.permute.xlu0 %7004
        %vm7038 = vcmask 523648
        %7039 = vst.msk [vmem:[%s351] sm:$0xff] %vm7038, %v6943
        %7040 = vst.msk [vmem:[%s351 + $0x8] sm:$0xff] %vm7038, %v6945
        %7041 = vst.msk [vmem:[%s351 + $0x10] sm:$0xff] %vm7038, %v6947
        %7042 = vst.msk [vmem:[%s351 + $0x18] sm:$0xff] %vm7038, %v6949
        %7043 = vst.msk [vmem:[%s351 + $0x20] sm:$0xff] %vm7038, %v6951
        %7044 = vst.msk [vmem:[%s351 + $0x28] sm:$0xff] %vm7038, %v6953
        %7045 = vst.msk [vmem:[%s351 + $0x30] sm:$0xff] %vm7038, %v6955
        %7046 = vst.msk [vmem:[%s351 + $0x38] sm:$0xff] %vm7038, %v6957
        %7047 = vst.msk [vmem:[%s351 + $0x40] sm:$0xff] %vm7038, %v6959
        %7048 = vst.msk [vmem:[%s351 + $0x48] sm:$0xff] %vm7038, %v6961
        %7049 = vst.msk [vmem:[%s351 + $0x50] sm:$0xff] %vm7038, %v6963
        %7050 = vst.msk [vmem:[%s351 + $0x58] sm:$0xff] %vm7038, %v6965
        %7051 = vst.msk [vmem:[%s351 + $0x60] sm:$0xff] %vm7038, %v6967
        %7052 = vst.msk [vmem:[%s351 + $0x68] sm:$0xff] %vm7038, %v6969
        %7053 = vst.msk [vmem:[%s351 + $0x70] sm:$0xff] %vm7038, %v6971
        %7054 = vst.msk [vmem:[%s351 + $0x78] sm:$0xff] %vm7038, %v6973
        %7055 = vst.msk [vmem:[%s351 + $0x80] sm:$0xff] %vm7038, %v6975
        %7056 = vst.msk [vmem:[%s351 + $0x88] sm:$0xff] %vm7038, %v6977
        %7057 = vst.msk [vmem:[%s351 + $0x90] sm:$0xff] %vm7038, %v6979
        %7058 = vst.msk [vmem:[%s351 + $0x98] sm:$0xff] %vm7038, %v6981
        %7059 = vst.msk [vmem:[%s351 + $0xa0] sm:$0xff] %vm7038, %v6983
        %7060 = vst.msk [vmem:[%s351 + $0xa8] sm:$0xff] %vm7038, %v6985
        %7061 = vst.msk [vmem:[%s351 + $0xb0] sm:$0xff] %vm7038, %v6987
        %7062 = vst.msk [vmem:[%s351 + $0xb8] sm:$0xff] %vm7038, %v6989
        %7063 = vst.msk [vmem:[%s351 + $0xc0] sm:$0xff] %vm7038, %v6991
        %7064 = vst.msk [vmem:[%s351 + $0xc8] sm:$0xff] %vm7038, %v6993
        %7065 = vst.msk [vmem:[%s351 + $0xd0] sm:$0xff] %vm7038, %v6995
        %7066 = vst.msk [vmem:[%s351 + $0xd8] sm:$0xff] %vm7038, %v6997
        %7067 = vst.msk [vmem:[%s351 + $0xe0] sm:$0xff] %vm7038, %v6999
        %7068 = vst.msk [vmem:[%s351 + $0xe8] sm:$0xff] %vm7038, %v7001
        %7069 = vst.msk [vmem:[%s351 + $0xf0] sm:$0xff] %vm7038, %v7003
        %7070 = vst.msk [vmem:[%s351 + $0xf8] sm:$0xff] %vm7038, %v7005
        %s7071 = smul.u32 32, %s21
        %p7072 = scmp.lt.s32.totalorder %s7071, 63
        %s7073 = scalar_select %p7072, %s7071, 63
        %s7074 = smul.addr %s7073, 8
        %s7075 = scalar_lea.vmem %s9, %s7074
        // Predicated region
        $region61: #{generic_stack_forward.1} parent=55 // pred_check
          %p7076 = pneg %p233
        $region62: #{generic_stack_forward.1} parent=55 // pred_check_branch
          %7078 = sbr.rel (%p7076) target = $region64
        $region63: #{generic_stack_forward.1} parent=55 // pred_region
          %s7079 = smul.u32 32, %s21
        $region64: #{generic_stack_forward.1} parent=55 // pred_fallthru
          _
      $region56: #{generic_stack_forward.1} parent=5 // pred_fallthru
        _
      %p7080 = scmp.le.s32.totalorder 2, %s16
      // Predicated region
      $region65: #{generic_stack_forward.1} parent=5 // pred_check
        %p7081 = pneg %p7080
      $region66: #{generic_stack_forward.1} parent=5 // pred_check_branch
        %7083 = sbr.rel (%p7081) target = $region68
      $region67: #{generic_stack_forward.1} parent=5 // pred_region
        %s7084 = ssub.s32 %s16, 2
        // Predicated region
        $region69: #{generic_stack_forward.1} parent=67 // pred_check
          %p7085 = pneg %p239
        $region70: #{generic_stack_forward.1} parent=67 // pred_check_branch
          %7087 = sbr.rel (%p7085) target = $region72
        $region71: #{generic_stack_forward.1} parent=67 // pred_region
          %s7088 = smul.u32 32, %s22
          %p7089 = scmp.lt.s32.totalorder %s7088, 63
          %s7090 = scalar_select %p7089, %s7088, 63
          %s7091 = smul.addr %s7090, 8
          %s7092 = scalar_lea.vmem %s9, %s7091
        $region72: #{generic_stack_forward.1} parent=67 // pred_fallthru
          _
      $region68: #{generic_stack_forward.1} parent=5 // pred_fallthru
        _
    $region6: #{generic_stack_forward.1} parent=1 // loop_footer
      %s20 = sadd.s32 1, %s16
    $region7: #{generic_stack_forward.1} parent=1 // loop_footer_branch
      %15 = sbr.rel target = $region3
    $region8: #{generic_stack_forward.1} parent=1 // loop_exit
      _
    %7093 = vsyncpa [#allocation3], 1
    %s7094 = scalar_lea.sflag [#allocation3], 1
    %7095 = vsyncpa %s7094, 1

</llo_original>
